<compile_context>
chip_gen: v7x
topology: tpu7x:2x2x1
jax: 0.10.0
libtpu: 0.0.40
codegen_flags: <defaults>
</compile_context>

<pallas_src>
import functools
import math

import jax
import jax.numpy as jnp
from jax.experimental import pallas as pl
from jax.experimental.pallas import tpu as pltpu


def _same_padding(kernel_size):
    # PyTorch padding='same' for stride=1: extra pad goes to the right.
    total = kernel_size - 1
    left = total // 2
    return left, total - left


def _round_up(x, m):
    return ((x + m - 1) // m) * m


# --------------------------------------------------------------------------
# shared conv-tile helper: K accumulating per-tap dots (bf16 in, fp32 out).
# Avoids building the (B, tile_l, K*C_in) im2col patches (lane-concat relayout).
# --------------------------------------------------------------------------
def _conv_tile(xm_ref, xh_ref, w_ref, *, kernel_size, tile_l):
    """xm_ref: (B, tile_l, C_in) main tile, xh_ref: (B, t_halo, C_in) right halo,
    w_ref: (K, C_in, C_out).  Returns (B, tile_l, C_out) float32."""
    x = jnp.concatenate([xm_ref[...], xh_ref[...]], axis=1)   # (B, tile_l+halo, C_in)
    acc = None
    for k in range(kernel_size):
        xk = x[:, k:k + tile_l, :]
        d = jax.lax.dot_general(
            xk, w_ref[k],
            dimension_numbers=(((2,), (0,)), ((), ())),
            preferred_element_type=jnp.float32)               # (B, tile_l, C_out)
        acc = d if acc is None else acc + d
    return acc


# --------------------------------------------------------------------------
# pass 1: conv + per-channel sum / sum-of-squares (BatchNorm batch statistics)
# --------------------------------------------------------------------------
def _conv_stats_kernel(xm_ref, xh_ref, w_ref, sum_ref, sq_ref, *,
                       kernel_size, tile_l, l_conv, tiles_per_core, tail_tile):
    c = pl.program_id(0)          # core-split index ("parallel")
    i = pl.program_id(1)          # tile index within this core ("arbitrary")

    @pl.when(i == 0)
    def _():
        sum_ref[...] = jnp.zeros_like(sum_ref)
        sq_ref[...] = jnp.zeros_like(sq_ref)

    conv = _conv_tile(xm_ref, xh_ref, w_ref,
                      kernel_size=kernel_size, tile_l=tile_l)

    def _accum(v):
        # All 8 rows of the (1, 8, C_out) accumulator carry the same value; the
        # 8-row shape keeps the output block sublane-aligned.
        sum_ref[...] += jnp.sum(v, axis=(0, 1), keepdims=True)
        sq_ref[...] += jnp.sum(v * v, axis=(0, 1), keepdims=True)

    if tail_tile is None:
        _accum(conv)
    else:
        tile_idx = c * tiles_per_core + i

        # Tiles fully inside the sequence (and the all-zero padding tiles of an
        # odd core split, which contribute exactly zero) take the cheap path;
        # only the partial tail tile pays the iota/where masking.
        @pl.when(tile_idx != tail_tile)
        def _():
            _accum(conv)

        @pl.when(tile_idx == tail_tile)
        def _():
            pos = (jax.lax.broadcasted_iota(jnp.int32, conv.shape, 1)
                   + tile_idx * tile_l)
            _accum(jnp.where(pos < l_conv, conv, 0.0))


# --------------------------------------------------------------------------
# pass 2: conv + folded BatchNorm + ReLU + MaxPool, lane-dense store per tile
# --------------------------------------------------------------------------
def _norm_pool_kernel(xm_ref, xh_ref, w_ref, scale_ref, shift_ref, out_ref, y_ref,
                      *, kernel_size, tile_l, pool_size, pool_stride, pack, g_tile):
    conv = _conv_tile(xm_ref, xh_ref, w_ref,
                      kernel_size=kernel_size, tile_l=tile_l)
    # BN folded into (scale, shift) outside the kernel, then ReLU.
    # TODO(synk): y_ref scratch is kept because the pooling needs sublane-
    # strided reads; value-level strided slices / in-kernel reshape would let
    # this round trip be removed entirely.
    y_ref[...] = jnp.maximum(conv * scale_ref[...] + shift_ref[...], 0.0)

    # Vectorized max-pool + lane-dense repack: `pack` consecutive pooled
    # positions (each C_out channels wide) are concatenated along lanes so the
    # output row is a dense multiple of 128 lanes -> unmasked vst + unpadded
    # HBM image for the intermediate activation.
    step = pack * pool_stride
    pieces = []
    for j in range(pack):
        p = y_ref[:, pl.ds(j * pool_stride, g_tile, stride=step), :]
        for s in range(1, pool_size):
            p = jnp.maximum(
                p, y_ref[:, pl.ds(j * pool_stride + s, g_tile, stride=step), :])
        pieces.append(p)
    packed = pieces[0] if pack == 1 else jnp.concatenate(pieces, axis=-1)
    out_ref[...] = packed.astype(out_ref.dtype)
    # TODO(synk): Dropout is stochastic in training mode; identity here.


# --------------------------------------------------------------------------
# one conv block = 2 tiled pallas_calls
# --------------------------------------------------------------------------
def conv_block(x, w, gamma, beta, *, n_strides, pool_size, pool_strides,
               out_dtype=jnp.float32, max_tile_l=2048, eps=1e-5):
    """x: (B, L, C_in), w: (K, C_in, C_out), gamma/beta: (C_out,)."""
    assert n_strides == 1, "stride-1 'same'-padding conv path"
    # TODO(synk): pool windows that cross tile boundaries (pool_size != stride)
    # would need a pooling halo; the module config uses pool_size == stride.
    assert pool_size == pool_strides

    B, L, C_in = x.shape
    K, _, C_out = w.shape
    ps = pool_size

    left, _right = _same_padding(K)
    t_halo = _round_up(max(K - 1, 1), 16)         # bf16 packs 16 sublanes per vreg

    # lane-dense packing factor: `pack` pooled positions per 128-lane output row
    pack = 128 // C_out if (C_out <= 128 and 128 % C_out == 0) else 1

    # tile_l: multiple of 8*ps*pack (packed pooled tile stays sublane-aligned)
    # and of t_halo; capped by a VMEM budget and max_tile_l.
    unit = math.lcm(8 * ps * pack, t_halo)
    vmem_budget = 24 * 1024 * 1024
    per_l = B * 128 * (2 * 2 + 4 * 4)   # bf16 x double-buffers + fp32 temps (lane-padded)
    cap = max(unit, (vmem_budget // per_l) // unit * unit)
    cap = min(cap, max(unit, (max_tile_l // unit) * unit))
    tile_l = min(_round_up(L, unit), cap)

    n_tiles = pl.cdiv(L, tile_l)
    tile_pool = tile_l // ps
    g_tile = tile_pool // pack
    l_conv = L                                     # 'same' padding, stride 1
    l_pool = (l_conv - pool_size) // pool_strides + 1
    tail_tile = (n_tiles - 1) if (n_tiles * tile_l != l_conv) else None

    # Split pass-1 stats across 2 cores (v7x megacore); harmless on v5e/v6e.
    n_split = 2 if n_tiles >= 2 else 1
    tiles_per_core = pl.cdiv(n_tiles, n_split)

    # Zero-padded bf16 input covering every tile (incl. split padding) + halo.
    l_total = n_split * tiles_per_core * tile_l + t_halo
    assert l_total >= L + (K - 1)
    x_pad = jnp.pad(x.astype(jnp.bfloat16),
                    ((0, 0), (left, l_total - L - left), (0, 0)))
    # TODO(synk): for blocks >= 1 this pad is an extra HBM copy; it could be
    # folded into the previous block's output index_map (pre-padded buffer).
    wk = w.astype(jnp.bfloat16)                    # (K, C_in, C_out)

    halo_step = tile_l // t_halo
    vmem_limit = 48 * 1024 * 1024                  # safe on v5e/v6e (128 MiB) and v7x (64 MiB)

    # ---------------- pass 1: batch-norm statistics ----------------
    xm1 = pl.BlockSpec((B, tile_l, C_in),
                       lambda c, i: (0, c * tiles_per_core + i, 0))
    xh1 = pl.BlockSpec((B, t_halo, C_in),
                       lambda c, i: (0, (c * tiles_per_core + i + 1) * halo_step, 0))
    w1 = pl.BlockSpec((K, C_in, C_out), lambda c, i: (0, 0, 0))
    st1 = pl.BlockSpec((1, 8, C_out), lambda c, i: (c, 0, 0))

    stats_kernel = functools.partial(
        _conv_stats_kernel, kernel_size=K, tile_l=tile_l, l_conv=l_conv,
        tiles_per_core=tiles_per_core, tail_tile=tail_tile)
    s, q = pl.pallas_call(
        stats_kernel,
        grid_spec=pltpu.PrefetchScalarGridSpec(
            num_scalar_prefetch=0,
            grid=(n_split, tiles_per_core),
            in_specs=[xm1, xh1, w1],
            out_specs=[st1, st1]),
        out_shape=[jax.ShapeDtypeStruct((n_split, 8, C_out), jnp.float32)] * 2,
        compiler_params=pltpu.CompilerParams(
            dimension_semantics=("parallel", "arbitrary"),
            vmem_limit_bytes=vmem_limit),
    )(x_pad, x_pad, wk)

    # Fold BN (training-mode batch stats, biased variance) into scale/shift.
    s = jnp.sum(s[:, 0, :], axis=0)
    q = jnp.sum(q[:, 0, :], axis=0)
    cnt = jnp.float32(B * l_conv)
    mean = s / cnt
    # TODO(synk): E[x^2]-E[x]^2 can cancel when |mean| >> std; a centered
    # (pilot-mean) accumulation would be more robust for extreme activations.
    var = jnp.maximum(q / cnt - mean * mean, 0.0)
    inv = jax.lax.rsqrt(var + eps)
    g32 = gamma.astype(jnp.float32)
    scale = (g32 * inv).reshape(1, C_out)
    shift = (beta.astype(jnp.float32) - mean * g32 * inv).reshape(1, C_out)
    # TODO(synk): BatchNorm running_mean/running_var buffers are not updated.

    # ---------------- pass 2: normalize + ReLU + MaxPool ----------------
    xm2 = pl.BlockSpec((B, tile_l, C_in), lambda i: (0, i, 0))
    xh2 = pl.BlockSpec((B, t_halo, C_in), lambda i: (0, (i + 1) * halo_step, 0))
    w2 = pl.BlockSpec((K, C_in, C_out), lambda i: (0, 0, 0))
    v2 = pl.BlockSpec((1, C_out), lambda i: (0, 0))
    o2 = pl.BlockSpec((B, g_tile, pack * C_out), lambda i: (0, i, 0))

    pool_kernel = functools.partial(
        _norm_pool_kernel, kernel_size=K, tile_l=tile_l, pool_size=pool_size,
        pool_stride=pool_strides, pack=pack, g_tile=g_tile)
    out = pl.pallas_call(
        pool_kernel,
        grid_spec=pltpu.PrefetchScalarGridSpec(
            num_scalar_prefetch=0,
            grid=(n_tiles,),
            in_specs=[xm2, xh2, w2, v2, v2],
            out_specs=o2,
            scratch_shapes=[pltpu.VMEM((B, tile_l, C_out), jnp.float32)]),
        out_shape=jax.ShapeDtypeStruct((B, n_tiles * g_tile, pack * C_out), out_dtype),
        compiler_params=pltpu.CompilerParams(
            dimension_semantics=("parallel",),   # tiles independent -> 2 TCs on v7x
            vmem_limit_bytes=vmem_limit),
    )(x_pad, x_pad, wk, scale, shift)

    # lane-dense (pack) slab -> (B, L, C_out) (row-major compatible), crop padding
    out = out.reshape(B, n_tiles * tile_pool, C_out)[:, :l_pool, :]
    return out


def conv_tokenizer(x, params, weights):
    """Forward of ConvTokenizer: (B, seq_len, n_channels) -> (B, token_len, d_model)."""
    t = x
    n = len(params["n_filters"])
    for i in range(n):
        w, gamma, beta = weights[i]
        t = conv_block(
            t, w, gamma, beta,
            n_strides=params["n_strides"][i],
            pool_size=params["pool_sizes"][i],
            pool_strides=params["pool_strides"][i],
            out_dtype=(jnp.float32 if i == n - 1 else jnp.bfloat16))
    return t


# ---------------------------- pure-JAX reference ----------------------------
def _ref_block(x, w, gamma, beta, pool_size, pool_strides, out_dtype, eps=1e-5):
    K = w.shape[0]
    left, right = _same_padding(K)
    xp = jnp.pad(x.astype(jnp.bfloat16), ((0, 0), (left, right), (0, 0)))
    conv = jax.lax.conv_general_dilated(
        xp, w.astype(jnp.bfloat16), window_strides=(1,), padding="VALID",
        dimension_numbers=("NWC", "WIO", "NWC"),
        preferred_element_type=jnp.float32)
    mean = conv.mean(axis=(0, 1))
    var = ((conv - mean) ** 2).mean(axis=(0, 1))
    y = (conv - mean) * jax.lax.rsqrt(var + eps) * gamma + beta
    y = jnp.maximum(y, 0.0)
    l_pool = (y.shape[1] - pool_size) // pool_strides + 1
    pooled = jnp.stack(
        [y[:, t * pool_strides: t * pool_strides + pool_size, :].max(axis=1)
         for t in range(l_pool)], axis=1)
    return pooled.astype(out_dtype)


def _ref_tokenizer(x, params, weights):
    t = x
    n = len(params["n_filters"])
    for i in range(n):
        w, gamma, beta = weights[i]
        t = _ref_block(t, w, gamma, beta,
                       params["pool_sizes"][i], params["pool_strides"][i],
                       jnp.float32 if i == n - 1 else jnp.bfloat16)
    return t


if __name__ == "__main__":
    # Synthetic ConvTokenizer params (shapes implied by the module's __init__).
    params = {
        "n_channels": 4,
        "n_filters": [16, 32],
        "kernel_sizes": [8, 7],
        "n_strides": [1, 1],
        "pool_sizes": [2, 2],
        "pool_strides": [2, 2],
        "dropout": [0.1, 0.1],
    }

    key = jax.random.PRNGKey(0)
    kx, *kws = jax.random.split(key, 1 + len(params["n_filters"]))

    B, L = 2, 16
    x = jax.random.normal(kx, (B, L, params["n_channels"]), dtype=jnp.float32)

    # Deterministic init: conv weight (K, C_in, C_out), BN gamma=1 / beta=0
    # (as in the module's _init_weight).
    weights = []
    c_in = params["n_channels"]
    for i, c_out in enumerate(params["n_filters"]):
        k = params["kernel_sizes"][i]
        w = 0.1 * jax.random.normal(kws[i], (k, c_in, c_out), dtype=jnp.float32)
        gamma = jnp.ones((c_out,), jnp.float32)
        beta = jnp.zeros((c_out,), jnp.float32)
        weights.append((w, gamma, beta))
        c_in = c_out

    run = jax.jit(lambda xx, ww: conv_tokenizer(xx, params, ww))
    out = jax.block_until_ready(run(x, weights))
    ref = jax.block_until_ready(_ref_tokenizer(x, params, weights))

    assert out.shape == (B, 4, params["n_filters"][-1]), out.shape
    assert out.dtype == jnp.float32, out.dtype
    err = float(jnp.max(jnp.abs(out - ref)))
    assert err < 2e-3, err

    print("KERNEL_OK")
</pallas_src>

<mosaic_0001>
module attributes {stable_mosaic.version = 11 : i64} {
  func.func @_norm_pool_kernel(%arg0: i32, %arg1: memref<2x128x4xbf16, #tpu.memory_space<vmem>>, %arg2: memref<2x16x4xbf16, #tpu.memory_space<vmem>>, %arg3: memref<8x4x16xbf16, #tpu.memory_space<vmem>>, %arg4: memref<1x16xf32, #tpu.memory_space<vmem>>, %arg5: memref<1x16xf32, #tpu.memory_space<vmem>>, %arg6: memref<2x8x128xbf16, #tpu.memory_space<vmem>>, %arg7: memref<2x128x16xf32, #tpu.memory_space<vmem>>) attributes {dimension_semantics = [#tpu.dimension_semantics<parallel>], iteration_bounds = array<i64: 1>, scalar_prefetch = 0 : i64, scratch_operands = 1 : i64, tpu.core_type = #tpu.core_type<tc>, window_params = [{transform_indices = @transform_0, window_bounds = array<i64: 2, 128, 4>}, {transform_indices = @transform_1, window_bounds = array<i64: 2, 16, 4>}, {pipeline_mode = #tpu.pipeline_mode<synchronous>, transform_indices = @transform_2, window_bounds = array<i64: 8, 4, 16>}, {pipeline_mode = #tpu.pipeline_mode<synchronous>, transform_indices = @transform_3, window_bounds = array<i64: 1, 16>}, {pipeline_mode = #tpu.pipeline_mode<synchronous>, transform_indices = @transform_4, window_bounds = array<i64: 1, 16>}, {transform_indices = @transform_5, window_bounds = array<i64: 2, 8, 128>}]} {
    %c0 = arith.constant 0 : index
    %c0_0 = arith.constant 0 : index
    %c0_1 = arith.constant 0 : index
    %0 = vector.load %arg1[%c0, %c0_0, %c0_1] : memref<2x128x4xbf16, #tpu.memory_space<vmem>>, vector<2x128x4xbf16>
    %c0_2 = arith.constant 0 : index
    %c0_3 = arith.constant 0 : index
    %c0_4 = arith.constant 0 : index
    %1 = vector.load %arg2[%c0_2, %c0_3, %c0_4] : memref<2x16x4xbf16, #tpu.memory_space<vmem>>, vector<2x16x4xbf16>
    %2 = tpu.concatenate %0, %1 in 1 : vector<2x128x4xbf16>, vector<2x16x4xbf16> -> vector<2x144x4xbf16>
    %3 = vector.extract_strided_slice %2 {offsets = [0, 0, 0], sizes = [2, 128, 4], strides = [1, 1, 1]} : vector<2x144x4xbf16> to vector<2x128x4xbf16>
    %c0_5 = arith.constant 0 : index
    %c0_6 = arith.constant 0 : index
    %c0_7 = arith.constant 0 : index
    %4 = vector.load %arg3[%c0_5, %c0_6, %c0_7] : memref<8x4x16xbf16, #tpu.memory_space<vmem>>, vector<1x4x16xbf16>
    %5 = vector.shape_cast %4 : vector<1x4x16xbf16> to vector<4x16xbf16>
    %cst = arith.constant dense<0.000000e+00> : vector<2x128x16xf32>
    %6 = tpu.matmul %3, %5, %cst {dimension_numbers = #tpu.dot_dimension_numbers<[2], [0], [0, 1], [1], [0, 0, 0, 1, 1, 1], [], []>} : vector<2x128x4xbf16>, vector<4x16xbf16>, vector<2x128x16xf32> -> vector<2x128x16xf32>
    %7 = vector.extract_strided_slice %2 {offsets = [0, 1, 0], sizes = [2, 128, 4], strides = [1, 1, 1]} : vector<2x144x4xbf16> to vector<2x128x4xbf16>
    %c1 = arith.constant 1 : index
    %c0_8 = arith.constant 0 : index
    %c0_9 = arith.constant 0 : index
    %8 = vector.load %arg3[%c1, %c0_8, %c0_9] : memref<8x4x16xbf16, #tpu.memory_space<vmem>>, vector<1x4x16xbf16>
    %9 = vector.shape_cast %8 : vector<1x4x16xbf16> to vector<4x16xbf16>
    %cst_10 = arith.constant dense<0.000000e+00> : vector<2x128x16xf32>
    %10 = tpu.matmul %7, %9, %cst_10 {dimension_numbers = #tpu.dot_dimension_numbers<[2], [0], [0, 1], [1], [0, 0, 0, 1, 1, 1], [], []>} : vector<2x128x4xbf16>, vector<4x16xbf16>, vector<2x128x16xf32> -> vector<2x128x16xf32>
    %11 = arith.addf %6, %10 : vector<2x128x16xf32>
    %12 = vector.extract_strided_slice %2 {offsets = [0, 2, 0], sizes = [2, 128, 4], strides = [1, 1, 1]} : vector<2x144x4xbf16> to vector<2x128x4xbf16>
    %c2 = arith.constant 2 : index
    %c0_11 = arith.constant 0 : index
    %c0_12 = arith.constant 0 : index
    %13 = vector.load %arg3[%c2, %c0_11, %c0_12] : memref<8x4x16xbf16, #tpu.memory_space<vmem>>, vector<1x4x16xbf16>
    %14 = vector.shape_cast %13 : vector<1x4x16xbf16> to vector<4x16xbf16>
    %cst_13 = arith.constant dense<0.000000e+00> : vector<2x128x16xf32>
    %15 = tpu.matmul %12, %14, %cst_13 {dimension_numbers = #tpu.dot_dimension_numbers<[2], [0], [0, 1], [1], [0, 0, 0, 1, 1, 1], [], []>} : vector<2x128x4xbf16>, vector<4x16xbf16>, vector<2x128x16xf32> -> vector<2x128x16xf32>
    %16 = arith.addf %11, %15 : vector<2x128x16xf32>
    %17 = vector.extract_strided_slice %2 {offsets = [0, 3, 0], sizes = [2, 128, 4], strides = [1, 1, 1]} : vector<2x144x4xbf16> to vector<2x128x4xbf16>
    %c3 = arith.constant 3 : index
    %c0_14 = arith.constant 0 : index
    %c0_15 = arith.constant 0 : index
    %18 = vector.load %arg3[%c3, %c0_14, %c0_15] : memref<8x4x16xbf16, #tpu.memory_space<vmem>>, vector<1x4x16xbf16>
    %19 = vector.shape_cast %18 : vector<1x4x16xbf16> to vector<4x16xbf16>
    %cst_16 = arith.constant dense<0.000000e+00> : vector<2x128x16xf32>
    %20 = tpu.matmul %17, %19, %cst_16 {dimension_numbers = #tpu.dot_dimension_numbers<[2], [0], [0, 1], [1], [0, 0, 0, 1, 1, 1], [], []>} : vector<2x128x4xbf16>, vector<4x16xbf16>, vector<2x128x16xf32> -> vector<2x128x16xf32>
    %21 = arith.addf %16, %20 : vector<2x128x16xf32>
    %22 = vector.extract_strided_slice %2 {offsets = [0, 4, 0], sizes = [2, 128, 4], strides = [1, 1, 1]} : vector<2x144x4xbf16> to vector<2x128x4xbf16>
    %c4 = arith.constant 4 : index
    %c0_17 = arith.constant 0 : index
    %c0_18 = arith.constant 0 : index
    %23 = vector.load %arg3[%c4, %c0_17, %c0_18] : memref<8x4x16xbf16, #tpu.memory_space<vmem>>, vector<1x4x16xbf16>
    %24 = vector.shape_cast %23 : vector<1x4x16xbf16> to vector<4x16xbf16>
    %cst_19 = arith.constant dense<0.000000e+00> : vector<2x128x16xf32>
    %25 = tpu.matmul %22, %24, %cst_19 {dimension_numbers = #tpu.dot_dimension_numbers<[2], [0], [0, 1], [1], [0, 0, 0, 1, 1, 1], [], []>} : vector<2x128x4xbf16>, vector<4x16xbf16>, vector<2x128x16xf32> -> vector<2x128x16xf32>
    %26 = arith.addf %21, %25 : vector<2x128x16xf32>
    %27 = vector.extract_strided_slice %2 {offsets = [0, 5, 0], sizes = [2, 128, 4], strides = [1, 1, 1]} : vector<2x144x4xbf16> to vector<2x128x4xbf16>
    %c5 = arith.constant 5 : index
    %c0_20 = arith.constant 0 : index
    %c0_21 = arith.constant 0 : index
    %28 = vector.load %arg3[%c5, %c0_20, %c0_21] : memref<8x4x16xbf16, #tpu.memory_space<vmem>>, vector<1x4x16xbf16>
    %29 = vector.shape_cast %28 : vector<1x4x16xbf16> to vector<4x16xbf16>
    %cst_22 = arith.constant dense<0.000000e+00> : vector<2x128x16xf32>
    %30 = tpu.matmul %27, %29, %cst_22 {dimension_numbers = #tpu.dot_dimension_numbers<[2], [0], [0, 1], [1], [0, 0, 0, 1, 1, 1], [], []>} : vector<2x128x4xbf16>, vector<4x16xbf16>, vector<2x128x16xf32> -> vector<2x128x16xf32>
    %31 = arith.addf %26, %30 : vector<2x128x16xf32>
    %32 = vector.extract_strided_slice %2 {offsets = [0, 6, 0], sizes = [2, 128, 4], strides = [1, 1, 1]} : vector<2x144x4xbf16> to vector<2x128x4xbf16>
    %c6 = arith.constant 6 : index
    %c0_23 = arith.constant 0 : index
    %c0_24 = arith.constant 0 : index
    %33 = vector.load %arg3[%c6, %c0_23, %c0_24] : memref<8x4x16xbf16, #tpu.memory_space<vmem>>, vector<1x4x16xbf16>
    %34 = vector.shape_cast %33 : vector<1x4x16xbf16> to vector<4x16xbf16>
    %cst_25 = arith.constant dense<0.000000e+00> : vector<2x128x16xf32>
    %35 = tpu.matmul %32, %34, %cst_25 {dimension_numbers = #tpu.dot_dimension_numbers<[2], [0], [0, 1], [1], [0, 0, 0, 1, 1, 1], [], []>} : vector<2x128x4xbf16>, vector<4x16xbf16>, vector<2x128x16xf32> -> vector<2x128x16xf32>
    %36 = arith.addf %31, %35 : vector<2x128x16xf32>
    %37 = vector.extract_strided_slice %2 {offsets = [0, 7, 0], sizes = [2, 128, 4], strides = [1, 1, 1]} : vector<2x144x4xbf16> to vector<2x128x4xbf16>
    %c7 = arith.constant 7 : index
    %c0_26 = arith.constant 0 : index
    %c0_27 = arith.constant 0 : index
    %38 = vector.load %arg3[%c7, %c0_26, %c0_27] : memref<8x4x16xbf16, #tpu.memory_space<vmem>>, vector<1x4x16xbf16>
    %39 = vector.shape_cast %38 : vector<1x4x16xbf16> to vector<4x16xbf16>
    %cst_28 = arith.constant dense<0.000000e+00> : vector<2x128x16xf32>
    %40 = tpu.matmul %37, %39, %cst_28 {dimension_numbers = #tpu.dot_dimension_numbers<[2], [0], [0, 1], [1], [0, 0, 0, 1, 1, 1], [], []>} : vector<2x128x4xbf16>, vector<4x16xbf16>, vector<2x128x16xf32> -> vector<2x128x16xf32>
    %41 = arith.addf %36, %40 : vector<2x128x16xf32>
    %c0_29 = arith.constant 0 : index
    %c0_30 = arith.constant 0 : index
    %42 = vector.load %arg4[%c0_29, %c0_30] : memref<1x16xf32, #tpu.memory_space<vmem>>, vector<1x16xf32>
    %43 = vector.shape_cast %42 : vector<1x16xf32> to vector<1x1x16xf32>
    %44 = vector.broadcast %43 : vector<1x1x16xf32> to vector<2x128x16xf32>
    %45 = arith.mulf %41, %44 : vector<2x128x16xf32>
    %c0_31 = arith.constant 0 : index
    %c0_32 = arith.constant 0 : index
    %46 = vector.load %arg5[%c0_31, %c0_32] : memref<1x16xf32, #tpu.memory_space<vmem>>, vector<1x16xf32>
    %47 = vector.shape_cast %46 : vector<1x16xf32> to vector<1x1x16xf32>
    %48 = vector.broadcast %47 : vector<1x1x16xf32> to vector<2x128x16xf32>
    %49 = arith.addf %45, %48 : vector<2x128x16xf32>
    %cst_33 = arith.constant 0.000000e+00 : f32
    %50 = vector.broadcast %cst_33 : f32 to vector<2x128x16xf32>
    %51 = arith.maximumf %49, %50 : vector<2x128x16xf32>
    %c0_34 = arith.constant 0 : index
    %c0_35 = arith.constant 0 : index
    %c0_36 = arith.constant 0 : index
    %52 = vector.load %arg7[%c0_34, %c0_35, %c0_36] : memref<2x128x16xf32, #tpu.memory_space<vmem>>, vector<2x128x16xf32>
    tpu.vector_store %arg7[%c0_34, %c0_35, %c0_36], %51 {strides = array<i32>} : memref<2x128x16xf32, #tpu.memory_space<vmem>>, vector<2x128x16xf32>,
    %c0_37 = arith.constant 0 : index
    %c0_38 = arith.constant 0 : index
    %c0_39 = arith.constant 0 : index
    %53 = tpu.strided_load %arg7[%c0_37, %c0_38, %c0_39] {strides = array<i32: 1, 16, 1>} : memref<2x128x16xf32, #tpu.memory_space<vmem>>, vector<2x8x16xf32>
    %c0_40 = arith.constant 0 : index
    %c1_41 = arith.constant 1 : index
    %c0_42 = arith.constant 0 : index
    %54 = tpu.strided_load %arg7[%c0_40, %c1_41, %c0_42] {strides = array<i32: 1, 16, 1>} : memref<2x128x16xf32, #tpu.memory_space<vmem>>, vector<2x8x16xf32>
    %55 = arith.maximumf %53, %54 : vector<2x8x16xf32>
    %c0_43 = arith.constant 0 : index
    %c2_44 = arith.constant 2 : index
    %c0_45 = arith.constant 0 : index
    %56 = tpu.strided_load %arg7[%c0_43, %c2_44, %c0_45] {strides = array<i32: 1, 16, 1>} : memref<2x128x16xf32, #tpu.memory_space<vmem>>, vector<2x8x16xf32>
    %c0_46 = arith.constant 0 : index
    %c3_47 = arith.constant 3 : index
    %c0_48 = arith.constant 0 : index
    %57 = tpu.strided_load %arg7[%c0_46, %c3_47, %c0_48] {strides = array<i32: 1, 16, 1>} : memref<2x128x16xf32, #tpu.memory_space<vmem>>, vector<2x8x16xf32>
    %58 = arith.maximumf %56, %57 : vector<2x8x16xf32>
    %c0_49 = arith.constant 0 : index
    %c4_50 = arith.constant 4 : index
    %c0_51 = arith.constant 0 : index
    %59 = tpu.strided_load %arg7[%c0_49, %c4_50, %c0_51] {strides = array<i32: 1, 16, 1>} : memref<2x128x16xf32, #tpu.memory_space<vmem>>, vector<2x8x16xf32>
    %c0_52 = arith.constant 0 : index
    %c5_53 = arith.constant 5 : index
    %c0_54 = arith.constant 0 : index
    %60 = tpu.strided_load %arg7[%c0_52, %c5_53, %c0_54] {strides = array<i32: 1, 16, 1>} : memref<2x128x16xf32, #tpu.memory_space<vmem>>, vector<2x8x16xf32>
    %61 = arith.maximumf %59, %60 : vector<2x8x16xf32>
    %c0_55 = arith.constant 0 : index
    %c6_56 = arith.constant 6 : index
    %c0_57 = arith.constant 0 : index
    %62 = tpu.strided_load %arg7[%c0_55, %c6_56, %c0_57] {strides = array<i32: 1, 16, 1>} : memref<2x128x16xf32, #tpu.memory_space<vmem>>, vector<2x8x16xf32>
    %c0_58 = arith.constant 0 : index
    %c7_59 = arith.constant 7 : index
    %c0_60 = arith.constant 0 : index
    %63 = tpu.strided_load %arg7[%c0_58, %c7_59, %c0_60] {strides = array<i32: 1, 16, 1>} : memref<2x128x16xf32, #tpu.memory_space<vmem>>, vector<2x8x16xf32>
    %64 = arith.maximumf %62, %63 : vector<2x8x16xf32>
    %c0_61 = arith.constant 0 : index
    %c8 = arith.constant 8 : index
    %c0_62 = arith.constant 0 : index
    %65 = tpu.strided_load %arg7[%c0_61, %c8, %c0_62] {strides = array<i32: 1, 16, 1>} : memref<2x128x16xf32, #tpu.memory_space<vmem>>, vector<2x8x16xf32>
    %c0_63 = arith.constant 0 : index
    %c9 = arith.constant 9 : index
    %c0_64 = arith.constant 0 : index
    %66 = tpu.strided_load %arg7[%c0_63, %c9, %c0_64] {strides = array<i32: 1, 16, 1>} : memref<2x128x16xf32, #tpu.memory_space<vmem>>, vector<2x8x16xf32>
    %67 = arith.maximumf %65, %66 : vector<2x8x16xf32>
    %c0_65 = arith.constant 0 : index
    %c10 = arith.constant 10 : index
    %c0_66 = arith.constant 0 : index
    %68 = tpu.strided_load %arg7[%c0_65, %c10, %c0_66] {strides = array<i32: 1, 16, 1>} : memref<2x128x16xf32, #tpu.memory_space<vmem>>, vector<2x8x16xf32>
    %c0_67 = arith.constant 0 : index
    %c11 = arith.constant 11 : index
    %c0_68 = arith.constant 0 : index
    %69 = tpu.strided_load %arg7[%c0_67, %c11, %c0_68] {strides = array<i32: 1, 16, 1>} : memref<2x128x16xf32, #tpu.memory_space<vmem>>, vector<2x8x16xf32>
    %70 = arith.maximumf %68, %69 : vector<2x8x16xf32>
    %c0_69 = arith.constant 0 : index
    %c12 = arith.constant 12 : index
    %c0_70 = arith.constant 0 : index
    %71 = tpu.strided_load %arg7[%c0_69, %c12, %c0_70] {strides = array<i32: 1, 16, 1>} : memref<2x128x16xf32, #tpu.memory_space<vmem>>, vector<2x8x16xf32>
    %c0_71 = arith.constant 0 : index
    %c13 = arith.constant 13 : index
    %c0_72 = arith.constant 0 : index
    %72 = tpu.strided_load %arg7[%c0_71, %c13, %c0_72] {strides = array<i32: 1, 16, 1>} : memref<2x128x16xf32, #tpu.memory_space<vmem>>, vector<2x8x16xf32>
    %73 = arith.maximumf %71, %72 : vector<2x8x16xf32>
    %c0_73 = arith.constant 0 : index
    %c14 = arith.constant 14 : index
    %c0_74 = arith.constant 0 : index
    %74 = tpu.strided_load %arg7[%c0_73, %c14, %c0_74] {strides = array<i32: 1, 16, 1>} : memref<2x128x16xf32, #tpu.memory_space<vmem>>, vector<2x8x16xf32>
    %c0_75 = arith.constant 0 : index
    %c15 = arith.constant 15 : index
    %c0_76 = arith.constant 0 : index
    %75 = tpu.strided_load %arg7[%c0_75, %c15, %c0_76] {strides = array<i32: 1, 16, 1>} : memref<2x128x16xf32, #tpu.memory_space<vmem>>, vector<2x8x16xf32>
    %76 = arith.maximumf %74, %75 : vector<2x8x16xf32>
    %77 = tpu.concatenate %55, %58, %61, %64, %67, %70, %73, %76 in 2 : vector<2x8x16xf32>, vector<2x8x16xf32>, vector<2x8x16xf32>, vector<2x8x16xf32>, vector<2x8x16xf32>, vector<2x8x16xf32>, vector<2x8x16xf32>, vector<2x8x16xf32> -> vector<2x8x128xf32>
    %78 = arith.truncf %77 : vector<2x8x128xf32> to vector<2x8x128xbf16>
    %c0_77 = arith.constant 0 : index
    %c0_78 = arith.constant 0 : index
    %c0_79 = arith.constant 0 : index
    %79 = vector.load %arg6[%c0_77, %c0_78, %c0_79] : memref<2x8x128xbf16, #tpu.memory_space<vmem>>, vector<2x8x128xbf16>
    tpu.vector_store %arg6[%c0_77, %c0_78, %c0_79], %78 {strides = array<i32>} : memref<2x8x128xbf16, #tpu.memory_space<vmem>>, vector<2x8x128xbf16>,
    return
  }
  func.func @transform_0(%arg0: i32) -> (i32, i32, i32) {
    %c0_i32 = arith.constant 0 : i32
    %c0_i32_0 = arith.constant 0 : i32
    %c0_i32_1 = arith.constant 0 : i32
    return %c0_i32, %arg0, %c0_i32_0 : i32, i32, i32
  }
  func.func @transform_1(%arg0: i32) -> (i32, i32, i32) {
    %c1_i32 = arith.constant 1 : i32
    %0 = arith.addi %arg0, %c1_i32 : i32
    %c8_i32 = arith.constant 8 : i32
    %1 = arith.muli %0, %c8_i32 : i32
    %c0_i32 = arith.constant 0 : i32
    %c0_i32_0 = arith.constant 0 : i32
    %c0_i32_1 = arith.constant 0 : i32
    return %c0_i32, %1, %c0_i32_0 : i32, i32, i32
  }
  func.func @transform_2(%arg0: i32) -> (i32, i32, i32) {
    %c0_i32 = arith.constant 0 : i32
    %c0_i32_0 = arith.constant 0 : i32
    %c0_i32_1 = arith.constant 0 : i32
    %c0_i32_2 = arith.constant 0 : i32
    return %c0_i32, %c0_i32_0, %c0_i32_1 : i32, i32, i32
  }
  func.func @transform_3(%arg0: i32) -> (i32, i32) {
    %c0_i32 = arith.constant 0 : i32
    %c0_i32_0 = arith.constant 0 : i32
    %c0_i32_1 = arith.constant 0 : i32
    return %c0_i32, %c0_i32_0 : i32, i32
  }
  func.func @transform_4(%arg0: i32) -> (i32, i32) {
    %c0_i32 = arith.constant 0 : i32
    %c0_i32_0 = arith.constant 0 : i32
    %c0_i32_1 = arith.constant 0 : i32
    return %c0_i32, %c0_i32_0 : i32, i32
  }
  func.func @transform_5(%arg0: i32) -> (i32, i32, i32) {
    %c0_i32 = arith.constant 0 : i32
    %c0_i32_0 = arith.constant 0 : i32
    %c0_i32_1 = arith.constant 0 : i32
    return %c0_i32, %arg0, %c0_i32_0 : i32, i32, i32
  }
}

module attributes {stable_mosaic.version = 11 : i64} {
  func.func @_conv_stats_kernel(%arg0: i32, %arg1: i32, %arg2: memref<2x128x4xbf16, #tpu.memory_space<vmem>>, %arg3: memref<2x16x4xbf16, #tpu.memory_space<vmem>>, %arg4: memref<8x4x16xbf16, #tpu.memory_space<vmem>>, %arg5: memref<1x8x16xf32, #tpu.memory_space<vmem>>, %arg6: memref<1x8x16xf32, #tpu.memory_space<vmem>>) attributes {dimension_semantics = [#tpu.dimension_semantics<parallel>, #tpu.dimension_semantics<arbitrary>], iteration_bounds = array<i64: 1, 1>, scalar_prefetch = 0 : i64, scratch_operands = 0 : i64, tpu.core_type = #tpu.core_type<tc>, window_params = [{transform_indices = @transform_0, window_bounds = array<i64: 2, 128, 4>}, {transform_indices = @transform_1, window_bounds = array<i64: 2, 16, 4>}, {pipeline_mode = #tpu.pipeline_mode<synchronous>, transform_indices = @transform_2, window_bounds = array<i64: 8, 4, 16>}, {transform_indices = @transform_3, window_bounds = array<i64: 1, 8, 16>}, {transform_indices = @transform_4, window_bounds = array<i64: 1, 8, 16>}]} {
    %c0_i32 = arith.constant 0 : i32
    %0 = arith.cmpi eq, %arg1, %c0_i32 : i32
    %1 = arith.extui %0 : i1 to i32
    %c0_i32_0 = arith.constant 0 : i32
    %2 = arith.cmpi ne, %1, %c0_i32_0 : i32
    scf.if %2 {
      %cst_34 = arith.constant 0.000000e+00 : f32
      %53 = vector.broadcast %cst_34 : f32 to vector<1x8x16xf32>
      %c0_35 = arith.constant 0 : index
      %c0_36 = arith.constant 0 : index
      %c0_37 = arith.constant 0 : index
      %54 = vector.load %arg5[%c0_35, %c0_36, %c0_37] : memref<1x8x16xf32, #tpu.memory_space<vmem>>, vector<1x8x16xf32>
      tpu.vector_store %arg5[%c0_35, %c0_36, %c0_37], %53 {strides = array<i32>} : memref<1x8x16xf32, #tpu.memory_space<vmem>>, vector<1x8x16xf32>,
      %cst_38 = arith.constant 0.000000e+00 : f32
      %55 = vector.broadcast %cst_38 : f32 to vector<1x8x16xf32>
      %c0_39 = arith.constant 0 : index
      %c0_40 = arith.constant 0 : index
      %c0_41 = arith.constant 0 : index
      %56 = vector.load %arg6[%c0_39, %c0_40, %c0_41] : memref<1x8x16xf32, #tpu.memory_space<vmem>>, vector<1x8x16xf32>
      tpu.vector_store %arg6[%c0_39, %c0_40, %c0_41], %55 {strides = array<i32>} : memref<1x8x16xf32, #tpu.memory_space<vmem>>, vector<1x8x16xf32>,
    } else {
    }
    %c0 = arith.constant 0 : index
    %c0_1 = arith.constant 0 : index
    %c0_2 = arith.constant 0 : index
    %3 = vector.load %arg2[%c0, %c0_1, %c0_2] : memref<2x128x4xbf16, #tpu.memory_space<vmem>>, vector<2x128x4xbf16>
    %c0_3 = arith.constant 0 : index
    %c0_4 = arith.constant 0 : index
    %c0_5 = arith.constant 0 : index
    %4 = vector.load %arg3[%c0_3, %c0_4, %c0_5] : memref<2x16x4xbf16, #tpu.memory_space<vmem>>, vector<2x16x4xbf16>
    %5 = tpu.concatenate %3, %4 in 1 : vector<2x128x4xbf16>, vector<2x16x4xbf16> -> vector<2x144x4xbf16>
    %6 = vector.extract_strided_slice %5 {offsets = [0, 0, 0], sizes = [2, 128, 4], strides = [1, 1, 1]} : vector<2x144x4xbf16> to vector<2x128x4xbf16>
    %c0_6 = arith.constant 0 : index
    %c0_7 = arith.constant 0 : index
    %c0_8 = arith.constant 0 : index
    %7 = vector.load %arg4[%c0_6, %c0_7, %c0_8] : memref<8x4x16xbf16, #tpu.memory_space<vmem>>, vector<1x4x16xbf16>
    %8 = vector.shape_cast %7 : vector<1x4x16xbf16> to vector<4x16xbf16>
    %cst = arith.constant dense<0.000000e+00> : vector<2x128x16xf32>
    %9 = tpu.matmul %6, %8, %cst {dimension_numbers = #tpu.dot_dimension_numbers<[2], [0], [0, 1], [1], [0, 0, 0, 1, 1, 1], [], []>} : vector<2x128x4xbf16>, vector<4x16xbf16>, vector<2x128x16xf32> -> vector<2x128x16xf32>
    %10 = vector.extract_strided_slice %5 {offsets = [0, 1, 0], sizes = [2, 128, 4], strides = [1, 1, 1]} : vector<2x144x4xbf16> to vector<2x128x4xbf16>
    %c1 = arith.constant 1 : index
    %c0_9 = arith.constant 0 : index
    %c0_10 = arith.constant 0 : index
    %11 = vector.load %arg4[%c1, %c0_9, %c0_10] : memref<8x4x16xbf16, #tpu.memory_space<vmem>>, vector<1x4x16xbf16>
    %12 = vector.shape_cast %11 : vector<1x4x16xbf16> to vector<4x16xbf16>
    %cst_11 = arith.constant dense<0.000000e+00> : vector<2x128x16xf32>
    %13 = tpu.matmul %10, %12, %cst_11 {dimension_numbers = #tpu.dot_dimension_numbers<[2], [0], [0, 1], [1], [0, 0, 0, 1, 1, 1], [], []>} : vector<2x128x4xbf16>, vector<4x16xbf16>, vector<2x128x16xf32> -> vector<2x128x16xf32>
    %14 = arith.addf %9, %13 : vector<2x128x16xf32>
    %15 = vector.extract_strided_slice %5 {offsets = [0, 2, 0], sizes = [2, 128, 4], strides = [1, 1, 1]} : vector<2x144x4xbf16> to vector<2x128x4xbf16>
    %c2 = arith.constant 2 : index
    %c0_12 = arith.constant 0 : index
    %c0_13 = arith.constant 0 : index
    %16 = vector.load %arg4[%c2, %c0_12, %c0_13] : memref<8x4x16xbf16, #tpu.memory_space<vmem>>, vector<1x4x16xbf16>
    %17 = vector.shape_cast %16 : vector<1x4x16xbf16> to vector<4x16xbf16>
    %cst_14 = arith.constant dense<0.000000e+00> : vector<2x128x16xf32>
    %18 = tpu.matmul %15, %17, %cst_14 {dimension_numbers = #tpu.dot_dimension_numbers<[2], [0], [0, 1], [1], [0, 0, 0, 1, 1, 1], [], []>} : vector<2x128x4xbf16>, vector<4x16xbf16>, vector<2x128x16xf32> -> vector<2x128x16xf32>
    %19 = arith.addf %14, %18 : vector<2x128x16xf32>
    %20 = vector.extract_strided_slice %5 {offsets = [0, 3, 0], sizes = [2, 128, 4], strides = [1, 1, 1]} : vector<2x144x4xbf16> to vector<2x128x4xbf16>
    %c3 = arith.constant 3 : index
    %c0_15 = arith.constant 0 : index
    %c0_16 = arith.constant 0 : index
    %21 = vector.load %arg4[%c3, %c0_15, %c0_16] : memref<8x4x16xbf16, #tpu.memory_space<vmem>>, vector<1x4x16xbf16>
    %22 = vector.shape_cast %21 : vector<1x4x16xbf16> to vector<4x16xbf16>
    %cst_17 = arith.constant dense<0.000000e+00> : vector<2x128x16xf32>
    %23 = tpu.matmul %20, %22, %cst_17 {dimension_numbers = #tpu.dot_dimension_numbers<[2], [0], [0, 1], [1], [0, 0, 0, 1, 1, 1], [], []>} : vector<2x128x4xbf16>, vector<4x16xbf16>, vector<2x128x16xf32> -> vector<2x128x16xf32>
    %24 = arith.addf %19, %23 : vector<2x128x16xf32>
    %25 = vector.extract_strided_slice %5 {offsets = [0, 4, 0], sizes = [2, 128, 4], strides = [1, 1, 1]} : vector<2x144x4xbf16> to vector<2x128x4xbf16>
    %c4 = arith.constant 4 : index
    %c0_18 = arith.constant 0 : index
    %c0_19 = arith.constant 0 : index
    %26 = vector.load %arg4[%c4, %c0_18, %c0_19] : memref<8x4x16xbf16, #tpu.memory_space<vmem>>, vector<1x4x16xbf16>
    %27 = vector.shape_cast %26 : vector<1x4x16xbf16> to vector<4x16xbf16>
    %cst_20 = arith.constant dense<0.000000e+00> : vector<2x128x16xf32>
    %28 = tpu.matmul %25, %27, %cst_20 {dimension_numbers = #tpu.dot_dimension_numbers<[2], [0], [0, 1], [1], [0, 0, 0, 1, 1, 1], [], []>} : vector<2x128x4xbf16>, vector<4x16xbf16>, vector<2x128x16xf32> -> vector<2x128x16xf32>
    %29 = arith.addf %24, %28 : vector<2x128x16xf32>
    %30 = vector.extract_strided_slice %5 {offsets = [0, 5, 0], sizes = [2, 128, 4], strides = [1, 1, 1]} : vector<2x144x4xbf16> to vector<2x128x4xbf16>
    %c5 = arith.constant 5 : index
    %c0_21 = arith.constant 0 : index
    %c0_22 = arith.constant 0 : index
    %31 = vector.load %arg4[%c5, %c0_21, %c0_22] : memref<8x4x16xbf16, #tpu.memory_space<vmem>>, vector<1x4x16xbf16>
    %32 = vector.shape_cast %31 : vector<1x4x16xbf16> to vector<4x16xbf16>
    %cst_23 = arith.constant dense<0.000000e+00> : vector<2x128x16xf32>
    %33 = tpu.matmul %30, %32, %cst_23 {dimension_numbers = #tpu.dot_dimension_numbers<[2], [0], [0, 1], [1], [0, 0, 0, 1, 1, 1], [], []>} : vector<2x128x4xbf16>, vector<4x16xbf16>, vector<2x128x16xf32> -> vector<2x128x16xf32>
    %34 = arith.addf %29, %33 : vector<2x128x16xf32>
    %35 = vector.extract_strided_slice %5 {offsets = [0, 6, 0], sizes = [2, 128, 4], strides = [1, 1, 1]} : vector<2x144x4xbf16> to vector<2x128x4xbf16>
    %c6 = arith.constant 6 : index
    %c0_24 = arith.constant 0 : index
    %c0_25 = arith.constant 0 : index
    %36 = vector.load %arg4[%c6, %c0_24, %c0_25] : memref<8x4x16xbf16, #tpu.memory_space<vmem>>, vector<1x4x16xbf16>
    %37 = vector.shape_cast %36 : vector<1x4x16xbf16> to vector<4x16xbf16>
    %cst_26 = arith.constant dense<0.000000e+00> : vector<2x128x16xf32>
    %38 = tpu.matmul %35, %37, %cst_26 {dimension_numbers = #tpu.dot_dimension_numbers<[2], [0], [0, 1], [1], [0, 0, 0, 1, 1, 1], [], []>} : vector<2x128x4xbf16>, vector<4x16xbf16>, vector<2x128x16xf32> -> vector<2x128x16xf32>
    %39 = arith.addf %34, %38 : vector<2x128x16xf32>
    %40 = vector.extract_strided_slice %5 {offsets = [0, 7, 0], sizes = [2, 128, 4], strides = [1, 1, 1]} : vector<2x144x4xbf16> to vector<2x128x4xbf16>
    %c7 = arith.constant 7 : index
    %c0_27 = arith.constant 0 : index
    %c0_28 = arith.constant 0 : index
    %41 = vector.load %arg4[%c7, %c0_27, %c0_28] : memref<8x4x16xbf16, #tpu.memory_space<vmem>>, vector<1x4x16xbf16>
    %42 = vector.shape_cast %41 : vector<1x4x16xbf16> to vector<4x16xbf16>
    %cst_29 = arith.constant dense<0.000000e+00> : vector<2x128x16xf32>
    %43 = tpu.matmul %40, %42, %cst_29 {dimension_numbers = #tpu.dot_dimension_numbers<[2], [0], [0, 1], [1], [0, 0, 0, 1, 1, 1], [], []>} : vector<2x128x4xbf16>, vector<4x16xbf16>, vector<2x128x16xf32> -> vector<2x128x16xf32>
    %44 = arith.addf %39, %43 : vector<2x128x16xf32>
    %c1_i32 = arith.constant 1 : i32
    %45 = arith.muli %arg0, %c1_i32 : i32
    %46 = arith.addi %45, %arg1 : i32
    %c0_i32_30 = arith.constant 0 : i32
    %47 = arith.cmpi ne, %46, %c0_i32_30 : i32
    %48 = arith.extui %47 : i1 to i32
    %c0_i32_31 = arith.constant 0 : i32
    %49 = arith.cmpi ne, %48, %c0_i32_31 : i32
    scf.if %49 {
      %c0_34 = arith.constant 0 : index
      %c0_35 = arith.constant 0 : index
      %c0_36 = arith.constant 0 : index
      %53 = vector.load %arg5[%c0_34, %c0_35, %c0_36] : memref<1x8x16xf32, #tpu.memory_space<vmem>>, vector<1x8x16xf32>
      %cst_37 = arith.constant dense<0.000000e+00> : vector<16xf32>
      %54 = vector.multi_reduction <add>, %44, %cst_37 [0, 1] : vector<2x128x16xf32> to vector<16xf32>
      %55 = vector.shape_cast %54 : vector<16xf32> to vector<1x1x16xf32>
      %56 = vector.broadcast %55 : vector<1x1x16xf32> to vector<1x8x16xf32>
      %57 = arith.addf %53, %56 : vector<1x8x16xf32>
      %c0_38 = arith.constant 0 : index
      %c0_39 = arith.constant 0 : index
      %c0_40 = arith.constant 0 : index
      %58 = vector.load %arg5[%c0_38, %c0_39, %c0_40] : memref<1x8x16xf32, #tpu.memory_space<vmem>>, vector<1x8x16xf32>
      tpu.vector_store %arg5[%c0_38, %c0_39, %c0_40], %57 {strides = array<i32>} : memref<1x8x16xf32, #tpu.memory_space<vmem>>, vector<1x8x16xf32>,
      %c0_41 = arith.constant 0 : index
      %c0_42 = arith.constant 0 : index
      %c0_43 = arith.constant 0 : index
      %59 = vector.load %arg6[%c0_41, %c0_42, %c0_43] : memref<1x8x16xf32, #tpu.memory_space<vmem>>, vector<1x8x16xf32>
      %60 = arith.mulf %44, %44 : vector<2x128x16xf32>
      %cst_44 = arith.constant dense<0.000000e+00> : vector<16xf32>
      %61 = vector.multi_reduction <add>, %60, %cst_44 [0, 1] : vector<2x128x16xf32> to vector<16xf32>
      %62 = vector.shape_cast %61 : vector<16xf32> to vector<1x1x16xf32>
      %63 = vector.broadcast %62 : vector<1x1x16xf32> to vector<1x8x16xf32>
      %64 = arith.addf %59, %63 : vector<1x8x16xf32>
      %c0_45 = arith.constant 0 : index
      %c0_46 = arith.constant 0 : index
      %c0_47 = arith.constant 0 : index
      %65 = vector.load %arg6[%c0_45, %c0_46, %c0_47] : memref<1x8x16xf32, #tpu.memory_space<vmem>>, vector<1x8x16xf32>
      tpu.vector_store %arg6[%c0_45, %c0_46, %c0_47], %64 {strides = array<i32>} : memref<1x8x16xf32, #tpu.memory_space<vmem>>, vector<1x8x16xf32>,
    } else {
    }
    %c0_i32_32 = arith.constant 0 : i32
    %50 = arith.cmpi eq, %46, %c0_i32_32 : i32
    %51 = arith.extui %50 : i1 to i32
    %c0_i32_33 = arith.constant 0 : i32
    %52 = arith.cmpi ne, %51, %c0_i32_33 : i32
    scf.if %52 {
      %53 = tpu.iota {dimensions = array<i32: 1>} : vector<2x128x16xi32>
      %c128_i32 = arith.constant 128 : i32
      %54 = arith.muli %46, %c128_i32 : i32
      %55 = vector.broadcast %54 : i32 to vector<2x128x16xi32>
      %56 = arith.addi %53, %55 : vector<2x128x16xi32>
      %c16_i32 = arith.constant 16 : i32
      %57 = vector.broadcast %c16_i32 : i32 to vector<2x128x16xi32>
      %58 = arith.cmpi slt, %56, %57 : vector<2x128x16xi32>
      %cst_34 = arith.constant 0.000000e+00 : f32
      %59 = vector.broadcast %cst_34 : f32 to vector<2x128x16xf32>
      %60 = arith.select %58, %44, %59 : vector<2x128x16xi1>, vector<2x128x16xf32>
      %c0_35 = arith.constant 0 : index
      %c0_36 = arith.constant 0 : index
      %c0_37 = arith.constant 0 : index
      %61 = vector.load %arg5[%c0_35, %c0_36, %c0_37] : memref<1x8x16xf32, #tpu.memory_space<vmem>>, vector<1x8x16xf32>
      %cst_38 = arith.constant dense<0.000000e+00> : vector<16xf32>
      %62 = vector.multi_reduction <add>, %60, %cst_38 [0, 1] : vector<2x128x16xf32> to vector<16xf32>
      %63 = vector.shape_cast %62 : vector<16xf32> to vector<1x1x16xf32>
      %64 = vector.broadcast %63 : vector<1x1x16xf32> to vector<1x8x16xf32>
      %65 = arith.addf %61, %64 : vector<1x8x16xf32>
      %c0_39 = arith.constant 0 : index
      %c0_40 = arith.constant 0 : index
      %c0_41 = arith.constant 0 : index
      %66 = vector.load %arg5[%c0_39, %c0_40, %c0_41] : memref<1x8x16xf32, #tpu.memory_space<vmem>>, vector<1x8x16xf32>
      tpu.vector_store %arg5[%c0_39, %c0_40, %c0_41], %65 {strides = array<i32>} : memref<1x8x16xf32, #tpu.memory_space<vmem>>, vector<1x8x16xf32>,
      %c0_42 = arith.constant 0 : index
      %c0_43 = arith.constant 0 : index
      %c0_44 = arith.constant 0 : index
      %67 = vector.load %arg6[%c0_42, %c0_43, %c0_44] : memref<1x8x16xf32, #tpu.memory_space<vmem>>, vector<1x8x16xf32>
      %68 = arith.mulf %60, %60 : vector<2x128x16xf32>
      %cst_45 = arith.constant dense<0.000000e+00> : vector<16xf32>
      %69 = vector.multi_reduction <add>, %68, %cst_45 [0, 1] : vector<2x128x16xf32> to vector<16xf32>
      %70 = vector.shape_cast %69 : vector<16xf32> to vector<1x1x16xf32>
      %71 = vector.broadcast %70 : vector<1x1x16xf32> to vector<1x8x16xf32>
      %72 = arith.addf %67, %71 : vector<1x8x16xf32>
      %c0_46 = arith.constant 0 : index
      %c0_47 = arith.constant 0 : index
      %c0_48 = arith.constant 0 : index
      %73 = vector.load %arg6[%c0_46, %c0_47, %c0_48] : memref<1x8x16xf32, #tpu.memory_space<vmem>>, vector<1x8x16xf32>
      tpu.vector_store %arg6[%c0_46, %c0_47, %c0_48], %72 {strides = array<i32>} : memref<1x8x16xf32, #tpu.memory_space<vmem>>, vector<1x8x16xf32>,
    } else {
    }
    return
  }
  func.func @transform_0(%arg0: i32, %arg1: i32) -> (i32, i32, i32) {
    %c1_i32 = arith.constant 1 : i32
    %0 = arith.muli %arg0, %c1_i32 : i32
    %1 = arith.addi %0, %arg1 : i32
    %c0_i32 = arith.constant 0 : i32
    %c0_i32_0 = arith.constant 0 : i32
    %c0_i32_1 = arith.constant 0 : i32
    return %c0_i32, %1, %c0_i32_0 : i32, i32, i32
  }
  func.func @transform_1(%arg0: i32, %arg1: i32) -> (i32, i32, i32) {
    %c1_i32 = arith.constant 1 : i32
    %0 = arith.muli %arg0, %c1_i32 : i32
    %1 = arith.addi %0, %arg1 : i32
    %c1_i32_0 = arith.constant 1 : i32
    %2 = arith.addi %1, %c1_i32_0 : i32
    %c8_i32 = arith.constant 8 : i32
    %3 = arith.muli %2, %c8_i32 : i32
    %c0_i32 = arith.constant 0 : i32
    %c0_i32_1 = arith.constant 0 : i32
    %c0_i32_2 = arith.constant 0 : i32
    return %c0_i32, %3, %c0_i32_1 : i32, i32, i32
  }
  func.func @transform_2(%arg0: i32, %arg1: i32) -> (i32, i32, i32) {
    %c0_i32 = arith.constant 0 : i32
    %c0_i32_0 = arith.constant 0 : i32
    %c0_i32_1 = arith.constant 0 : i32
    %c0_i32_2 = arith.constant 0 : i32
    return %c0_i32, %c0_i32_0, %c0_i32_1 : i32, i32, i32
  }
  func.func @transform_3(%arg0: i32, %arg1: i32) -> (i32, i32, i32) {
    %c0_i32 = arith.constant 0 : i32
    %c0_i32_0 = arith.constant 0 : i32
    %c0_i32_1 = arith.constant 0 : i32
    return %arg0, %c0_i32, %c0_i32_0 : i32, i32, i32
  }
  func.func @transform_4(%arg0: i32, %arg1: i32) -> (i32, i32, i32) {
    %c0_i32 = arith.constant 0 : i32
    %c0_i32_0 = arith.constant 0 : i32
    %c0_i32_1 = arith.constant 0 : i32
    return %arg0, %c0_i32, %c0_i32_0 : i32, i32, i32
  }
}

module attributes {stable_mosaic.version = 11 : i64} {
  func.func @_norm_pool_kernel(%arg0: i32, %arg1: memref<2x64x16xbf16, #tpu.memory_space<vmem>>, %arg2: memref<2x16x16xbf16, #tpu.memory_space<vmem>>, %arg3: memref<7x16x32xbf16, #tpu.memory_space<vmem>>, %arg4: memref<1x32xf32, #tpu.memory_space<vmem>>, %arg5: memref<1x32xf32, #tpu.memory_space<vmem>>, %arg6: memref<2x8x128xf32, #tpu.memory_space<vmem>>, %arg7: memref<2x64x32xf32, #tpu.memory_space<vmem>>) attributes {dimension_semantics = [#tpu.dimension_semantics<parallel>], iteration_bounds = array<i64: 1>, scalar_prefetch = 0 : i64, scratch_operands = 1 : i64, tpu.core_type = #tpu.core_type<tc>, window_params = [{transform_indices = @transform_0, window_bounds = array<i64: 2, 64, 16>}, {transform_indices = @transform_1, window_bounds = array<i64: 2, 16, 16>}, {pipeline_mode = #tpu.pipeline_mode<synchronous>, transform_indices = @transform_2, window_bounds = array<i64: 7, 16, 32>}, {pipeline_mode = #tpu.pipeline_mode<synchronous>, transform_indices = @transform_3, window_bounds = array<i64: 1, 32>}, {pipeline_mode = #tpu.pipeline_mode<synchronous>, transform_indices = @transform_4, window_bounds = array<i64: 1, 32>}, {transform_indices = @transform_5, window_bounds = array<i64: 2, 8, 128>}]} {
    %c0 = arith.constant 0 : index
    %c0_0 = arith.constant 0 : index
    %c0_1 = arith.constant 0 : index
    %0 = vector.load %arg1[%c0, %c0_0, %c0_1] : memref<2x64x16xbf16, #tpu.memory_space<vmem>>, vector<2x64x16xbf16>
    %c0_2 = arith.constant 0 : index
    %c0_3 = arith.constant 0 : index
    %c0_4 = arith.constant 0 : index
    %1 = vector.load %arg2[%c0_2, %c0_3, %c0_4] : memref<2x16x16xbf16, #tpu.memory_space<vmem>>, vector<2x16x16xbf16>
    %2 = tpu.concatenate %0, %1 in 1 : vector<2x64x16xbf16>, vector<2x16x16xbf16> -> vector<2x80x16xbf16>
    %3 = vector.extract_strided_slice %2 {offsets = [0, 0, 0], sizes = [2, 64, 16], strides = [1, 1, 1]} : vector<2x80x16xbf16> to vector<2x64x16xbf16>
    %c0_5 = arith.constant 0 : index
    %c0_6 = arith.constant 0 : index
    %c0_7 = arith.constant 0 : index
    %4 = vector.load %arg3[%c0_5, %c0_6, %c0_7] : memref<7x16x32xbf16, #tpu.memory_space<vmem>>, vector<1x16x32xbf16>
    %5 = vector.shape_cast %4 : vector<1x16x32xbf16> to vector<16x32xbf16>
    %cst = arith.constant dense<0.000000e+00> : vector<2x64x32xf32>
    %6 = tpu.matmul %3, %5, %cst {dimension_numbers = #tpu.dot_dimension_numbers<[2], [0], [0, 1], [1], [0, 0, 0, 1, 1, 1], [], []>} : vector<2x64x16xbf16>, vector<16x32xbf16>, vector<2x64x32xf32> -> vector<2x64x32xf32>
    %7 = vector.extract_strided_slice %2 {offsets = [0, 1, 0], sizes = [2, 64, 16], strides = [1, 1, 1]} : vector<2x80x16xbf16> to vector<2x64x16xbf16>
    %c1 = arith.constant 1 : index
    %c0_8 = arith.constant 0 : index
    %c0_9 = arith.constant 0 : index
    %8 = vector.load %arg3[%c1, %c0_8, %c0_9] : memref<7x16x32xbf16, #tpu.memory_space<vmem>>, vector<1x16x32xbf16>
    %9 = vector.shape_cast %8 : vector<1x16x32xbf16> to vector<16x32xbf16>
    %cst_10 = arith.constant dense<0.000000e+00> : vector<2x64x32xf32>
    %10 = tpu.matmul %7, %9, %cst_10 {dimension_numbers = #tpu.dot_dimension_numbers<[2], [0], [0, 1], [1], [0, 0, 0, 1, 1, 1], [], []>} : vector<2x64x16xbf16>, vector<16x32xbf16>, vector<2x64x32xf32> -> vector<2x64x32xf32>
    %11 = arith.addf %6, %10 : vector<2x64x32xf32>
    %12 = vector.extract_strided_slice %2 {offsets = [0, 2, 0], sizes = [2, 64, 16], strides = [1, 1, 1]} : vector<2x80x16xbf16> to vector<2x64x16xbf16>
    %c2 = arith.constant 2 : index
    %c0_11 = arith.constant 0 : index
    %c0_12 = arith.constant 0 : index
    %13 = vector.load %arg3[%c2, %c0_11, %c0_12] : memref<7x16x32xbf16, #tpu.memory_space<vmem>>, vector<1x16x32xbf16>
    %14 = vector.shape_cast %13 : vector<1x16x32xbf16> to vector<16x32xbf16>
    %cst_13 = arith.constant dense<0.000000e+00> : vector<2x64x32xf32>
    %15 = tpu.matmul %12, %14, %cst_13 {dimension_numbers = #tpu.dot_dimension_numbers<[2], [0], [0, 1], [1], [0, 0, 0, 1, 1, 1], [], []>} : vector<2x64x16xbf16>, vector<16x32xbf16>, vector<2x64x32xf32> -> vector<2x64x32xf32>
    %16 = arith.addf %11, %15 : vector<2x64x32xf32>
    %17 = vector.extract_strided_slice %2 {offsets = [0, 3, 0], sizes = [2, 64, 16], strides = [1, 1, 1]} : vector<2x80x16xbf16> to vector<2x64x16xbf16>
    %c3 = arith.constant 3 : index
    %c0_14 = arith.constant 0 : index
    %c0_15 = arith.constant 0 : index
    %18 = vector.load %arg3[%c3, %c0_14, %c0_15] : memref<7x16x32xbf16, #tpu.memory_space<vmem>>, vector<1x16x32xbf16>
    %19 = vector.shape_cast %18 : vector<1x16x32xbf16> to vector<16x32xbf16>
    %cst_16 = arith.constant dense<0.000000e+00> : vector<2x64x32xf32>
    %20 = tpu.matmul %17, %19, %cst_16 {dimension_numbers = #tpu.dot_dimension_numbers<[2], [0], [0, 1], [1], [0, 0, 0, 1, 1, 1], [], []>} : vector<2x64x16xbf16>, vector<16x32xbf16>, vector<2x64x32xf32> -> vector<2x64x32xf32>
    %21 = arith.addf %16, %20 : vector<2x64x32xf32>
    %22 = vector.extract_strided_slice %2 {offsets = [0, 4, 0], sizes = [2, 64, 16], strides = [1, 1, 1]} : vector<2x80x16xbf16> to vector<2x64x16xbf16>
    %c4 = arith.constant 4 : index
    %c0_17 = arith.constant 0 : index
    %c0_18 = arith.constant 0 : index
    %23 = vector.load %arg3[%c4, %c0_17, %c0_18] : memref<7x16x32xbf16, #tpu.memory_space<vmem>>, vector<1x16x32xbf16>
    %24 = vector.shape_cast %23 : vector<1x16x32xbf16> to vector<16x32xbf16>
    %cst_19 = arith.constant dense<0.000000e+00> : vector<2x64x32xf32>
    %25 = tpu.matmul %22, %24, %cst_19 {dimension_numbers = #tpu.dot_dimension_numbers<[2], [0], [0, 1], [1], [0, 0, 0, 1, 1, 1], [], []>} : vector<2x64x16xbf16>, vector<16x32xbf16>, vector<2x64x32xf32> -> vector<2x64x32xf32>
    %26 = arith.addf %21, %25 : vector<2x64x32xf32>
    %27 = vector.extract_strided_slice %2 {offsets = [0, 5, 0], sizes = [2, 64, 16], strides = [1, 1, 1]} : vector<2x80x16xbf16> to vector<2x64x16xbf16>
    %c5 = arith.constant 5 : index
    %c0_20 = arith.constant 0 : index
    %c0_21 = arith.constant 0 : index
    %28 = vector.load %arg3[%c5, %c0_20, %c0_21] : memref<7x16x32xbf16, #tpu.memory_space<vmem>>, vector<1x16x32xbf16>
    %29 = vector.shape_cast %28 : vector<1x16x32xbf16> to vector<16x32xbf16>
    %cst_22 = arith.constant dense<0.000000e+00> : vector<2x64x32xf32>
    %30 = tpu.matmul %27, %29, %cst_22 {dimension_numbers = #tpu.dot_dimension_numbers<[2], [0], [0, 1], [1], [0, 0, 0, 1, 1, 1], [], []>} : vector<2x64x16xbf16>, vector<16x32xbf16>, vector<2x64x32xf32> -> vector<2x64x32xf32>
    %31 = arith.addf %26, %30 : vector<2x64x32xf32>
    %32 = vector.extract_strided_slice %2 {offsets = [0, 6, 0], sizes = [2, 64, 16], strides = [1, 1, 1]} : vector<2x80x16xbf16> to vector<2x64x16xbf16>
    %c6 = arith.constant 6 : index
    %c0_23 = arith.constant 0 : index
    %c0_24 = arith.constant 0 : index
    %33 = vector.load %arg3[%c6, %c0_23, %c0_24] : memref<7x16x32xbf16, #tpu.memory_space<vmem>>, vector<1x16x32xbf16>
    %34 = vector.shape_cast %33 : vector<1x16x32xbf16> to vector<16x32xbf16>
    %cst_25 = arith.constant dense<0.000000e+00> : vector<2x64x32xf32>
    %35 = tpu.matmul %32, %34, %cst_25 {dimension_numbers = #tpu.dot_dimension_numbers<[2], [0], [0, 1], [1], [0, 0, 0, 1, 1, 1], [], []>} : vector<2x64x16xbf16>, vector<16x32xbf16>, vector<2x64x32xf32> -> vector<2x64x32xf32>
    %36 = arith.addf %31, %35 : vector<2x64x32xf32>
    %c0_26 = arith.constant 0 : index
    %c0_27 = arith.constant 0 : index
    %37 = vector.load %arg4[%c0_26, %c0_27] : memref<1x32xf32, #tpu.memory_space<vmem>>, vector<1x32xf32>
    %38 = vector.shape_cast %37 : vector<1x32xf32> to vector<1x1x32xf32>
    %39 = vector.broadcast %38 : vector<1x1x32xf32> to vector<2x64x32xf32>
    %40 = arith.mulf %36, %39 : vector<2x64x32xf32>
    %c0_28 = arith.constant 0 : index
    %c0_29 = arith.constant 0 : index
    %41 = vector.load %arg5[%c0_28, %c0_29] : memref<1x32xf32, #tpu.memory_space<vmem>>, vector<1x32xf32>
    %42 = vector.shape_cast %41 : vector<1x32xf32> to vector<1x1x32xf32>
    %43 = vector.broadcast %42 : vector<1x1x32xf32> to vector<2x64x32xf32>
    %44 = arith.addf %40, %43 : vector<2x64x32xf32>
    %cst_30 = arith.constant 0.000000e+00 : f32
    %45 = vector.broadcast %cst_30 : f32 to vector<2x64x32xf32>
    %46 = arith.maximumf %44, %45 : vector<2x64x32xf32>
    %c0_31 = arith.constant 0 : index
    %c0_32 = arith.constant 0 : index
    %c0_33 = arith.constant 0 : index
    %47 = vector.load %arg7[%c0_31, %c0_32, %c0_33] : memref<2x64x32xf32, #tpu.memory_space<vmem>>, vector<2x64x32xf32>
    tpu.vector_store %arg7[%c0_31, %c0_32, %c0_33], %46 {strides = array<i32>} : memref<2x64x32xf32, #tpu.memory_space<vmem>>, vector<2x64x32xf32>,
    %c0_34 = arith.constant 0 : index
    %c0_35 = arith.constant 0 : index
    %c0_36 = arith.constant 0 : index
    %48 = tpu.strided_load %arg7[%c0_34, %c0_35, %c0_36] {strides = array<i32: 1, 8, 1>} : memref<2x64x32xf32, #tpu.memory_space<vmem>>, vector<2x8x32xf32>
    %c0_37 = arith.constant 0 : index
    %c1_38 = arith.constant 1 : index
    %c0_39 = arith.constant 0 : index
    %49 = tpu.strided_load %arg7[%c0_37, %c1_38, %c0_39] {strides = array<i32: 1, 8, 1>} : memref<2x64x32xf32, #tpu.memory_space<vmem>>, vector<2x8x32xf32>
    %50 = arith.maximumf %48, %49 : vector<2x8x32xf32>
    %c0_40 = arith.constant 0 : index
    %c2_41 = arith.constant 2 : index
    %c0_42 = arith.constant 0 : index
    %51 = tpu.strided_load %arg7[%c0_40, %c2_41, %c0_42] {strides = array<i32: 1, 8, 1>} : memref<2x64x32xf32, #tpu.memory_space<vmem>>, vector<2x8x32xf32>
    %c0_43 = arith.constant 0 : index
    %c3_44 = arith.constant 3 : index
    %c0_45 = arith.constant 0 : index
    %52 = tpu.strided_load %arg7[%c0_43, %c3_44, %c0_45] {strides = array<i32: 1, 8, 1>} : memref<2x64x32xf32, #tpu.memory_space<vmem>>, vector<2x8x32xf32>
    %53 = arith.maximumf %51, %52 : vector<2x8x32xf32>
    %c0_46 = arith.constant 0 : index
    %c4_47 = arith.constant 4 : index
    %c0_48 = arith.constant 0 : index
    %54 = tpu.strided_load %arg7[%c0_46, %c4_47, %c0_48] {strides = array<i32: 1, 8, 1>} : memref<2x64x32xf32, #tpu.memory_space<vmem>>, vector<2x8x32xf32>
    %c0_49 = arith.constant 0 : index
    %c5_50 = arith.constant 5 : index
    %c0_51 = arith.constant 0 : index
    %55 = tpu.strided_load %arg7[%c0_49, %c5_50, %c0_51] {strides = array<i32: 1, 8, 1>} : memref<2x64x32xf32, #tpu.memory_space<vmem>>, vector<2x8x32xf32>
    %56 = arith.maximumf %54, %55 : vector<2x8x32xf32>
    %c0_52 = arith.constant 0 : index
    %c6_53 = arith.constant 6 : index
    %c0_54 = arith.constant 0 : index
    %57 = tpu.strided_load %arg7[%c0_52, %c6_53, %c0_54] {strides = array<i32: 1, 8, 1>} : memref<2x64x32xf32, #tpu.memory_space<vmem>>, vector<2x8x32xf32>
    %c0_55 = arith.constant 0 : index
    %c7 = arith.constant 7 : index
    %c0_56 = arith.constant 0 : index
    %58 = tpu.strided_load %arg7[%c0_55, %c7, %c0_56] {strides = array<i32: 1, 8, 1>} : memref<2x64x32xf32, #tpu.memory_space<vmem>>, vector<2x8x32xf32>
    %59 = arith.maximumf %57, %58 : vector<2x8x32xf32>
    %60 = tpu.concatenate %50, %53, %56, %59 in 2 : vector<2x8x32xf32>, vector<2x8x32xf32>, vector<2x8x32xf32>, vector<2x8x32xf32> -> vector<2x8x128xf32>
    %c0_57 = arith.constant 0 : index
    %c0_58 = arith.constant 0 : index
    %c0_59 = arith.constant 0 : index
    %61 = vector.load %arg6[%c0_57, %c0_58, %c0_59] : memref<2x8x128xf32, #tpu.memory_space<vmem>>, vector<2x8x128xf32>
    tpu.vector_store %arg6[%c0_57, %c0_58, %c0_59], %60 {strides = array<i32>} : memref<2x8x128xf32, #tpu.memory_space<vmem>>, vector<2x8x128xf32>,
    return
  }
  func.func @transform_0(%arg0: i32) -> (i32, i32, i32) {
    %c0_i32 = arith.constant 0 : i32
    %c0_i32_0 = arith.constant 0 : i32
    %c0_i32_1 = arith.constant 0 : i32
    return %c0_i32, %arg0, %c0_i32_0 : i32, i32, i32
  }
  func.func @transform_1(%arg0: i32) -> (i32, i32, i32) {
    %c1_i32 = arith.constant 1 : i32
    %0 = arith.addi %arg0, %c1_i32 : i32
    %c4_i32 = arith.constant 4 : i32
    %1 = arith.muli %0, %c4_i32 : i32
    %c0_i32 = arith.constant 0 : i32
    %c0_i32_0 = arith.constant 0 : i32
    %c0_i32_1 = arith.constant 0 : i32
    return %c0_i32, %1, %c0_i32_0 : i32, i32, i32
  }
  func.func @transform_2(%arg0: i32) -> (i32, i32, i32) {
    %c0_i32 = arith.constant 0 : i32
    %c0_i32_0 = arith.constant 0 : i32
    %c0_i32_1 = arith.constant 0 : i32
    %c0_i32_2 = arith.constant 0 : i32
    return %c0_i32, %c0_i32_0, %c0_i32_1 : i32, i32, i32
  }
  func.func @transform_3(%arg0: i32) -> (i32, i32) {
    %c0_i32 = arith.constant 0 : i32
    %c0_i32_0 = arith.constant 0 : i32
    %c0_i32_1 = arith.constant 0 : i32
    return %c0_i32, %c0_i32_0 : i32, i32
  }
  func.func @transform_4(%arg0: i32) -> (i32, i32) {
    %c0_i32 = arith.constant 0 : i32
    %c0_i32_0 = arith.constant 0 : i32
    %c0_i32_1 = arith.constant 0 : i32
    return %c0_i32, %c0_i32_0 : i32, i32
  }
  func.func @transform_5(%arg0: i32) -> (i32, i32, i32) {
    %c0_i32 = arith.constant 0 : i32
    %c0_i32_0 = arith.constant 0 : i32
    %c0_i32_1 = arith.constant 0 : i32
    return %c0_i32, %arg0, %c0_i32_0 : i32, i32, i32
  }
}

module attributes {stable_mosaic.version = 11 : i64} {
  func.func @_conv_stats_kernel(%arg0: i32, %arg1: i32, %arg2: memref<2x64x16xbf16, #tpu.memory_space<vmem>>, %arg3: memref<2x16x16xbf16, #tpu.memory_space<vmem>>, %arg4: memref<7x16x32xbf16, #tpu.memory_space<vmem>>, %arg5: memref<1x8x32xf32, #tpu.memory_space<vmem>>, %arg6: memref<1x8x32xf32, #tpu.memory_space<vmem>>) attributes {dimension_semantics = [#tpu.dimension_semantics<parallel>, #tpu.dimension_semantics<arbitrary>], iteration_bounds = array<i64: 1, 1>, scalar_prefetch = 0 : i64, scratch_operands = 0 : i64, tpu.core_type = #tpu.core_type<tc>, window_params = [{transform_indices = @transform_0, window_bounds = array<i64: 2, 64, 16>}, {transform_indices = @transform_1, window_bounds = array<i64: 2, 16, 16>}, {pipeline_mode = #tpu.pipeline_mode<synchronous>, transform_indices = @transform_2, window_bounds = array<i64: 7, 16, 32>}, {transform_indices = @transform_3, window_bounds = array<i64: 1, 8, 32>}, {transform_indices = @transform_4, window_bounds = array<i64: 1, 8, 32>}]} {
    %c0_i32 = arith.constant 0 : i32
    %0 = arith.cmpi eq, %arg1, %c0_i32 : i32
    %1 = arith.extui %0 : i1 to i32
    %c0_i32_0 = arith.constant 0 : i32
    %2 = arith.cmpi ne, %1, %c0_i32_0 : i32
    scf.if %2 {
      %cst_31 = arith.constant 0.000000e+00 : f32
      %48 = vector.broadcast %cst_31 : f32 to vector<1x8x32xf32>
      %c0_32 = arith.constant 0 : index
      %c0_33 = arith.constant 0 : index
      %c0_34 = arith.constant 0 : index
      %49 = vector.load %arg5[%c0_32, %c0_33, %c0_34] : memref<1x8x32xf32, #tpu.memory_space<vmem>>, vector<1x8x32xf32>
      tpu.vector_store %arg5[%c0_32, %c0_33, %c0_34], %48 {strides = array<i32>} : memref<1x8x32xf32, #tpu.memory_space<vmem>>, vector<1x8x32xf32>,
      %cst_35 = arith.constant 0.000000e+00 : f32
      %50 = vector.broadcast %cst_35 : f32 to vector<1x8x32xf32>
      %c0_36 = arith.constant 0 : index
      %c0_37 = arith.constant 0 : index
      %c0_38 = arith.constant 0 : index
      %51 = vector.load %arg6[%c0_36, %c0_37, %c0_38] : memref<1x8x32xf32, #tpu.memory_space<vmem>>, vector<1x8x32xf32>
      tpu.vector_store %arg6[%c0_36, %c0_37, %c0_38], %50 {strides = array<i32>} : memref<1x8x32xf32, #tpu.memory_space<vmem>>, vector<1x8x32xf32>,
    } else {
    }
    %c0 = arith.constant 0 : index
    %c0_1 = arith.constant 0 : index
    %c0_2 = arith.constant 0 : index
    %3 = vector.load %arg2[%c0, %c0_1, %c0_2] : memref<2x64x16xbf16, #tpu.memory_space<vmem>>, vector<2x64x16xbf16>
    %c0_3 = arith.constant 0 : index
    %c0_4 = arith.constant 0 : index
    %c0_5 = arith.constant 0 : index
    %4 = vector.load %arg3[%c0_3, %c0_4, %c0_5] : memref<2x16x16xbf16, #tpu.memory_space<vmem>>, vector<2x16x16xbf16>
    %5 = tpu.concatenate %3, %4 in 1 : vector<2x64x16xbf16>, vector<2x16x16xbf16> -> vector<2x80x16xbf16>
    %6 = vector.extract_strided_slice %5 {offsets = [0, 0, 0], sizes = [2, 64, 16], strides = [1, 1, 1]} : vector<2x80x16xbf16> to vector<2x64x16xbf16>
    %c0_6 = arith.constant 0 : index
    %c0_7 = arith.constant 0 : index
    %c0_8 = arith.constant 0 : index
    %7 = vector.load %arg4[%c0_6, %c0_7, %c0_8] : memref<7x16x32xbf16, #tpu.memory_space<vmem>>, vector<1x16x32xbf16>
    %8 = vector.shape_cast %7 : vector<1x16x32xbf16> to vector<16x32xbf16>
    %cst = arith.constant dense<0.000000e+00> : vector<2x64x32xf32>
    %9 = tpu.matmul %6, %8, %cst {dimension_numbers = #tpu.dot_dimension_numbers<[2], [0], [0, 1], [1], [0, 0, 0, 1, 1, 1], [], []>} : vector<2x64x16xbf16>, vector<16x32xbf16>, vector<2x64x32xf32> -> vector<2x64x32xf32>
    %10 = vector.extract_strided_slice %5 {offsets = [0, 1, 0], sizes = [2, 64, 16], strides = [1, 1, 1]} : vector<2x80x16xbf16> to vector<2x64x16xbf16>
    %c1 = arith.constant 1 : index
    %c0_9 = arith.constant 0 : index
    %c0_10 = arith.constant 0 : index
    %11 = vector.load %arg4[%c1, %c0_9, %c0_10] : memref<7x16x32xbf16, #tpu.memory_space<vmem>>, vector<1x16x32xbf16>
    %12 = vector.shape_cast %11 : vector<1x16x32xbf16> to vector<16x32xbf16>
    %cst_11 = arith.constant dense<0.000000e+00> : vector<2x64x32xf32>
    %13 = tpu.matmul %10, %12, %cst_11 {dimension_numbers = #tpu.dot_dimension_numbers<[2], [0], [0, 1], [1], [0, 0, 0, 1, 1, 1], [], []>} : vector<2x64x16xbf16>, vector<16x32xbf16>, vector<2x64x32xf32> -> vector<2x64x32xf32>
    %14 = arith.addf %9, %13 : vector<2x64x32xf32>
    %15 = vector.extract_strided_slice %5 {offsets = [0, 2, 0], sizes = [2, 64, 16], strides = [1, 1, 1]} : vector<2x80x16xbf16> to vector<2x64x16xbf16>
    %c2 = arith.constant 2 : index
    %c0_12 = arith.constant 0 : index
    %c0_13 = arith.constant 0 : index
    %16 = vector.load %arg4[%c2, %c0_12, %c0_13] : memref<7x16x32xbf16, #tpu.memory_space<vmem>>, vector<1x16x32xbf16>
    %17 = vector.shape_cast %16 : vector<1x16x32xbf16> to vector<16x32xbf16>
    %cst_14 = arith.constant dense<0.000000e+00> : vector<2x64x32xf32>
    %18 = tpu.matmul %15, %17, %cst_14 {dimension_numbers = #tpu.dot_dimension_numbers<[2], [0], [0, 1], [1], [0, 0, 0, 1, 1, 1], [], []>} : vector<2x64x16xbf16>, vector<16x32xbf16>, vector<2x64x32xf32> -> vector<2x64x32xf32>
    %19 = arith.addf %14, %18 : vector<2x64x32xf32>
    %20 = vector.extract_strided_slice %5 {offsets = [0, 3, 0], sizes = [2, 64, 16], strides = [1, 1, 1]} : vector<2x80x16xbf16> to vector<2x64x16xbf16>
    %c3 = arith.constant 3 : index
    %c0_15 = arith.constant 0 : index
    %c0_16 = arith.constant 0 : index
    %21 = vector.load %arg4[%c3, %c0_15, %c0_16] : memref<7x16x32xbf16, #tpu.memory_space<vmem>>, vector<1x16x32xbf16>
    %22 = vector.shape_cast %21 : vector<1x16x32xbf16> to vector<16x32xbf16>
    %cst_17 = arith.constant dense<0.000000e+00> : vector<2x64x32xf32>
    %23 = tpu.matmul %20, %22, %cst_17 {dimension_numbers = #tpu.dot_dimension_numbers<[2], [0], [0, 1], [1], [0, 0, 0, 1, 1, 1], [], []>} : vector<2x64x16xbf16>, vector<16x32xbf16>, vector<2x64x32xf32> -> vector<2x64x32xf32>
    %24 = arith.addf %19, %23 : vector<2x64x32xf32>
    %25 = vector.extract_strided_slice %5 {offsets = [0, 4, 0], sizes = [2, 64, 16], strides = [1, 1, 1]} : vector<2x80x16xbf16> to vector<2x64x16xbf16>
    %c4 = arith.constant 4 : index
    %c0_18 = arith.constant 0 : index
    %c0_19 = arith.constant 0 : index
    %26 = vector.load %arg4[%c4, %c0_18, %c0_19] : memref<7x16x32xbf16, #tpu.memory_space<vmem>>, vector<1x16x32xbf16>
    %27 = vector.shape_cast %26 : vector<1x16x32xbf16> to vector<16x32xbf16>
    %cst_20 = arith.constant dense<0.000000e+00> : vector<2x64x32xf32>
    %28 = tpu.matmul %25, %27, %cst_20 {dimension_numbers = #tpu.dot_dimension_numbers<[2], [0], [0, 1], [1], [0, 0, 0, 1, 1, 1], [], []>} : vector<2x64x16xbf16>, vector<16x32xbf16>, vector<2x64x32xf32> -> vector<2x64x32xf32>
    %29 = arith.addf %24, %28 : vector<2x64x32xf32>
    %30 = vector.extract_strided_slice %5 {offsets = [0, 5, 0], sizes = [2, 64, 16], strides = [1, 1, 1]} : vector<2x80x16xbf16> to vector<2x64x16xbf16>
    %c5 = arith.constant 5 : index
    %c0_21 = arith.constant 0 : index
    %c0_22 = arith.constant 0 : index
    %31 = vector.load %arg4[%c5, %c0_21, %c0_22] : memref<7x16x32xbf16, #tpu.memory_space<vmem>>, vector<1x16x32xbf16>
    %32 = vector.shape_cast %31 : vector<1x16x32xbf16> to vector<16x32xbf16>
    %cst_23 = arith.constant dense<0.000000e+00> : vector<2x64x32xf32>
    %33 = tpu.matmul %30, %32, %cst_23 {dimension_numbers = #tpu.dot_dimension_numbers<[2], [0], [0, 1], [1], [0, 0, 0, 1, 1, 1], [], []>} : vector<2x64x16xbf16>, vector<16x32xbf16>, vector<2x64x32xf32> -> vector<2x64x32xf32>
    %34 = arith.addf %29, %33 : vector<2x64x32xf32>
    %35 = vector.extract_strided_slice %5 {offsets = [0, 6, 0], sizes = [2, 64, 16], strides = [1, 1, 1]} : vector<2x80x16xbf16> to vector<2x64x16xbf16>
    %c6 = arith.constant 6 : index
    %c0_24 = arith.constant 0 : index
    %c0_25 = arith.constant 0 : index
    %36 = vector.load %arg4[%c6, %c0_24, %c0_25] : memref<7x16x32xbf16, #tpu.memory_space<vmem>>, vector<1x16x32xbf16>
    %37 = vector.shape_cast %36 : vector<1x16x32xbf16> to vector<16x32xbf16>
    %cst_26 = arith.constant dense<0.000000e+00> : vector<2x64x32xf32>
    %38 = tpu.matmul %35, %37, %cst_26 {dimension_numbers = #tpu.dot_dimension_numbers<[2], [0], [0, 1], [1], [0, 0, 0, 1, 1, 1], [], []>} : vector<2x64x16xbf16>, vector<16x32xbf16>, vector<2x64x32xf32> -> vector<2x64x32xf32>
    %39 = arith.addf %34, %38 : vector<2x64x32xf32>
    %c1_i32 = arith.constant 1 : i32
    %40 = arith.muli %arg0, %c1_i32 : i32
    %41 = arith.addi %40, %arg1 : i32
    %c0_i32_27 = arith.constant 0 : i32
    %42 = arith.cmpi ne, %41, %c0_i32_27 : i32
    %43 = arith.extui %42 : i1 to i32
    %c0_i32_28 = arith.constant 0 : i32
    %44 = arith.cmpi ne, %43, %c0_i32_28 : i32
    scf.if %44 {
      %c0_31 = arith.constant 0 : index
      %c0_32 = arith.constant 0 : index
      %c0_33 = arith.constant 0 : index
      %48 = vector.load %arg5[%c0_31, %c0_32, %c0_33] : memref<1x8x32xf32, #tpu.memory_space<vmem>>, vector<1x8x32xf32>
      %cst_34 = arith.constant dense<0.000000e+00> : vector<32xf32>
      %49 = vector.multi_reduction <add>, %39, %cst_34 [0, 1] : vector<2x64x32xf32> to vector<32xf32>
      %50 = vector.shape_cast %49 : vector<32xf32> to vector<1x1x32xf32>
      %51 = vector.broadcast %50 : vector<1x1x32xf32> to vector<1x8x32xf32>
      %52 = arith.addf %48, %51 : vector<1x8x32xf32>
      %c0_35 = arith.constant 0 : index
      %c0_36 = arith.constant 0 : index
      %c0_37 = arith.constant 0 : index
      %53 = vector.load %arg5[%c0_35, %c0_36, %c0_37] : memref<1x8x32xf32, #tpu.memory_space<vmem>>, vector<1x8x32xf32>
      tpu.vector_store %arg5[%c0_35, %c0_36, %c0_37], %52 {strides = array<i32>} : memref<1x8x32xf32, #tpu.memory_space<vmem>>, vector<1x8x32xf32>,
      %c0_38 = arith.constant 0 : index
      %c0_39 = arith.constant 0 : index
      %c0_40 = arith.constant 0 : index
      %54 = vector.load %arg6[%c0_38, %c0_39, %c0_40] : memref<1x8x32xf32, #tpu.memory_space<vmem>>, vector<1x8x32xf32>
      %55 = arith.mulf %39, %39 : vector<2x64x32xf32>
      %cst_41 = arith.constant dense<0.000000e+00> : vector<32xf32>
      %56 = vector.multi_reduction <add>, %55, %cst_41 [0, 1] : vector<2x64x32xf32> to vector<32xf32>
      %57 = vector.shape_cast %56 : vector<32xf32> to vector<1x1x32xf32>
      %58 = vector.broadcast %57 : vector<1x1x32xf32> to vector<1x8x32xf32>
      %59 = arith.addf %54, %58 : vector<1x8x32xf32>
      %c0_42 = arith.constant 0 : index
      %c0_43 = arith.constant 0 : index
      %c0_44 = arith.constant 0 : index
      %60 = vector.load %arg6[%c0_42, %c0_43, %c0_44] : memref<1x8x32xf32, #tpu.memory_space<vmem>>, vector<1x8x32xf32>
      tpu.vector_store %arg6[%c0_42, %c0_43, %c0_44], %59 {strides = array<i32>} : memref<1x8x32xf32, #tpu.memory_space<vmem>>, vector<1x8x32xf32>,
    } else {
    }
    %c0_i32_29 = arith.constant 0 : i32
    %45 = arith.cmpi eq, %41, %c0_i32_29 : i32
    %46 = arith.extui %45 : i1 to i32
    %c0_i32_30 = arith.constant 0 : i32
    %47 = arith.cmpi ne, %46, %c0_i32_30 : i32
    scf.if %47 {
      %48 = tpu.iota {dimensions = array<i32: 1>} : vector<2x64x32xi32>
      %c64_i32 = arith.constant 64 : i32
      %49 = arith.muli %41, %c64_i32 : i32
      %50 = vector.broadcast %49 : i32 to vector<2x64x32xi32>
      %51 = arith.addi %48, %50 : vector<2x64x32xi32>
      %c8_i32 = arith.constant 8 : i32
      %52 = vector.broadcast %c8_i32 : i32 to vector<2x64x32xi32>
      %53 = arith.cmpi slt, %51, %52 : vector<2x64x32xi32>
      %cst_31 = arith.constant 0.000000e+00 : f32
      %54 = vector.broadcast %cst_31 : f32 to vector<2x64x32xf32>
      %55 = arith.select %53, %39, %54 : vector<2x64x32xi1>, vector<2x64x32xf32>
      %c0_32 = arith.constant 0 : index
      %c0_33 = arith.constant 0 : index
      %c0_34 = arith.constant 0 : index
      %56 = vector.load %arg5[%c0_32, %c0_33, %c0_34] : memref<1x8x32xf32, #tpu.memory_space<vmem>>, vector<1x8x32xf32>
      %cst_35 = arith.constant dense<0.000000e+00> : vector<32xf32>
      %57 = vector.multi_reduction <add>, %55, %cst_35 [0, 1] : vector<2x64x32xf32> to vector<32xf32>
      %58 = vector.shape_cast %57 : vector<32xf32> to vector<1x1x32xf32>
      %59 = vector.broadcast %58 : vector<1x1x32xf32> to vector<1x8x32xf32>
      %60 = arith.addf %56, %59 : vector<1x8x32xf32>
      %c0_36 = arith.constant 0 : index
      %c0_37 = arith.constant 0 : index
      %c0_38 = arith.constant 0 : index
      %61 = vector.load %arg5[%c0_36, %c0_37, %c0_38] : memref<1x8x32xf32, #tpu.memory_space<vmem>>, vector<1x8x32xf32>
      tpu.vector_store %arg5[%c0_36, %c0_37, %c0_38], %60 {strides = array<i32>} : memref<1x8x32xf32, #tpu.memory_space<vmem>>, vector<1x8x32xf32>,
      %c0_39 = arith.constant 0 : index
      %c0_40 = arith.constant 0 : index
      %c0_41 = arith.constant 0 : index
      %62 = vector.load %arg6[%c0_39, %c0_40, %c0_41] : memref<1x8x32xf32, #tpu.memory_space<vmem>>, vector<1x8x32xf32>
      %63 = arith.mulf %55, %55 : vector<2x64x32xf32>
      %cst_42 = arith.constant dense<0.000000e+00> : vector<32xf32>
      %64 = vector.multi_reduction <add>, %63, %cst_42 [0, 1] : vector<2x64x32xf32> to vector<32xf32>
      %65 = vector.shape_cast %64 : vector<32xf32> to vector<1x1x32xf32>
      %66 = vector.broadcast %65 : vector<1x1x32xf32> to vector<1x8x32xf32>
      %67 = arith.addf %62, %66 : vector<1x8x32xf32>
      %c0_43 = arith.constant 0 : index
      %c0_44 = arith.constant 0 : index
      %c0_45 = arith.constant 0 : index
      %68 = vector.load %arg6[%c0_43, %c0_44, %c0_45] : memref<1x8x32xf32, #tpu.memory_space<vmem>>, vector<1x8x32xf32>
      tpu.vector_store %arg6[%c0_43, %c0_44, %c0_45], %67 {strides = array<i32>} : memref<1x8x32xf32, #tpu.memory_space<vmem>>, vector<1x8x32xf32>,
    } else {
    }
    return
  }
  func.func @transform_0(%arg0: i32, %arg1: i32) -> (i32, i32, i32) {
    %c1_i32 = arith.constant 1 : i32
    %0 = arith.muli %arg0, %c1_i32 : i32
    %1 = arith.addi %0, %arg1 : i32
    %c0_i32 = arith.constant 0 : i32
    %c0_i32_0 = arith.constant 0 : i32
    %c0_i32_1 = arith.constant 0 : i32
    return %c0_i32, %1, %c0_i32_0 : i32, i32, i32
  }
  func.func @transform_1(%arg0: i32, %arg1: i32) -> (i32, i32, i32) {
    %c1_i32 = arith.constant 1 : i32
    %0 = arith.muli %arg0, %c1_i32 : i32
    %1 = arith.addi %0, %arg1 : i32
    %c1_i32_0 = arith.constant 1 : i32
    %2 = arith.addi %1, %c1_i32_0 : i32
    %c4_i32 = arith.constant 4 : i32
    %3 = arith.muli %2, %c4_i32 : i32
    %c0_i32 = arith.constant 0 : i32
    %c0_i32_1 = arith.constant 0 : i32
    %c0_i32_2 = arith.constant 0 : i32
    return %c0_i32, %3, %c0_i32_1 : i32, i32, i32
  }
  func.func @transform_2(%arg0: i32, %arg1: i32) -> (i32, i32, i32) {
    %c0_i32 = arith.constant 0 : i32
    %c0_i32_0 = arith.constant 0 : i32
    %c0_i32_1 = arith.constant 0 : i32
    %c0_i32_2 = arith.constant 0 : i32
    return %c0_i32, %c0_i32_0, %c0_i32_1 : i32, i32, i32
  }
  func.func @transform_3(%arg0: i32, %arg1: i32) -> (i32, i32, i32) {
    %c0_i32 = arith.constant 0 : i32
    %c0_i32_0 = arith.constant 0 : i32
    %c0_i32_1 = arith.constant 0 : i32
    return %arg0, %c0_i32, %c0_i32_0 : i32, i32, i32
  }
  func.func @transform_4(%arg0: i32, %arg1: i32) -> (i32, i32, i32) {
    %c0_i32 = arith.constant 0 : i32
    %c0_i32_0 = arith.constant 0 : i32
    %c0_i32_1 = arith.constant 0 : i32
    return %arg0, %c0_i32, %c0_i32_0 : i32, i32, i32
  }
}

</mosaic_0001>

<llo_original>
// kernel: _lambda_.7
$region0: #{_lambda_.7}
  #allocation0 [shape = 'u32[]', space=smem, size = 0x4, offset = 0x4, fixed_abs, tag = 'smem constant byte address 0x4 - core index']
  #allocation1 [shape = 'u32[144,128]{1,0:T(1,128)}', space=vmem, size = 0x12000, scoped, tag = 'internal scratch']
  #allocation2 [shape = 'f32[2,64,32]{2,1,0:T(8,128)}', space=vmem, size = 0x10000, scoped, tag = 'scratch operand']
  %s0 = inlined_call_operand.vmem [shape: bf16[2,80,16], index: 0, kind: input, shape index: {}, may-alias: {0,1}]
  %s1 = inlined_call_operand.vmem [shape: bf16[2,80,16], index: 1, kind: input, shape index: {}, may-alias: {0,1}]
  %s2 = inlined_call_operand.vmem [shape: bf16[7,16,32], index: 2, kind: input, shape index: {}]
  %s3 = inlined_call_operand.vmem [shape: f32[1,32], index: 3, kind: input, shape index: {}]
  %s4 = inlined_call_operand.vmem [shape: f32[1,32], index: 4, kind: input, shape index: {}]
  %s5 = inlined_call_operand.vmem [shape: f32[2,8,128], index: 5, kind: output, shape index: {}]
  %s6 = sld [smem:[#allocation0]]
  $region112: #{_lambda_.7} parent=0
    _
  %s8 = ssub.s32 1, %s6
  %s9 = scalar_select 0, %s8, %s6
  $region1: #{_lambda_.7} parent=0
    #allocation3 [shape = 'u8[32768]{0}', space=vmem, size = 0x8000, scoped, tag = 'input window, operand 0, single buffered']
    #allocation4 [shape = 'u8[8192]{0}', space=vmem, size = 0x2000, scoped, tag = 'input window, operand 1, single buffered']
    // Predicated region
    $region2: #{_lambda_.7} parent=1 // pred_check
      _
    $region3: #{_lambda_.7} parent=1 // pred_check_branch
      %11 = sbr.rel (0) target = $region5
    $region4: #{_lambda_.7} parent=1 // pred_region
      // Predicated region
      $region6: #{_lambda_.7} parent=4 // pred_check
        _
      $region7: #{_lambda_.7} parent=4 // pred_check_branch
        %13 = sbr.rel (0) target = $region9
      $region8: #{_lambda_.7} parent=4 // pred_region
        // Predicated region
        $region10: #{_lambda_.7} parent=8 // pred_check
          _
        $region11: #{_lambda_.7} parent=8 // pred_check_branch
          %15 = sbr.rel target = $region13
        $region12: #{_lambda_.7} parent=8 // pred_region
          // Predicated region
          $region25: #{_lambda_.7} parent=12 // pred_check
            _
          $region26: #{_lambda_.7} parent=12 // pred_check_branch
            %60 = sbr.rel (0) target = $region28
          $region27: #{_lambda_.7} parent=12 // pred_region
            loop: start=0, step=1, limit=1
            $region29: #{_lambda_.7} parent=27 // loop_pre_header
              _
            $region30: #{_lambda_.7} parent=27 // loop_header
              %s62 = sphi 0, %s66
              %p63 = scmp.ge.s32.totalorder %s62, 1
              %s67 = sphi %s0, %s0
              %s68 = sphi [#allocation3], [#allocation3]
            $region31: #{_lambda_.7} parent=27 // loop_header_branch
              %65 = sbr.rel (%p63) target = $region35
            $region32: #{_lambda_.7} parent=27 // loop_body
              _
            $region33: #{_lambda_.7} parent=27 // loop_footer
              %s66 = sadd.s32 1, %s62
            $region34: #{_lambda_.7} parent=27 // loop_footer_branch
              %61 = sbr.rel target = $region30
            $region35: #{_lambda_.7} parent=27 // loop_exit
              _
            loop: start=0, step=1, limit=1
            $region36: #{_lambda_.7} parent=27 // loop_pre_header
              _
            $region37: #{_lambda_.7} parent=27 // loop_header
              %s71 = sphi 0, %s75
              %p72 = scmp.ge.s32.totalorder %s71, 1
              %s76 = sphi %s0, %s0
              %s77 = sphi [#allocation3], [#allocation3]
            $region38: #{_lambda_.7} parent=27 // loop_header_branch
              %74 = sbr.rel (%p72) target = $region42
            $region39: #{_lambda_.7} parent=27 // loop_body
              %v78 = vld [vmem:[%s76] sm:$0xf]
              %79 = vst [vmem:[%s77] sm:$0xf] %v78
              %v80 = vld [vmem:[%s76 + $0x4] sm:$0xf]
              %81 = vst [vmem:[%s77 + $0x4] sm:$0xf] %v80
              %v82 = vld [vmem:[%s76 + $0x8] sm:$0xf]
              %83 = vst [vmem:[%s77 + $0x8] sm:$0xf] %v82
              %v84 = vld [vmem:[%s76 + $0xc] sm:$0xf]
              %85 = vst [vmem:[%s77 + $0xc] sm:$0xf] %v84
              %v86 = vld [vmem:[%s76 + $0x10] sm:$0xf]
              %87 = vst [vmem:[%s77 + $0x10] sm:$0xf] %v86
              %v88 = vld [vmem:[%s76 + $0x14] sm:$0xf]
              %89 = vst [vmem:[%s77 + $0x14] sm:$0xf] %v88
              %v90 = vld [vmem:[%s76 + $0x18] sm:$0xf]
              %91 = vst [vmem:[%s77 + $0x18] sm:$0xf] %v90
              %v92 = vld [vmem:[%s76 + $0x1c] sm:$0xf]
              %93 = vst [vmem:[%s77 + $0x1c] sm:$0xf] %v92
              %v94 = vld [vmem:[%s76 + $0x28] sm:$0xf]
              %95 = vst [vmem:[%s77 + $0x20] sm:$0xf] %v94
              %v96 = vld [vmem:[%s76 + $0x2c] sm:$0xf]
              %97 = vst [vmem:[%s77 + $0x24] sm:$0xf] %v96
              %v98 = vld [vmem:[%s76 + $0x30] sm:$0xf]
              %99 = vst [vmem:[%s77 + $0x28] sm:$0xf] %v98
              %v100 = vld [vmem:[%s76 + $0x34] sm:$0xf]
              %101 = vst [vmem:[%s77 + $0x2c] sm:$0xf] %v100
              %v102 = vld [vmem:[%s76 + $0x38] sm:$0xf]
              %103 = vst [vmem:[%s77 + $0x30] sm:$0xf] %v102
              %v104 = vld [vmem:[%s76 + $0x3c] sm:$0xf]
              %105 = vst [vmem:[%s77 + $0x34] sm:$0xf] %v104
              %v106 = vld [vmem:[%s76 + $0x40] sm:$0xf]
              %107 = vst [vmem:[%s77 + $0x38] sm:$0xf] %v106
              %v108 = vld [vmem:[%s76 + $0x44] sm:$0xf]
              %109 = vst [vmem:[%s77 + $0x3c] sm:$0xf] %v108
            $region40: #{_lambda_.7} parent=27 // loop_footer
              %s75 = sadd.s32 1, %s71
            $region41: #{_lambda_.7} parent=27 // loop_footer_branch
              %70 = sbr.rel target = $region37
            $region42: #{_lambda_.7} parent=27 // loop_exit
              _
          $region28: #{_lambda_.7} parent=12 // pred_fallthru
            _
        $region13: #{_lambda_.7} parent=8 // pred_fallthru
          _
        // Predicated region
        $region14: #{_lambda_.7} parent=8 // pred_check
          _
        $region15: #{_lambda_.7} parent=8 // pred_check_branch
          %17 = sbr.rel (0) target = $region17
        $region16: #{_lambda_.7} parent=8 // pred_region
          loop: start=0, step=1, limit=1
          $region18: #{_lambda_.7} parent=16 // loop_pre_header
            _
          $region19: #{_lambda_.7} parent=16 // loop_header
            %s20 = sphi 0, %s24
            %p21 = scmp.ge.s32.totalorder %s20, 1
            %s25 = sphi %s0, %s0
            %s26 = sphi [#allocation3], [#allocation3]
          $region20: #{_lambda_.7} parent=16 // loop_header_branch
            %23 = sbr.rel (%p21) target = $region24
          $region21: #{_lambda_.7} parent=16 // loop_body
            %v27 = vld [vmem:[%s25] sm:$0xf]
            %28 = vst [vmem:[%s26] sm:$0xf] %v27
            %v29 = vld [vmem:[%s25 + $0x4] sm:$0xf]
            %30 = vst [vmem:[%s26 + $0x4] sm:$0xf] %v29
            %v31 = vld [vmem:[%s25 + $0x8] sm:$0xf]
            %32 = vst [vmem:[%s26 + $0x8] sm:$0xf] %v31
            %v33 = vld [vmem:[%s25 + $0xc] sm:$0xf]
            %34 = vst [vmem:[%s26 + $0xc] sm:$0xf] %v33
            %v35 = vld [vmem:[%s25 + $0x10] sm:$0xf]
            %36 = vst [vmem:[%s26 + $0x10] sm:$0xf] %v35
            %v37 = vld [vmem:[%s25 + $0x14] sm:$0xf]
            %38 = vst [vmem:[%s26 + $0x14] sm:$0xf] %v37
            %v39 = vld [vmem:[%s25 + $0x18] sm:$0xf]
            %40 = vst [vmem:[%s26 + $0x18] sm:$0xf] %v39
            %v41 = vld [vmem:[%s25 + $0x1c] sm:$0xf]
            %42 = vst [vmem:[%s26 + $0x1c] sm:$0xf] %v41
            %v43 = vld [vmem:[%s25 + $0x28] sm:$0xf]
            %44 = vst [vmem:[%s26 + $0x20] sm:$0xf] %v43
            %v45 = vld [vmem:[%s25 + $0x2c] sm:$0xf]
            %46 = vst [vmem:[%s26 + $0x24] sm:$0xf] %v45
            %v47 = vld [vmem:[%s25 + $0x30] sm:$0xf]
            %48 = vst [vmem:[%s26 + $0x28] sm:$0xf] %v47
            %v49 = vld [vmem:[%s25 + $0x34] sm:$0xf]
            %50 = vst [vmem:[%s26 + $0x2c] sm:$0xf] %v49
            %v51 = vld [vmem:[%s25 + $0x38] sm:$0xf]
            %52 = vst [vmem:[%s26 + $0x30] sm:$0xf] %v51
            %v53 = vld [vmem:[%s25 + $0x3c] sm:$0xf]
            %54 = vst [vmem:[%s26 + $0x34] sm:$0xf] %v53
            %v55 = vld [vmem:[%s25 + $0x40] sm:$0xf]
            %56 = vst [vmem:[%s26 + $0x38] sm:$0xf] %v55
            %v57 = vld [vmem:[%s25 + $0x44] sm:$0xf]
            %58 = vst [vmem:[%s26 + $0x3c] sm:$0xf] %v57
          $region22: #{_lambda_.7} parent=16 // loop_footer
            %s24 = sadd.s32 1, %s20
          $region23: #{_lambda_.7} parent=16 // loop_footer_branch
            %19 = sbr.rel target = $region19
          $region24: #{_lambda_.7} parent=16 // loop_exit
            _
        $region17: #{_lambda_.7} parent=8 // pred_fallthru
          _
      $region9: #{_lambda_.7} parent=4 // pred_fallthru
        _
      %110 = vnop
    $region5: #{_lambda_.7} parent=1 // pred_fallthru
      _
    // Predicated region
    $region43: #{_lambda_.7} parent=1 // pred_check
      _
    $region44: #{_lambda_.7} parent=1 // pred_check_branch
      %112 = sbr.rel (0) target = $region46
    $region45: #{_lambda_.7} parent=1 // pred_region
      %s113 = sadd.s32 0, 1
      %s114 = smul.u32 %s113, 4
      %s115 = smul.u32 2, %s114
      %s116 = smul.addr %s115, 4
      %s117 = scalar_lea.vmem %s1, %s116
      // Predicated region
      $region47: #{_lambda_.7} parent=45 // pred_check
        _
      $region48: #{_lambda_.7} parent=45 // pred_check_branch
        %119 = sbr.rel (0) target = $region50
      $region49: #{_lambda_.7} parent=45 // pred_region
        // Predicated region
        $region51: #{_lambda_.7} parent=49 // pred_check
          _
        $region52: #{_lambda_.7} parent=49 // pred_check_branch
          %121 = sbr.rel target = $region54
        $region53: #{_lambda_.7} parent=49 // pred_region
          // Predicated region
          $region66: #{_lambda_.7} parent=53 // pred_check
            _
          $region67: #{_lambda_.7} parent=53 // pred_check_branch
            %142 = sbr.rel (0) target = $region69
          $region68: #{_lambda_.7} parent=53 // pred_region
            loop: start=0, step=1, limit=1
            $region70: #{_lambda_.7} parent=68 // loop_pre_header
              _
            $region71: #{_lambda_.7} parent=68 // loop_header
              %s144 = sphi 0, %s148
              %p145 = scmp.ge.s32.totalorder %s144, 1
              %s149 = sphi %s117, %s117
              %s150 = sphi [#allocation4], [#allocation4]
            $region72: #{_lambda_.7} parent=68 // loop_header_branch
              %147 = sbr.rel (%p145) target = $region76
            $region73: #{_lambda_.7} parent=68 // loop_body
              _
            $region74: #{_lambda_.7} parent=68 // loop_footer
              %s148 = sadd.s32 1, %s144
            $region75: #{_lambda_.7} parent=68 // loop_footer_branch
              %143 = sbr.rel target = $region71
            $region76: #{_lambda_.7} parent=68 // loop_exit
              _
            loop: start=0, step=1, limit=1
            $region77: #{_lambda_.7} parent=68 // loop_pre_header
              _
            $region78: #{_lambda_.7} parent=68 // loop_header
              %s153 = sphi 0, %s157
              %p154 = scmp.ge.s32.totalorder %s153, 1
              %s158 = sphi %s117, %s117
              %s159 = sphi [#allocation4], [#allocation4]
            $region79: #{_lambda_.7} parent=68 // loop_header_branch
              %156 = sbr.rel (%p154) target = $region83
            $region80: #{_lambda_.7} parent=68 // loop_body
              %v160 = vld [vmem:[%s158] sm:$0xf]
              %161 = vst [vmem:[%s159] sm:$0xf] %v160
              %v162 = vld [vmem:[%s158 + $0x4] sm:$0xf]
              %163 = vst [vmem:[%s159 + $0x4] sm:$0xf] %v162
              %v164 = vld [vmem:[%s158 + $0x28] sm:$0xf]
              %165 = vst [vmem:[%s159 + $0x8] sm:$0xf] %v164
              %v166 = vld [vmem:[%s158 + $0x2c] sm:$0xf]
              %167 = vst [vmem:[%s159 + $0xc] sm:$0xf] %v166
            $region81: #{_lambda_.7} parent=68 // loop_footer
              %s157 = sadd.s32 1, %s153
            $region82: #{_lambda_.7} parent=68 // loop_footer_branch
              %152 = sbr.rel target = $region78
            $region83: #{_lambda_.7} parent=68 // loop_exit
              _
          $region69: #{_lambda_.7} parent=53 // pred_fallthru
            _
        $region54: #{_lambda_.7} parent=49 // pred_fallthru
          _
        // Predicated region
        $region55: #{_lambda_.7} parent=49 // pred_check
          _
        $region56: #{_lambda_.7} parent=49 // pred_check_branch
          %123 = sbr.rel (0) target = $region58
        $region57: #{_lambda_.7} parent=49 // pred_region
          loop: start=0, step=1, limit=1
          $region59: #{_lambda_.7} parent=57 // loop_pre_header
            _
          $region60: #{_lambda_.7} parent=57 // loop_header
            %s126 = sphi 0, %s130
            %p127 = scmp.ge.s32.totalorder %s126, 1
            %s131 = sphi %s117, %s117
            %s132 = sphi [#allocation4], [#allocation4]
          $region61: #{_lambda_.7} parent=57 // loop_header_branch
            %129 = sbr.rel (%p127) target = $region65
          $region62: #{_lambda_.7} parent=57 // loop_body
            %v133 = vld [vmem:[%s131] sm:$0xf]
            %134 = vst [vmem:[%s132] sm:$0xf] %v133
            %v135 = vld [vmem:[%s131 + $0x4] sm:$0xf]
            %136 = vst [vmem:[%s132 + $0x4] sm:$0xf] %v135
            %v137 = vld [vmem:[%s131 + $0x28] sm:$0xf]
            %138 = vst [vmem:[%s132 + $0x8] sm:$0xf] %v137
            %v139 = vld [vmem:[%s131 + $0x2c] sm:$0xf]
            %140 = vst [vmem:[%s132 + $0xc] sm:$0xf] %v139
          $region63: #{_lambda_.7} parent=57 // loop_footer
            %s130 = sadd.s32 1, %s126
          $region64: #{_lambda_.7} parent=57 // loop_footer_branch
            %125 = sbr.rel target = $region60
          $region65: #{_lambda_.7} parent=57 // loop_exit
            _
        $region58: #{_lambda_.7} parent=49 // pred_fallthru
          _
      $region50: #{_lambda_.7} parent=45 // pred_fallthru
        _
      %168 = vnop
    $region46: #{_lambda_.7} parent=1 // pred_fallthru
      _
    // Predicated region
    $region84: #{_lambda_.7} parent=1 // pred_check
      _
    $region85: #{_lambda_.7} parent=1 // pred_check_branch
      %170 = sbr.rel (0) target = $region87
    $region86: #{_lambda_.7} parent=1 // pred_region
      _
    $region87: #{_lambda_.7} parent=1 // pred_fallthru
      _
    // Predicated region
    $region88: #{_lambda_.7} parent=1 // pred_check
      _
    $region89: #{_lambda_.7} parent=1 // pred_check_branch
      %172 = sbr.rel (0) target = $region91
    $region90: #{_lambda_.7} parent=1 // pred_region
      _
    $region91: #{_lambda_.7} parent=1 // pred_fallthru
      _
    // Predicated region
    $region92: #{_lambda_.7} parent=1 // pred_check
      _
    $region93: #{_lambda_.7} parent=1 // pred_check_branch
      %174 = sbr.rel (0) target = $region95
    $region94: #{_lambda_.7} parent=1 // pred_region
      _
    $region95: #{_lambda_.7} parent=1 // pred_fallthru
      _
    // Predicated region
    $region96: #{_lambda_.7} parent=1 // pred_check
      _
    $region97: #{_lambda_.7} parent=1 // pred_check_branch
      %176 = sbr.rel (0) target = $region99
    $region98: #{_lambda_.7} parent=1 // pred_region
      _
    $region99: #{_lambda_.7} parent=1 // pred_fallthru
      _
    // Predicated region
    $region100: #{_lambda_.7} parent=1 // pred_check
      _
    $region101: #{_lambda_.7} parent=1 // pred_check_branch
      %178 = sbr.rel (0) target = $region103
    $region102: #{_lambda_.7} parent=1 // pred_region
      _
    $region103: #{_lambda_.7} parent=1 // pred_fallthru
      _
    %s179 = sadd.s32 0, 1
    %s180 = smul.u32 %s179, 4
    %s181 = smul.u32 2, %s180
    %v183 = vld [vmem:[#allocation3] sm:$0xf]
    %v184 = vld [vmem:[#allocation3 + $0x4] sm:$0xf]
    %v185 = vld [vmem:[#allocation3 + $0x8] sm:$0xf]
    %v186 = vld [vmem:[#allocation3 + $0xc] sm:$0xf]
    %v187 = vld [vmem:[#allocation3 + $0x10] sm:$0xf]
    %v188 = vld [vmem:[#allocation3 + $0x14] sm:$0xf]
    %v189 = vld [vmem:[#allocation3 + $0x18] sm:$0xf]
    %v190 = vld [vmem:[#allocation3 + $0x1c] sm:$0xf]
    %v191 = vld [vmem:[#allocation3 + $0x20] sm:$0xf]
    %v192 = vld [vmem:[#allocation3 + $0x24] sm:$0xf]
    %v193 = vld [vmem:[#allocation3 + $0x28] sm:$0xf]
    %v194 = vld [vmem:[#allocation3 + $0x2c] sm:$0xf]
    %v195 = vld [vmem:[#allocation3 + $0x30] sm:$0xf]
    %v196 = vld [vmem:[#allocation3 + $0x34] sm:$0xf]
    %v197 = vld [vmem:[#allocation3 + $0x38] sm:$0xf]
    %v198 = vld [vmem:[#allocation3 + $0x3c] sm:$0xf]
    %v199 = vld [vmem:[#allocation4] sm:$0xf]
    %v200 = vld [vmem:[#allocation4 + $0x4] sm:$0xf]
    %v201 = vld [vmem:[#allocation4 + $0x8] sm:$0xf]
    %v202 = vld [vmem:[#allocation4 + $0xc] sm:$0xf]
    %v219 = vunpack.c.l.b16 %v183
    %v220 = vunpack.c.l.b16 %v184
    %v221 = vunpack.c.l.b16 %v185
    %v222 = vunpack.c.l.b16 %v186
    %v223 = vunpack.c.l.b16 %v187
    %v224 = vunpack.c.l.b16 %v188
    %v225 = vunpack.c.l.b16 %v189
    %v226 = vunpack.c.l.b16 %v190
    %v227 = vunpack.c.l.b16 %v191
    %v228 = vunpack.c.l.b16 %v192
    %v229 = vunpack.c.l.b16 %v193
    %v230 = vunpack.c.l.b16 %v194
    %v231 = vunpack.c.l.b16 %v195
    %v232 = vunpack.c.l.b16 %v196
    %v233 = vunpack.c.l.b16 %v197
    %v234 = vunpack.c.l.b16 %v198
    %v235 = vpack.c.b16 %v220, %v219
    %v236 = vpack.c.b16 %v222, %v221
    %v237 = vpack.c.b16 %v224, %v223
    %v238 = vpack.c.b16 %v226, %v225
    %v239 = vpack.c.b16 %v228, %v227
    %v240 = vpack.c.b16 %v230, %v229
    %v241 = vpack.c.b16 %v232, %v231
    %v242 = vpack.c.b16 %v234, %v233
    %v247 = vunpack.c.l.b16 %v199
    %v248 = vunpack.c.l.b16 %v200
    %v249 = vunpack.c.l.b16 %v201
    %v250 = vunpack.c.l.b16 %v202
    %v251 = vpack.c.b16 %v248, %v247
    %v252 = vpack.c.b16 %v250, %v249
    %v253 = vld [vmem:[%s2] sm:$0xf]
    %v254 = vld [vmem:[%s2 + $0x4] sm:$0xf]
    %s255 = scalar_lea.vmem %s2, 8
    %v256 = vld [vmem:[%s255] sm:$0xf]
    %v257 = vld [vmem:[%s255 + $0x4] sm:$0xf]
    %vm258 = vsmask.f32 7424
    %v260 = vshrl.u32 %v235, 16
    %v262 = vshll.u32 %v235, 16
    %v264 = vrot.slane %v262, 1
    %v265 = vor.u32 %v260, %v264
    %v267 = vshll.u32 %v236, 16
    %v269 = vrot.slane %v267, 1
    %v270 = vsel %vm258, %v265, %v269
    %v271 = vshrl.u32 %v236, 16
    %v273 = vor.u32 %v271, %v269
    %v275 = vshll.u32 %v237, 16
    %v277 = vrot.slane %v275, 1
    %v278 = vsel %vm258, %v273, %v277
    %v279 = vshrl.u32 %v237, 16
    %v281 = vor.u32 %v279, %v277
    %v283 = vshll.u32 %v238, 16
    %v285 = vrot.slane %v283, 1
    %v286 = vsel %vm258, %v281, %v285
    %v287 = vshrl.u32 %v238, 16
    %v289 = vor.u32 %v287, %v285
    %v291 = vshll.u32 %v251, 16
    %v293 = vrot.slane %v291, 1
    %v294 = vsel %vm258, %v289, %v293
    %v296 = vshrl.u32 %v239, 16
    %v298 = vshll.u32 %v239, 16
    %v300 = vrot.slane %v298, 1
    %v301 = vor.u32 %v296, %v300
    %v303 = vshll.u32 %v240, 16
    %v305 = vrot.slane %v303, 1
    %v306 = vsel %vm258, %v301, %v305
    %v307 = vshrl.u32 %v240, 16
    %v309 = vor.u32 %v307, %v305
    %v311 = vshll.u32 %v241, 16
    %v313 = vrot.slane %v311, 1
    %v314 = vsel %vm258, %v309, %v313
    %v315 = vshrl.u32 %v241, 16
    %v317 = vor.u32 %v315, %v313
    %v319 = vshll.u32 %v242, 16
    %v321 = vrot.slane %v319, 1
    %v322 = vsel %vm258, %v317, %v321
    %v323 = vshrl.u32 %v242, 16
    %v325 = vor.u32 %v323, %v321
    %v327 = vshll.u32 %v252, 16
    %v329 = vrot.slane %v327, 1
    %v330 = vsel %vm258, %v325, %v329
    %v333 = vunpack.c.l.b16 %v256
    %v334 = vunpack.c.l.b16 %v257
    %v335 = vpack.c.b16 %v334, %v333
    %vm337 = vcmask 130048
    %v339 = vsel %vm337, %v270, 0
    %v342 = vsel %vm337, %v278, 0
    %v345 = vsel %vm337, %v286, 0
    %v348 = vsel %vm337, %v294, 0
    %v351 = vsel %vm337, %v306, 0
    %v354 = vsel %vm337, %v314, 0
    %v357 = vsel %vm337, %v322, 0
    %v360 = vsel %vm337, %v330, 0
    %362 = vmatprep.subr.bf16.mxu0 0
    %363 = vmatpush1.bf16.msra.mxu0 %v335
    %364 = vmatprep.subr.bf16.mxu0 0
    %365 = vmatpush1.bf16.msra.mxu0 0
    %366 = vmatprep.subr.bf16.mxu0 0
    %367 = vmatpush1.bf16.msra.mxu0 0
    %368 = vmatprep.subr.bf16.mxu0 0
    %369 = vmatpush1.bf16.msra.mxu0 0
    %370 = vmatprep.subr.bf16.mxu0 0
    %371 = vmatpush1.bf16.msra.mxu0 0
    %372 = vmatprep.subr.bf16.mxu0 0
    %373 = vmatpush1.bf16.msra.mxu0 0
    %374 = vmatprep.subr.bf16.mxu0 0
    %375 = vmatpush1.bf16.msra.mxu0 0
    %376 = vmatprep.subr.bf16.mxu0 0
    %377 = vmatpush1.bf16.msra.mxu0 0
    %378 = vmatprep.subr.bf16.mxu0 0
    %379 = vmatpush1.bf16.msra.mxu0 0
    %380 = vmatprep.subr.bf16.mxu0 0
    %381 = vmatpush1.bf16.msra.mxu0 0
    %382 = vmatprep.subr.bf16.mxu0 0
    %383 = vmatpush1.bf16.msra.mxu0 0
    %384 = vmatprep.subr.bf16.mxu0 0
    %385 = vmatpush1.bf16.msra.mxu0 0
    %386 = vmatprep.subr.bf16.mxu0 0
    %387 = vmatpush1.bf16.msra.mxu0 0
    %388 = vmatprep.subr.bf16.mxu0 0
    %389 = vmatpush1.bf16.msra.mxu0 0
    %390 = vmatprep.subr.bf16.mxu0 0
    %391 = vmatpush1.bf16.msra.mxu0 0
    %392 = vmatprep.subr.bf16.mxu0 0
    %393 = vmatpush1.bf16.msra.mxu0 0
    %394 = vmatprep.mubr.bf16.mxu0 0
    %395 = vmatmul.mubr.bf16.gmra.mrb[0].mxu0 %v339
    %v396 = vpop.f32.mrb[0].mxu0
    %v397 = vadd.f32 0.0, %v396
    %v398 = vpop.f32.mrb[0].mxu0
    %v399 = vpop.f32.mrb[0].mxu0
    %v400 = vadd.f32 0.0, %v399
    %v401 = vpop.f32.mrb[0].mxu0
    %402 = vmatprep.mubr.bf16.mxu0 0
    %403 = vmatmul.mubr.bf16.gmra.mrb[0].mxu0 %v342
    %v404 = vpop.f32.mrb[0].mxu0
    %v405 = vadd.f32 0.0, %v404
    %v406 = vpop.f32.mrb[0].mxu0
    %v407 = vpop.f32.mrb[0].mxu0
    %v408 = vadd.f32 0.0, %v407
    %v409 = vpop.f32.mrb[0].mxu0
    %410 = vmatprep.mubr.bf16.mxu0 0
    %411 = vmatmul.mubr.bf16.gmra.mrb[0].mxu0 %v345
    %v412 = vpop.f32.mrb[0].mxu0
    %v413 = vadd.f32 0.0, %v412
    %v414 = vpop.f32.mrb[0].mxu0
    %v415 = vpop.f32.mrb[0].mxu0
    %v416 = vadd.f32 0.0, %v415
    %v417 = vpop.f32.mrb[0].mxu0
    %418 = vmatprep.mubr.bf16.mxu0 0
    %419 = vmatmul.mubr.bf16.gmra.mrb[0].mxu0 %v348
    %v420 = vpop.f32.mrb[0].mxu0
    %v421 = vadd.f32 0.0, %v420
    %v422 = vpop.f32.mrb[0].mxu0
    %v423 = vpop.f32.mrb[0].mxu0
    %v424 = vadd.f32 0.0, %v423
    %v425 = vpop.f32.mrb[0].mxu0
    %426 = vmatprep.mubr.bf16.mxu0 0
    %427 = vmatmul.mubr.bf16.gmra.mrb[0].mxu0 %v351
    %v428 = vpop.f32.mrb[0].mxu0
    %v429 = vadd.f32 0.0, %v428
    %v430 = vpop.f32.mrb[0].mxu0
    %v431 = vpop.f32.mrb[0].mxu0
    %v432 = vadd.f32 0.0, %v431
    %v433 = vpop.f32.mrb[0].mxu0
    %434 = vmatprep.mubr.bf16.mxu0 0
    %435 = vmatmul.mubr.bf16.gmra.mrb[0].mxu0 %v354
    %v436 = vpop.f32.mrb[0].mxu0
    %v437 = vadd.f32 0.0, %v436
    %v438 = vpop.f32.mrb[0].mxu0
    %v439 = vpop.f32.mrb[0].mxu0
    %v440 = vadd.f32 0.0, %v439
    %v441 = vpop.f32.mrb[0].mxu0
    %442 = vmatprep.mubr.bf16.mxu0 0
    %443 = vmatmul.mubr.bf16.gmra.mrb[0].mxu0 %v357
    %v444 = vpop.f32.mrb[0].mxu0
    %v445 = vadd.f32 0.0, %v444
    %v446 = vpop.f32.mrb[0].mxu0
    %v447 = vpop.f32.mrb[0].mxu0
    %v448 = vadd.f32 0.0, %v447
    %v449 = vpop.f32.mrb[0].mxu0
    %450 = vmatprep.mubr.bf16.mxu0 0
    %451 = vmatmul.mubr.bf16.gmra.mrb[0].mxu0 %v360
    %v452 = vpop.f32.mrb[0].mxu0
    %v453 = vadd.f32 0.0, %v452
    %v454 = vpop.f32.mrb[0].mxu0
    %v455 = vpop.f32.mrb[0].mxu0
    %v456 = vadd.f32 0.0, %v455
    %v457 = vpop.f32.mrb[0].mxu0
    %458 = vdwg.mxu0
    %v461 = vunpack.c.l.b16 %v253
    %v462 = vunpack.c.l.b16 %v254
    %v463 = vpack.c.b16 %v462, %v461
    %v465 = vsel %vm337, %v235, 0
    %v467 = vsel %vm337, %v236, 0
    %v469 = vsel %vm337, %v237, 0
    %v471 = vsel %vm337, %v238, 0
    %v473 = vsel %vm337, %v239, 0
    %v475 = vsel %vm337, %v240, 0
    %v477 = vsel %vm337, %v241, 0
    %v479 = vsel %vm337, %v242, 0
    %481 = vmatprep.subr.bf16.mxu0 0
    %482 = vmatpush1.bf16.msra.mxu0 %v463
    %483 = vmatprep.subr.bf16.mxu0 0
    %484 = vmatpush1.bf16.msra.mxu0 0
    %485 = vmatprep.subr.bf16.mxu0 0
    %486 = vmatpush1.bf16.msra.mxu0 0
    %487 = vmatprep.subr.bf16.mxu0 0
    %488 = vmatpush1.bf16.msra.mxu0 0
    %489 = vmatprep.subr.bf16.mxu0 0
    %490 = vmatpush1.bf16.msra.mxu0 0
    %491 = vmatprep.subr.bf16.mxu0 0
    %492 = vmatpush1.bf16.msra.mxu0 0
    %493 = vmatprep.subr.bf16.mxu0 0
    %494 = vmatpush1.bf16.msra.mxu0 0
    %495 = vmatprep.subr.bf16.mxu0 0
    %496 = vmatpush1.bf16.msra.mxu0 0
    %497 = vmatprep.subr.bf16.mxu0 0
    %498 = vmatpush1.bf16.msra.mxu0 0
    %499 = vmatprep.subr.bf16.mxu0 0
    %500 = vmatpush1.bf16.msra.mxu0 0
    %501 = vmatprep.subr.bf16.mxu0 0
    %502 = vmatpush1.bf16.msra.mxu0 0
    %503 = vmatprep.subr.bf16.mxu0 0
    %504 = vmatpush1.bf16.msra.mxu0 0
    %505 = vmatprep.subr.bf16.mxu0 0
    %506 = vmatpush1.bf16.msra.mxu0 0
    %507 = vmatprep.subr.bf16.mxu0 0
    %508 = vmatpush1.bf16.msra.mxu0 0
    %509 = vmatprep.subr.bf16.mxu0 0
    %510 = vmatpush1.bf16.msra.mxu0 0
    %511 = vmatprep.subr.bf16.mxu0 0
    %512 = vmatpush1.bf16.msra.mxu0 0
    %513 = vmatprep.mubr.bf16.mxu0 0
    %514 = vmatmul.mubr.bf16.gmra.mrb[0].mxu0 %v465
    %v515 = vpop.f32.mrb[0].mxu0
    %v516 = vadd.f32 %v397, %v515
    %v517 = vpop.f32.mrb[0].mxu0
    %v518 = vpop.f32.mrb[0].mxu0
    %v519 = vadd.f32 %v400, %v518
    %v520 = vpop.f32.mrb[0].mxu0
    %521 = vmatprep.mubr.bf16.mxu0 0
    %522 = vmatmul.mubr.bf16.gmra.mrb[0].mxu0 %v467
    %v523 = vpop.f32.mrb[0].mxu0
    %v524 = vadd.f32 %v405, %v523
    %v525 = vpop.f32.mrb[0].mxu0
    %v526 = vpop.f32.mrb[0].mxu0
    %v527 = vadd.f32 %v408, %v526
    %v528 = vpop.f32.mrb[0].mxu0
    %529 = vmatprep.mubr.bf16.mxu0 0
    %530 = vmatmul.mubr.bf16.gmra.mrb[0].mxu0 %v469
    %v531 = vpop.f32.mrb[0].mxu0
    %v532 = vadd.f32 %v413, %v531
    %v533 = vpop.f32.mrb[0].mxu0
    %v534 = vpop.f32.mrb[0].mxu0
    %v535 = vadd.f32 %v416, %v534
    %v536 = vpop.f32.mrb[0].mxu0
    %537 = vmatprep.mubr.bf16.mxu0 0
    %538 = vmatmul.mubr.bf16.gmra.mrb[0].mxu0 %v471
    %v539 = vpop.f32.mrb[0].mxu0
    %v540 = vadd.f32 %v421, %v539
    %v541 = vpop.f32.mrb[0].mxu0
    %v542 = vpop.f32.mrb[0].mxu0
    %v543 = vadd.f32 %v424, %v542
    %v544 = vpop.f32.mrb[0].mxu0
    %545 = vmatprep.mubr.bf16.mxu0 0
    %546 = vmatmul.mubr.bf16.gmra.mrb[0].mxu0 %v473
    %v547 = vpop.f32.mrb[0].mxu0
    %v548 = vadd.f32 %v429, %v547
    %v549 = vpop.f32.mrb[0].mxu0
    %v550 = vpop.f32.mrb[0].mxu0
    %v551 = vadd.f32 %v432, %v550
    %v552 = vpop.f32.mrb[0].mxu0
    %553 = vmatprep.mubr.bf16.mxu0 0
    %554 = vmatmul.mubr.bf16.gmra.mrb[0].mxu0 %v475
    %v555 = vpop.f32.mrb[0].mxu0
    %v556 = vadd.f32 %v437, %v555
    %v557 = vpop.f32.mrb[0].mxu0
    %v558 = vpop.f32.mrb[0].mxu0
    %v559 = vadd.f32 %v440, %v558
    %v560 = vpop.f32.mrb[0].mxu0
    %561 = vmatprep.mubr.bf16.mxu0 0
    %562 = vmatmul.mubr.bf16.gmra.mrb[0].mxu0 %v477
    %v563 = vpop.f32.mrb[0].mxu0
    %v564 = vadd.f32 %v445, %v563
    %v565 = vpop.f32.mrb[0].mxu0
    %v566 = vpop.f32.mrb[0].mxu0
    %v567 = vadd.f32 %v448, %v566
    %v568 = vpop.f32.mrb[0].mxu0
    %569 = vmatprep.mubr.bf16.mxu0 0
    %570 = vmatmul.mubr.bf16.gmra.mrb[0].mxu0 %v479
    %v571 = vpop.f32.mrb[0].mxu0
    %v572 = vadd.f32 %v453, %v571
    %v573 = vpop.f32.mrb[0].mxu0
    %v574 = vpop.f32.mrb[0].mxu0
    %v575 = vadd.f32 %v456, %v574
    %v576 = vpop.f32.mrb[0].mxu0
    %577 = vdwg.mxu0
    %s578 = scalar_lea.vmem %s2, 16
    %v579 = vld [vmem:[%s578] sm:$0xf]
    %v580 = vld [vmem:[%s578 + $0x4] sm:$0xf]
    %vm581 = vcmask 1046528
    %v582 = vrot.slane %v235, 1
    %v583 = vrot.slane %v236, 1
    %v584 = vsel %vm581, %v582, %v583
    %v585 = vrot.slane %v237, 1
    %v586 = vsel %vm581, %v583, %v585
    %v587 = vrot.slane %v238, 1
    %v588 = vsel %vm581, %v585, %v587
    %v589 = vrot.slane %v251, 1
    %v590 = vsel %vm581, %v587, %v589
    %v591 = vrot.slane %v239, 1
    %v592 = vrot.slane %v240, 1
    %v593 = vsel %vm581, %v591, %v592
    %v594 = vrot.slane %v241, 1
    %v595 = vsel %vm581, %v592, %v594
    %v596 = vrot.slane %v242, 1
    %v597 = vsel %vm581, %v594, %v596
    %v598 = vrot.slane %v252, 1
    %v599 = vsel %vm581, %v596, %v598
    %v602 = vunpack.c.l.b16 %v579
    %v603 = vunpack.c.l.b16 %v580
    %v604 = vpack.c.b16 %v603, %v602
    %v607 = vsel %vm337, %v584, 0
    %v610 = vsel %vm337, %v586, 0
    %v613 = vsel %vm337, %v588, 0
    %v616 = vsel %vm337, %v590, 0
    %v619 = vsel %vm337, %v593, 0
    %v622 = vsel %vm337, %v595, 0
    %v625 = vsel %vm337, %v597, 0
    %v628 = vsel %vm337, %v599, 0
    %630 = vmatprep.subr.bf16.mxu0 0
    %631 = vmatpush1.bf16.msra.mxu0 %v604
    %632 = vmatprep.subr.bf16.mxu0 0
    %633 = vmatpush1.bf16.msra.mxu0 0
    %634 = vmatprep.subr.bf16.mxu0 0
    %635 = vmatpush1.bf16.msra.mxu0 0
    %636 = vmatprep.subr.bf16.mxu0 0
    %637 = vmatpush1.bf16.msra.mxu0 0
    %638 = vmatprep.subr.bf16.mxu0 0
    %639 = vmatpush1.bf16.msra.mxu0 0
    %640 = vmatprep.subr.bf16.mxu0 0
    %641 = vmatpush1.bf16.msra.mxu0 0
    %642 = vmatprep.subr.bf16.mxu0 0
    %643 = vmatpush1.bf16.msra.mxu0 0
    %644 = vmatprep.subr.bf16.mxu0 0
    %645 = vmatpush1.bf16.msra.mxu0 0
    %646 = vmatprep.subr.bf16.mxu0 0
    %647 = vmatpush1.bf16.msra.mxu0 0
    %648 = vmatprep.subr.bf16.mxu0 0
    %649 = vmatpush1.bf16.msra.mxu0 0
    %650 = vmatprep.subr.bf16.mxu0 0
    %651 = vmatpush1.bf16.msra.mxu0 0
    %652 = vmatprep.subr.bf16.mxu0 0
    %653 = vmatpush1.bf16.msra.mxu0 0
    %654 = vmatprep.subr.bf16.mxu0 0
    %655 = vmatpush1.bf16.msra.mxu0 0
    %656 = vmatprep.subr.bf16.mxu0 0
    %657 = vmatpush1.bf16.msra.mxu0 0
    %658 = vmatprep.subr.bf16.mxu0 0
    %659 = vmatpush1.bf16.msra.mxu0 0
    %660 = vmatprep.subr.bf16.mxu0 0
    %661 = vmatpush1.bf16.msra.mxu0 0
    %662 = vmatprep.mubr.bf16.mxu0 0
    %663 = vmatmul.mubr.bf16.gmra.mrb[0].mxu0 %v607
    %v664 = vpop.f32.mrb[0].mxu0
    %v665 = vadd.f32 0.0, %v664
    %v666 = vpop.f32.mrb[0].mxu0
    %v667 = vpop.f32.mrb[0].mxu0
    %v668 = vadd.f32 0.0, %v667
    %v669 = vpop.f32.mrb[0].mxu0
    %670 = vmatprep.mubr.bf16.mxu0 0
    %671 = vmatmul.mubr.bf16.gmra.mrb[0].mxu0 %v610
    %v672 = vpop.f32.mrb[0].mxu0
    %v673 = vadd.f32 0.0, %v672
    %v674 = vpop.f32.mrb[0].mxu0
    %v675 = vpop.f32.mrb[0].mxu0
    %v676 = vadd.f32 0.0, %v675
    %v677 = vpop.f32.mrb[0].mxu0
    %678 = vmatprep.mubr.bf16.mxu0 0
    %679 = vmatmul.mubr.bf16.gmra.mrb[0].mxu0 %v613
    %v680 = vpop.f32.mrb[0].mxu0
    %v681 = vadd.f32 0.0, %v680
    %v682 = vpop.f32.mrb[0].mxu0
    %v683 = vpop.f32.mrb[0].mxu0
    %v684 = vadd.f32 0.0, %v683
    %v685 = vpop.f32.mrb[0].mxu0
    %686 = vmatprep.mubr.bf16.mxu0 0
    %687 = vmatmul.mubr.bf16.gmra.mrb[0].mxu0 %v616
    %v688 = vpop.f32.mrb[0].mxu0
    %v689 = vadd.f32 0.0, %v688
    %v690 = vpop.f32.mrb[0].mxu0
    %v691 = vpop.f32.mrb[0].mxu0
    %v692 = vadd.f32 0.0, %v691
    %v693 = vpop.f32.mrb[0].mxu0
    %694 = vmatprep.mubr.bf16.mxu0 0
    %695 = vmatmul.mubr.bf16.gmra.mrb[0].mxu0 %v619
    %v696 = vpop.f32.mrb[0].mxu0
    %v697 = vadd.f32 0.0, %v696
    %v698 = vpop.f32.mrb[0].mxu0
    %v699 = vpop.f32.mrb[0].mxu0
    %v700 = vadd.f32 0.0, %v699
    %v701 = vpop.f32.mrb[0].mxu0
    %702 = vmatprep.mubr.bf16.mxu0 0
    %703 = vmatmul.mubr.bf16.gmra.mrb[0].mxu0 %v622
    %v704 = vpop.f32.mrb[0].mxu0
    %v705 = vadd.f32 0.0, %v704
    %v706 = vpop.f32.mrb[0].mxu0
    %v707 = vpop.f32.mrb[0].mxu0
    %v708 = vadd.f32 0.0, %v707
    %v709 = vpop.f32.mrb[0].mxu0
    %710 = vmatprep.mubr.bf16.mxu0 0
    %711 = vmatmul.mubr.bf16.gmra.mrb[0].mxu0 %v625
    %v712 = vpop.f32.mrb[0].mxu0
    %v713 = vadd.f32 0.0, %v712
    %v714 = vpop.f32.mrb[0].mxu0
    %v715 = vpop.f32.mrb[0].mxu0
    %v716 = vadd.f32 0.0, %v715
    %v717 = vpop.f32.mrb[0].mxu0
    %718 = vmatprep.mubr.bf16.mxu0 0
    %719 = vmatmul.mubr.bf16.gmra.mrb[0].mxu0 %v628
    %v720 = vpop.f32.mrb[0].mxu0
    %v721 = vadd.f32 0.0, %v720
    %v722 = vpop.f32.mrb[0].mxu0
    %v723 = vpop.f32.mrb[0].mxu0
    %v724 = vadd.f32 0.0, %v723
    %v725 = vpop.f32.mrb[0].mxu0
    %726 = vdwg.mxu0
    %v727 = vadd.f32 %v516, %v665
    %v728 = vadd.f32 %v519, %v668
    %v729 = vadd.f32 %v524, %v673
    %v730 = vadd.f32 %v527, %v676
    %v731 = vadd.f32 %v532, %v681
    %v732 = vadd.f32 %v535, %v684
    %v733 = vadd.f32 %v540, %v689
    %v734 = vadd.f32 %v543, %v692
    %v735 = vadd.f32 %v548, %v697
    %v736 = vadd.f32 %v551, %v700
    %v737 = vadd.f32 %v556, %v705
    %v738 = vadd.f32 %v559, %v708
    %v739 = vadd.f32 %v564, %v713
    %v740 = vadd.f32 %v567, %v716
    %v741 = vadd.f32 %v572, %v721
    %v742 = vadd.f32 %v575, %v724
    %s743 = scalar_lea.vmem %s2, 24
    %v744 = vld [vmem:[%s743] sm:$0xf]
    %v745 = vld [vmem:[%s743 + $0x4] sm:$0xf]
    %vm746 = vsmask.f32 6400
    %v747 = vrot.slane %v260, 1
    %v748 = vrot.slane %v262, 2
    %v749 = vor.u32 %v747, %v748
    %v750 = vrot.slane %v271, 1
    %v751 = vrot.slane %v267, 2
    %v752 = vor.u32 %v750, %v751
    %v753 = vsel %vm746, %v749, %v752
    %v754 = vrot.slane %v279, 1
    %v755 = vrot.slane %v275, 2
    %v756 = vor.u32 %v754, %v755
    %v757 = vsel %vm746, %v752, %v756
    %v758 = vrot.slane %v287, 1
    %v759 = vrot.slane %v283, 2
    %v760 = vor.u32 %v758, %v759
    %v761 = vsel %vm746, %v756, %v760
    %v762 = vshrl.u32 %v251, 16
    %v764 = vrot.slane %v762, 1
    %v765 = vrot.slane %v291, 2
    %v766 = vor.u32 %v764, %v765
    %v767 = vsel %vm746, %v760, %v766
    %v768 = vrot.slane %v296, 1
    %v769 = vrot.slane %v298, 2
    %v770 = vor.u32 %v768, %v769
    %v771 = vrot.slane %v307, 1
    %v772 = vrot.slane %v303, 2
    %v773 = vor.u32 %v771, %v772
    %v774 = vsel %vm746, %v770, %v773
    %v775 = vrot.slane %v315, 1
    %v776 = vrot.slane %v311, 2
    %v777 = vor.u32 %v775, %v776
    %v778 = vsel %vm746, %v773, %v777
    %v779 = vrot.slane %v323, 1
    %v780 = vrot.slane %v319, 2
    %v781 = vor.u32 %v779, %v780
    %v782 = vsel %vm746, %v777, %v781
    %v783 = vshrl.u32 %v252, 16
    %v785 = vrot.slane %v783, 1
    %v786 = vrot.slane %v327, 2
    %v787 = vor.u32 %v785, %v786
    %v788 = vsel %vm746, %v781, %v787
    %v791 = vunpack.c.l.b16 %v744
    %v792 = vunpack.c.l.b16 %v745
    %v793 = vpack.c.b16 %v792, %v791
    %v796 = vsel %vm337, %v753, 0
    %v799 = vsel %vm337, %v757, 0
    %v802 = vsel %vm337, %v761, 0
    %v805 = vsel %vm337, %v767, 0
    %v808 = vsel %vm337, %v774, 0
    %v811 = vsel %vm337, %v778, 0
    %v814 = vsel %vm337, %v782, 0
    %v817 = vsel %vm337, %v788, 0
    %819 = vmatprep.subr.bf16.mxu0 0
    %820 = vmatpush1.bf16.msra.mxu0 %v793
    %821 = vmatprep.subr.bf16.mxu0 0
    %822 = vmatpush1.bf16.msra.mxu0 0
    %823 = vmatprep.subr.bf16.mxu0 0
    %824 = vmatpush1.bf16.msra.mxu0 0
    %825 = vmatprep.subr.bf16.mxu0 0
    %826 = vmatpush1.bf16.msra.mxu0 0
    %827 = vmatprep.subr.bf16.mxu0 0
    %828 = vmatpush1.bf16.msra.mxu0 0
    %829 = vmatprep.subr.bf16.mxu0 0
    %830 = vmatpush1.bf16.msra.mxu0 0
    %831 = vmatprep.subr.bf16.mxu0 0
    %832 = vmatpush1.bf16.msra.mxu0 0
    %833 = vmatprep.subr.bf16.mxu0 0
    %834 = vmatpush1.bf16.msra.mxu0 0
    %835 = vmatprep.subr.bf16.mxu0 0
    %836 = vmatpush1.bf16.msra.mxu0 0
    %837 = vmatprep.subr.bf16.mxu0 0
    %838 = vmatpush1.bf16.msra.mxu0 0
    %839 = vmatprep.subr.bf16.mxu0 0
    %840 = vmatpush1.bf16.msra.mxu0 0
    %841 = vmatprep.subr.bf16.mxu0 0
    %842 = vmatpush1.bf16.msra.mxu0 0
    %843 = vmatprep.subr.bf16.mxu0 0
    %844 = vmatpush1.bf16.msra.mxu0 0
    %845 = vmatprep.subr.bf16.mxu0 0
    %846 = vmatpush1.bf16.msra.mxu0 0
    %847 = vmatprep.subr.bf16.mxu0 0
    %848 = vmatpush1.bf16.msra.mxu0 0
    %849 = vmatprep.subr.bf16.mxu0 0
    %850 = vmatpush1.bf16.msra.mxu0 0
    %851 = vmatprep.mubr.bf16.mxu0 0
    %852 = vmatmul.mubr.bf16.gmra.mrb[0].mxu0 %v796
    %v853 = vpop.f32.mrb[0].mxu0
    %v854 = vadd.f32 0.0, %v853
    %v855 = vpop.f32.mrb[0].mxu0
    %v856 = vpop.f32.mrb[0].mxu0
    %v857 = vadd.f32 0.0, %v856
    %v858 = vpop.f32.mrb[0].mxu0
    %859 = vmatprep.mubr.bf16.mxu0 0
    %860 = vmatmul.mubr.bf16.gmra.mrb[0].mxu0 %v799
    %v861 = vpop.f32.mrb[0].mxu0
    %v862 = vadd.f32 0.0, %v861
    %v863 = vpop.f32.mrb[0].mxu0
    %v864 = vpop.f32.mrb[0].mxu0
    %v865 = vadd.f32 0.0, %v864
    %v866 = vpop.f32.mrb[0].mxu0
    %867 = vmatprep.mubr.bf16.mxu0 0
    %868 = vmatmul.mubr.bf16.gmra.mrb[0].mxu0 %v802
    %v869 = vpop.f32.mrb[0].mxu0
    %v870 = vadd.f32 0.0, %v869
    %v871 = vpop.f32.mrb[0].mxu0
    %v872 = vpop.f32.mrb[0].mxu0
    %v873 = vadd.f32 0.0, %v872
    %v874 = vpop.f32.mrb[0].mxu0
    %875 = vmatprep.mubr.bf16.mxu0 0
    %876 = vmatmul.mubr.bf16.gmra.mrb[0].mxu0 %v805
    %v877 = vpop.f32.mrb[0].mxu0
    %v878 = vadd.f32 0.0, %v877
    %v879 = vpop.f32.mrb[0].mxu0
    %v880 = vpop.f32.mrb[0].mxu0
    %v881 = vadd.f32 0.0, %v880
    %v882 = vpop.f32.mrb[0].mxu0
    %883 = vmatprep.mubr.bf16.mxu0 0
    %884 = vmatmul.mubr.bf16.gmra.mrb[0].mxu0 %v808
    %v885 = vpop.f32.mrb[0].mxu0
    %v886 = vadd.f32 0.0, %v885
    %v887 = vpop.f32.mrb[0].mxu0
    %v888 = vpop.f32.mrb[0].mxu0
    %v889 = vadd.f32 0.0, %v888
    %v890 = vpop.f32.mrb[0].mxu0
    %891 = vmatprep.mubr.bf16.mxu0 0
    %892 = vmatmul.mubr.bf16.gmra.mrb[0].mxu0 %v811
    %v893 = vpop.f32.mrb[0].mxu0
    %v894 = vadd.f32 0.0, %v893
    %v895 = vpop.f32.mrb[0].mxu0
    %v896 = vpop.f32.mrb[0].mxu0
    %v897 = vadd.f32 0.0, %v896
    %v898 = vpop.f32.mrb[0].mxu0
    %899 = vmatprep.mubr.bf16.mxu0 0
    %900 = vmatmul.mubr.bf16.gmra.mrb[0].mxu0 %v814
    %v901 = vpop.f32.mrb[0].mxu0
    %v902 = vadd.f32 0.0, %v901
    %v903 = vpop.f32.mrb[0].mxu0
    %v904 = vpop.f32.mrb[0].mxu0
    %v905 = vadd.f32 0.0, %v904
    %v906 = vpop.f32.mrb[0].mxu0
    %907 = vmatprep.mubr.bf16.mxu0 0
    %908 = vmatmul.mubr.bf16.gmra.mrb[0].mxu0 %v817
    %v909 = vpop.f32.mrb[0].mxu0
    %v910 = vadd.f32 0.0, %v909
    %v911 = vpop.f32.mrb[0].mxu0
    %v912 = vpop.f32.mrb[0].mxu0
    %v913 = vadd.f32 0.0, %v912
    %v914 = vpop.f32.mrb[0].mxu0
    %915 = vdwg.mxu0
    %v916 = vadd.f32 %v727, %v854
    %v917 = vadd.f32 %v728, %v857
    %v918 = vadd.f32 %v729, %v862
    %v919 = vadd.f32 %v730, %v865
    %v920 = vadd.f32 %v731, %v870
    %v921 = vadd.f32 %v732, %v873
    %v922 = vadd.f32 %v733, %v878
    %v923 = vadd.f32 %v734, %v881
    %v924 = vadd.f32 %v735, %v886
    %v925 = vadd.f32 %v736, %v889
    %v926 = vadd.f32 %v737, %v894
    %v927 = vadd.f32 %v738, %v897
    %v928 = vadd.f32 %v739, %v902
    %v929 = vadd.f32 %v740, %v905
    %v930 = vadd.f32 %v741, %v910
    %v931 = vadd.f32 %v742, %v913
    %s932 = scalar_lea.vmem %s2, 32
    %v933 = vld [vmem:[%s932] sm:$0xf]
    %v934 = vld [vmem:[%s932 + $0x4] sm:$0xf]
    %vm935 = vcmask 1045504
    %v936 = vrot.slane %v235, 2
    %v937 = vrot.slane %v236, 2
    %v938 = vsel %vm935, %v936, %v937
    %v939 = vrot.slane %v237, 2
    %v940 = vsel %vm935, %v937, %v939
    %v941 = vrot.slane %v238, 2
    %v942 = vsel %vm935, %v939, %v941
    %v943 = vrot.slane %v251, 2
    %v944 = vsel %vm935, %v941, %v943
    %v945 = vrot.slane %v239, 2
    %v946 = vrot.slane %v240, 2
    %v947 = vsel %vm935, %v945, %v946
    %v948 = vrot.slane %v241, 2
    %v949 = vsel %vm935, %v946, %v948
    %v950 = vrot.slane %v242, 2
    %v951 = vsel %vm935, %v948, %v950
    %v952 = vrot.slane %v252, 2
    %v953 = vsel %vm935, %v950, %v952
    %v956 = vunpack.c.l.b16 %v933
    %v957 = vunpack.c.l.b16 %v934
    %v958 = vpack.c.b16 %v957, %v956
    %v961 = vsel %vm337, %v938, 0
    %v964 = vsel %vm337, %v940, 0
    %v967 = vsel %vm337, %v942, 0
    %v970 = vsel %vm337, %v944, 0
    %v973 = vsel %vm337, %v947, 0
    %v976 = vsel %vm337, %v949, 0
    %v979 = vsel %vm337, %v951, 0
    %v982 = vsel %vm337, %v953, 0
    %984 = vmatprep.subr.bf16.mxu0 0
    %985 = vmatpush1.bf16.msra.mxu0 %v958
    %986 = vmatprep.subr.bf16.mxu0 0
    %987 = vmatpush1.bf16.msra.mxu0 0
    %988 = vmatprep.subr.bf16.mxu0 0
    %989 = vmatpush1.bf16.msra.mxu0 0
    %990 = vmatprep.subr.bf16.mxu0 0
    %991 = vmatpush1.bf16.msra.mxu0 0
    %992 = vmatprep.subr.bf16.mxu0 0
    %993 = vmatpush1.bf16.msra.mxu0 0
    %994 = vmatprep.subr.bf16.mxu0 0
    %995 = vmatpush1.bf16.msra.mxu0 0
    %996 = vmatprep.subr.bf16.mxu0 0
    %997 = vmatpush1.bf16.msra.mxu0 0
    %998 = vmatprep.subr.bf16.mxu0 0
    %999 = vmatpush1.bf16.msra.mxu0 0
    %1000 = vmatprep.subr.bf16.mxu0 0
    %1001 = vmatpush1.bf16.msra.mxu0 0
    %1002 = vmatprep.subr.bf16.mxu0 0
    %1003 = vmatpush1.bf16.msra.mxu0 0
    %1004 = vmatprep.subr.bf16.mxu0 0
    %1005 = vmatpush1.bf16.msra.mxu0 0
    %1006 = vmatprep.subr.bf16.mxu0 0
    %1007 = vmatpush1.bf16.msra.mxu0 0
    %1008 = vmatprep.subr.bf16.mxu0 0
    %1009 = vmatpush1.bf16.msra.mxu0 0
    %1010 = vmatprep.subr.bf16.mxu0 0
    %1011 = vmatpush1.bf16.msra.mxu0 0
    %1012 = vmatprep.subr.bf16.mxu0 0
    %1013 = vmatpush1.bf16.msra.mxu0 0
    %1014 = vmatprep.subr.bf16.mxu0 0
    %1015 = vmatpush1.bf16.msra.mxu0 0
    %1016 = vmatprep.mubr.bf16.mxu0 0
    %1017 = vmatmul.mubr.bf16.gmra.mrb[0].mxu0 %v961
    %v1018 = vpop.f32.mrb[0].mxu0
    %v1019 = vadd.f32 0.0, %v1018
    %v1020 = vpop.f32.mrb[0].mxu0
    %v1021 = vpop.f32.mrb[0].mxu0
    %v1022 = vadd.f32 0.0, %v1021
    %v1023 = vpop.f32.mrb[0].mxu0
    %1024 = vmatprep.mubr.bf16.mxu0 0
    %1025 = vmatmul.mubr.bf16.gmra.mrb[0].mxu0 %v964
    %v1026 = vpop.f32.mrb[0].mxu0
    %v1027 = vadd.f32 0.0, %v1026
    %v1028 = vpop.f32.mrb[0].mxu0
    %v1029 = vpop.f32.mrb[0].mxu0
    %v1030 = vadd.f32 0.0, %v1029
    %v1031 = vpop.f32.mrb[0].mxu0
    %1032 = vmatprep.mubr.bf16.mxu0 0
    %1033 = vmatmul.mubr.bf16.gmra.mrb[0].mxu0 %v967
    %v1034 = vpop.f32.mrb[0].mxu0
    %v1035 = vadd.f32 0.0, %v1034
    %v1036 = vpop.f32.mrb[0].mxu0
    %v1037 = vpop.f32.mrb[0].mxu0
    %v1038 = vadd.f32 0.0, %v1037
    %v1039 = vpop.f32.mrb[0].mxu0
    %1040 = vmatprep.mubr.bf16.mxu0 0
    %1041 = vmatmul.mubr.bf16.gmra.mrb[0].mxu0 %v970
    %v1042 = vpop.f32.mrb[0].mxu0
    %v1043 = vadd.f32 0.0, %v1042
    %v1044 = vpop.f32.mrb[0].mxu0
    %v1045 = vpop.f32.mrb[0].mxu0
    %v1046 = vadd.f32 0.0, %v1045
    %v1047 = vpop.f32.mrb[0].mxu0
    %1048 = vmatprep.mubr.bf16.mxu0 0
    %1049 = vmatmul.mubr.bf16.gmra.mrb[0].mxu0 %v973
    %v1050 = vpop.f32.mrb[0].mxu0
    %v1051 = vadd.f32 0.0, %v1050
    %v1052 = vpop.f32.mrb[0].mxu0
    %v1053 = vpop.f32.mrb[0].mxu0
    %v1054 = vadd.f32 0.0, %v1053
    %v1055 = vpop.f32.mrb[0].mxu0
    %1056 = vmatprep.mubr.bf16.mxu0 0
    %1057 = vmatmul.mubr.bf16.gmra.mrb[0].mxu0 %v976
    %v1058 = vpop.f32.mrb[0].mxu0
    %v1059 = vadd.f32 0.0, %v1058
    %v1060 = vpop.f32.mrb[0].mxu0
    %v1061 = vpop.f32.mrb[0].mxu0
    %v1062 = vadd.f32 0.0, %v1061
    %v1063 = vpop.f32.mrb[0].mxu0
    %1064 = vmatprep.mubr.bf16.mxu0 0
    %1065 = vmatmul.mubr.bf16.gmra.mrb[0].mxu0 %v979
    %v1066 = vpop.f32.mrb[0].mxu0
    %v1067 = vadd.f32 0.0, %v1066
    %v1068 = vpop.f32.mrb[0].mxu0
    %v1069 = vpop.f32.mrb[0].mxu0
    %v1070 = vadd.f32 0.0, %v1069
    %v1071 = vpop.f32.mrb[0].mxu0
    %1072 = vmatprep.mubr.bf16.mxu0 0
    %1073 = vmatmul.mubr.bf16.gmra.mrb[0].mxu0 %v982
    %v1074 = vpop.f32.mrb[0].mxu0
    %v1075 = vadd.f32 0.0, %v1074
    %v1076 = vpop.f32.mrb[0].mxu0
    %v1077 = vpop.f32.mrb[0].mxu0
    %v1078 = vadd.f32 0.0, %v1077
    %v1079 = vpop.f32.mrb[0].mxu0
    %1080 = vdwg.mxu0
    %v1081 = vadd.f32 %v916, %v1019
    %v1082 = vadd.f32 %v917, %v1022
    %v1083 = vadd.f32 %v918, %v1027
    %v1084 = vadd.f32 %v919, %v1030
    %v1085 = vadd.f32 %v920, %v1035
    %v1086 = vadd.f32 %v921, %v1038
    %v1087 = vadd.f32 %v922, %v1043
    %v1088 = vadd.f32 %v923, %v1046
    %v1089 = vadd.f32 %v924, %v1051
    %v1090 = vadd.f32 %v925, %v1054
    %v1091 = vadd.f32 %v926, %v1059
    %v1092 = vadd.f32 %v927, %v1062
    %v1093 = vadd.f32 %v928, %v1067
    %v1094 = vadd.f32 %v929, %v1070
    %v1095 = vadd.f32 %v930, %v1075
    %v1096 = vadd.f32 %v931, %v1078
    %s1097 = scalar_lea.vmem %s2, 40
    %v1098 = vld [vmem:[%s1097] sm:$0xf]
    %v1099 = vld [vmem:[%s1097 + $0x4] sm:$0xf]
    %vm1100 = vsmask.f32 5376
    %v1101 = vrot.slane %v260, 2
    %v1102 = vrot.slane %v262, 3
    %v1103 = vor.u32 %v1101, %v1102
    %v1104 = vrot.slane %v271, 2
    %v1105 = vrot.slane %v267, 3
    %v1106 = vor.u32 %v1104, %v1105
    %v1107 = vsel %vm1100, %v1103, %v1106
    %v1108 = vrot.slane %v279, 2
    %v1109 = vrot.slane %v275, 3
    %v1110 = vor.u32 %v1108, %v1109
    %v1111 = vsel %vm1100, %v1106, %v1110
    %v1112 = vrot.slane %v287, 2
    %v1113 = vrot.slane %v283, 3
    %v1114 = vor.u32 %v1112, %v1113
    %v1115 = vsel %vm1100, %v1110, %v1114
    %v1116 = vrot.slane %v762, 2
    %v1117 = vrot.slane %v291, 3
    %v1118 = vor.u32 %v1116, %v1117
    %v1119 = vsel %vm1100, %v1114, %v1118
    %v1120 = vrot.slane %v296, 2
    %v1121 = vrot.slane %v298, 3
    %v1122 = vor.u32 %v1120, %v1121
    %v1123 = vrot.slane %v307, 2
    %v1124 = vrot.slane %v303, 3
    %v1125 = vor.u32 %v1123, %v1124
    %v1126 = vsel %vm1100, %v1122, %v1125
    %v1127 = vrot.slane %v315, 2
    %v1128 = vrot.slane %v311, 3
    %v1129 = vor.u32 %v1127, %v1128
    %v1130 = vsel %vm1100, %v1125, %v1129
    %v1131 = vrot.slane %v323, 2
    %v1132 = vrot.slane %v319, 3
    %v1133 = vor.u32 %v1131, %v1132
    %v1134 = vsel %vm1100, %v1129, %v1133
    %v1135 = vrot.slane %v783, 2
    %v1136 = vrot.slane %v327, 3
    %v1137 = vor.u32 %v1135, %v1136
    %v1138 = vsel %vm1100, %v1133, %v1137
    %v1141 = vunpack.c.l.b16 %v1098
    %v1142 = vunpack.c.l.b16 %v1099
    %v1143 = vpack.c.b16 %v1142, %v1141
    %v1146 = vsel %vm337, %v1107, 0
    %v1149 = vsel %vm337, %v1111, 0
    %v1152 = vsel %vm337, %v1115, 0
    %v1155 = vsel %vm337, %v1119, 0
    %v1158 = vsel %vm337, %v1126, 0
    %v1161 = vsel %vm337, %v1130, 0
    %v1164 = vsel %vm337, %v1134, 0
    %v1167 = vsel %vm337, %v1138, 0
    %1169 = vmatprep.subr.bf16.mxu0 0
    %1170 = vmatpush1.bf16.msra.mxu0 %v1143
    %1171 = vmatprep.subr.bf16.mxu0 0
    %1172 = vmatpush1.bf16.msra.mxu0 0
    %1173 = vmatprep.subr.bf16.mxu0 0
    %1174 = vmatpush1.bf16.msra.mxu0 0
    %1175 = vmatprep.subr.bf16.mxu0 0
    %1176 = vmatpush1.bf16.msra.mxu0 0
    %1177 = vmatprep.subr.bf16.mxu0 0
    %1178 = vmatpush1.bf16.msra.mxu0 0
    %1179 = vmatprep.subr.bf16.mxu0 0
    %1180 = vmatpush1.bf16.msra.mxu0 0
    %1181 = vmatprep.subr.bf16.mxu0 0
    %1182 = vmatpush1.bf16.msra.mxu0 0
    %1183 = vmatprep.subr.bf16.mxu0 0
    %1184 = vmatpush1.bf16.msra.mxu0 0
    %1185 = vmatprep.subr.bf16.mxu0 0
    %1186 = vmatpush1.bf16.msra.mxu0 0
    %1187 = vmatprep.subr.bf16.mxu0 0
    %1188 = vmatpush1.bf16.msra.mxu0 0
    %1189 = vmatprep.subr.bf16.mxu0 0
    %1190 = vmatpush1.bf16.msra.mxu0 0
    %1191 = vmatprep.subr.bf16.mxu0 0
    %1192 = vmatpush1.bf16.msra.mxu0 0
    %1193 = vmatprep.subr.bf16.mxu0 0
    %1194 = vmatpush1.bf16.msra.mxu0 0
    %1195 = vmatprep.subr.bf16.mxu0 0
    %1196 = vmatpush1.bf16.msra.mxu0 0
    %1197 = vmatprep.subr.bf16.mxu0 0
    %1198 = vmatpush1.bf16.msra.mxu0 0
    %1199 = vmatprep.subr.bf16.mxu0 0
    %1200 = vmatpush1.bf16.msra.mxu0 0
    %1201 = vmatprep.mubr.bf16.mxu0 0
    %1202 = vmatmul.mubr.bf16.gmra.mrb[0].mxu0 %v1146
    %v1203 = vpop.f32.mrb[0].mxu0
    %v1204 = vadd.f32 0.0, %v1203
    %v1205 = vpop.f32.mrb[0].mxu0
    %v1206 = vpop.f32.mrb[0].mxu0
    %v1207 = vadd.f32 0.0, %v1206
    %v1208 = vpop.f32.mrb[0].mxu0
    %1209 = vmatprep.mubr.bf16.mxu0 0
    %1210 = vmatmul.mubr.bf16.gmra.mrb[0].mxu0 %v1149
    %v1211 = vpop.f32.mrb[0].mxu0
    %v1212 = vadd.f32 0.0, %v1211
    %v1213 = vpop.f32.mrb[0].mxu0
    %v1214 = vpop.f32.mrb[0].mxu0
    %v1215 = vadd.f32 0.0, %v1214
    %v1216 = vpop.f32.mrb[0].mxu0
    %1217 = vmatprep.mubr.bf16.mxu0 0
    %1218 = vmatmul.mubr.bf16.gmra.mrb[0].mxu0 %v1152
    %v1219 = vpop.f32.mrb[0].mxu0
    %v1220 = vadd.f32 0.0, %v1219
    %v1221 = vpop.f32.mrb[0].mxu0
    %v1222 = vpop.f32.mrb[0].mxu0
    %v1223 = vadd.f32 0.0, %v1222
    %v1224 = vpop.f32.mrb[0].mxu0
    %1225 = vmatprep.mubr.bf16.mxu0 0
    %1226 = vmatmul.mubr.bf16.gmra.mrb[0].mxu0 %v1155
    %v1227 = vpop.f32.mrb[0].mxu0
    %v1228 = vadd.f32 0.0, %v1227
    %v1229 = vpop.f32.mrb[0].mxu0
    %v1230 = vpop.f32.mrb[0].mxu0
    %v1231 = vadd.f32 0.0, %v1230
    %v1232 = vpop.f32.mrb[0].mxu0
    %1233 = vmatprep.mubr.bf16.mxu0 0
    %1234 = vmatmul.mubr.bf16.gmra.mrb[0].mxu0 %v1158
    %v1235 = vpop.f32.mrb[0].mxu0
    %v1236 = vadd.f32 0.0, %v1235
    %v1237 = vpop.f32.mrb[0].mxu0
    %v1238 = vpop.f32.mrb[0].mxu0
    %v1239 = vadd.f32 0.0, %v1238
    %v1240 = vpop.f32.mrb[0].mxu0
    %1241 = vmatprep.mubr.bf16.mxu0 0
    %1242 = vmatmul.mubr.bf16.gmra.mrb[0].mxu0 %v1161
    %v1243 = vpop.f32.mrb[0].mxu0
    %v1244 = vadd.f32 0.0, %v1243
    %v1245 = vpop.f32.mrb[0].mxu0
    %v1246 = vpop.f32.mrb[0].mxu0
    %v1247 = vadd.f32 0.0, %v1246
    %v1248 = vpop.f32.mrb[0].mxu0
    %1249 = vmatprep.mubr.bf16.mxu0 0
    %1250 = vmatmul.mubr.bf16.gmra.mrb[0].mxu0 %v1164
    %v1251 = vpop.f32.mrb[0].mxu0
    %v1252 = vadd.f32 0.0, %v1251
    %v1253 = vpop.f32.mrb[0].mxu0
    %v1254 = vpop.f32.mrb[0].mxu0
    %v1255 = vadd.f32 0.0, %v1254
    %v1256 = vpop.f32.mrb[0].mxu0
    %1257 = vmatprep.mubr.bf16.mxu0 0
    %1258 = vmatmul.mubr.bf16.gmra.mrb[0].mxu0 %v1167
    %v1259 = vpop.f32.mrb[0].mxu0
    %v1260 = vadd.f32 0.0, %v1259
    %v1261 = vpop.f32.mrb[0].mxu0
    %v1262 = vpop.f32.mrb[0].mxu0
    %v1263 = vadd.f32 0.0, %v1262
    %v1264 = vpop.f32.mrb[0].mxu0
    %1265 = vdwg.mxu0
    %v1266 = vadd.f32 %v1081, %v1204
    %v1267 = vadd.f32 %v1082, %v1207
    %v1268 = vadd.f32 %v1083, %v1212
    %v1269 = vadd.f32 %v1084, %v1215
    %v1270 = vadd.f32 %v1085, %v1220
    %v1271 = vadd.f32 %v1086, %v1223
    %v1272 = vadd.f32 %v1087, %v1228
    %v1273 = vadd.f32 %v1088, %v1231
    %v1274 = vadd.f32 %v1089, %v1236
    %v1275 = vadd.f32 %v1090, %v1239
    %v1276 = vadd.f32 %v1091, %v1244
    %v1277 = vadd.f32 %v1092, %v1247
    %v1278 = vadd.f32 %v1093, %v1252
    %v1279 = vadd.f32 %v1094, %v1255
    %v1280 = vadd.f32 %v1095, %v1260
    %v1281 = vadd.f32 %v1096, %v1263
    %s1282 = scalar_lea.vmem %s2, 48
    %v1283 = vld [vmem:[%s1282] sm:$0xf]
    %v1284 = vld [vmem:[%s1282 + $0x4] sm:$0xf]
    %vm1285 = vcmask 1044480
    %v1286 = vrot.slane %v235, 3
    %v1287 = vrot.slane %v236, 3
    %v1288 = vsel %vm1285, %v1286, %v1287
    %v1289 = vrot.slane %v237, 3
    %v1290 = vsel %vm1285, %v1287, %v1289
    %v1291 = vrot.slane %v238, 3
    %v1292 = vsel %vm1285, %v1289, %v1291
    %v1293 = vrot.slane %v251, 3
    %v1294 = vsel %vm1285, %v1291, %v1293
    %v1295 = vrot.slane %v239, 3
    %v1296 = vrot.slane %v240, 3
    %v1297 = vsel %vm1285, %v1295, %v1296
    %v1298 = vrot.slane %v241, 3
    %v1299 = vsel %vm1285, %v1296, %v1298
    %v1300 = vrot.slane %v242, 3
    %v1301 = vsel %vm1285, %v1298, %v1300
    %v1302 = vrot.slane %v252, 3
    %v1303 = vsel %vm1285, %v1300, %v1302
    %v1306 = vunpack.c.l.b16 %v1283
    %v1307 = vunpack.c.l.b16 %v1284
    %v1308 = vpack.c.b16 %v1307, %v1306
    %v1311 = vsel %vm337, %v1288, 0
    %v1314 = vsel %vm337, %v1290, 0
    %v1317 = vsel %vm337, %v1292, 0
    %v1320 = vsel %vm337, %v1294, 0
    %v1323 = vsel %vm337, %v1297, 0
    %v1326 = vsel %vm337, %v1299, 0
    %v1329 = vsel %vm337, %v1301, 0
    %v1332 = vsel %vm337, %v1303, 0
    %1334 = vmatprep.subr.bf16.mxu0 0
    %1335 = vmatpush1.bf16.msra.mxu0 %v1308
    %1336 = vmatprep.subr.bf16.mxu0 0
    %1337 = vmatpush1.bf16.msra.mxu0 0
    %1338 = vmatprep.subr.bf16.mxu0 0
    %1339 = vmatpush1.bf16.msra.mxu0 0
    %1340 = vmatprep.subr.bf16.mxu0 0
    %1341 = vmatpush1.bf16.msra.mxu0 0
    %1342 = vmatprep.subr.bf16.mxu0 0
    %1343 = vmatpush1.bf16.msra.mxu0 0
    %1344 = vmatprep.subr.bf16.mxu0 0
    %1345 = vmatpush1.bf16.msra.mxu0 0
    %1346 = vmatprep.subr.bf16.mxu0 0
    %1347 = vmatpush1.bf16.msra.mxu0 0
    %1348 = vmatprep.subr.bf16.mxu0 0
    %1349 = vmatpush1.bf16.msra.mxu0 0
    %1350 = vmatprep.subr.bf16.mxu0 0
    %1351 = vmatpush1.bf16.msra.mxu0 0
    %1352 = vmatprep.subr.bf16.mxu0 0
    %1353 = vmatpush1.bf16.msra.mxu0 0
    %1354 = vmatprep.subr.bf16.mxu0 0
    %1355 = vmatpush1.bf16.msra.mxu0 0
    %1356 = vmatprep.subr.bf16.mxu0 0
    %1357 = vmatpush1.bf16.msra.mxu0 0
    %1358 = vmatprep.subr.bf16.mxu0 0
    %1359 = vmatpush1.bf16.msra.mxu0 0
    %1360 = vmatprep.subr.bf16.mxu0 0
    %1361 = vmatpush1.bf16.msra.mxu0 0
    %1362 = vmatprep.subr.bf16.mxu0 0
    %1363 = vmatpush1.bf16.msra.mxu0 0
    %1364 = vmatprep.subr.bf16.mxu0 0
    %1365 = vmatpush1.bf16.msra.mxu0 0
    %1366 = vmatprep.mubr.bf16.mxu0 0
    %1367 = vmatmul.mubr.bf16.gmra.mrb[0].mxu0 %v1311
    %v1368 = vpop.f32.mrb[0].mxu0
    %v1369 = vadd.f32 0.0, %v1368
    %v1370 = vpop.f32.mrb[0].mxu0
    %v1371 = vpop.f32.mrb[0].mxu0
    %v1372 = vadd.f32 0.0, %v1371
    %v1373 = vpop.f32.mrb[0].mxu0
    %1374 = vmatprep.mubr.bf16.mxu0 0
    %1375 = vmatmul.mubr.bf16.gmra.mrb[0].mxu0 %v1314
    %v1376 = vpop.f32.mrb[0].mxu0
    %v1377 = vadd.f32 0.0, %v1376
    %v1378 = vpop.f32.mrb[0].mxu0
    %v1379 = vpop.f32.mrb[0].mxu0
    %v1380 = vadd.f32 0.0, %v1379
    %v1381 = vpop.f32.mrb[0].mxu0
    %1382 = vmatprep.mubr.bf16.mxu0 0
    %1383 = vmatmul.mubr.bf16.gmra.mrb[0].mxu0 %v1317
    %v1384 = vpop.f32.mrb[0].mxu0
    %v1385 = vadd.f32 0.0, %v1384
    %v1386 = vpop.f32.mrb[0].mxu0
    %v1387 = vpop.f32.mrb[0].mxu0
    %v1388 = vadd.f32 0.0, %v1387
    %v1389 = vpop.f32.mrb[0].mxu0
    %1390 = vmatprep.mubr.bf16.mxu0 0
    %1391 = vmatmul.mubr.bf16.gmra.mrb[0].mxu0 %v1320
    %v1392 = vpop.f32.mrb[0].mxu0
    %v1393 = vadd.f32 0.0, %v1392
    %v1394 = vpop.f32.mrb[0].mxu0
    %v1395 = vpop.f32.mrb[0].mxu0
    %v1396 = vadd.f32 0.0, %v1395
    %v1397 = vpop.f32.mrb[0].mxu0
    %1398 = vmatprep.mubr.bf16.mxu0 0
    %1399 = vmatmul.mubr.bf16.gmra.mrb[0].mxu0 %v1323
    %v1400 = vpop.f32.mrb[0].mxu0
    %v1401 = vadd.f32 0.0, %v1400
    %v1402 = vpop.f32.mrb[0].mxu0
    %v1403 = vpop.f32.mrb[0].mxu0
    %v1404 = vadd.f32 0.0, %v1403
    %v1405 = vpop.f32.mrb[0].mxu0
    %1406 = vmatprep.mubr.bf16.mxu0 0
    %1407 = vmatmul.mubr.bf16.gmra.mrb[0].mxu0 %v1326
    %v1408 = vpop.f32.mrb[0].mxu0
    %v1409 = vadd.f32 0.0, %v1408
    %v1410 = vpop.f32.mrb[0].mxu0
    %v1411 = vpop.f32.mrb[0].mxu0
    %v1412 = vadd.f32 0.0, %v1411
    %v1413 = vpop.f32.mrb[0].mxu0
    %1414 = vmatprep.mubr.bf16.mxu0 0
    %1415 = vmatmul.mubr.bf16.gmra.mrb[0].mxu0 %v1329
    %v1416 = vpop.f32.mrb[0].mxu0
    %v1417 = vadd.f32 0.0, %v1416
    %v1418 = vpop.f32.mrb[0].mxu0
    %v1419 = vpop.f32.mrb[0].mxu0
    %v1420 = vadd.f32 0.0, %v1419
    %v1421 = vpop.f32.mrb[0].mxu0
    %1422 = vmatprep.mubr.bf16.mxu0 0
    %1423 = vmatmul.mubr.bf16.gmra.mrb[0].mxu0 %v1332
    %v1424 = vpop.f32.mrb[0].mxu0
    %v1425 = vadd.f32 0.0, %v1424
    %v1426 = vpop.f32.mrb[0].mxu0
    %v1427 = vpop.f32.mrb[0].mxu0
    %v1428 = vadd.f32 0.0, %v1427
    %v1429 = vpop.f32.mrb[0].mxu0
    %1430 = vdwg.mxu0
    %v1431 = vadd.f32 %v1266, %v1369
    %v1432 = vadd.f32 %v1267, %v1372
    %v1433 = vadd.f32 %v1268, %v1377
    %v1434 = vadd.f32 %v1269, %v1380
    %v1435 = vadd.f32 %v1270, %v1385
    %v1436 = vadd.f32 %v1271, %v1388
    %v1437 = vadd.f32 %v1272, %v1393
    %v1438 = vadd.f32 %v1273, %v1396
    %v1439 = vadd.f32 %v1274, %v1401
    %v1440 = vadd.f32 %v1275, %v1404
    %v1441 = vadd.f32 %v1276, %v1409
    %v1442 = vadd.f32 %v1277, %v1412
    %v1443 = vadd.f32 %v1278, %v1417
    %v1444 = vadd.f32 %v1279, %v1420
    %v1445 = vadd.f32 %v1280, %v1425
    %v1446 = vadd.f32 %v1281, %v1428
    %v1447 = vld [vmem:[%s3] sm:$0x1]
    %v1449 = vlaneseq
    %v1450 = vshrl.u32 %v1449, 7
    %v1451 = vsub.s32 0, %v1450
    %v1452 = vrot.slane %v1447, %v1451
    %v1454 = vmul.f32 %v1431, %v1452
    %v1455 = vmul.f32 %v1432, %v1452
    %v1456 = vmul.f32 %v1433, %v1452
    %v1457 = vmul.f32 %v1434, %v1452
    %v1458 = vmul.f32 %v1435, %v1452
    %v1459 = vmul.f32 %v1436, %v1452
    %v1460 = vmul.f32 %v1437, %v1452
    %v1461 = vmul.f32 %v1438, %v1452
    %v1462 = vmul.f32 %v1439, %v1452
    %v1463 = vmul.f32 %v1440, %v1452
    %v1464 = vmul.f32 %v1441, %v1452
    %v1465 = vmul.f32 %v1442, %v1452
    %v1466 = vmul.f32 %v1443, %v1452
    %v1467 = vmul.f32 %v1444, %v1452
    %v1468 = vmul.f32 %v1445, %v1452
    %v1469 = vmul.f32 %v1446, %v1452
    %v1470 = vld [vmem:[%s4] sm:$0x1]
    %v1472 = vlaneseq
    %v1473 = vshrl.u32 %v1472, 7
    %v1474 = vsub.s32 0, %v1473
    %v1475 = vrot.slane %v1470, %v1474
    %v1477 = vadd.f32 %v1454, %v1475
    %v1478 = vadd.f32 %v1455, %v1475
    %v1479 = vadd.f32 %v1456, %v1475
    %v1480 = vadd.f32 %v1457, %v1475
    %v1481 = vadd.f32 %v1458, %v1475
    %v1482 = vadd.f32 %v1459, %v1475
    %v1483 = vadd.f32 %v1460, %v1475
    %v1484 = vadd.f32 %v1461, %v1475
    %v1485 = vadd.f32 %v1462, %v1475
    %v1486 = vadd.f32 %v1463, %v1475
    %v1487 = vadd.f32 %v1464, %v1475
    %v1488 = vadd.f32 %v1465, %v1475
    %v1489 = vadd.f32 %v1466, %v1475
    %v1490 = vadd.f32 %v1467, %v1475
    %v1491 = vadd.f32 %v1468, %v1475
    %v1492 = vadd.f32 %v1469, %v1475
    %v1493 = vmax.f32 %v1477, 0.0
    %v1494 = vmax.f32 %v1478, 0.0
    %v1495 = vmax.f32 %v1479, 0.0
    %v1496 = vmax.f32 %v1480, 0.0
    %v1497 = vmax.f32 %v1481, 0.0
    %v1498 = vmax.f32 %v1482, 0.0
    %v1499 = vmax.f32 %v1483, 0.0
    %v1500 = vmax.f32 %v1484, 0.0
    %v1501 = vmax.f32 %v1485, 0.0
    %v1502 = vmax.f32 %v1486, 0.0
    %v1503 = vmax.f32 %v1487, 0.0
    %v1504 = vmax.f32 %v1488, 0.0
    %v1505 = vmax.f32 %v1489, 0.0
    %v1506 = vmax.f32 %v1490, 0.0
    %v1507 = vmax.f32 %v1491, 0.0
    %v1508 = vmax.f32 %v1492, 0.0
    %vm1509 = vcmask 261120
    %1510 = vst.msk [vmem:[#allocation2] sm:$0xff] %vm1509, %v1493
    %1511 = vst.msk [vmem:[#allocation2 + $0x8] sm:$0xff] %vm1509, %v1494
    %1512 = vst.msk [vmem:[#allocation2 + $0x10] sm:$0xff] %vm1509, %v1495
    %1513 = vst.msk [vmem:[#allocation2 + $0x18] sm:$0xff] %vm1509, %v1496
    %1514 = vst.msk [vmem:[#allocation2 + $0x20] sm:$0xff] %vm1509, %v1497
    %1515 = vst.msk [vmem:[#allocation2 + $0x28] sm:$0xff] %vm1509, %v1498
    %1516 = vst.msk [vmem:[#allocation2 + $0x30] sm:$0xff] %vm1509, %v1499
    %1517 = vst.msk [vmem:[#allocation2 + $0x38] sm:$0xff] %vm1509, %v1500
    %1518 = vst.msk [vmem:[#allocation2 + $0x40] sm:$0xff] %vm1509, %v1501
    %1519 = vst.msk [vmem:[#allocation2 + $0x48] sm:$0xff] %vm1509, %v1502
    %1520 = vst.msk [vmem:[#allocation2 + $0x50] sm:$0xff] %vm1509, %v1503
    %1521 = vst.msk [vmem:[#allocation2 + $0x58] sm:$0xff] %vm1509, %v1504
    %1522 = vst.msk [vmem:[#allocation2 + $0x60] sm:$0xff] %vm1509, %v1505
    %1523 = vst.msk [vmem:[#allocation2 + $0x68] sm:$0xff] %vm1509, %v1506
    %1524 = vst.msk [vmem:[#allocation2 + $0x70] sm:$0xff] %vm1509, %v1507
    %1525 = vst.msk [vmem:[#allocation2 + $0x78] sm:$0xff] %vm1509, %v1508
    %v1526 = vld [vmem:[#allocation2] ss:$8 sm:$0xf]
    %v1527 = vld [vmem:[#allocation2] ss:$8 sm:$0xf0]
    %v1528 = vor.u32 %v1526, %v1527
    %s1529 = scalar_lea.vmem [#allocation2], 64
    %v1530 = vld [vmem:[%s1529] ss:$8 sm:$0xf]
    %v1531 = vld [vmem:[%s1529] ss:$8 sm:$0xf0]
    %v1532 = vor.u32 %v1530, %v1531
    %s1533 = scalar_lea.vmem [#allocation2], 1
    %v1534 = vld [vmem:[%s1533] ss:$8 sm:$0xf]
    %v1535 = vld [vmem:[%s1533] ss:$8 sm:$0xf0]
    %v1536 = vor.u32 %v1534, %v1535
    %s1537 = scalar_lea.vmem [#allocation2], 65
    %v1538 = vld [vmem:[%s1537] ss:$8 sm:$0xf]
    %v1539 = vld [vmem:[%s1537] ss:$8 sm:$0xf0]
    %v1540 = vor.u32 %v1538, %v1539
    %v1541 = vmax.f32 %v1528, %v1536
    %v1542 = vmax.f32 %v1532, %v1540
    %s1543 = scalar_lea.vmem [#allocation2], 2
    %v1544 = vld [vmem:[%s1543] ss:$8 sm:$0xf]
    %v1545 = vld [vmem:[%s1543] ss:$8 sm:$0xf0]
    %v1546 = vor.u32 %v1544, %v1545
    %s1547 = scalar_lea.vmem [#allocation2], 66
    %v1548 = vld [vmem:[%s1547] ss:$8 sm:$0xf]
    %v1549 = vld [vmem:[%s1547] ss:$8 sm:$0xf0]
    %v1550 = vor.u32 %v1548, %v1549
    %s1551 = scalar_lea.vmem [#allocation2], 3
    %v1552 = vld [vmem:[%s1551] ss:$8 sm:$0xf]
    %v1553 = vld [vmem:[%s1551] ss:$8 sm:$0xf0]
    %v1554 = vor.u32 %v1552, %v1553
    %s1555 = scalar_lea.vmem [#allocation2], 67
    %v1556 = vld [vmem:[%s1555] ss:$8 sm:$0xf]
    %v1557 = vld [vmem:[%s1555] ss:$8 sm:$0xf0]
    %v1558 = vor.u32 %v1556, %v1557
    %v1559 = vmax.f32 %v1546, %v1554
    %v1560 = vmax.f32 %v1550, %v1558
    %s1561 = scalar_lea.vmem [#allocation2], 4
    %v1562 = vld [vmem:[%s1561] ss:$8 sm:$0xf]
    %v1563 = vld [vmem:[%s1561] ss:$8 sm:$0xf0]
    %v1564 = vor.u32 %v1562, %v1563
    %s1565 = scalar_lea.vmem [#allocation2], 68
    %v1566 = vld [vmem:[%s1565] ss:$8 sm:$0xf]
    %v1567 = vld [vmem:[%s1565] ss:$8 sm:$0xf0]
    %v1568 = vor.u32 %v1566, %v1567
    %s1569 = scalar_lea.vmem [#allocation2], 5
    %v1570 = vld [vmem:[%s1569] ss:$8 sm:$0xf]
    %v1571 = vld [vmem:[%s1569] ss:$8 sm:$0xf0]
    %v1572 = vor.u32 %v1570, %v1571
    %s1573 = scalar_lea.vmem [#allocation2], 69
    %v1574 = vld [vmem:[%s1573] ss:$8 sm:$0xf]
    %v1575 = vld [vmem:[%s1573] ss:$8 sm:$0xf0]
    %v1576 = vor.u32 %v1574, %v1575
    %v1577 = vmax.f32 %v1564, %v1572
    %v1578 = vmax.f32 %v1568, %v1576
    %s1579 = scalar_lea.vmem [#allocation2], 6
    %v1580 = vld [vmem:[%s1579] ss:$8 sm:$0xf]
    %v1581 = vld [vmem:[%s1579] ss:$8 sm:$0xf0]
    %v1582 = vor.u32 %v1580, %v1581
    %s1583 = scalar_lea.vmem [#allocation2], 70
    %v1584 = vld [vmem:[%s1583] ss:$8 sm:$0xf]
    %v1585 = vld [vmem:[%s1583] ss:$8 sm:$0xf0]
    %v1586 = vor.u32 %v1584, %v1585
    %s1587 = scalar_lea.vmem [#allocation2], 7
    %v1588 = vld [vmem:[%s1587] ss:$8 sm:$0xf]
    %v1589 = vld [vmem:[%s1587] ss:$8 sm:$0xf0]
    %v1590 = vor.u32 %v1588, %v1589
    %s1591 = scalar_lea.vmem [#allocation2], 71
    %v1592 = vld [vmem:[%s1591] ss:$8 sm:$0xf]
    %v1593 = vld [vmem:[%s1591] ss:$8 sm:$0xf0]
    %v1594 = vor.u32 %v1592, %v1593
    %v1595 = vmax.f32 %v1582, %v1590
    %v1596 = vmax.f32 %v1586, %v1594
    %1599 = vrot.lane.b32.xlu0 %v1559, 32
    %v1600 = vpop.permute.xlu0 %1599
    %1601 = vrot.lane.b32.xlu0 %v1560, 32
    %v1602 = vpop.permute.xlu0 %1601
    %1607 = vrot.lane.b32.xlu0 %v1577, 64
    %v1608 = vpop.permute.xlu0 %1607
    %1609 = vrot.lane.b32.xlu0 %v1578, 64
    %v1610 = vpop.permute.xlu0 %1609
    %1615 = vrot.lane.b32.xlu0 %v1595, 96
    %v1616 = vpop.permute.xlu0 %1615
    %1617 = vrot.lane.b32.xlu0 %v1596, 96
    %v1618 = vpop.permute.xlu0 %1617
    %v1621 = vsel %vm1509, %v1541, %v1600
    %v1622 = vsel %vm1509, %v1542, %v1602
    %vm1623 = vcmask 523264
    %v1624 = vsel %vm1623, %v1621, %v1608
    %v1625 = vsel %vm1623, %v1622, %v1610
    %vm1626 = vcmask 785408
    %v1627 = vsel %vm1626, %v1624, %v1616
    %v1628 = vsel %vm1626, %v1625, %v1618
    %1629 = vst [vmem:[%s5] sm:$0xff] %v1627
    %1630 = vst [vmem:[%s5 + $0x8] sm:$0xff] %v1628
    // Predicated region
    $region104: #{_lambda_.7} parent=1 // pred_check
      _
    $region105: #{_lambda_.7} parent=1 // pred_check_branch
      %1632 = sbr.rel (0) target = $region107
    $region106: #{_lambda_.7} parent=1 // pred_region
      _
    $region107: #{_lambda_.7} parent=1 // pred_fallthru
      _
    // Predicated region
    $region108: #{_lambda_.7} parent=1 // pred_check
      _
    $region109: #{_lambda_.7} parent=1 // pred_check_branch
      %1634 = sbr.rel (0) target = $region111
    $region110: #{_lambda_.7} parent=1 // pred_region
      _
    $region111: #{_lambda_.7} parent=1 // pred_fallthru
      _

// kernel: _lambda_.6
$region0: #{_lambda_.6}
  #allocation0 [shape = 'u32[]', space=smem, size = 0x4, offset = 0x4, fixed_abs, tag = 'smem constant byte address 0x4 - core index']
  #allocation1 [shape = 'u32[144,128]{1,0:T(1,128)}', space=vmem, size = 0x12000, scoped, tag = 'internal scratch']
  %s0 = inlined_call_operand.vmem [shape: bf16[2,80,16], index: 0, kind: input, shape index: {}, may-alias: {0,1}]
  %s1 = inlined_call_operand.vmem [shape: bf16[2,80,16], index: 1, kind: input, shape index: {}, may-alias: {0,1}]
  %s2 = inlined_call_operand.vmem [shape: bf16[7,16,32], index: 2, kind: input, shape index: {}]
  %s3 = inlined_call_operand.vmem [shape: f32[1,8,32], index: 3, kind: output, shape index: {0}]
  %s4 = inlined_call_operand.vmem [shape: f32[1,8,32], index: 4, kind: output, shape index: {1}]
  %5 = xla_tuple %s3, %s4
  %s6 = sld [smem:[#allocation0]]
  $region145: #{_lambda_.6} parent=0
    _
  %s8 = ssub.s32 1, %s6
  %s9 = scalar_select 0, %s8, %s6
  $region1: #{_lambda_.6} parent=0
    #allocation2 [shape = 'u8[32768]{0}', space=vmem, size = 0x8000, scoped, tag = 'input window, operand 0, single buffered']
    #allocation3 [shape = 'u8[8192]{0}', space=vmem, size = 0x2000, scoped, tag = 'input window, operand 1, single buffered']
    // Predicated region
    $region2: #{_lambda_.6} parent=1 // pred_check
      _
    $region3: #{_lambda_.6} parent=1 // pred_check_branch
      %11 = sbr.rel (0) target = $region5
    $region4: #{_lambda_.6} parent=1 // pred_region
      %s12 = sadd.s32 0, 0
      %s13 = smul.u32 8, %s12
      %s14 = ssub.s32 10, %s13
      %p15 = scmp.lt.s32.totalorder %s14, 8
      %s16 = scalar_select %p15, %s14, 8
      %s17 = smul.u32 128, %s16
      %p18 = scmp.ne.s32.totalorder 0, %s17
      %s19 = smul.addr %s13, 4
      %s20 = scalar_lea.vmem %s0, %s19
      // Predicated region
      $region6: #{_lambda_.6} parent=4 // pred_check
        %p21 = pneg %p18
      $region7: #{_lambda_.6} parent=4 // pred_check_branch
        %23 = sbr.rel (%p21) target = $region9
      $region8: #{_lambda_.6} parent=4 // pred_region
        // Predicated region
        $region10: #{_lambda_.6} parent=8 // pred_check
          _
        $region11: #{_lambda_.6} parent=8 // pred_check_branch
          %25 = sbr.rel target = $region13
        $region12: #{_lambda_.6} parent=8 // pred_region
          // Predicated region
          $region32: #{_lambda_.6} parent=12 // pred_check
            _
          $region33: #{_lambda_.6} parent=12 // pred_check_branch
            %106 = sbr.rel (0) target = $region35
          $region34: #{_lambda_.6} parent=12 // pred_region
            %s107 = sshrl.u32 %s16, 3
            // While loop
            $region36: #{_lambda_.6} parent=34 // loop_pre_header
              _
            $region37: #{_lambda_.6} parent=34 // loop_header
              %s109 = sphi 0, %s111
              %p110 = scmp.ge.s32.totalorder %s109, %s107
              %s114 = sphi 0, %s119
              %s115 = sphi %s20, %s122
              %s116 = sphi [#allocation2], %s123
            $region38: #{_lambda_.6} parent=34 // loop_header_branch
              %113 = sbr.rel (%p110) target = $region42
            $region39: #{_lambda_.6} parent=34 // loop_body
              %s117 = sadd.s32 1, %s114
              %p118 = scmp.ge.s32.totalorder %s117, %s107
              %s119 = scalar_select %p118, 0, %s117
              %s120 = smul.u32 %s119, 32
              %s121 = smul.u32 %s119, 32
              %s122 = scalar_lea.vmem %s20, %s120
              %s123 = scalar_lea.vmem [#allocation2], %s121
            $region40: #{_lambda_.6} parent=34 // loop_footer
              %s111 = sadd.s32 %s109, 1
            $region41: #{_lambda_.6} parent=34 // loop_footer_branch
              %108 = sbr.rel target = $region37
            $region42: #{_lambda_.6} parent=34 // loop_exit
              _
            %s124 = sshrl.u32 %s16, 3
            %s125 = sand.u32 %s16, 7
            %s126 = smul.u32 %s124, 8
            %s127 = smul.u32 4, %s126
            %s128 = scalar_lea.vmem %s20, %s127
            %s129 = smul.u32 4, %s126
            %s130 = scalar_lea.vmem [#allocation2], %s129
            // While loop
            $region43: #{_lambda_.6} parent=34 // loop_pre_header
              _
            $region44: #{_lambda_.6} parent=34 // loop_header
              %s132 = sphi 0, %s134
              %p133 = scmp.ge.s32.totalorder %s132, %s125
              %s137 = sphi 0, %s142
              %s138 = sphi %s128, %s145
              %s139 = sphi %s130, %s146
            $region45: #{_lambda_.6} parent=34 // loop_header_branch
              %136 = sbr.rel (%p133) target = $region49
            $region46: #{_lambda_.6} parent=34 // loop_body
              %s140 = sadd.s32 1, %s137
              %p141 = scmp.ge.s32.totalorder %s140, %s125
              %s142 = scalar_select %p141, 0, %s140
              %s143 = smul.u32 %s142, 4
              %s144 = smul.u32 %s142, 4
              %s145 = scalar_lea.vmem %s128, %s143
              %s146 = scalar_lea.vmem %s130, %s144 [#allocation2]
            $region47: #{_lambda_.6} parent=34 // loop_footer
              %s134 = sadd.s32 %s132, 1
            $region48: #{_lambda_.6} parent=34 // loop_footer_branch
              %131 = sbr.rel target = $region44
            $region49: #{_lambda_.6} parent=34 // loop_exit
              _
            %s148 = sshrl.u32 %s16, 3
            // While loop
            $region50: #{_lambda_.6} parent=34 // loop_pre_header
              _
            $region51: #{_lambda_.6} parent=34 // loop_header
              %s150 = sphi 0, %s152
              %p151 = scmp.ge.s32.totalorder %s150, %s148
              %s155 = sphi 0, %s192
              %s156 = sphi %s20, %s195
              %s157 = sphi [#allocation2], %s196
            $region52: #{_lambda_.6} parent=34 // loop_header_branch
              %154 = sbr.rel (%p151) target = $region56
            $region53: #{_lambda_.6} parent=34 // loop_body
              %v158 = vld [vmem:[%s156] sm:$0xf]
              %159 = vst [vmem:[%s157] sm:$0xf] %v158
              %v160 = vld [vmem:[%s156 + $0x4] sm:$0xf]
              %161 = vst [vmem:[%s157 + $0x4] sm:$0xf] %v160
              %v162 = vld [vmem:[%s156 + $0x8] sm:$0xf]
              %163 = vst [vmem:[%s157 + $0x8] sm:$0xf] %v162
              %v164 = vld [vmem:[%s156 + $0xc] sm:$0xf]
              %165 = vst [vmem:[%s157 + $0xc] sm:$0xf] %v164
              %v166 = vld [vmem:[%s156 + $0x10] sm:$0xf]
              %167 = vst [vmem:[%s157 + $0x10] sm:$0xf] %v166
              %v168 = vld [vmem:[%s156 + $0x14] sm:$0xf]
              %169 = vst [vmem:[%s157 + $0x14] sm:$0xf] %v168
              %v170 = vld [vmem:[%s156 + $0x18] sm:$0xf]
              %171 = vst [vmem:[%s157 + $0x18] sm:$0xf] %v170
              %v172 = vld [vmem:[%s156 + $0x1c] sm:$0xf]
              %173 = vst [vmem:[%s157 + $0x1c] sm:$0xf] %v172
              %v174 = vld [vmem:[%s156 + $0x28] sm:$0xf]
              %175 = vst [vmem:[%s157 + $0x20] sm:$0xf] %v174
              %v176 = vld [vmem:[%s156 + $0x2c] sm:$0xf]
              %177 = vst [vmem:[%s157 + $0x24] sm:$0xf] %v176
              %v178 = vld [vmem:[%s156 + $0x30] sm:$0xf]
              %179 = vst [vmem:[%s157 + $0x28] sm:$0xf] %v178
              %v180 = vld [vmem:[%s156 + $0x34] sm:$0xf]
              %181 = vst [vmem:[%s157 + $0x2c] sm:$0xf] %v180
              %v182 = vld [vmem:[%s156 + $0x38] sm:$0xf]
              %183 = vst [vmem:[%s157 + $0x30] sm:$0xf] %v182
              %v184 = vld [vmem:[%s156 + $0x3c] sm:$0xf]
              %185 = vst [vmem:[%s157 + $0x34] sm:$0xf] %v184
              %v186 = vld [vmem:[%s156 + $0x40] sm:$0xf]
              %187 = vst [vmem:[%s157 + $0x38] sm:$0xf] %v186
              %v188 = vld [vmem:[%s156 + $0x44] sm:$0xf]
              %189 = vst [vmem:[%s157 + $0x3c] sm:$0xf] %v188
              %s190 = sadd.s32 1, %s155
              %p191 = scmp.ge.s32.totalorder %s190, %s148
              %s192 = scalar_select %p191, 0, %s190
              %s193 = smul.u32 %s192, 32
              %s194 = smul.u32 %s192, 32
              %s195 = scalar_lea.vmem %s20, %s193
              %s196 = scalar_lea.vmem [#allocation2], %s194
            $region54: #{_lambda_.6} parent=34 // loop_footer
              %s152 = sadd.s32 %s150, 1
            $region55: #{_lambda_.6} parent=34 // loop_footer_branch
              %149 = sbr.rel target = $region51
            $region56: #{_lambda_.6} parent=34 // loop_exit
              _
            %s197 = sshrl.u32 %s16, 3
            %s198 = sand.u32 %s16, 7
            %s199 = smul.u32 %s197, 8
            %s200 = smul.u32 4, %s199
            %s201 = scalar_lea.vmem %s20, %s200
            %s202 = smul.u32 4, %s199
            %s203 = scalar_lea.vmem [#allocation2], %s202
            // While loop
            $region57: #{_lambda_.6} parent=34 // loop_pre_header
              _
            $region58: #{_lambda_.6} parent=34 // loop_header
              %s205 = sphi 0, %s207
              %p206 = scmp.ge.s32.totalorder %s205, %s198
              %s210 = sphi 0, %s219
              %s211 = sphi %s201, %s222
              %s212 = sphi %s203, %s223
            $region59: #{_lambda_.6} parent=34 // loop_header_branch
              %209 = sbr.rel (%p206) target = $region63
            $region60: #{_lambda_.6} parent=34 // loop_body
              %v213 = vld [vmem:[%s211] sm:$0xf]
              %214 = vst [vmem:[%s212] sm:$0xf] %v213
              %v215 = vld [vmem:[%s211 + $0x28] sm:$0xf]
              %216 = vst [vmem:[%s212 + $0x20] sm:$0xf] %v215
              %s217 = sadd.s32 1, %s210
              %p218 = scmp.ge.s32.totalorder %s217, %s198
              %s219 = scalar_select %p218, 0, %s217
              %s220 = smul.u32 %s219, 4
              %s221 = smul.u32 %s219, 4
              %s222 = scalar_lea.vmem %s201, %s220
              %s223 = scalar_lea.vmem %s203, %s221 [#allocation2]
            $region61: #{_lambda_.6} parent=34 // loop_footer
              %s207 = sadd.s32 %s205, 1
            $region62: #{_lambda_.6} parent=34 // loop_footer_branch
              %204 = sbr.rel target = $region58
            $region63: #{_lambda_.6} parent=34 // loop_exit
              _
          $region35: #{_lambda_.6} parent=12 // pred_fallthru
            _
        $region13: #{_lambda_.6} parent=8 // pred_fallthru
          _
        // Predicated region
        $region14: #{_lambda_.6} parent=8 // pred_check
          _
        $region15: #{_lambda_.6} parent=8 // pred_check_branch
          %27 = sbr.rel (0) target = $region17
        $region16: #{_lambda_.6} parent=8 // pred_region
          %s29 = sshrl.u32 %s16, 3
          // While loop
          $region18: #{_lambda_.6} parent=16 // loop_pre_header
            _
          $region19: #{_lambda_.6} parent=16 // loop_header
            %s31 = sphi 0, %s33
            %p32 = scmp.ge.s32.totalorder %s31, %s29
            %s36 = sphi 0, %s73
            %s37 = sphi %s20, %s76
            %s38 = sphi [#allocation2], %s77
          $region20: #{_lambda_.6} parent=16 // loop_header_branch
            %35 = sbr.rel (%p32) target = $region24
          $region21: #{_lambda_.6} parent=16 // loop_body
            %v39 = vld [vmem:[%s37] sm:$0xf]
            %40 = vst [vmem:[%s38] sm:$0xf] %v39
            %v41 = vld [vmem:[%s37 + $0x4] sm:$0xf]
            %42 = vst [vmem:[%s38 + $0x4] sm:$0xf] %v41
            %v43 = vld [vmem:[%s37 + $0x8] sm:$0xf]
            %44 = vst [vmem:[%s38 + $0x8] sm:$0xf] %v43
            %v45 = vld [vmem:[%s37 + $0xc] sm:$0xf]
            %46 = vst [vmem:[%s38 + $0xc] sm:$0xf] %v45
            %v47 = vld [vmem:[%s37 + $0x10] sm:$0xf]
            %48 = vst [vmem:[%s38 + $0x10] sm:$0xf] %v47
            %v49 = vld [vmem:[%s37 + $0x14] sm:$0xf]
            %50 = vst [vmem:[%s38 + $0x14] sm:$0xf] %v49
            %v51 = vld [vmem:[%s37 + $0x18] sm:$0xf]
            %52 = vst [vmem:[%s38 + $0x18] sm:$0xf] %v51
            %v53 = vld [vmem:[%s37 + $0x1c] sm:$0xf]
            %54 = vst [vmem:[%s38 + $0x1c] sm:$0xf] %v53
            %v55 = vld [vmem:[%s37 + $0x28] sm:$0xf]
            %56 = vst [vmem:[%s38 + $0x20] sm:$0xf] %v55
            %v57 = vld [vmem:[%s37 + $0x2c] sm:$0xf]
            %58 = vst [vmem:[%s38 + $0x24] sm:$0xf] %v57
            %v59 = vld [vmem:[%s37 + $0x30] sm:$0xf]
            %60 = vst [vmem:[%s38 + $0x28] sm:$0xf] %v59
            %v61 = vld [vmem:[%s37 + $0x34] sm:$0xf]
            %62 = vst [vmem:[%s38 + $0x2c] sm:$0xf] %v61
            %v63 = vld [vmem:[%s37 + $0x38] sm:$0xf]
            %64 = vst [vmem:[%s38 + $0x30] sm:$0xf] %v63
            %v65 = vld [vmem:[%s37 + $0x3c] sm:$0xf]
            %66 = vst [vmem:[%s38 + $0x34] sm:$0xf] %v65
            %v67 = vld [vmem:[%s37 + $0x40] sm:$0xf]
            %68 = vst [vmem:[%s38 + $0x38] sm:$0xf] %v67
            %v69 = vld [vmem:[%s37 + $0x44] sm:$0xf]
            %70 = vst [vmem:[%s38 + $0x3c] sm:$0xf] %v69
            %s71 = sadd.s32 1, %s36
            %p72 = scmp.ge.s32.totalorder %s71, %s29
            %s73 = scalar_select %p72, 0, %s71
            %s74 = smul.u32 %s73, 32
            %s75 = smul.u32 %s73, 32
            %s76 = scalar_lea.vmem %s20, %s74
            %s77 = scalar_lea.vmem [#allocation2], %s75
          $region22: #{_lambda_.6} parent=16 // loop_footer
            %s33 = sadd.s32 %s31, 1
          $region23: #{_lambda_.6} parent=16 // loop_footer_branch
            %30 = sbr.rel target = $region19
          $region24: #{_lambda_.6} parent=16 // loop_exit
            _
          %s78 = sshrl.u32 %s16, 3
          %s79 = sand.u32 %s16, 7
          %s80 = smul.u32 %s78, 8
          %s81 = smul.u32 4, %s80
          %s82 = scalar_lea.vmem %s20, %s81
          %s83 = smul.u32 4, %s80
          %s84 = scalar_lea.vmem [#allocation2], %s83
          // While loop
          $region25: #{_lambda_.6} parent=16 // loop_pre_header
            _
          $region26: #{_lambda_.6} parent=16 // loop_header
            %s86 = sphi 0, %s88
            %p87 = scmp.ge.s32.totalorder %s86, %s79
            %s91 = sphi 0, %s100
            %s92 = sphi %s82, %s103
            %s93 = sphi %s84, %s104
          $region27: #{_lambda_.6} parent=16 // loop_header_branch
            %90 = sbr.rel (%p87) target = $region31
          $region28: #{_lambda_.6} parent=16 // loop_body
            %v94 = vld [vmem:[%s92] sm:$0xf]
            %95 = vst [vmem:[%s93] sm:$0xf] %v94
            %v96 = vld [vmem:[%s92 + $0x28] sm:$0xf]
            %97 = vst [vmem:[%s93 + $0x20] sm:$0xf] %v96
            %s98 = sadd.s32 1, %s91
            %p99 = scmp.ge.s32.totalorder %s98, %s79
            %s100 = scalar_select %p99, 0, %s98
            %s101 = smul.u32 %s100, 4
            %s102 = smul.u32 %s100, 4
            %s103 = scalar_lea.vmem %s82, %s101
            %s104 = scalar_lea.vmem %s84, %s102 [#allocation2]
          $region29: #{_lambda_.6} parent=16 // loop_footer
            %s88 = sadd.s32 %s86, 1
          $region30: #{_lambda_.6} parent=16 // loop_footer_branch
            %85 = sbr.rel target = $region26
          $region31: #{_lambda_.6} parent=16 // loop_exit
            _
        $region17: #{_lambda_.6} parent=8 // pred_fallthru
          _
      $region9: #{_lambda_.6} parent=4 // pred_fallthru
        _
      %224 = vnop
    $region5: #{_lambda_.6} parent=1 // pred_fallthru
      _
    // Predicated region
    $region64: #{_lambda_.6} parent=1 // pred_check
      _
    $region65: #{_lambda_.6} parent=1 // pred_check_branch
      %226 = sbr.rel (0) target = $region67
    $region66: #{_lambda_.6} parent=1 // pred_region
      %s227 = sadd.s32 0, 0
      %s228 = sadd.s32 %s227, 1
      %s229 = smul.u32 %s228, 4
      %s230 = smul.u32 2, %s229
      %s231 = smul.addr %s230, 4
      %s232 = scalar_lea.vmem %s1, %s231
      // Predicated region
      $region68: #{_lambda_.6} parent=66 // pred_check
        _
      $region69: #{_lambda_.6} parent=66 // pred_check_branch
        %234 = sbr.rel (0) target = $region71
      $region70: #{_lambda_.6} parent=66 // pred_region
        // Predicated region
        $region72: #{_lambda_.6} parent=70 // pred_check
          _
        $region73: #{_lambda_.6} parent=70 // pred_check_branch
          %236 = sbr.rel target = $region75
        $region74: #{_lambda_.6} parent=70 // pred_region
          // Predicated region
          $region87: #{_lambda_.6} parent=74 // pred_check
            _
          $region88: #{_lambda_.6} parent=74 // pred_check_branch
            %257 = sbr.rel (0) target = $region90
          $region89: #{_lambda_.6} parent=74 // pred_region
            loop: start=0, step=1, limit=1
            $region91: #{_lambda_.6} parent=89 // loop_pre_header
              _
            $region92: #{_lambda_.6} parent=89 // loop_header
              %s259 = sphi 0, %s263
              %p260 = scmp.ge.s32.totalorder %s259, 1
              %s264 = sphi %s232, %s232
              %s265 = sphi [#allocation3], [#allocation3]
            $region93: #{_lambda_.6} parent=89 // loop_header_branch
              %262 = sbr.rel (%p260) target = $region97
            $region94: #{_lambda_.6} parent=89 // loop_body
              _
            $region95: #{_lambda_.6} parent=89 // loop_footer
              %s263 = sadd.s32 1, %s259
            $region96: #{_lambda_.6} parent=89 // loop_footer_branch
              %258 = sbr.rel target = $region92
            $region97: #{_lambda_.6} parent=89 // loop_exit
              _
            loop: start=0, step=1, limit=1
            $region98: #{_lambda_.6} parent=89 // loop_pre_header
              _
            $region99: #{_lambda_.6} parent=89 // loop_header
              %s268 = sphi 0, %s272
              %p269 = scmp.ge.s32.totalorder %s268, 1
              %s273 = sphi %s232, %s232
              %s274 = sphi [#allocation3], [#allocation3]
            $region100: #{_lambda_.6} parent=89 // loop_header_branch
              %271 = sbr.rel (%p269) target = $region104
            $region101: #{_lambda_.6} parent=89 // loop_body
              %v275 = vld [vmem:[%s273] sm:$0xf]
              %276 = vst [vmem:[%s274] sm:$0xf] %v275
              %v277 = vld [vmem:[%s273 + $0x4] sm:$0xf]
              %278 = vst [vmem:[%s274 + $0x4] sm:$0xf] %v277
              %v279 = vld [vmem:[%s273 + $0x28] sm:$0xf]
              %280 = vst [vmem:[%s274 + $0x8] sm:$0xf] %v279
              %v281 = vld [vmem:[%s273 + $0x2c] sm:$0xf]
              %282 = vst [vmem:[%s274 + $0xc] sm:$0xf] %v281
            $region102: #{_lambda_.6} parent=89 // loop_footer
              %s272 = sadd.s32 1, %s268
            $region103: #{_lambda_.6} parent=89 // loop_footer_branch
              %267 = sbr.rel target = $region99
            $region104: #{_lambda_.6} parent=89 // loop_exit
              _
          $region90: #{_lambda_.6} parent=74 // pred_fallthru
            _
        $region75: #{_lambda_.6} parent=70 // pred_fallthru
          _
        // Predicated region
        $region76: #{_lambda_.6} parent=70 // pred_check
          _
        $region77: #{_lambda_.6} parent=70 // pred_check_branch
          %238 = sbr.rel (0) target = $region79
        $region78: #{_lambda_.6} parent=70 // pred_region
          loop: start=0, step=1, limit=1
          $region80: #{_lambda_.6} parent=78 // loop_pre_header
            _
          $region81: #{_lambda_.6} parent=78 // loop_header
            %s241 = sphi 0, %s245
            %p242 = scmp.ge.s32.totalorder %s241, 1
            %s246 = sphi %s232, %s232
            %s247 = sphi [#allocation3], [#allocation3]
          $region82: #{_lambda_.6} parent=78 // loop_header_branch
            %244 = sbr.rel (%p242) target = $region86
          $region83: #{_lambda_.6} parent=78 // loop_body
            %v248 = vld [vmem:[%s246] sm:$0xf]
            %249 = vst [vmem:[%s247] sm:$0xf] %v248
            %v250 = vld [vmem:[%s246 + $0x4] sm:$0xf]
            %251 = vst [vmem:[%s247 + $0x4] sm:$0xf] %v250
            %v252 = vld [vmem:[%s246 + $0x28] sm:$0xf]
            %253 = vst [vmem:[%s247 + $0x8] sm:$0xf] %v252
            %v254 = vld [vmem:[%s246 + $0x2c] sm:$0xf]
            %255 = vst [vmem:[%s247 + $0xc] sm:$0xf] %v254
          $region84: #{_lambda_.6} parent=78 // loop_footer
            %s245 = sadd.s32 1, %s241
          $region85: #{_lambda_.6} parent=78 // loop_footer_branch
            %240 = sbr.rel target = $region81
          $region86: #{_lambda_.6} parent=78 // loop_exit
            _
        $region79: #{_lambda_.6} parent=70 // pred_fallthru
          _
      $region71: #{_lambda_.6} parent=66 // pred_fallthru
        _
      %283 = vnop
    $region67: #{_lambda_.6} parent=1 // pred_fallthru
      _
    // Predicated region
    $region105: #{_lambda_.6} parent=1 // pred_check
      _
    $region106: #{_lambda_.6} parent=1 // pred_check_branch
      %285 = sbr.rel (0) target = $region108
    $region107: #{_lambda_.6} parent=1 // pred_region
      _
    $region108: #{_lambda_.6} parent=1 // pred_fallthru
      _
    // Predicated region
    $region109: #{_lambda_.6} parent=1 // pred_check
      _
    $region110: #{_lambda_.6} parent=1 // pred_check_branch
      %287 = sbr.rel (0) target = $region112
    $region111: #{_lambda_.6} parent=1 // pred_region
      _
    $region112: #{_lambda_.6} parent=1 // pred_fallthru
      _
    // Predicated region
    $region113: #{_lambda_.6} parent=1 // pred_check
      _
    $region114: #{_lambda_.6} parent=1 // pred_check_branch
      %289 = sbr.rel (0) target = $region116
    $region115: #{_lambda_.6} parent=1 // pred_region
      _
    $region116: #{_lambda_.6} parent=1 // pred_fallthru
      _
    %s290 = sadd.s32 0, 0
    %s291 = smul.u32 8, %s290
    %s292 = ssub.s32 10, %s291
    %p293 = scmp.lt.s32.totalorder %s292, 8
    %s294 = scalar_select %p293, %s292, 8
    %s295 = smul.u32 128, %s294
    %s296 = sadd.s32 0, 0
    %s297 = sadd.s32 %s296, 1
    %s298 = smul.u32 %s297, 4
    %s299 = smul.u32 2, %s298
    %p301 = scmp.eq.s32.totalorder 0, 0
    // Predicated region
    $region117: #{_lambda_.6} parent=1 // pred_check
      %p302 = pneg %p301
    $region118: #{_lambda_.6} parent=1 // pred_check_branch
      %304 = sbr.rel (%p302) target = $region120
    $region119: #{_lambda_.6} parent=1 // pred_region
      %vm305 = vcmask 261120
      %306 = vst.msk [vmem:[%s3] sm:$0xff] %vm305, 0.0
      %307 = vst.msk [vmem:[%s4] sm:$0xff] %vm305, 0.0
    $region120: #{_lambda_.6} parent=1 // pred_fallthru
      _
    %v308 = vld [vmem:[#allocation2] sm:$0xf]
    %v309 = vld [vmem:[#allocation2 + $0x4] sm:$0xf]
    %v310 = vld [vmem:[#allocation2 + $0x8] sm:$0xf]
    %v311 = vld [vmem:[#allocation2 + $0xc] sm:$0xf]
    %v312 = vld [vmem:[#allocation2 + $0x10] sm:$0xf]
    %v313 = vld [vmem:[#allocation2 + $0x14] sm:$0xf]
    %v314 = vld [vmem:[#allocation2 + $0x18] sm:$0xf]
    %v315 = vld [vmem:[#allocation2 + $0x1c] sm:$0xf]
    %v316 = vld [vmem:[#allocation2 + $0x20] sm:$0xf]
    %v317 = vld [vmem:[#allocation2 + $0x24] sm:$0xf]
    %v318 = vld [vmem:[#allocation2 + $0x28] sm:$0xf]
    %v319 = vld [vmem:[#allocation2 + $0x2c] sm:$0xf]
    %v320 = vld [vmem:[#allocation2 + $0x30] sm:$0xf]
    %v321 = vld [vmem:[#allocation2 + $0x34] sm:$0xf]
    %v322 = vld [vmem:[#allocation2 + $0x38] sm:$0xf]
    %v323 = vld [vmem:[#allocation2 + $0x3c] sm:$0xf]
    %v324 = vld [vmem:[#allocation3] sm:$0xf]
    %v325 = vld [vmem:[#allocation3 + $0x4] sm:$0xf]
    %v326 = vld [vmem:[#allocation3 + $0x8] sm:$0xf]
    %v327 = vld [vmem:[#allocation3 + $0xc] sm:$0xf]
    %v344 = vunpack.c.l.b16 %v308
    %v345 = vunpack.c.l.b16 %v309
    %v346 = vunpack.c.l.b16 %v310
    %v347 = vunpack.c.l.b16 %v311
    %v348 = vunpack.c.l.b16 %v312
    %v349 = vunpack.c.l.b16 %v313
    %v350 = vunpack.c.l.b16 %v314
    %v351 = vunpack.c.l.b16 %v315
    %v352 = vunpack.c.l.b16 %v316
    %v353 = vunpack.c.l.b16 %v317
    %v354 = vunpack.c.l.b16 %v318
    %v355 = vunpack.c.l.b16 %v319
    %v356 = vunpack.c.l.b16 %v320
    %v357 = vunpack.c.l.b16 %v321
    %v358 = vunpack.c.l.b16 %v322
    %v359 = vunpack.c.l.b16 %v323
    %v360 = vpack.c.b16 %v345, %v344
    %v361 = vpack.c.b16 %v347, %v346
    %v362 = vpack.c.b16 %v349, %v348
    %v363 = vpack.c.b16 %v351, %v350
    %v364 = vpack.c.b16 %v353, %v352
    %v365 = vpack.c.b16 %v355, %v354
    %v366 = vpack.c.b16 %v357, %v356
    %v367 = vpack.c.b16 %v359, %v358
    %v372 = vunpack.c.l.b16 %v324
    %v373 = vunpack.c.l.b16 %v325
    %v374 = vunpack.c.l.b16 %v326
    %v375 = vunpack.c.l.b16 %v327
    %v376 = vpack.c.b16 %v373, %v372
    %v377 = vpack.c.b16 %v375, %v374
    %v378 = vld [vmem:[%s2] sm:$0xf]
    %v379 = vld [vmem:[%s2 + $0x4] sm:$0xf]
    %s380 = scalar_lea.vmem %s2, 8
    %v381 = vld [vmem:[%s380] sm:$0xf]
    %v382 = vld [vmem:[%s380 + $0x4] sm:$0xf]
    %vm383 = vsmask.f32 7424
    %v385 = vshrl.u32 %v360, 16
    %v387 = vshll.u32 %v360, 16
    %v389 = vrot.slane %v387, 1
    %v390 = vor.u32 %v385, %v389
    %v392 = vshll.u32 %v361, 16
    %v394 = vrot.slane %v392, 1
    %v395 = vsel %vm383, %v390, %v394
    %v396 = vshrl.u32 %v361, 16
    %v398 = vor.u32 %v396, %v394
    %v400 = vshll.u32 %v362, 16
    %v402 = vrot.slane %v400, 1
    %v403 = vsel %vm383, %v398, %v402
    %v404 = vshrl.u32 %v362, 16
    %v406 = vor.u32 %v404, %v402
    %v408 = vshll.u32 %v363, 16
    %v410 = vrot.slane %v408, 1
    %v411 = vsel %vm383, %v406, %v410
    %v412 = vshrl.u32 %v363, 16
    %v414 = vor.u32 %v412, %v410
    %v416 = vshll.u32 %v376, 16
    %v418 = vrot.slane %v416, 1
    %v419 = vsel %vm383, %v414, %v418
    %v421 = vshrl.u32 %v364, 16
    %v423 = vshll.u32 %v364, 16
    %v425 = vrot.slane %v423, 1
    %v426 = vor.u32 %v421, %v425
    %v428 = vshll.u32 %v365, 16
    %v430 = vrot.slane %v428, 1
    %v431 = vsel %vm383, %v426, %v430
    %v432 = vshrl.u32 %v365, 16
    %v434 = vor.u32 %v432, %v430
    %v436 = vshll.u32 %v366, 16
    %v438 = vrot.slane %v436, 1
    %v439 = vsel %vm383, %v434, %v438
    %v440 = vshrl.u32 %v366, 16
    %v442 = vor.u32 %v440, %v438
    %v444 = vshll.u32 %v367, 16
    %v446 = vrot.slane %v444, 1
    %v447 = vsel %vm383, %v442, %v446
    %v448 = vshrl.u32 %v367, 16
    %v450 = vor.u32 %v448, %v446
    %v452 = vshll.u32 %v377, 16
    %v454 = vrot.slane %v452, 1
    %v455 = vsel %vm383, %v450, %v454
    %v458 = vunpack.c.l.b16 %v381
    %v459 = vunpack.c.l.b16 %v382
    %v460 = vpack.c.b16 %v459, %v458
    %vm462 = vcmask 130048
    %v464 = vsel %vm462, %v395, 0
    %v467 = vsel %vm462, %v403, 0
    %v470 = vsel %vm462, %v411, 0
    %v473 = vsel %vm462, %v419, 0
    %v476 = vsel %vm462, %v431, 0
    %v479 = vsel %vm462, %v439, 0
    %v482 = vsel %vm462, %v447, 0
    %v485 = vsel %vm462, %v455, 0
    %487 = vmatprep.subr.bf16.mxu0 0
    %488 = vmatpush1.bf16.msra.mxu0 %v460
    %489 = vmatprep.subr.bf16.mxu0 0
    %490 = vmatpush1.bf16.msra.mxu0 0
    %491 = vmatprep.subr.bf16.mxu0 0
    %492 = vmatpush1.bf16.msra.mxu0 0
    %493 = vmatprep.subr.bf16.mxu0 0
    %494 = vmatpush1.bf16.msra.mxu0 0
    %495 = vmatprep.subr.bf16.mxu0 0
    %496 = vmatpush1.bf16.msra.mxu0 0
    %497 = vmatprep.subr.bf16.mxu0 0
    %498 = vmatpush1.bf16.msra.mxu0 0
    %499 = vmatprep.subr.bf16.mxu0 0
    %500 = vmatpush1.bf16.msra.mxu0 0
    %501 = vmatprep.subr.bf16.mxu0 0
    %502 = vmatpush1.bf16.msra.mxu0 0
    %503 = vmatprep.subr.bf16.mxu0 0
    %504 = vmatpush1.bf16.msra.mxu0 0
    %505 = vmatprep.subr.bf16.mxu0 0
    %506 = vmatpush1.bf16.msra.mxu0 0
    %507 = vmatprep.subr.bf16.mxu0 0
    %508 = vmatpush1.bf16.msra.mxu0 0
    %509 = vmatprep.subr.bf16.mxu0 0
    %510 = vmatpush1.bf16.msra.mxu0 0
    %511 = vmatprep.subr.bf16.mxu0 0
    %512 = vmatpush1.bf16.msra.mxu0 0
    %513 = vmatprep.subr.bf16.mxu0 0
    %514 = vmatpush1.bf16.msra.mxu0 0
    %515 = vmatprep.subr.bf16.mxu0 0
    %516 = vmatpush1.bf16.msra.mxu0 0
    %517 = vmatprep.subr.bf16.mxu0 0
    %518 = vmatpush1.bf16.msra.mxu0 0
    %519 = vmatprep.mubr.bf16.mxu0 0
    %520 = vmatmul.mubr.bf16.gmra.mrb[0].mxu0 %v464
    %v521 = vpop.f32.mrb[0].mxu0
    %v522 = vadd.f32 0.0, %v521
    %v523 = vpop.f32.mrb[0].mxu0
    %v524 = vpop.f32.mrb[0].mxu0
    %v525 = vadd.f32 0.0, %v524
    %v526 = vpop.f32.mrb[0].mxu0
    %527 = vmatprep.mubr.bf16.mxu0 0
    %528 = vmatmul.mubr.bf16.gmra.mrb[0].mxu0 %v467
    %v529 = vpop.f32.mrb[0].mxu0
    %v530 = vadd.f32 0.0, %v529
    %v531 = vpop.f32.mrb[0].mxu0
    %v532 = vpop.f32.mrb[0].mxu0
    %v533 = vadd.f32 0.0, %v532
    %v534 = vpop.f32.mrb[0].mxu0
    %535 = vmatprep.mubr.bf16.mxu0 0
    %536 = vmatmul.mubr.bf16.gmra.mrb[0].mxu0 %v470
    %v537 = vpop.f32.mrb[0].mxu0
    %v538 = vadd.f32 0.0, %v537
    %v539 = vpop.f32.mrb[0].mxu0
    %v540 = vpop.f32.mrb[0].mxu0
    %v541 = vadd.f32 0.0, %v540
    %v542 = vpop.f32.mrb[0].mxu0
    %543 = vmatprep.mubr.bf16.mxu0 0
    %544 = vmatmul.mubr.bf16.gmra.mrb[0].mxu0 %v473
    %v545 = vpop.f32.mrb[0].mxu0
    %v546 = vadd.f32 0.0, %v545
    %v547 = vpop.f32.mrb[0].mxu0
    %v548 = vpop.f32.mrb[0].mxu0
    %v549 = vadd.f32 0.0, %v548
    %v550 = vpop.f32.mrb[0].mxu0
    %551 = vmatprep.mubr.bf16.mxu0 0
    %552 = vmatmul.mubr.bf16.gmra.mrb[0].mxu0 %v476
    %v553 = vpop.f32.mrb[0].mxu0
    %v554 = vadd.f32 0.0, %v553
    %v555 = vpop.f32.mrb[0].mxu0
    %v556 = vpop.f32.mrb[0].mxu0
    %v557 = vadd.f32 0.0, %v556
    %v558 = vpop.f32.mrb[0].mxu0
    %559 = vmatprep.mubr.bf16.mxu0 0
    %560 = vmatmul.mubr.bf16.gmra.mrb[0].mxu0 %v479
    %v561 = vpop.f32.mrb[0].mxu0
    %v562 = vadd.f32 0.0, %v561
    %v563 = vpop.f32.mrb[0].mxu0
    %v564 = vpop.f32.mrb[0].mxu0
    %v565 = vadd.f32 0.0, %v564
    %v566 = vpop.f32.mrb[0].mxu0
    %567 = vmatprep.mubr.bf16.mxu0 0
    %568 = vmatmul.mubr.bf16.gmra.mrb[0].mxu0 %v482
    %v569 = vpop.f32.mrb[0].mxu0
    %v570 = vadd.f32 0.0, %v569
    %v571 = vpop.f32.mrb[0].mxu0
    %v572 = vpop.f32.mrb[0].mxu0
    %v573 = vadd.f32 0.0, %v572
    %v574 = vpop.f32.mrb[0].mxu0
    %575 = vmatprep.mubr.bf16.mxu0 0
    %576 = vmatmul.mubr.bf16.gmra.mrb[0].mxu0 %v485
    %v577 = vpop.f32.mrb[0].mxu0
    %v578 = vadd.f32 0.0, %v577
    %v579 = vpop.f32.mrb[0].mxu0
    %v580 = vpop.f32.mrb[0].mxu0
    %v581 = vadd.f32 0.0, %v580
    %v582 = vpop.f32.mrb[0].mxu0
    %583 = vdwg.mxu0
    %v586 = vunpack.c.l.b16 %v378
    %v587 = vunpack.c.l.b16 %v379
    %v588 = vpack.c.b16 %v587, %v586
    %v590 = vsel %vm462, %v360, 0
    %v592 = vsel %vm462, %v361, 0
    %v594 = vsel %vm462, %v362, 0
    %v596 = vsel %vm462, %v363, 0
    %v598 = vsel %vm462, %v364, 0
    %v600 = vsel %vm462, %v365, 0
    %v602 = vsel %vm462, %v366, 0
    %v604 = vsel %vm462, %v367, 0
    %606 = vmatprep.subr.bf16.mxu0 0
    %607 = vmatpush1.bf16.msra.mxu0 %v588
    %608 = vmatprep.subr.bf16.mxu0 0
    %609 = vmatpush1.bf16.msra.mxu0 0
    %610 = vmatprep.subr.bf16.mxu0 0
    %611 = vmatpush1.bf16.msra.mxu0 0
    %612 = vmatprep.subr.bf16.mxu0 0
    %613 = vmatpush1.bf16.msra.mxu0 0
    %614 = vmatprep.subr.bf16.mxu0 0
    %615 = vmatpush1.bf16.msra.mxu0 0
    %616 = vmatprep.subr.bf16.mxu0 0
    %617 = vmatpush1.bf16.msra.mxu0 0
    %618 = vmatprep.subr.bf16.mxu0 0
    %619 = vmatpush1.bf16.msra.mxu0 0
    %620 = vmatprep.subr.bf16.mxu0 0
    %621 = vmatpush1.bf16.msra.mxu0 0
    %622 = vmatprep.subr.bf16.mxu0 0
    %623 = vmatpush1.bf16.msra.mxu0 0
    %624 = vmatprep.subr.bf16.mxu0 0
    %625 = vmatpush1.bf16.msra.mxu0 0
    %626 = vmatprep.subr.bf16.mxu0 0
    %627 = vmatpush1.bf16.msra.mxu0 0
    %628 = vmatprep.subr.bf16.mxu0 0
    %629 = vmatpush1.bf16.msra.mxu0 0
    %630 = vmatprep.subr.bf16.mxu0 0
    %631 = vmatpush1.bf16.msra.mxu0 0
    %632 = vmatprep.subr.bf16.mxu0 0
    %633 = vmatpush1.bf16.msra.mxu0 0
    %634 = vmatprep.subr.bf16.mxu0 0
    %635 = vmatpush1.bf16.msra.mxu0 0
    %636 = vmatprep.subr.bf16.mxu0 0
    %637 = vmatpush1.bf16.msra.mxu0 0
    %638 = vmatprep.mubr.bf16.mxu0 0
    %639 = vmatmul.mubr.bf16.gmra.mrb[0].mxu0 %v590
    %v640 = vpop.f32.mrb[0].mxu0
    %v641 = vadd.f32 %v522, %v640
    %v642 = vpop.f32.mrb[0].mxu0
    %v643 = vpop.f32.mrb[0].mxu0
    %v644 = vadd.f32 %v525, %v643
    %v645 = vpop.f32.mrb[0].mxu0
    %646 = vmatprep.mubr.bf16.mxu0 0
    %647 = vmatmul.mubr.bf16.gmra.mrb[0].mxu0 %v592
    %v648 = vpop.f32.mrb[0].mxu0
    %v649 = vadd.f32 %v530, %v648
    %v650 = vpop.f32.mrb[0].mxu0
    %v651 = vpop.f32.mrb[0].mxu0
    %v652 = vadd.f32 %v533, %v651
    %v653 = vpop.f32.mrb[0].mxu0
    %654 = vmatprep.mubr.bf16.mxu0 0
    %655 = vmatmul.mubr.bf16.gmra.mrb[0].mxu0 %v594
    %v656 = vpop.f32.mrb[0].mxu0
    %v657 = vadd.f32 %v538, %v656
    %v658 = vpop.f32.mrb[0].mxu0
    %v659 = vpop.f32.mrb[0].mxu0
    %v660 = vadd.f32 %v541, %v659
    %v661 = vpop.f32.mrb[0].mxu0
    %662 = vmatprep.mubr.bf16.mxu0 0
    %663 = vmatmul.mubr.bf16.gmra.mrb[0].mxu0 %v596
    %v664 = vpop.f32.mrb[0].mxu0
    %v665 = vadd.f32 %v546, %v664
    %v666 = vpop.f32.mrb[0].mxu0
    %v667 = vpop.f32.mrb[0].mxu0
    %v668 = vadd.f32 %v549, %v667
    %v669 = vpop.f32.mrb[0].mxu0
    %670 = vmatprep.mubr.bf16.mxu0 0
    %671 = vmatmul.mubr.bf16.gmra.mrb[0].mxu0 %v598
    %v672 = vpop.f32.mrb[0].mxu0
    %v673 = vadd.f32 %v554, %v672
    %v674 = vpop.f32.mrb[0].mxu0
    %v675 = vpop.f32.mrb[0].mxu0
    %v676 = vadd.f32 %v557, %v675
    %v677 = vpop.f32.mrb[0].mxu0
    %678 = vmatprep.mubr.bf16.mxu0 0
    %679 = vmatmul.mubr.bf16.gmra.mrb[0].mxu0 %v600
    %v680 = vpop.f32.mrb[0].mxu0
    %v681 = vadd.f32 %v562, %v680
    %v682 = vpop.f32.mrb[0].mxu0
    %v683 = vpop.f32.mrb[0].mxu0
    %v684 = vadd.f32 %v565, %v683
    %v685 = vpop.f32.mrb[0].mxu0
    %686 = vmatprep.mubr.bf16.mxu0 0
    %687 = vmatmul.mubr.bf16.gmra.mrb[0].mxu0 %v602
    %v688 = vpop.f32.mrb[0].mxu0
    %v689 = vadd.f32 %v570, %v688
    %v690 = vpop.f32.mrb[0].mxu0
    %v691 = vpop.f32.mrb[0].mxu0
    %v692 = vadd.f32 %v573, %v691
    %v693 = vpop.f32.mrb[0].mxu0
    %694 = vmatprep.mubr.bf16.mxu0 0
    %695 = vmatmul.mubr.bf16.gmra.mrb[0].mxu0 %v604
    %v696 = vpop.f32.mrb[0].mxu0
    %v697 = vadd.f32 %v578, %v696
    %v698 = vpop.f32.mrb[0].mxu0
    %v699 = vpop.f32.mrb[0].mxu0
    %v700 = vadd.f32 %v581, %v699
    %v701 = vpop.f32.mrb[0].mxu0
    %702 = vdwg.mxu0
    %s703 = scalar_lea.vmem %s2, 16
    %v704 = vld [vmem:[%s703] sm:$0xf]
    %v705 = vld [vmem:[%s703 + $0x4] sm:$0xf]
    %vm706 = vcmask 1046528
    %v707 = vrot.slane %v360, 1
    %v708 = vrot.slane %v361, 1
    %v709 = vsel %vm706, %v707, %v708
    %v710 = vrot.slane %v362, 1
    %v711 = vsel %vm706, %v708, %v710
    %v712 = vrot.slane %v363, 1
    %v713 = vsel %vm706, %v710, %v712
    %v714 = vrot.slane %v376, 1
    %v715 = vsel %vm706, %v712, %v714
    %v716 = vrot.slane %v364, 1
    %v717 = vrot.slane %v365, 1
    %v718 = vsel %vm706, %v716, %v717
    %v719 = vrot.slane %v366, 1
    %v720 = vsel %vm706, %v717, %v719
    %v721 = vrot.slane %v367, 1
    %v722 = vsel %vm706, %v719, %v721
    %v723 = vrot.slane %v377, 1
    %v724 = vsel %vm706, %v721, %v723
    %v727 = vunpack.c.l.b16 %v704
    %v728 = vunpack.c.l.b16 %v705
    %v729 = vpack.c.b16 %v728, %v727
    %v732 = vsel %vm462, %v709, 0
    %v735 = vsel %vm462, %v711, 0
    %v738 = vsel %vm462, %v713, 0
    %v741 = vsel %vm462, %v715, 0
    %v744 = vsel %vm462, %v718, 0
    %v747 = vsel %vm462, %v720, 0
    %v750 = vsel %vm462, %v722, 0
    %v753 = vsel %vm462, %v724, 0
    %755 = vmatprep.subr.bf16.mxu0 0
    %756 = vmatpush1.bf16.msra.mxu0 %v729
    %757 = vmatprep.subr.bf16.mxu0 0
    %758 = vmatpush1.bf16.msra.mxu0 0
    %759 = vmatprep.subr.bf16.mxu0 0
    %760 = vmatpush1.bf16.msra.mxu0 0
    %761 = vmatprep.subr.bf16.mxu0 0
    %762 = vmatpush1.bf16.msra.mxu0 0
    %763 = vmatprep.subr.bf16.mxu0 0
    %764 = vmatpush1.bf16.msra.mxu0 0
    %765 = vmatprep.subr.bf16.mxu0 0
    %766 = vmatpush1.bf16.msra.mxu0 0
    %767 = vmatprep.subr.bf16.mxu0 0
    %768 = vmatpush1.bf16.msra.mxu0 0
    %769 = vmatprep.subr.bf16.mxu0 0
    %770 = vmatpush1.bf16.msra.mxu0 0
    %771 = vmatprep.subr.bf16.mxu0 0
    %772 = vmatpush1.bf16.msra.mxu0 0
    %773 = vmatprep.subr.bf16.mxu0 0
    %774 = vmatpush1.bf16.msra.mxu0 0
    %775 = vmatprep.subr.bf16.mxu0 0
    %776 = vmatpush1.bf16.msra.mxu0 0
    %777 = vmatprep.subr.bf16.mxu0 0
    %778 = vmatpush1.bf16.msra.mxu0 0
    %779 = vmatprep.subr.bf16.mxu0 0
    %780 = vmatpush1.bf16.msra.mxu0 0
    %781 = vmatprep.subr.bf16.mxu0 0
    %782 = vmatpush1.bf16.msra.mxu0 0
    %783 = vmatprep.subr.bf16.mxu0 0
    %784 = vmatpush1.bf16.msra.mxu0 0
    %785 = vmatprep.subr.bf16.mxu0 0
    %786 = vmatpush1.bf16.msra.mxu0 0
    %787 = vmatprep.mubr.bf16.mxu0 0
    %788 = vmatmul.mubr.bf16.gmra.mrb[0].mxu0 %v732
    %v789 = vpop.f32.mrb[0].mxu0
    %v790 = vadd.f32 0.0, %v789
    %v791 = vpop.f32.mrb[0].mxu0
    %v792 = vpop.f32.mrb[0].mxu0
    %v793 = vadd.f32 0.0, %v792
    %v794 = vpop.f32.mrb[0].mxu0
    %795 = vmatprep.mubr.bf16.mxu0 0
    %796 = vmatmul.mubr.bf16.gmra.mrb[0].mxu0 %v735
    %v797 = vpop.f32.mrb[0].mxu0
    %v798 = vadd.f32 0.0, %v797
    %v799 = vpop.f32.mrb[0].mxu0
    %v800 = vpop.f32.mrb[0].mxu0
    %v801 = vadd.f32 0.0, %v800
    %v802 = vpop.f32.mrb[0].mxu0
    %803 = vmatprep.mubr.bf16.mxu0 0
    %804 = vmatmul.mubr.bf16.gmra.mrb[0].mxu0 %v738
    %v805 = vpop.f32.mrb[0].mxu0
    %v806 = vadd.f32 0.0, %v805
    %v807 = vpop.f32.mrb[0].mxu0
    %v808 = vpop.f32.mrb[0].mxu0
    %v809 = vadd.f32 0.0, %v808
    %v810 = vpop.f32.mrb[0].mxu0
    %811 = vmatprep.mubr.bf16.mxu0 0
    %812 = vmatmul.mubr.bf16.gmra.mrb[0].mxu0 %v741
    %v813 = vpop.f32.mrb[0].mxu0
    %v814 = vadd.f32 0.0, %v813
    %v815 = vpop.f32.mrb[0].mxu0
    %v816 = vpop.f32.mrb[0].mxu0
    %v817 = vadd.f32 0.0, %v816
    %v818 = vpop.f32.mrb[0].mxu0
    %819 = vmatprep.mubr.bf16.mxu0 0
    %820 = vmatmul.mubr.bf16.gmra.mrb[0].mxu0 %v744
    %v821 = vpop.f32.mrb[0].mxu0
    %v822 = vadd.f32 0.0, %v821
    %v823 = vpop.f32.mrb[0].mxu0
    %v824 = vpop.f32.mrb[0].mxu0
    %v825 = vadd.f32 0.0, %v824
    %v826 = vpop.f32.mrb[0].mxu0
    %827 = vmatprep.mubr.bf16.mxu0 0
    %828 = vmatmul.mubr.bf16.gmra.mrb[0].mxu0 %v747
    %v829 = vpop.f32.mrb[0].mxu0
    %v830 = vadd.f32 0.0, %v829
    %v831 = vpop.f32.mrb[0].mxu0
    %v832 = vpop.f32.mrb[0].mxu0
    %v833 = vadd.f32 0.0, %v832
    %v834 = vpop.f32.mrb[0].mxu0
    %835 = vmatprep.mubr.bf16.mxu0 0
    %836 = vmatmul.mubr.bf16.gmra.mrb[0].mxu0 %v750
    %v837 = vpop.f32.mrb[0].mxu0
    %v838 = vadd.f32 0.0, %v837
    %v839 = vpop.f32.mrb[0].mxu0
    %v840 = vpop.f32.mrb[0].mxu0
    %v841 = vadd.f32 0.0, %v840
    %v842 = vpop.f32.mrb[0].mxu0
    %843 = vmatprep.mubr.bf16.mxu0 0
    %844 = vmatmul.mubr.bf16.gmra.mrb[0].mxu0 %v753
    %v845 = vpop.f32.mrb[0].mxu0
    %v846 = vadd.f32 0.0, %v845
    %v847 = vpop.f32.mrb[0].mxu0
    %v848 = vpop.f32.mrb[0].mxu0
    %v849 = vadd.f32 0.0, %v848
    %v850 = vpop.f32.mrb[0].mxu0
    %851 = vdwg.mxu0
    %v852 = vadd.f32 %v641, %v790
    %v853 = vadd.f32 %v644, %v793
    %v854 = vadd.f32 %v649, %v798
    %v855 = vadd.f32 %v652, %v801
    %v856 = vadd.f32 %v657, %v806
    %v857 = vadd.f32 %v660, %v809
    %v858 = vadd.f32 %v665, %v814
    %v859 = vadd.f32 %v668, %v817
    %v860 = vadd.f32 %v673, %v822
    %v861 = vadd.f32 %v676, %v825
    %v862 = vadd.f32 %v681, %v830
    %v863 = vadd.f32 %v684, %v833
    %v864 = vadd.f32 %v689, %v838
    %v865 = vadd.f32 %v692, %v841
    %v866 = vadd.f32 %v697, %v846
    %v867 = vadd.f32 %v700, %v849
    %s868 = scalar_lea.vmem %s2, 24
    %v869 = vld [vmem:[%s868] sm:$0xf]
    %v870 = vld [vmem:[%s868 + $0x4] sm:$0xf]
    %vm871 = vsmask.f32 6400
    %v872 = vrot.slane %v385, 1
    %v873 = vrot.slane %v387, 2
    %v874 = vor.u32 %v872, %v873
    %v875 = vrot.slane %v396, 1
    %v876 = vrot.slane %v392, 2
    %v877 = vor.u32 %v875, %v876
    %v878 = vsel %vm871, %v874, %v877
    %v879 = vrot.slane %v404, 1
    %v880 = vrot.slane %v400, 2
    %v881 = vor.u32 %v879, %v880
    %v882 = vsel %vm871, %v877, %v881
    %v883 = vrot.slane %v412, 1
    %v884 = vrot.slane %v408, 2
    %v885 = vor.u32 %v883, %v884
    %v886 = vsel %vm871, %v881, %v885
    %v887 = vshrl.u32 %v376, 16
    %v889 = vrot.slane %v887, 1
    %v890 = vrot.slane %v416, 2
    %v891 = vor.u32 %v889, %v890
    %v892 = vsel %vm871, %v885, %v891
    %v893 = vrot.slane %v421, 1
    %v894 = vrot.slane %v423, 2
    %v895 = vor.u32 %v893, %v894
    %v896 = vrot.slane %v432, 1
    %v897 = vrot.slane %v428, 2
    %v898 = vor.u32 %v896, %v897
    %v899 = vsel %vm871, %v895, %v898
    %v900 = vrot.slane %v440, 1
    %v901 = vrot.slane %v436, 2
    %v902 = vor.u32 %v900, %v901
    %v903 = vsel %vm871, %v898, %v902
    %v904 = vrot.slane %v448, 1
    %v905 = vrot.slane %v444, 2
    %v906 = vor.u32 %v904, %v905
    %v907 = vsel %vm871, %v902, %v906
    %v908 = vshrl.u32 %v377, 16
    %v910 = vrot.slane %v908, 1
    %v911 = vrot.slane %v452, 2
    %v912 = vor.u32 %v910, %v911
    %v913 = vsel %vm871, %v906, %v912
    %v916 = vunpack.c.l.b16 %v869
    %v917 = vunpack.c.l.b16 %v870
    %v918 = vpack.c.b16 %v917, %v916
    %v921 = vsel %vm462, %v878, 0
    %v924 = vsel %vm462, %v882, 0
    %v927 = vsel %vm462, %v886, 0
    %v930 = vsel %vm462, %v892, 0
    %v933 = vsel %vm462, %v899, 0
    %v936 = vsel %vm462, %v903, 0
    %v939 = vsel %vm462, %v907, 0
    %v942 = vsel %vm462, %v913, 0
    %944 = vmatprep.subr.bf16.mxu0 0
    %945 = vmatpush1.bf16.msra.mxu0 %v918
    %946 = vmatprep.subr.bf16.mxu0 0
    %947 = vmatpush1.bf16.msra.mxu0 0
    %948 = vmatprep.subr.bf16.mxu0 0
    %949 = vmatpush1.bf16.msra.mxu0 0
    %950 = vmatprep.subr.bf16.mxu0 0
    %951 = vmatpush1.bf16.msra.mxu0 0
    %952 = vmatprep.subr.bf16.mxu0 0
    %953 = vmatpush1.bf16.msra.mxu0 0
    %954 = vmatprep.subr.bf16.mxu0 0
    %955 = vmatpush1.bf16.msra.mxu0 0
    %956 = vmatprep.subr.bf16.mxu0 0
    %957 = vmatpush1.bf16.msra.mxu0 0
    %958 = vmatprep.subr.bf16.mxu0 0
    %959 = vmatpush1.bf16.msra.mxu0 0
    %960 = vmatprep.subr.bf16.mxu0 0
    %961 = vmatpush1.bf16.msra.mxu0 0
    %962 = vmatprep.subr.bf16.mxu0 0
    %963 = vmatpush1.bf16.msra.mxu0 0
    %964 = vmatprep.subr.bf16.mxu0 0
    %965 = vmatpush1.bf16.msra.mxu0 0
    %966 = vmatprep.subr.bf16.mxu0 0
    %967 = vmatpush1.bf16.msra.mxu0 0
    %968 = vmatprep.subr.bf16.mxu0 0
    %969 = vmatpush1.bf16.msra.mxu0 0
    %970 = vmatprep.subr.bf16.mxu0 0
    %971 = vmatpush1.bf16.msra.mxu0 0
    %972 = vmatprep.subr.bf16.mxu0 0
    %973 = vmatpush1.bf16.msra.mxu0 0
    %974 = vmatprep.subr.bf16.mxu0 0
    %975 = vmatpush1.bf16.msra.mxu0 0
    %976 = vmatprep.mubr.bf16.mxu0 0
    %977 = vmatmul.mubr.bf16.gmra.mrb[0].mxu0 %v921
    %v978 = vpop.f32.mrb[0].mxu0
    %v979 = vadd.f32 0.0, %v978
    %v980 = vpop.f32.mrb[0].mxu0
    %v981 = vpop.f32.mrb[0].mxu0
    %v982 = vadd.f32 0.0, %v981
    %v983 = vpop.f32.mrb[0].mxu0
    %984 = vmatprep.mubr.bf16.mxu0 0
    %985 = vmatmul.mubr.bf16.gmra.mrb[0].mxu0 %v924
    %v986 = vpop.f32.mrb[0].mxu0
    %v987 = vadd.f32 0.0, %v986
    %v988 = vpop.f32.mrb[0].mxu0
    %v989 = vpop.f32.mrb[0].mxu0
    %v990 = vadd.f32 0.0, %v989
    %v991 = vpop.f32.mrb[0].mxu0
    %992 = vmatprep.mubr.bf16.mxu0 0
    %993 = vmatmul.mubr.bf16.gmra.mrb[0].mxu0 %v927
    %v994 = vpop.f32.mrb[0].mxu0
    %v995 = vadd.f32 0.0, %v994
    %v996 = vpop.f32.mrb[0].mxu0
    %v997 = vpop.f32.mrb[0].mxu0
    %v998 = vadd.f32 0.0, %v997
    %v999 = vpop.f32.mrb[0].mxu0
    %1000 = vmatprep.mubr.bf16.mxu0 0
    %1001 = vmatmul.mubr.bf16.gmra.mrb[0].mxu0 %v930
    %v1002 = vpop.f32.mrb[0].mxu0
    %v1003 = vadd.f32 0.0, %v1002
    %v1004 = vpop.f32.mrb[0].mxu0
    %v1005 = vpop.f32.mrb[0].mxu0
    %v1006 = vadd.f32 0.0, %v1005
    %v1007 = vpop.f32.mrb[0].mxu0
    %1008 = vmatprep.mubr.bf16.mxu0 0
    %1009 = vmatmul.mubr.bf16.gmra.mrb[0].mxu0 %v933
    %v1010 = vpop.f32.mrb[0].mxu0
    %v1011 = vadd.f32 0.0, %v1010
    %v1012 = vpop.f32.mrb[0].mxu0
    %v1013 = vpop.f32.mrb[0].mxu0
    %v1014 = vadd.f32 0.0, %v1013
    %v1015 = vpop.f32.mrb[0].mxu0
    %1016 = vmatprep.mubr.bf16.mxu0 0
    %1017 = vmatmul.mubr.bf16.gmra.mrb[0].mxu0 %v936
    %v1018 = vpop.f32.mrb[0].mxu0
    %v1019 = vadd.f32 0.0, %v1018
    %v1020 = vpop.f32.mrb[0].mxu0
    %v1021 = vpop.f32.mrb[0].mxu0
    %v1022 = vadd.f32 0.0, %v1021
    %v1023 = vpop.f32.mrb[0].mxu0
    %1024 = vmatprep.mubr.bf16.mxu0 0
    %1025 = vmatmul.mubr.bf16.gmra.mrb[0].mxu0 %v939
    %v1026 = vpop.f32.mrb[0].mxu0
    %v1027 = vadd.f32 0.0, %v1026
    %v1028 = vpop.f32.mrb[0].mxu0
    %v1029 = vpop.f32.mrb[0].mxu0
    %v1030 = vadd.f32 0.0, %v1029
    %v1031 = vpop.f32.mrb[0].mxu0
    %1032 = vmatprep.mubr.bf16.mxu0 0
    %1033 = vmatmul.mubr.bf16.gmra.mrb[0].mxu0 %v942
    %v1034 = vpop.f32.mrb[0].mxu0
    %v1035 = vadd.f32 0.0, %v1034
    %v1036 = vpop.f32.mrb[0].mxu0
    %v1037 = vpop.f32.mrb[0].mxu0
    %v1038 = vadd.f32 0.0, %v1037
    %v1039 = vpop.f32.mrb[0].mxu0
    %1040 = vdwg.mxu0
    %v1041 = vadd.f32 %v852, %v979
    %v1042 = vadd.f32 %v853, %v982
    %v1043 = vadd.f32 %v854, %v987
    %v1044 = vadd.f32 %v855, %v990
    %v1045 = vadd.f32 %v856, %v995
    %v1046 = vadd.f32 %v857, %v998
    %v1047 = vadd.f32 %v858, %v1003
    %v1048 = vadd.f32 %v859, %v1006
    %v1049 = vadd.f32 %v860, %v1011
    %v1050 = vadd.f32 %v861, %v1014
    %v1051 = vadd.f32 %v862, %v1019
    %v1052 = vadd.f32 %v863, %v1022
    %v1053 = vadd.f32 %v864, %v1027
    %v1054 = vadd.f32 %v865, %v1030
    %v1055 = vadd.f32 %v866, %v1035
    %v1056 = vadd.f32 %v867, %v1038
    %s1057 = scalar_lea.vmem %s2, 32
    %v1058 = vld [vmem:[%s1057] sm:$0xf]
    %v1059 = vld [vmem:[%s1057 + $0x4] sm:$0xf]
    %vm1060 = vcmask 1045504
    %v1061 = vrot.slane %v360, 2
    %v1062 = vrot.slane %v361, 2
    %v1063 = vsel %vm1060, %v1061, %v1062
    %v1064 = vrot.slane %v362, 2
    %v1065 = vsel %vm1060, %v1062, %v1064
    %v1066 = vrot.slane %v363, 2
    %v1067 = vsel %vm1060, %v1064, %v1066
    %v1068 = vrot.slane %v376, 2
    %v1069 = vsel %vm1060, %v1066, %v1068
    %v1070 = vrot.slane %v364, 2
    %v1071 = vrot.slane %v365, 2
    %v1072 = vsel %vm1060, %v1070, %v1071
    %v1073 = vrot.slane %v366, 2
    %v1074 = vsel %vm1060, %v1071, %v1073
    %v1075 = vrot.slane %v367, 2
    %v1076 = vsel %vm1060, %v1073, %v1075
    %v1077 = vrot.slane %v377, 2
    %v1078 = vsel %vm1060, %v1075, %v1077
    %v1081 = vunpack.c.l.b16 %v1058
    %v1082 = vunpack.c.l.b16 %v1059
    %v1083 = vpack.c.b16 %v1082, %v1081
    %v1086 = vsel %vm462, %v1063, 0
    %v1089 = vsel %vm462, %v1065, 0
    %v1092 = vsel %vm462, %v1067, 0
    %v1095 = vsel %vm462, %v1069, 0
    %v1098 = vsel %vm462, %v1072, 0
    %v1101 = vsel %vm462, %v1074, 0
    %v1104 = vsel %vm462, %v1076, 0
    %v1107 = vsel %vm462, %v1078, 0
    %1109 = vmatprep.subr.bf16.mxu0 0
    %1110 = vmatpush1.bf16.msra.mxu0 %v1083
    %1111 = vmatprep.subr.bf16.mxu0 0
    %1112 = vmatpush1.bf16.msra.mxu0 0
    %1113 = vmatprep.subr.bf16.mxu0 0
    %1114 = vmatpush1.bf16.msra.mxu0 0
    %1115 = vmatprep.subr.bf16.mxu0 0
    %1116 = vmatpush1.bf16.msra.mxu0 0
    %1117 = vmatprep.subr.bf16.mxu0 0
    %1118 = vmatpush1.bf16.msra.mxu0 0
    %1119 = vmatprep.subr.bf16.mxu0 0
    %1120 = vmatpush1.bf16.msra.mxu0 0
    %1121 = vmatprep.subr.bf16.mxu0 0
    %1122 = vmatpush1.bf16.msra.mxu0 0
    %1123 = vmatprep.subr.bf16.mxu0 0
    %1124 = vmatpush1.bf16.msra.mxu0 0
    %1125 = vmatprep.subr.bf16.mxu0 0
    %1126 = vmatpush1.bf16.msra.mxu0 0
    %1127 = vmatprep.subr.bf16.mxu0 0
    %1128 = vmatpush1.bf16.msra.mxu0 0
    %1129 = vmatprep.subr.bf16.mxu0 0
    %1130 = vmatpush1.bf16.msra.mxu0 0
    %1131 = vmatprep.subr.bf16.mxu0 0
    %1132 = vmatpush1.bf16.msra.mxu0 0
    %1133 = vmatprep.subr.bf16.mxu0 0
    %1134 = vmatpush1.bf16.msra.mxu0 0
    %1135 = vmatprep.subr.bf16.mxu0 0
    %1136 = vmatpush1.bf16.msra.mxu0 0
    %1137 = vmatprep.subr.bf16.mxu0 0
    %1138 = vmatpush1.bf16.msra.mxu0 0
    %1139 = vmatprep.subr.bf16.mxu0 0
    %1140 = vmatpush1.bf16.msra.mxu0 0
    %1141 = vmatprep.mubr.bf16.mxu0 0
    %1142 = vmatmul.mubr.bf16.gmra.mrb[0].mxu0 %v1086
    %v1143 = vpop.f32.mrb[0].mxu0
    %v1144 = vadd.f32 0.0, %v1143
    %v1145 = vpop.f32.mrb[0].mxu0
    %v1146 = vpop.f32.mrb[0].mxu0
    %v1147 = vadd.f32 0.0, %v1146
    %v1148 = vpop.f32.mrb[0].mxu0
    %1149 = vmatprep.mubr.bf16.mxu0 0
    %1150 = vmatmul.mubr.bf16.gmra.mrb[0].mxu0 %v1089
    %v1151 = vpop.f32.mrb[0].mxu0
    %v1152 = vadd.f32 0.0, %v1151
    %v1153 = vpop.f32.mrb[0].mxu0
    %v1154 = vpop.f32.mrb[0].mxu0
    %v1155 = vadd.f32 0.0, %v1154
    %v1156 = vpop.f32.mrb[0].mxu0
    %1157 = vmatprep.mubr.bf16.mxu0 0
    %1158 = vmatmul.mubr.bf16.gmra.mrb[0].mxu0 %v1092
    %v1159 = vpop.f32.mrb[0].mxu0
    %v1160 = vadd.f32 0.0, %v1159
    %v1161 = vpop.f32.mrb[0].mxu0
    %v1162 = vpop.f32.mrb[0].mxu0
    %v1163 = vadd.f32 0.0, %v1162
    %v1164 = vpop.f32.mrb[0].mxu0
    %1165 = vmatprep.mubr.bf16.mxu0 0
    %1166 = vmatmul.mubr.bf16.gmra.mrb[0].mxu0 %v1095
    %v1167 = vpop.f32.mrb[0].mxu0
    %v1168 = vadd.f32 0.0, %v1167
    %v1169 = vpop.f32.mrb[0].mxu0
    %v1170 = vpop.f32.mrb[0].mxu0
    %v1171 = vadd.f32 0.0, %v1170
    %v1172 = vpop.f32.mrb[0].mxu0
    %1173 = vmatprep.mubr.bf16.mxu0 0
    %1174 = vmatmul.mubr.bf16.gmra.mrb[0].mxu0 %v1098
    %v1175 = vpop.f32.mrb[0].mxu0
    %v1176 = vadd.f32 0.0, %v1175
    %v1177 = vpop.f32.mrb[0].mxu0
    %v1178 = vpop.f32.mrb[0].mxu0
    %v1179 = vadd.f32 0.0, %v1178
    %v1180 = vpop.f32.mrb[0].mxu0
    %1181 = vmatprep.mubr.bf16.mxu0 0
    %1182 = vmatmul.mubr.bf16.gmra.mrb[0].mxu0 %v1101
    %v1183 = vpop.f32.mrb[0].mxu0
    %v1184 = vadd.f32 0.0, %v1183
    %v1185 = vpop.f32.mrb[0].mxu0
    %v1186 = vpop.f32.mrb[0].mxu0
    %v1187 = vadd.f32 0.0, %v1186
    %v1188 = vpop.f32.mrb[0].mxu0
    %1189 = vmatprep.mubr.bf16.mxu0 0
    %1190 = vmatmul.mubr.bf16.gmra.mrb[0].mxu0 %v1104
    %v1191 = vpop.f32.mrb[0].mxu0
    %v1192 = vadd.f32 0.0, %v1191
    %v1193 = vpop.f32.mrb[0].mxu0
    %v1194 = vpop.f32.mrb[0].mxu0
    %v1195 = vadd.f32 0.0, %v1194
    %v1196 = vpop.f32.mrb[0].mxu0
    %1197 = vmatprep.mubr.bf16.mxu0 0
    %1198 = vmatmul.mubr.bf16.gmra.mrb[0].mxu0 %v1107
    %v1199 = vpop.f32.mrb[0].mxu0
    %v1200 = vadd.f32 0.0, %v1199
    %v1201 = vpop.f32.mrb[0].mxu0
    %v1202 = vpop.f32.mrb[0].mxu0
    %v1203 = vadd.f32 0.0, %v1202
    %v1204 = vpop.f32.mrb[0].mxu0
    %1205 = vdwg.mxu0
    %v1206 = vadd.f32 %v1041, %v1144
    %v1207 = vadd.f32 %v1042, %v1147
    %v1208 = vadd.f32 %v1043, %v1152
    %v1209 = vadd.f32 %v1044, %v1155
    %v1210 = vadd.f32 %v1045, %v1160
    %v1211 = vadd.f32 %v1046, %v1163
    %v1212 = vadd.f32 %v1047, %v1168
    %v1213 = vadd.f32 %v1048, %v1171
    %v1214 = vadd.f32 %v1049, %v1176
    %v1215 = vadd.f32 %v1050, %v1179
    %v1216 = vadd.f32 %v1051, %v1184
    %v1217 = vadd.f32 %v1052, %v1187
    %v1218 = vadd.f32 %v1053, %v1192
    %v1219 = vadd.f32 %v1054, %v1195
    %v1220 = vadd.f32 %v1055, %v1200
    %v1221 = vadd.f32 %v1056, %v1203
    %s1222 = scalar_lea.vmem %s2, 40
    %v1223 = vld [vmem:[%s1222] sm:$0xf]
    %v1224 = vld [vmem:[%s1222 + $0x4] sm:$0xf]
    %vm1225 = vsmask.f32 5376
    %v1226 = vrot.slane %v385, 2
    %v1227 = vrot.slane %v387, 3
    %v1228 = vor.u32 %v1226, %v1227
    %v1229 = vrot.slane %v396, 2
    %v1230 = vrot.slane %v392, 3
    %v1231 = vor.u32 %v1229, %v1230
    %v1232 = vsel %vm1225, %v1228, %v1231
    %v1233 = vrot.slane %v404, 2
    %v1234 = vrot.slane %v400, 3
    %v1235 = vor.u32 %v1233, %v1234
    %v1236 = vsel %vm1225, %v1231, %v1235
    %v1237 = vrot.slane %v412, 2
    %v1238 = vrot.slane %v408, 3
    %v1239 = vor.u32 %v1237, %v1238
    %v1240 = vsel %vm1225, %v1235, %v1239
    %v1241 = vrot.slane %v887, 2
    %v1242 = vrot.slane %v416, 3
    %v1243 = vor.u32 %v1241, %v1242
    %v1244 = vsel %vm1225, %v1239, %v1243
    %v1245 = vrot.slane %v421, 2
    %v1246 = vrot.slane %v423, 3
    %v1247 = vor.u32 %v1245, %v1246
    %v1248 = vrot.slane %v432, 2
    %v1249 = vrot.slane %v428, 3
    %v1250 = vor.u32 %v1248, %v1249
    %v1251 = vsel %vm1225, %v1247, %v1250
    %v1252 = vrot.slane %v440, 2
    %v1253 = vrot.slane %v436, 3
    %v1254 = vor.u32 %v1252, %v1253
    %v1255 = vsel %vm1225, %v1250, %v1254
    %v1256 = vrot.slane %v448, 2
    %v1257 = vrot.slane %v444, 3
    %v1258 = vor.u32 %v1256, %v1257
    %v1259 = vsel %vm1225, %v1254, %v1258
    %v1260 = vrot.slane %v908, 2
    %v1261 = vrot.slane %v452, 3
    %v1262 = vor.u32 %v1260, %v1261
    %v1263 = vsel %vm1225, %v1258, %v1262
    %v1266 = vunpack.c.l.b16 %v1223
    %v1267 = vunpack.c.l.b16 %v1224
    %v1268 = vpack.c.b16 %v1267, %v1266
    %v1271 = vsel %vm462, %v1232, 0
    %v1274 = vsel %vm462, %v1236, 0
    %v1277 = vsel %vm462, %v1240, 0
    %v1280 = vsel %vm462, %v1244, 0
    %v1283 = vsel %vm462, %v1251, 0
    %v1286 = vsel %vm462, %v1255, 0
    %v1289 = vsel %vm462, %v1259, 0
    %v1292 = vsel %vm462, %v1263, 0
    %1294 = vmatprep.subr.bf16.mxu0 0
    %1295 = vmatpush1.bf16.msra.mxu0 %v1268
    %1296 = vmatprep.subr.bf16.mxu0 0
    %1297 = vmatpush1.bf16.msra.mxu0 0
    %1298 = vmatprep.subr.bf16.mxu0 0
    %1299 = vmatpush1.bf16.msra.mxu0 0
    %1300 = vmatprep.subr.bf16.mxu0 0
    %1301 = vmatpush1.bf16.msra.mxu0 0
    %1302 = vmatprep.subr.bf16.mxu0 0
    %1303 = vmatpush1.bf16.msra.mxu0 0
    %1304 = vmatprep.subr.bf16.mxu0 0
    %1305 = vmatpush1.bf16.msra.mxu0 0
    %1306 = vmatprep.subr.bf16.mxu0 0
    %1307 = vmatpush1.bf16.msra.mxu0 0
    %1308 = vmatprep.subr.bf16.mxu0 0
    %1309 = vmatpush1.bf16.msra.mxu0 0
    %1310 = vmatprep.subr.bf16.mxu0 0
    %1311 = vmatpush1.bf16.msra.mxu0 0
    %1312 = vmatprep.subr.bf16.mxu0 0
    %1313 = vmatpush1.bf16.msra.mxu0 0
    %1314 = vmatprep.subr.bf16.mxu0 0
    %1315 = vmatpush1.bf16.msra.mxu0 0
    %1316 = vmatprep.subr.bf16.mxu0 0
    %1317 = vmatpush1.bf16.msra.mxu0 0
    %1318 = vmatprep.subr.bf16.mxu0 0
    %1319 = vmatpush1.bf16.msra.mxu0 0
    %1320 = vmatprep.subr.bf16.mxu0 0
    %1321 = vmatpush1.bf16.msra.mxu0 0
    %1322 = vmatprep.subr.bf16.mxu0 0
    %1323 = vmatpush1.bf16.msra.mxu0 0
    %1324 = vmatprep.subr.bf16.mxu0 0
    %1325 = vmatpush1.bf16.msra.mxu0 0
    %1326 = vmatprep.mubr.bf16.mxu0 0
    %1327 = vmatmul.mubr.bf16.gmra.mrb[0].mxu0 %v1271
    %v1328 = vpop.f32.mrb[0].mxu0
    %v1329 = vadd.f32 0.0, %v1328
    %v1330 = vpop.f32.mrb[0].mxu0
    %v1331 = vpop.f32.mrb[0].mxu0
    %v1332 = vadd.f32 0.0, %v1331
    %v1333 = vpop.f32.mrb[0].mxu0
    %1334 = vmatprep.mubr.bf16.mxu0 0
    %1335 = vmatmul.mubr.bf16.gmra.mrb[0].mxu0 %v1274
    %v1336 = vpop.f32.mrb[0].mxu0
    %v1337 = vadd.f32 0.0, %v1336
    %v1338 = vpop.f32.mrb[0].mxu0
    %v1339 = vpop.f32.mrb[0].mxu0
    %v1340 = vadd.f32 0.0, %v1339
    %v1341 = vpop.f32.mrb[0].mxu0
    %1342 = vmatprep.mubr.bf16.mxu0 0
    %1343 = vmatmul.mubr.bf16.gmra.mrb[0].mxu0 %v1277
    %v1344 = vpop.f32.mrb[0].mxu0
    %v1345 = vadd.f32 0.0, %v1344
    %v1346 = vpop.f32.mrb[0].mxu0
    %v1347 = vpop.f32.mrb[0].mxu0
    %v1348 = vadd.f32 0.0, %v1347
    %v1349 = vpop.f32.mrb[0].mxu0
    %1350 = vmatprep.mubr.bf16.mxu0 0
    %1351 = vmatmul.mubr.bf16.gmra.mrb[0].mxu0 %v1280
    %v1352 = vpop.f32.mrb[0].mxu0
    %v1353 = vadd.f32 0.0, %v1352
    %v1354 = vpop.f32.mrb[0].mxu0
    %v1355 = vpop.f32.mrb[0].mxu0
    %v1356 = vadd.f32 0.0, %v1355
    %v1357 = vpop.f32.mrb[0].mxu0
    %1358 = vmatprep.mubr.bf16.mxu0 0
    %1359 = vmatmul.mubr.bf16.gmra.mrb[0].mxu0 %v1283
    %v1360 = vpop.f32.mrb[0].mxu0
    %v1361 = vadd.f32 0.0, %v1360
    %v1362 = vpop.f32.mrb[0].mxu0
    %v1363 = vpop.f32.mrb[0].mxu0
    %v1364 = vadd.f32 0.0, %v1363
    %v1365 = vpop.f32.mrb[0].mxu0
    %1366 = vmatprep.mubr.bf16.mxu0 0
    %1367 = vmatmul.mubr.bf16.gmra.mrb[0].mxu0 %v1286
    %v1368 = vpop.f32.mrb[0].mxu0
    %v1369 = vadd.f32 0.0, %v1368
    %v1370 = vpop.f32.mrb[0].mxu0
    %v1371 = vpop.f32.mrb[0].mxu0
    %v1372 = vadd.f32 0.0, %v1371
    %v1373 = vpop.f32.mrb[0].mxu0
    %1374 = vmatprep.mubr.bf16.mxu0 0
    %1375 = vmatmul.mubr.bf16.gmra.mrb[0].mxu0 %v1289
    %v1376 = vpop.f32.mrb[0].mxu0
    %v1377 = vadd.f32 0.0, %v1376
    %v1378 = vpop.f32.mrb[0].mxu0
    %v1379 = vpop.f32.mrb[0].mxu0
    %v1380 = vadd.f32 0.0, %v1379
    %v1381 = vpop.f32.mrb[0].mxu0
    %1382 = vmatprep.mubr.bf16.mxu0 0
    %1383 = vmatmul.mubr.bf16.gmra.mrb[0].mxu0 %v1292
    %v1384 = vpop.f32.mrb[0].mxu0
    %v1385 = vadd.f32 0.0, %v1384
    %v1386 = vpop.f32.mrb[0].mxu0
    %v1387 = vpop.f32.mrb[0].mxu0
    %v1388 = vadd.f32 0.0, %v1387
    %v1389 = vpop.f32.mrb[0].mxu0
    %1390 = vdwg.mxu0
    %v1391 = vadd.f32 %v1206, %v1329
    %v1392 = vadd.f32 %v1207, %v1332
    %v1393 = vadd.f32 %v1208, %v1337
    %v1394 = vadd.f32 %v1209, %v1340
    %v1395 = vadd.f32 %v1210, %v1345
    %v1396 = vadd.f32 %v1211, %v1348
    %v1397 = vadd.f32 %v1212, %v1353
    %v1398 = vadd.f32 %v1213, %v1356
    %v1399 = vadd.f32 %v1214, %v1361
    %v1400 = vadd.f32 %v1215, %v1364
    %v1401 = vadd.f32 %v1216, %v1369
    %v1402 = vadd.f32 %v1217, %v1372
    %v1403 = vadd.f32 %v1218, %v1377
    %v1404 = vadd.f32 %v1219, %v1380
    %v1405 = vadd.f32 %v1220, %v1385
    %v1406 = vadd.f32 %v1221, %v1388
    %s1407 = scalar_lea.vmem %s2, 48
    %v1408 = vld [vmem:[%s1407] sm:$0xf]
    %v1409 = vld [vmem:[%s1407 + $0x4] sm:$0xf]
    %vm1410 = vcmask 1044480
    %v1411 = vrot.slane %v360, 3
    %v1412 = vrot.slane %v361, 3
    %v1413 = vsel %vm1410, %v1411, %v1412
    %v1414 = vrot.slane %v362, 3
    %v1415 = vsel %vm1410, %v1412, %v1414
    %v1416 = vrot.slane %v363, 3
    %v1417 = vsel %vm1410, %v1414, %v1416
    %v1418 = vrot.slane %v376, 3
    %v1419 = vsel %vm1410, %v1416, %v1418
    %v1420 = vrot.slane %v364, 3
    %v1421 = vrot.slane %v365, 3
    %v1422 = vsel %vm1410, %v1420, %v1421
    %v1423 = vrot.slane %v366, 3
    %v1424 = vsel %vm1410, %v1421, %v1423
    %v1425 = vrot.slane %v367, 3
    %v1426 = vsel %vm1410, %v1423, %v1425
    %v1427 = vrot.slane %v377, 3
    %v1428 = vsel %vm1410, %v1425, %v1427
    %v1431 = vunpack.c.l.b16 %v1408
    %v1432 = vunpack.c.l.b16 %v1409
    %v1433 = vpack.c.b16 %v1432, %v1431
    %v1436 = vsel %vm462, %v1413, 0
    %v1439 = vsel %vm462, %v1415, 0
    %v1442 = vsel %vm462, %v1417, 0
    %v1445 = vsel %vm462, %v1419, 0
    %v1448 = vsel %vm462, %v1422, 0
    %v1451 = vsel %vm462, %v1424, 0
    %v1454 = vsel %vm462, %v1426, 0
    %v1457 = vsel %vm462, %v1428, 0
    %1459 = vmatprep.subr.bf16.mxu0 0
    %1460 = vmatpush1.bf16.msra.mxu0 %v1433
    %1461 = vmatprep.subr.bf16.mxu0 0
    %1462 = vmatpush1.bf16.msra.mxu0 0
    %1463 = vmatprep.subr.bf16.mxu0 0
    %1464 = vmatpush1.bf16.msra.mxu0 0
    %1465 = vmatprep.subr.bf16.mxu0 0
    %1466 = vmatpush1.bf16.msra.mxu0 0
    %1467 = vmatprep.subr.bf16.mxu0 0
    %1468 = vmatpush1.bf16.msra.mxu0 0
    %1469 = vmatprep.subr.bf16.mxu0 0
    %1470 = vmatpush1.bf16.msra.mxu0 0
    %1471 = vmatprep.subr.bf16.mxu0 0
    %1472 = vmatpush1.bf16.msra.mxu0 0
    %1473 = vmatprep.subr.bf16.mxu0 0
    %1474 = vmatpush1.bf16.msra.mxu0 0
    %1475 = vmatprep.subr.bf16.mxu0 0
    %1476 = vmatpush1.bf16.msra.mxu0 0
    %1477 = vmatprep.subr.bf16.mxu0 0
    %1478 = vmatpush1.bf16.msra.mxu0 0
    %1479 = vmatprep.subr.bf16.mxu0 0
    %1480 = vmatpush1.bf16.msra.mxu0 0
    %1481 = vmatprep.subr.bf16.mxu0 0
    %1482 = vmatpush1.bf16.msra.mxu0 0
    %1483 = vmatprep.subr.bf16.mxu0 0
    %1484 = vmatpush1.bf16.msra.mxu0 0
    %1485 = vmatprep.subr.bf16.mxu0 0
    %1486 = vmatpush1.bf16.msra.mxu0 0
    %1487 = vmatprep.subr.bf16.mxu0 0
    %1488 = vmatpush1.bf16.msra.mxu0 0
    %1489 = vmatprep.subr.bf16.mxu0 0
    %1490 = vmatpush1.bf16.msra.mxu0 0
    %1491 = vmatprep.mubr.bf16.mxu0 0
    %1492 = vmatmul.mubr.bf16.gmra.mrb[0].mxu0 %v1436
    %v1493 = vpop.f32.mrb[0].mxu0
    %v1494 = vadd.f32 0.0, %v1493
    %v1495 = vpop.f32.mrb[0].mxu0
    %v1496 = vpop.f32.mrb[0].mxu0
    %v1497 = vadd.f32 0.0, %v1496
    %v1498 = vpop.f32.mrb[0].mxu0
    %1499 = vmatprep.mubr.bf16.mxu0 0
    %1500 = vmatmul.mubr.bf16.gmra.mrb[0].mxu0 %v1439
    %v1501 = vpop.f32.mrb[0].mxu0
    %v1502 = vadd.f32 0.0, %v1501
    %v1503 = vpop.f32.mrb[0].mxu0
    %v1504 = vpop.f32.mrb[0].mxu0
    %v1505 = vadd.f32 0.0, %v1504
    %v1506 = vpop.f32.mrb[0].mxu0
    %1507 = vmatprep.mubr.bf16.mxu0 0
    %1508 = vmatmul.mubr.bf16.gmra.mrb[0].mxu0 %v1442
    %v1509 = vpop.f32.mrb[0].mxu0
    %v1510 = vadd.f32 0.0, %v1509
    %v1511 = vpop.f32.mrb[0].mxu0
    %v1512 = vpop.f32.mrb[0].mxu0
    %v1513 = vadd.f32 0.0, %v1512
    %v1514 = vpop.f32.mrb[0].mxu0
    %1515 = vmatprep.mubr.bf16.mxu0 0
    %1516 = vmatmul.mubr.bf16.gmra.mrb[0].mxu0 %v1445
    %v1517 = vpop.f32.mrb[0].mxu0
    %v1518 = vadd.f32 0.0, %v1517
    %v1519 = vpop.f32.mrb[0].mxu0
    %v1520 = vpop.f32.mrb[0].mxu0
    %v1521 = vadd.f32 0.0, %v1520
    %v1522 = vpop.f32.mrb[0].mxu0
    %1523 = vmatprep.mubr.bf16.mxu0 0
    %1524 = vmatmul.mubr.bf16.gmra.mrb[0].mxu0 %v1448
    %v1525 = vpop.f32.mrb[0].mxu0
    %v1526 = vadd.f32 0.0, %v1525
    %v1527 = vpop.f32.mrb[0].mxu0
    %v1528 = vpop.f32.mrb[0].mxu0
    %v1529 = vadd.f32 0.0, %v1528
    %v1530 = vpop.f32.mrb[0].mxu0
    %1531 = vmatprep.mubr.bf16.mxu0 0
    %1532 = vmatmul.mubr.bf16.gmra.mrb[0].mxu0 %v1451
    %v1533 = vpop.f32.mrb[0].mxu0
    %v1534 = vadd.f32 0.0, %v1533
    %v1535 = vpop.f32.mrb[0].mxu0
    %v1536 = vpop.f32.mrb[0].mxu0
    %v1537 = vadd.f32 0.0, %v1536
    %v1538 = vpop.f32.mrb[0].mxu0
    %1539 = vmatprep.mubr.bf16.mxu0 0
    %1540 = vmatmul.mubr.bf16.gmra.mrb[0].mxu0 %v1454
    %v1541 = vpop.f32.mrb[0].mxu0
    %v1542 = vadd.f32 0.0, %v1541
    %v1543 = vpop.f32.mrb[0].mxu0
    %v1544 = vpop.f32.mrb[0].mxu0
    %v1545 = vadd.f32 0.0, %v1544
    %v1546 = vpop.f32.mrb[0].mxu0
    %1547 = vmatprep.mubr.bf16.mxu0 0
    %1548 = vmatmul.mubr.bf16.gmra.mrb[0].mxu0 %v1457
    %v1549 = vpop.f32.mrb[0].mxu0
    %v1550 = vadd.f32 0.0, %v1549
    %v1551 = vpop.f32.mrb[0].mxu0
    %v1552 = vpop.f32.mrb[0].mxu0
    %v1553 = vadd.f32 0.0, %v1552
    %v1554 = vpop.f32.mrb[0].mxu0
    %1555 = vdwg.mxu0
    %v1556 = vadd.f32 %v1391, %v1494
    %v1557 = vadd.f32 %v1392, %v1497
    %v1558 = vadd.f32 %v1393, %v1502
    %v1559 = vadd.f32 %v1394, %v1505
    %v1560 = vadd.f32 %v1395, %v1510
    %v1561 = vadd.f32 %v1396, %v1513
    %v1562 = vadd.f32 %v1397, %v1518
    %v1563 = vadd.f32 %v1398, %v1521
    %v1564 = vadd.f32 %v1399, %v1526
    %v1565 = vadd.f32 %v1400, %v1529
    %v1566 = vadd.f32 %v1401, %v1534
    %v1567 = vadd.f32 %v1402, %v1537
    %v1568 = vadd.f32 %v1403, %v1542
    %v1569 = vadd.f32 %v1404, %v1545
    %v1570 = vadd.f32 %v1405, %v1550
    %v1571 = vadd.f32 %v1406, %v1553
    %s1572 = sadd.s32 0, 0
    %p1573 = scmp.ne.s32.totalorder %s1572, 0
    // Predicated region
    $region121: #{_lambda_.6} parent=1 // pred_check
      %p1574 = pneg %p1573
    $region122: #{_lambda_.6} parent=1 // pred_check_branch
      %1576 = sbr.rel (%p1574) target = $region124
    $region123: #{_lambda_.6} parent=1 // pred_region
      %v1577 = vld [vmem:[%s3] sm:$0xff]
      %vm1578 = vcmask 261120
      %v1579 = vsel %vm1578, %v1556, 0.0
      %v1580 = vsel %vm1578, %v1557, 0.0
      %v1581 = vadd.f32 %v1579, %v1580
      %v1582 = vsel %vm1578, %v1558, 0.0
      %v1583 = vadd.f32 %v1581, %v1582
      %v1584 = vsel %vm1578, %v1559, 0.0
      %v1585 = vadd.f32 %v1583, %v1584
      %v1586 = vsel %vm1578, %v1560, 0.0
      %v1587 = vadd.f32 %v1585, %v1586
      %v1588 = vsel %vm1578, %v1561, 0.0
      %v1589 = vadd.f32 %v1587, %v1588
      %v1590 = vsel %vm1578, %v1562, 0.0
      %v1591 = vadd.f32 %v1589, %v1590
      %v1592 = vsel %vm1578, %v1563, 0.0
      %v1593 = vadd.f32 %v1591, %v1592
      %v1594 = vsel %vm1578, %v1564, 0.0
      %v1595 = vadd.f32 %v1593, %v1594
      %v1596 = vsel %vm1578, %v1565, 0.0
      %v1597 = vadd.f32 %v1595, %v1596
      %v1598 = vsel %vm1578, %v1566, 0.0
      %v1599 = vadd.f32 %v1597, %v1598
      %v1600 = vsel %vm1578, %v1567, 0.0
      %v1601 = vadd.f32 %v1599, %v1600
      %v1602 = vsel %vm1578, %v1568, 0.0
      %v1603 = vadd.f32 %v1601, %v1602
      %v1604 = vsel %vm1578, %v1569, 0.0
      %v1605 = vadd.f32 %v1603, %v1604
      %v1606 = vsel %vm1578, %v1570, 0.0
      %v1607 = vadd.f32 %v1605, %v1606
      %v1608 = vsel %vm1578, %v1571, 0.0
      %v1609 = vadd.f32 %v1607, %v1608
      %v1610 = vrot.slane %v1609, 4
      %v1611 = vadd.f32 %v1609, %v1610
      %v1612 = vrot.slane %v1611, 2
      %v1613 = vadd.f32 %v1611, %v1612
      %v1614 = vrot.slane %v1613, 1
      %v1615 = vadd.f32 %v1613, %v1614
      %v1616 = vadd.f32 %v1577, %v1615
      %1617 = vst.msk [vmem:[%s3] sm:$0xff] %vm1578, %v1616
      %v1618 = vld [vmem:[%s4] sm:$0xff]
      %v1619 = vmul.f32 %v1556, %v1556
      %v1620 = vmul.f32 %v1557, %v1557
      %v1621 = vmul.f32 %v1558, %v1558
      %v1622 = vmul.f32 %v1559, %v1559
      %v1623 = vmul.f32 %v1560, %v1560
      %v1624 = vmul.f32 %v1561, %v1561
      %v1625 = vmul.f32 %v1562, %v1562
      %v1626 = vmul.f32 %v1563, %v1563
      %v1627 = vmul.f32 %v1564, %v1564
      %v1628 = vmul.f32 %v1565, %v1565
      %v1629 = vmul.f32 %v1566, %v1566
      %v1630 = vmul.f32 %v1567, %v1567
      %v1631 = vmul.f32 %v1568, %v1568
      %v1632 = vmul.f32 %v1569, %v1569
      %v1633 = vmul.f32 %v1570, %v1570
      %v1634 = vmul.f32 %v1571, %v1571
      %v1635 = vsel %vm1578, %v1619, 0.0
      %v1636 = vsel %vm1578, %v1620, 0.0
      %v1637 = vadd.f32 %v1635, %v1636
      %v1638 = vsel %vm1578, %v1621, 0.0
      %v1639 = vadd.f32 %v1637, %v1638
      %v1640 = vsel %vm1578, %v1622, 0.0
      %v1641 = vadd.f32 %v1639, %v1640
      %v1642 = vsel %vm1578, %v1623, 0.0
      %v1643 = vadd.f32 %v1641, %v1642
      %v1644 = vsel %vm1578, %v1624, 0.0
      %v1645 = vadd.f32 %v1643, %v1644
      %v1646 = vsel %vm1578, %v1625, 0.0
      %v1647 = vadd.f32 %v1645, %v1646
      %v1648 = vsel %vm1578, %v1626, 0.0
      %v1649 = vadd.f32 %v1647, %v1648
      %v1650 = vsel %vm1578, %v1627, 0.0
      %v1651 = vadd.f32 %v1649, %v1650
      %v1652 = vsel %vm1578, %v1628, 0.0
      %v1653 = vadd.f32 %v1651, %v1652
      %v1654 = vsel %vm1578, %v1629, 0.0
      %v1655 = vadd.f32 %v1653, %v1654
      %v1656 = vsel %vm1578, %v1630, 0.0
      %v1657 = vadd.f32 %v1655, %v1656
      %v1658 = vsel %vm1578, %v1631, 0.0
      %v1659 = vadd.f32 %v1657, %v1658
      %v1660 = vsel %vm1578, %v1632, 0.0
      %v1661 = vadd.f32 %v1659, %v1660
      %v1662 = vsel %vm1578, %v1633, 0.0
      %v1663 = vadd.f32 %v1661, %v1662
      %v1664 = vsel %vm1578, %v1634, 0.0
      %v1665 = vadd.f32 %v1663, %v1664
      %v1666 = vrot.slane %v1665, 4
      %v1667 = vadd.f32 %v1665, %v1666
      %v1668 = vrot.slane %v1667, 2
      %v1669 = vadd.f32 %v1667, %v1668
      %v1670 = vrot.slane %v1669, 1
      %v1671 = vadd.f32 %v1669, %v1670
      %v1672 = vadd.f32 %v1618, %v1671
      %1673 = vst.msk [vmem:[%s4] sm:$0xff] %vm1578, %v1672
    $region124: #{_lambda_.6} parent=1 // pred_fallthru
      _
    %p1674 = scmp.eq.s32.totalorder %s1572, 0
    // Predicated region
    $region125: #{_lambda_.6} parent=1 // pred_check
      %p1675 = pneg %p1674
    $region126: #{_lambda_.6} parent=1 // pred_check_branch
      %1677 = sbr.rel (%p1675) target = $region128
    $region127: #{_lambda_.6} parent=1 // pred_region
      %v1678 = vlaneseq
      %v1679 = vshrl.u32 %v1678, 7
      %v1680 = vadd.s32 %v1679, 8
      %v1681 = vadd.s32 %v1679, 16
      %v1682 = vadd.s32 %v1679, 24
      %v1683 = vadd.s32 %v1679, 32
      %v1684 = vadd.s32 %v1679, 40
      %v1685 = vadd.s32 %v1679, 48
      %v1686 = vadd.s32 %v1679, 56
      %s1687 = smul.u32 %s1572, 64
      %v1688 = vstv %s1687
      %v1689 = vadd.s32 %v1679, %v1688
      %v1690 = vadd.s32 %v1680, %v1688
      %v1691 = vadd.s32 %v1681, %v1688
      %v1692 = vadd.s32 %v1682, %v1688
      %v1693 = vadd.s32 %v1683, %v1688
      %v1694 = vadd.s32 %v1684, %v1688
      %v1695 = vadd.s32 %v1685, %v1688
      %v1696 = vadd.s32 %v1686, %v1688
      %vm1697 = vcmp.lt.s32.totalorder %v1689, 8
      %vm1698 = vcmp.lt.s32.totalorder %v1690, 8
      %vm1699 = vcmp.lt.s32.totalorder %v1691, 8
      %vm1700 = vcmp.lt.s32.totalorder %v1692, 8
      %vm1701 = vcmp.lt.s32.totalorder %v1693, 8
      %vm1702 = vcmp.lt.s32.totalorder %v1694, 8
      %vm1703 = vcmp.lt.s32.totalorder %v1695, 8
      %vm1704 = vcmp.lt.s32.totalorder %v1696, 8
      %v1705 = vsel %vm1697, %v1556, 0.0
      %v1706 = vsel %vm1698, %v1557, 0.0
      %v1707 = vsel %vm1699, %v1558, 0.0
      %v1708 = vsel %vm1700, %v1559, 0.0
      %v1709 = vsel %vm1701, %v1560, 0.0
      %v1710 = vsel %vm1702, %v1561, 0.0
      %v1711 = vsel %vm1703, %v1562, 0.0
      %v1712 = vsel %vm1704, %v1563, 0.0
      %v1713 = vsel %vm1697, %v1564, 0.0
      %v1714 = vsel %vm1698, %v1565, 0.0
      %v1715 = vsel %vm1699, %v1566, 0.0
      %v1716 = vsel %vm1700, %v1567, 0.0
      %v1717 = vsel %vm1701, %v1568, 0.0
      %v1718 = vsel %vm1702, %v1569, 0.0
      %v1719 = vsel %vm1703, %v1570, 0.0
      %v1720 = vsel %vm1704, %v1571, 0.0
      %v1721 = vld [vmem:[%s3] sm:$0xff]
      %vm1722 = vcmask 261120
      %v1723 = vsel %vm1722, %v1705, 0.0
      %v1724 = vsel %vm1722, %v1706, 0.0
      %v1725 = vadd.f32 %v1723, %v1724
      %v1726 = vsel %vm1722, %v1707, 0.0
      %v1727 = vadd.f32 %v1725, %v1726
      %v1728 = vsel %vm1722, %v1708, 0.0
      %v1729 = vadd.f32 %v1727, %v1728
      %v1730 = vsel %vm1722, %v1709, 0.0
      %v1731 = vadd.f32 %v1729, %v1730
      %v1732 = vsel %vm1722, %v1710, 0.0
      %v1733 = vadd.f32 %v1731, %v1732
      %v1734 = vsel %vm1722, %v1711, 0.0
      %v1735 = vadd.f32 %v1733, %v1734
      %v1736 = vsel %vm1722, %v1712, 0.0
      %v1737 = vadd.f32 %v1735, %v1736
      %v1738 = vsel %vm1722, %v1713, 0.0
      %v1739 = vadd.f32 %v1737, %v1738
      %v1740 = vsel %vm1722, %v1714, 0.0
      %v1741 = vadd.f32 %v1739, %v1740
      %v1742 = vsel %vm1722, %v1715, 0.0
      %v1743 = vadd.f32 %v1741, %v1742
      %v1744 = vsel %vm1722, %v1716, 0.0
      %v1745 = vadd.f32 %v1743, %v1744
      %v1746 = vsel %vm1722, %v1717, 0.0
      %v1747 = vadd.f32 %v1745, %v1746
      %v1748 = vsel %vm1722, %v1718, 0.0
      %v1749 = vadd.f32 %v1747, %v1748
      %v1750 = vsel %vm1722, %v1719, 0.0
      %v1751 = vadd.f32 %v1749, %v1750
      %v1752 = vsel %vm1722, %v1720, 0.0
      %v1753 = vadd.f32 %v1751, %v1752
      %v1754 = vrot.slane %v1753, 4
      %v1755 = vadd.f32 %v1753, %v1754
      %v1756 = vrot.slane %v1755, 2
      %v1757 = vadd.f32 %v1755, %v1756
      %v1758 = vrot.slane %v1757, 1
      %v1759 = vadd.f32 %v1757, %v1758
      %v1760 = vadd.f32 %v1721, %v1759
      %1761 = vst.msk [vmem:[%s3] sm:$0xff] %vm1722, %v1760
      %v1762 = vld [vmem:[%s4] sm:$0xff]
      %v1763 = vmul.f32 %v1705, %v1705
      %v1764 = vmul.f32 %v1706, %v1706
      %v1765 = vmul.f32 %v1707, %v1707
      %v1766 = vmul.f32 %v1708, %v1708
      %v1767 = vmul.f32 %v1709, %v1709
      %v1768 = vmul.f32 %v1710, %v1710
      %v1769 = vmul.f32 %v1711, %v1711
      %v1770 = vmul.f32 %v1712, %v1712
      %v1771 = vmul.f32 %v1713, %v1713
      %v1772 = vmul.f32 %v1714, %v1714
      %v1773 = vmul.f32 %v1715, %v1715
      %v1774 = vmul.f32 %v1716, %v1716
      %v1775 = vmul.f32 %v1717, %v1717
      %v1776 = vmul.f32 %v1718, %v1718
      %v1777 = vmul.f32 %v1719, %v1719
      %v1778 = vmul.f32 %v1720, %v1720
      %v1779 = vsel %vm1722, %v1763, 0.0
      %v1780 = vsel %vm1722, %v1764, 0.0
      %v1781 = vadd.f32 %v1779, %v1780
      %v1782 = vsel %vm1722, %v1765, 0.0
      %v1783 = vadd.f32 %v1781, %v1782
      %v1784 = vsel %vm1722, %v1766, 0.0
      %v1785 = vadd.f32 %v1783, %v1784
      %v1786 = vsel %vm1722, %v1767, 0.0
      %v1787 = vadd.f32 %v1785, %v1786
      %v1788 = vsel %vm1722, %v1768, 0.0
      %v1789 = vadd.f32 %v1787, %v1788
      %v1790 = vsel %vm1722, %v1769, 0.0
      %v1791 = vadd.f32 %v1789, %v1790
      %v1792 = vsel %vm1722, %v1770, 0.0
      %v1793 = vadd.f32 %v1791, %v1792
      %v1794 = vsel %vm1722, %v1771, 0.0
      %v1795 = vadd.f32 %v1793, %v1794
      %v1796 = vsel %vm1722, %v1772, 0.0
      %v1797 = vadd.f32 %v1795, %v1796
      %v1798 = vsel %vm1722, %v1773, 0.0
      %v1799 = vadd.f32 %v1797, %v1798
      %v1800 = vsel %vm1722, %v1774, 0.0
      %v1801 = vadd.f32 %v1799, %v1800
      %v1802 = vsel %vm1722, %v1775, 0.0
      %v1803 = vadd.f32 %v1801, %v1802
      %v1804 = vsel %vm1722, %v1776, 0.0
      %v1805 = vadd.f32 %v1803, %v1804
      %v1806 = vsel %vm1722, %v1777, 0.0
      %v1807 = vadd.f32 %v1805, %v1806
      %v1808 = vsel %vm1722, %v1778, 0.0
      %v1809 = vadd.f32 %v1807, %v1808
      %v1810 = vrot.slane %v1809, 4
      %v1811 = vadd.f32 %v1809, %v1810
      %v1812 = vrot.slane %v1811, 2
      %v1813 = vadd.f32 %v1811, %v1812
      %v1814 = vrot.slane %v1813, 1
      %v1815 = vadd.f32 %v1813, %v1814
      %v1816 = vadd.f32 %v1762, %v1815
      %1817 = vst.msk [vmem:[%s4] sm:$0xff] %vm1722, %v1816
    $region128: #{_lambda_.6} parent=1 // pred_fallthru
      _
    // Predicated region
    $region129: #{_lambda_.6} parent=1 // pred_check
      _
    $region130: #{_lambda_.6} parent=1 // pred_check_branch
      %1819 = sbr.rel (0) target = $region132
    $region131: #{_lambda_.6} parent=1 // pred_region
      _
    $region132: #{_lambda_.6} parent=1 // pred_fallthru
      _
    // Predicated region
    $region133: #{_lambda_.6} parent=1 // pred_check
      _
    $region134: #{_lambda_.6} parent=1 // pred_check_branch
      %1821 = sbr.rel (0) target = $region136
    $region135: #{_lambda_.6} parent=1 // pred_region
      _
    $region136: #{_lambda_.6} parent=1 // pred_fallthru
      _
    // Predicated region
    $region137: #{_lambda_.6} parent=1 // pred_check
      _
    $region138: #{_lambda_.6} parent=1 // pred_check_branch
      %1823 = sbr.rel (0) target = $region140
    $region139: #{_lambda_.6} parent=1 // pred_region
      _
    $region140: #{_lambda_.6} parent=1 // pred_fallthru
      _
    // Predicated region
    $region141: #{_lambda_.6} parent=1 // pred_check
      _
    $region142: #{_lambda_.6} parent=1 // pred_check_branch
      %1825 = sbr.rel (0) target = $region144
    $region143: #{_lambda_.6} parent=1 // pred_region
      _
    $region144: #{_lambda_.6} parent=1 // pred_fallthru
      _

// kernel: _lambda_.5
$region0: #{_lambda_.5}
  #allocation0 [shape = 'u32[]', space=smem, size = 0x4, offset = 0x4, fixed_abs, tag = 'smem constant byte address 0x4 - core index']
  #allocation1 [shape = 'u32[144,128]{1,0:T(1,128)}', space=vmem, size = 0x12000, scoped, tag = 'internal scratch']
  #allocation2 [shape = 'f32[2,128,16]{2,1,0:T(8,128)}', space=vmem, size = 0x20000, scoped, tag = 'scratch operand']
  %s0 = inlined_call_operand.vmem [shape: bf16[2,144,4], index: 0, kind: input, shape index: {}, may-alias: {0,1}]
  %s1 = inlined_call_operand.vmem [shape: bf16[2,144,4], index: 1, kind: input, shape index: {}, may-alias: {0,1}]
  %s2 = inlined_call_operand.vmem [shape: bf16[8,4,16], index: 2, kind: input, shape index: {}]
  %s3 = inlined_call_operand.vmem [shape: f32[1,16], index: 3, kind: input, shape index: {}]
  %s4 = inlined_call_operand.vmem [shape: f32[1,16], index: 4, kind: input, shape index: {}]
  %s5 = inlined_call_operand.vmem [shape: bf16[2,8,128], index: 5, kind: output, shape index: {}]
  %s6 = sld [smem:[#allocation0]]
  $region112: #{_lambda_.5} parent=0
    _
  %s8 = ssub.s32 1, %s6
  %s9 = scalar_select 0, %s8, %s6
  $region1: #{_lambda_.5} parent=0
    #allocation3 [shape = 'u8[65536]{0}', space=vmem, size = 0x10000, scoped, tag = 'input window, operand 0, single buffered']
    #allocation4 [shape = 'u8[8192]{0}', space=vmem, size = 0x2000, scoped, tag = 'input window, operand 1, single buffered']
    // Predicated region
    $region2: #{_lambda_.5} parent=1 // pred_check
      _
    $region3: #{_lambda_.5} parent=1 // pred_check_branch
      %11 = sbr.rel (0) target = $region5
    $region4: #{_lambda_.5} parent=1 // pred_region
      // Predicated region
      $region6: #{_lambda_.5} parent=4 // pred_check
        _
      $region7: #{_lambda_.5} parent=4 // pred_check_branch
        %13 = sbr.rel (0) target = $region9
      $region8: #{_lambda_.5} parent=4 // pred_region
        // Predicated region
        $region10: #{_lambda_.5} parent=8 // pred_check
          _
        $region11: #{_lambda_.5} parent=8 // pred_check_branch
          %15 = sbr.rel target = $region13
        $region12: #{_lambda_.5} parent=8 // pred_region
          // Predicated region
          $region25: #{_lambda_.5} parent=12 // pred_check
            _
          $region26: #{_lambda_.5} parent=12 // pred_check_branch
            %92 = sbr.rel (0) target = $region28
          $region27: #{_lambda_.5} parent=12 // pred_region
            loop: start=0, step=1, limit=1
            $region29: #{_lambda_.5} parent=27 // loop_pre_header
              _
            $region30: #{_lambda_.5} parent=27 // loop_header
              %s94 = sphi 0, %s98
              %p95 = scmp.ge.s32.totalorder %s94, 1
              %s99 = sphi %s0, %s0
              %s100 = sphi [#allocation3], [#allocation3]
            $region31: #{_lambda_.5} parent=27 // loop_header_branch
              %97 = sbr.rel (%p95) target = $region35
            $region32: #{_lambda_.5} parent=27 // loop_body
              _
            $region33: #{_lambda_.5} parent=27 // loop_footer
              %s98 = sadd.s32 1, %s94
            $region34: #{_lambda_.5} parent=27 // loop_footer_branch
              %93 = sbr.rel target = $region30
            $region35: #{_lambda_.5} parent=27 // loop_exit
              _
            loop: start=0, step=1, limit=1
            $region36: #{_lambda_.5} parent=27 // loop_pre_header
              _
            $region37: #{_lambda_.5} parent=27 // loop_header
              %s103 = sphi 0, %s107
              %p104 = scmp.ge.s32.totalorder %s103, 1
              %s108 = sphi %s0, %s0
              %s109 = sphi [#allocation3], [#allocation3]
            $region38: #{_lambda_.5} parent=27 // loop_header_branch
              %106 = sbr.rel (%p104) target = $region42
            $region39: #{_lambda_.5} parent=27 // loop_body
              %v110 = vld [vmem:[%s108] sm:$0xf]
              %111 = vst [vmem:[%s109] sm:$0xf] %v110
              %v112 = vld [vmem:[%s108 + $0x4] sm:$0xf]
              %113 = vst [vmem:[%s109 + $0x4] sm:$0xf] %v112
              %v114 = vld [vmem:[%s108 + $0x8] sm:$0xf]
              %115 = vst [vmem:[%s109 + $0x8] sm:$0xf] %v114
              %v116 = vld [vmem:[%s108 + $0xc] sm:$0xf]
              %117 = vst [vmem:[%s109 + $0xc] sm:$0xf] %v116
              %v118 = vld [vmem:[%s108 + $0x10] sm:$0xf]
              %119 = vst [vmem:[%s109 + $0x10] sm:$0xf] %v118
              %v120 = vld [vmem:[%s108 + $0x14] sm:$0xf]
              %121 = vst [vmem:[%s109 + $0x14] sm:$0xf] %v120
              %v122 = vld [vmem:[%s108 + $0x18] sm:$0xf]
              %123 = vst [vmem:[%s109 + $0x18] sm:$0xf] %v122
              %v124 = vld [vmem:[%s108 + $0x1c] sm:$0xf]
              %125 = vst [vmem:[%s109 + $0x1c] sm:$0xf] %v124
              %v126 = vld [vmem:[%s108 + $0x20] sm:$0xf]
              %127 = vst [vmem:[%s109 + $0x20] sm:$0xf] %v126
              %v128 = vld [vmem:[%s108 + $0x24] sm:$0xf]
              %129 = vst [vmem:[%s109 + $0x24] sm:$0xf] %v128
              %v130 = vld [vmem:[%s108 + $0x28] sm:$0xf]
              %131 = vst [vmem:[%s109 + $0x28] sm:$0xf] %v130
              %v132 = vld [vmem:[%s108 + $0x2c] sm:$0xf]
              %133 = vst [vmem:[%s109 + $0x2c] sm:$0xf] %v132
              %v134 = vld [vmem:[%s108 + $0x30] sm:$0xf]
              %135 = vst [vmem:[%s109 + $0x30] sm:$0xf] %v134
              %v136 = vld [vmem:[%s108 + $0x34] sm:$0xf]
              %137 = vst [vmem:[%s109 + $0x34] sm:$0xf] %v136
              %v138 = vld [vmem:[%s108 + $0x38] sm:$0xf]
              %139 = vst [vmem:[%s109 + $0x38] sm:$0xf] %v138
              %v140 = vld [vmem:[%s108 + $0x3c] sm:$0xf]
              %141 = vst [vmem:[%s109 + $0x3c] sm:$0xf] %v140
              %v142 = vld [vmem:[%s108 + $0x48] sm:$0xf]
              %143 = vst [vmem:[%s109 + $0x40] sm:$0xf] %v142
              %v144 = vld [vmem:[%s108 + $0x4c] sm:$0xf]
              %145 = vst [vmem:[%s109 + $0x44] sm:$0xf] %v144
              %v146 = vld [vmem:[%s108 + $0x50] sm:$0xf]
              %147 = vst [vmem:[%s109 + $0x48] sm:$0xf] %v146
              %v148 = vld [vmem:[%s108 + $0x54] sm:$0xf]
              %149 = vst [vmem:[%s109 + $0x4c] sm:$0xf] %v148
              %v150 = vld [vmem:[%s108 + $0x58] sm:$0xf]
              %151 = vst [vmem:[%s109 + $0x50] sm:$0xf] %v150
              %v152 = vld [vmem:[%s108 + $0x5c] sm:$0xf]
              %153 = vst [vmem:[%s109 + $0x54] sm:$0xf] %v152
              %v154 = vld [vmem:[%s108 + $0x60] sm:$0xf]
              %155 = vst [vmem:[%s109 + $0x58] sm:$0xf] %v154
              %v156 = vld [vmem:[%s108 + $0x64] sm:$0xf]
              %157 = vst [vmem:[%s109 + $0x5c] sm:$0xf] %v156
              %v158 = vld [vmem:[%s108 + $0x68] sm:$0xf]
              %159 = vst [vmem:[%s109 + $0x60] sm:$0xf] %v158
              %v160 = vld [vmem:[%s108 + $0x6c] sm:$0xf]
              %161 = vst [vmem:[%s109 + $0x64] sm:$0xf] %v160
              %v162 = vld [vmem:[%s108 + $0x70] sm:$0xf]
              %163 = vst [vmem:[%s109 + $0x68] sm:$0xf] %v162
              %v164 = vld [vmem:[%s108 + $0x74] sm:$0xf]
              %165 = vst [vmem:[%s109 + $0x6c] sm:$0xf] %v164
              %v166 = vld [vmem:[%s108 + $0x78] sm:$0xf]
              %167 = vst [vmem:[%s109 + $0x70] sm:$0xf] %v166
              %v168 = vld [vmem:[%s108 + $0x7c] sm:$0xf]
              %169 = vst [vmem:[%s109 + $0x74] sm:$0xf] %v168
              %v170 = vld [vmem:[%s108 + $0x80] sm:$0xf]
              %171 = vst [vmem:[%s109 + $0x78] sm:$0xf] %v170
              %v172 = vld [vmem:[%s108 + $0x84] sm:$0xf]
              %173 = vst [vmem:[%s109 + $0x7c] sm:$0xf] %v172
            $region40: #{_lambda_.5} parent=27 // loop_footer
              %s107 = sadd.s32 1, %s103
            $region41: #{_lambda_.5} parent=27 // loop_footer_branch
              %102 = sbr.rel target = $region37
            $region42: #{_lambda_.5} parent=27 // loop_exit
              _
          $region28: #{_lambda_.5} parent=12 // pred_fallthru
            _
        $region13: #{_lambda_.5} parent=8 // pred_fallthru
          _
        // Predicated region
        $region14: #{_lambda_.5} parent=8 // pred_check
          _
        $region15: #{_lambda_.5} parent=8 // pred_check_branch
          %17 = sbr.rel (0) target = $region17
        $region16: #{_lambda_.5} parent=8 // pred_region
          loop: start=0, step=1, limit=1
          $region18: #{_lambda_.5} parent=16 // loop_pre_header
            _
          $region19: #{_lambda_.5} parent=16 // loop_header
            %s20 = sphi 0, %s24
            %p21 = scmp.ge.s32.totalorder %s20, 1
            %s25 = sphi %s0, %s0
            %s26 = sphi [#allocation3], [#allocation3]
          $region20: #{_lambda_.5} parent=16 // loop_header_branch
            %23 = sbr.rel (%p21) target = $region24
          $region21: #{_lambda_.5} parent=16 // loop_body
            %v27 = vld [vmem:[%s25] sm:$0xf]
            %28 = vst [vmem:[%s26] sm:$0xf] %v27
            %v29 = vld [vmem:[%s25 + $0x4] sm:$0xf]
            %30 = vst [vmem:[%s26 + $0x4] sm:$0xf] %v29
            %v31 = vld [vmem:[%s25 + $0x8] sm:$0xf]
            %32 = vst [vmem:[%s26 + $0x8] sm:$0xf] %v31
            %v33 = vld [vmem:[%s25 + $0xc] sm:$0xf]
            %34 = vst [vmem:[%s26 + $0xc] sm:$0xf] %v33
            %v35 = vld [vmem:[%s25 + $0x10] sm:$0xf]
            %36 = vst [vmem:[%s26 + $0x10] sm:$0xf] %v35
            %v37 = vld [vmem:[%s25 + $0x14] sm:$0xf]
            %38 = vst [vmem:[%s26 + $0x14] sm:$0xf] %v37
            %v39 = vld [vmem:[%s25 + $0x18] sm:$0xf]
            %40 = vst [vmem:[%s26 + $0x18] sm:$0xf] %v39
            %v41 = vld [vmem:[%s25 + $0x1c] sm:$0xf]
            %42 = vst [vmem:[%s26 + $0x1c] sm:$0xf] %v41
            %v43 = vld [vmem:[%s25 + $0x20] sm:$0xf]
            %44 = vst [vmem:[%s26 + $0x20] sm:$0xf] %v43
            %v45 = vld [vmem:[%s25 + $0x24] sm:$0xf]
            %46 = vst [vmem:[%s26 + $0x24] sm:$0xf] %v45
            %v47 = vld [vmem:[%s25 + $0x28] sm:$0xf]
            %48 = vst [vmem:[%s26 + $0x28] sm:$0xf] %v47
            %v49 = vld [vmem:[%s25 + $0x2c] sm:$0xf]
            %50 = vst [vmem:[%s26 + $0x2c] sm:$0xf] %v49
            %v51 = vld [vmem:[%s25 + $0x30] sm:$0xf]
            %52 = vst [vmem:[%s26 + $0x30] sm:$0xf] %v51
            %v53 = vld [vmem:[%s25 + $0x34] sm:$0xf]
            %54 = vst [vmem:[%s26 + $0x34] sm:$0xf] %v53
            %v55 = vld [vmem:[%s25 + $0x38] sm:$0xf]
            %56 = vst [vmem:[%s26 + $0x38] sm:$0xf] %v55
            %v57 = vld [vmem:[%s25 + $0x3c] sm:$0xf]
            %58 = vst [vmem:[%s26 + $0x3c] sm:$0xf] %v57
            %v59 = vld [vmem:[%s25 + $0x48] sm:$0xf]
            %60 = vst [vmem:[%s26 + $0x40] sm:$0xf] %v59
            %v61 = vld [vmem:[%s25 + $0x4c] sm:$0xf]
            %62 = vst [vmem:[%s26 + $0x44] sm:$0xf] %v61
            %v63 = vld [vmem:[%s25 + $0x50] sm:$0xf]
            %64 = vst [vmem:[%s26 + $0x48] sm:$0xf] %v63
            %v65 = vld [vmem:[%s25 + $0x54] sm:$0xf]
            %66 = vst [vmem:[%s26 + $0x4c] sm:$0xf] %v65
            %v67 = vld [vmem:[%s25 + $0x58] sm:$0xf]
            %68 = vst [vmem:[%s26 + $0x50] sm:$0xf] %v67
            %v69 = vld [vmem:[%s25 + $0x5c] sm:$0xf]
            %70 = vst [vmem:[%s26 + $0x54] sm:$0xf] %v69
            %v71 = vld [vmem:[%s25 + $0x60] sm:$0xf]
            %72 = vst [vmem:[%s26 + $0x58] sm:$0xf] %v71
            %v73 = vld [vmem:[%s25 + $0x64] sm:$0xf]
            %74 = vst [vmem:[%s26 + $0x5c] sm:$0xf] %v73
            %v75 = vld [vmem:[%s25 + $0x68] sm:$0xf]
            %76 = vst [vmem:[%s26 + $0x60] sm:$0xf] %v75
            %v77 = vld [vmem:[%s25 + $0x6c] sm:$0xf]
            %78 = vst [vmem:[%s26 + $0x64] sm:$0xf] %v77
            %v79 = vld [vmem:[%s25 + $0x70] sm:$0xf]
            %80 = vst [vmem:[%s26 + $0x68] sm:$0xf] %v79
            %v81 = vld [vmem:[%s25 + $0x74] sm:$0xf]
            %82 = vst [vmem:[%s26 + $0x6c] sm:$0xf] %v81
            %v83 = vld [vmem:[%s25 + $0x78] sm:$0xf]
            %84 = vst [vmem:[%s26 + $0x70] sm:$0xf] %v83
            %v85 = vld [vmem:[%s25 + $0x7c] sm:$0xf]
            %86 = vst [vmem:[%s26 + $0x74] sm:$0xf] %v85
            %v87 = vld [vmem:[%s25 + $0x80] sm:$0xf]
            %88 = vst [vmem:[%s26 + $0x78] sm:$0xf] %v87
            %v89 = vld [vmem:[%s25 + $0x84] sm:$0xf]
            %90 = vst [vmem:[%s26 + $0x7c] sm:$0xf] %v89
          $region22: #{_lambda_.5} parent=16 // loop_footer
            %s24 = sadd.s32 1, %s20
          $region23: #{_lambda_.5} parent=16 // loop_footer_branch
            %19 = sbr.rel target = $region19
          $region24: #{_lambda_.5} parent=16 // loop_exit
            _
        $region17: #{_lambda_.5} parent=8 // pred_fallthru
          _
      $region9: #{_lambda_.5} parent=4 // pred_fallthru
        _
      %174 = vnop
    $region5: #{_lambda_.5} parent=1 // pred_fallthru
      _
    // Predicated region
    $region43: #{_lambda_.5} parent=1 // pred_check
      _
    $region44: #{_lambda_.5} parent=1 // pred_check_branch
      %176 = sbr.rel (0) target = $region46
    $region45: #{_lambda_.5} parent=1 // pred_region
      %s177 = sadd.s32 0, 1
      %s178 = smul.u32 %s177, 8
      %s179 = smul.u32 2, %s178
      %s180 = smul.addr %s179, 4
      %s181 = scalar_lea.vmem %s1, %s180
      // Predicated region
      $region47: #{_lambda_.5} parent=45 // pred_check
        _
      $region48: #{_lambda_.5} parent=45 // pred_check_branch
        %183 = sbr.rel (0) target = $region50
      $region49: #{_lambda_.5} parent=45 // pred_region
        // Predicated region
        $region51: #{_lambda_.5} parent=49 // pred_check
          _
        $region52: #{_lambda_.5} parent=49 // pred_check_branch
          %185 = sbr.rel target = $region54
        $region53: #{_lambda_.5} parent=49 // pred_region
          // Predicated region
          $region66: #{_lambda_.5} parent=53 // pred_check
            _
          $region67: #{_lambda_.5} parent=53 // pred_check_branch
            %206 = sbr.rel (0) target = $region69
          $region68: #{_lambda_.5} parent=53 // pred_region
            loop: start=0, step=1, limit=1
            $region70: #{_lambda_.5} parent=68 // loop_pre_header
              _
            $region71: #{_lambda_.5} parent=68 // loop_header
              %s208 = sphi 0, %s212
              %p209 = scmp.ge.s32.totalorder %s208, 1
              %s213 = sphi %s181, %s181
              %s214 = sphi [#allocation4], [#allocation4]
            $region72: #{_lambda_.5} parent=68 // loop_header_branch
              %211 = sbr.rel (%p209) target = $region76
            $region73: #{_lambda_.5} parent=68 // loop_body
              _
            $region74: #{_lambda_.5} parent=68 // loop_footer
              %s212 = sadd.s32 1, %s208
            $region75: #{_lambda_.5} parent=68 // loop_footer_branch
              %207 = sbr.rel target = $region71
            $region76: #{_lambda_.5} parent=68 // loop_exit
              _
            loop: start=0, step=1, limit=1
            $region77: #{_lambda_.5} parent=68 // loop_pre_header
              _
            $region78: #{_lambda_.5} parent=68 // loop_header
              %s217 = sphi 0, %s221
              %p218 = scmp.ge.s32.totalorder %s217, 1
              %s222 = sphi %s181, %s181
              %s223 = sphi [#allocation4], [#allocation4]
            $region79: #{_lambda_.5} parent=68 // loop_header_branch
              %220 = sbr.rel (%p218) target = $region83
            $region80: #{_lambda_.5} parent=68 // loop_body
              %v224 = vld [vmem:[%s222] sm:$0xf]
              %225 = vst [vmem:[%s223] sm:$0xf] %v224
              %v226 = vld [vmem:[%s222 + $0x4] sm:$0xf]
              %227 = vst [vmem:[%s223 + $0x4] sm:$0xf] %v226
              %v228 = vld [vmem:[%s222 + $0x48] sm:$0xf]
              %229 = vst [vmem:[%s223 + $0x8] sm:$0xf] %v228
              %v230 = vld [vmem:[%s222 + $0x4c] sm:$0xf]
              %231 = vst [vmem:[%s223 + $0xc] sm:$0xf] %v230
            $region81: #{_lambda_.5} parent=68 // loop_footer
              %s221 = sadd.s32 1, %s217
            $region82: #{_lambda_.5} parent=68 // loop_footer_branch
              %216 = sbr.rel target = $region78
            $region83: #{_lambda_.5} parent=68 // loop_exit
              _
          $region69: #{_lambda_.5} parent=53 // pred_fallthru
            _
        $region54: #{_lambda_.5} parent=49 // pred_fallthru
          _
        // Predicated region
        $region55: #{_lambda_.5} parent=49 // pred_check
          _
        $region56: #{_lambda_.5} parent=49 // pred_check_branch
          %187 = sbr.rel (0) target = $region58
        $region57: #{_lambda_.5} parent=49 // pred_region
          loop: start=0, step=1, limit=1
          $region59: #{_lambda_.5} parent=57 // loop_pre_header
            _
          $region60: #{_lambda_.5} parent=57 // loop_header
            %s190 = sphi 0, %s194
            %p191 = scmp.ge.s32.totalorder %s190, 1
            %s195 = sphi %s181, %s181
            %s196 = sphi [#allocation4], [#allocation4]
          $region61: #{_lambda_.5} parent=57 // loop_header_branch
            %193 = sbr.rel (%p191) target = $region65
          $region62: #{_lambda_.5} parent=57 // loop_body
            %v197 = vld [vmem:[%s195] sm:$0xf]
            %198 = vst [vmem:[%s196] sm:$0xf] %v197
            %v199 = vld [vmem:[%s195 + $0x4] sm:$0xf]
            %200 = vst [vmem:[%s196 + $0x4] sm:$0xf] %v199
            %v201 = vld [vmem:[%s195 + $0x48] sm:$0xf]
            %202 = vst [vmem:[%s196 + $0x8] sm:$0xf] %v201
            %v203 = vld [vmem:[%s195 + $0x4c] sm:$0xf]
            %204 = vst [vmem:[%s196 + $0xc] sm:$0xf] %v203
          $region63: #{_lambda_.5} parent=57 // loop_footer
            %s194 = sadd.s32 1, %s190
          $region64: #{_lambda_.5} parent=57 // loop_footer_branch
            %189 = sbr.rel target = $region60
          $region65: #{_lambda_.5} parent=57 // loop_exit
            _
        $region58: #{_lambda_.5} parent=49 // pred_fallthru
          _
      $region50: #{_lambda_.5} parent=45 // pred_fallthru
        _
      %232 = vnop
    $region46: #{_lambda_.5} parent=1 // pred_fallthru
      _
    // Predicated region
    $region84: #{_lambda_.5} parent=1 // pred_check
      _
    $region85: #{_lambda_.5} parent=1 // pred_check_branch
      %234 = sbr.rel (0) target = $region87
    $region86: #{_lambda_.5} parent=1 // pred_region
      _
    $region87: #{_lambda_.5} parent=1 // pred_fallthru
      _
    // Predicated region
    $region88: #{_lambda_.5} parent=1 // pred_check
      _
    $region89: #{_lambda_.5} parent=1 // pred_check_branch
      %236 = sbr.rel (0) target = $region91
    $region90: #{_lambda_.5} parent=1 // pred_region
      _
    $region91: #{_lambda_.5} parent=1 // pred_fallthru
      _
    // Predicated region
    $region92: #{_lambda_.5} parent=1 // pred_check
      _
    $region93: #{_lambda_.5} parent=1 // pred_check_branch
      %238 = sbr.rel (0) target = $region95
    $region94: #{_lambda_.5} parent=1 // pred_region
      _
    $region95: #{_lambda_.5} parent=1 // pred_fallthru
      _
    // Predicated region
    $region96: #{_lambda_.5} parent=1 // pred_check
      _
    $region97: #{_lambda_.5} parent=1 // pred_check_branch
      %240 = sbr.rel (0) target = $region99
    $region98: #{_lambda_.5} parent=1 // pred_region
      _
    $region99: #{_lambda_.5} parent=1 // pred_fallthru
      _
    // Predicated region
    $region100: #{_lambda_.5} parent=1 // pred_check
      _
    $region101: #{_lambda_.5} parent=1 // pred_check_branch
      %242 = sbr.rel (0) target = $region103
    $region102: #{_lambda_.5} parent=1 // pred_region
      _
    $region103: #{_lambda_.5} parent=1 // pred_fallthru
      _
    %s243 = sadd.s32 0, 1
    %s244 = smul.u32 %s243, 8
    %s245 = smul.u32 2, %s244
    %v247 = vld [vmem:[#allocation3] sm:$0xf]
    %v248 = vld [vmem:[#allocation3 + $0x4] sm:$0xf]
    %v249 = vld [vmem:[#allocation3 + $0x8] sm:$0xf]
    %v250 = vld [vmem:[#allocation3 + $0xc] sm:$0xf]
    %v251 = vld [vmem:[#allocation3 + $0x10] sm:$0xf]
    %v252 = vld [vmem:[#allocation3 + $0x14] sm:$0xf]
    %v253 = vld [vmem:[#allocation3 + $0x18] sm:$0xf]
    %v254 = vld [vmem:[#allocation3 + $0x1c] sm:$0xf]
    %v255 = vld [vmem:[#allocation3 + $0x20] sm:$0xf]
    %v256 = vld [vmem:[#allocation3 + $0x24] sm:$0xf]
    %v257 = vld [vmem:[#allocation3 + $0x28] sm:$0xf]
    %v258 = vld [vmem:[#allocation3 + $0x2c] sm:$0xf]
    %v259 = vld [vmem:[#allocation3 + $0x30] sm:$0xf]
    %v260 = vld [vmem:[#allocation3 + $0x34] sm:$0xf]
    %v261 = vld [vmem:[#allocation3 + $0x38] sm:$0xf]
    %v262 = vld [vmem:[#allocation3 + $0x3c] sm:$0xf]
    %v263 = vld [vmem:[#allocation3 + $0x40] sm:$0xf]
    %v264 = vld [vmem:[#allocation3 + $0x44] sm:$0xf]
    %v265 = vld [vmem:[#allocation3 + $0x48] sm:$0xf]
    %v266 = vld [vmem:[#allocation3 + $0x4c] sm:$0xf]
    %v267 = vld [vmem:[#allocation3 + $0x50] sm:$0xf]
    %v268 = vld [vmem:[#allocation3 + $0x54] sm:$0xf]
    %v269 = vld [vmem:[#allocation3 + $0x58] sm:$0xf]
    %v270 = vld [vmem:[#allocation3 + $0x5c] sm:$0xf]
    %v271 = vld [vmem:[#allocation3 + $0x60] sm:$0xf]
    %v272 = vld [vmem:[#allocation3 + $0x64] sm:$0xf]
    %v273 = vld [vmem:[#allocation3 + $0x68] sm:$0xf]
    %v274 = vld [vmem:[#allocation3 + $0x6c] sm:$0xf]
    %v275 = vld [vmem:[#allocation3 + $0x70] sm:$0xf]
    %v276 = vld [vmem:[#allocation3 + $0x74] sm:$0xf]
    %v277 = vld [vmem:[#allocation3 + $0x78] sm:$0xf]
    %v278 = vld [vmem:[#allocation3 + $0x7c] sm:$0xf]
    %v279 = vld [vmem:[#allocation4] sm:$0xf]
    %v280 = vld [vmem:[#allocation4 + $0x4] sm:$0xf]
    %v281 = vld [vmem:[#allocation4 + $0x8] sm:$0xf]
    %v282 = vld [vmem:[#allocation4 + $0xc] sm:$0xf]
    %v315 = vunpack.c.l.b16 %v247
    %v316 = vunpack.c.l.b16 %v248
    %v317 = vunpack.c.l.b16 %v249
    %v318 = vunpack.c.l.b16 %v250
    %v319 = vunpack.c.l.b16 %v251
    %v320 = vunpack.c.l.b16 %v252
    %v321 = vunpack.c.l.b16 %v253
    %v322 = vunpack.c.l.b16 %v254
    %v323 = vunpack.c.l.b16 %v255
    %v324 = vunpack.c.l.b16 %v256
    %v325 = vunpack.c.l.b16 %v257
    %v326 = vunpack.c.l.b16 %v258
    %v327 = vunpack.c.l.b16 %v259
    %v328 = vunpack.c.l.b16 %v260
    %v329 = vunpack.c.l.b16 %v261
    %v330 = vunpack.c.l.b16 %v262
    %v331 = vunpack.c.l.b16 %v263
    %v332 = vunpack.c.l.b16 %v264
    %v333 = vunpack.c.l.b16 %v265
    %v334 = vunpack.c.l.b16 %v266
    %v335 = vunpack.c.l.b16 %v267
    %v336 = vunpack.c.l.b16 %v268
    %v337 = vunpack.c.l.b16 %v269
    %v338 = vunpack.c.l.b16 %v270
    %v339 = vunpack.c.l.b16 %v271
    %v340 = vunpack.c.l.b16 %v272
    %v341 = vunpack.c.l.b16 %v273
    %v342 = vunpack.c.l.b16 %v274
    %v343 = vunpack.c.l.b16 %v275
    %v344 = vunpack.c.l.b16 %v276
    %v345 = vunpack.c.l.b16 %v277
    %v346 = vunpack.c.l.b16 %v278
    %v347 = vpack.c.b16 %v316, %v315
    %v348 = vpack.c.b16 %v318, %v317
    %v349 = vpack.c.b16 %v320, %v319
    %v350 = vpack.c.b16 %v322, %v321
    %v351 = vpack.c.b16 %v324, %v323
    %v352 = vpack.c.b16 %v326, %v325
    %v353 = vpack.c.b16 %v328, %v327
    %v354 = vpack.c.b16 %v330, %v329
    %v355 = vpack.c.b16 %v332, %v331
    %v356 = vpack.c.b16 %v334, %v333
    %v357 = vpack.c.b16 %v336, %v335
    %v358 = vpack.c.b16 %v338, %v337
    %v359 = vpack.c.b16 %v340, %v339
    %v360 = vpack.c.b16 %v342, %v341
    %v361 = vpack.c.b16 %v344, %v343
    %v362 = vpack.c.b16 %v346, %v345
    %v367 = vunpack.c.l.b16 %v279
    %v368 = vunpack.c.l.b16 %v280
    %v369 = vunpack.c.l.b16 %v281
    %v370 = vunpack.c.l.b16 %v282
    %v371 = vpack.c.b16 %v368, %v367
    %v372 = vpack.c.b16 %v370, %v369
    %v373 = vld [vmem:[%s2] sm:$0x3]
    %s374 = scalar_lea.vmem %s2, 2
    %v375 = vld [vmem:[%s374] sm:$0x3]
    %vm376 = vsmask.f32 7424
    %v378 = vshrl.u32 %v347, 16
    %v380 = vshll.u32 %v347, 16
    %v382 = vrot.slane %v380, 1
    %v383 = vor.u32 %v378, %v382
    %v385 = vshll.u32 %v348, 16
    %v387 = vrot.slane %v385, 1
    %v388 = vsel %vm376, %v383, %v387
    %v389 = vshrl.u32 %v348, 16
    %v391 = vor.u32 %v389, %v387
    %v393 = vshll.u32 %v349, 16
    %v395 = vrot.slane %v393, 1
    %v396 = vsel %vm376, %v391, %v395
    %v397 = vshrl.u32 %v349, 16
    %v399 = vor.u32 %v397, %v395
    %v401 = vshll.u32 %v350, 16
    %v403 = vrot.slane %v401, 1
    %v404 = vsel %vm376, %v399, %v403
    %v405 = vshrl.u32 %v350, 16
    %v407 = vor.u32 %v405, %v403
    %v409 = vshll.u32 %v351, 16
    %v411 = vrot.slane %v409, 1
    %v412 = vsel %vm376, %v407, %v411
    %v413 = vshrl.u32 %v351, 16
    %v415 = vor.u32 %v413, %v411
    %v417 = vshll.u32 %v352, 16
    %v419 = vrot.slane %v417, 1
    %v420 = vsel %vm376, %v415, %v419
    %v421 = vshrl.u32 %v352, 16
    %v423 = vor.u32 %v421, %v419
    %v425 = vshll.u32 %v353, 16
    %v427 = vrot.slane %v425, 1
    %v428 = vsel %vm376, %v423, %v427
    %v429 = vshrl.u32 %v353, 16
    %v431 = vor.u32 %v429, %v427
    %v433 = vshll.u32 %v354, 16
    %v435 = vrot.slane %v433, 1
    %v436 = vsel %vm376, %v431, %v435
    %v437 = vshrl.u32 %v354, 16
    %v439 = vor.u32 %v437, %v435
    %v441 = vshll.u32 %v371, 16
    %v443 = vrot.slane %v441, 1
    %v444 = vsel %vm376, %v439, %v443
    %v446 = vshrl.u32 %v355, 16
    %v448 = vshll.u32 %v355, 16
    %v450 = vrot.slane %v448, 1
    %v451 = vor.u32 %v446, %v450
    %v453 = vshll.u32 %v356, 16
    %v455 = vrot.slane %v453, 1
    %v456 = vsel %vm376, %v451, %v455
    %v457 = vshrl.u32 %v356, 16
    %v459 = vor.u32 %v457, %v455
    %v461 = vshll.u32 %v357, 16
    %v463 = vrot.slane %v461, 1
    %v464 = vsel %vm376, %v459, %v463
    %v465 = vshrl.u32 %v357, 16
    %v467 = vor.u32 %v465, %v463
    %v469 = vshll.u32 %v358, 16
    %v471 = vrot.slane %v469, 1
    %v472 = vsel %vm376, %v467, %v471
    %v473 = vshrl.u32 %v358, 16
    %v475 = vor.u32 %v473, %v471
    %v477 = vshll.u32 %v359, 16
    %v479 = vrot.slane %v477, 1
    %v480 = vsel %vm376, %v475, %v479
    %v481 = vshrl.u32 %v359, 16
    %v483 = vor.u32 %v481, %v479
    %v485 = vshll.u32 %v360, 16
    %v487 = vrot.slane %v485, 1
    %v488 = vsel %vm376, %v483, %v487
    %v489 = vshrl.u32 %v360, 16
    %v491 = vor.u32 %v489, %v487
    %v493 = vshll.u32 %v361, 16
    %v495 = vrot.slane %v493, 1
    %v496 = vsel %vm376, %v491, %v495
    %v497 = vshrl.u32 %v361, 16
    %v499 = vor.u32 %v497, %v495
    %v501 = vshll.u32 %v362, 16
    %v503 = vrot.slane %v501, 1
    %v504 = vsel %vm376, %v499, %v503
    %v505 = vshrl.u32 %v362, 16
    %v507 = vor.u32 %v505, %v503
    %v509 = vshll.u32 %v372, 16
    %v511 = vrot.slane %v509, 1
    %v512 = vsel %vm376, %v507, %v511
    %vm513 = vcmask 31744
    %v515 = vsel %vm513, %v388, 0
    %v518 = vsel %vm513, %v396, 0
    %v521 = vsel %vm513, %v404, 0
    %v524 = vsel %vm513, %v412, 0
    %v527 = vsel %vm513, %v420, 0
    %v530 = vsel %vm513, %v428, 0
    %v533 = vsel %vm513, %v436, 0
    %v536 = vsel %vm513, %v444, 0
    %v539 = vsel %vm513, %v456, 0
    %v542 = vsel %vm513, %v464, 0
    %v545 = vsel %vm513, %v472, 0
    %v548 = vsel %vm513, %v480, 0
    %v551 = vsel %vm513, %v488, 0
    %v554 = vsel %vm513, %v496, 0
    %v557 = vsel %vm513, %v504, 0
    %v560 = vsel %vm513, %v512, 0
    %vm562 = vcmask 1041408
    %v564 = vsel %vm562, %v375, 0
    %566 = vmatprep.subr.bf16.mxu0 0
    %567 = vmatpush1.bf16.msra.mxu0 %v564
    %568 = vmatprep.subr.bf16.mxu0 0
    %569 = vmatpush1.bf16.msra.mxu0 0
    %570 = vmatprep.subr.bf16.mxu0 0
    %571 = vmatpush1.bf16.msra.mxu0 0
    %572 = vmatprep.subr.bf16.mxu0 0
    %573 = vmatpush1.bf16.msra.mxu0 0
    %574 = vmatprep.subr.bf16.mxu0 0
    %575 = vmatpush1.bf16.msra.mxu0 0
    %576 = vmatprep.subr.bf16.mxu0 0
    %577 = vmatpush1.bf16.msra.mxu0 0
    %578 = vmatprep.subr.bf16.mxu0 0
    %579 = vmatpush1.bf16.msra.mxu0 0
    %580 = vmatprep.subr.bf16.mxu0 0
    %581 = vmatpush1.bf16.msra.mxu0 0
    %582 = vmatprep.subr.bf16.mxu0 0
    %583 = vmatpush1.bf16.msra.mxu0 0
    %584 = vmatprep.subr.bf16.mxu0 0
    %585 = vmatpush1.bf16.msra.mxu0 0
    %586 = vmatprep.subr.bf16.mxu0 0
    %587 = vmatpush1.bf16.msra.mxu0 0
    %588 = vmatprep.subr.bf16.mxu0 0
    %589 = vmatpush1.bf16.msra.mxu0 0
    %590 = vmatprep.subr.bf16.mxu0 0
    %591 = vmatpush1.bf16.msra.mxu0 0
    %592 = vmatprep.subr.bf16.mxu0 0
    %593 = vmatpush1.bf16.msra.mxu0 0
    %594 = vmatprep.subr.bf16.mxu0 0
    %595 = vmatpush1.bf16.msra.mxu0 0
    %596 = vmatprep.subr.bf16.mxu0 0
    %597 = vmatpush1.bf16.msra.mxu0 0
    %598 = vmatprep.mubr.bf16.mxu0 0
    %599 = vmatmul.mubr.bf16.gmra.mrb[0].mxu0 %v515
    %v600 = vpop.f32.mrb[0].mxu0
    %v601 = vadd.f32 0.0, %v600
    %v602 = vpop.f32.mrb[0].mxu0
    %v603 = vpop.f32.mrb[0].mxu0
    %v604 = vadd.f32 0.0, %v603
    %v605 = vpop.f32.mrb[0].mxu0
    %606 = vmatprep.mubr.bf16.mxu0 0
    %607 = vmatmul.mubr.bf16.gmra.mrb[0].mxu0 %v518
    %v608 = vpop.f32.mrb[0].mxu0
    %v609 = vadd.f32 0.0, %v608
    %v610 = vpop.f32.mrb[0].mxu0
    %v611 = vpop.f32.mrb[0].mxu0
    %v612 = vadd.f32 0.0, %v611
    %v613 = vpop.f32.mrb[0].mxu0
    %614 = vmatprep.mubr.bf16.mxu0 0
    %615 = vmatmul.mubr.bf16.gmra.mrb[0].mxu0 %v521
    %v616 = vpop.f32.mrb[0].mxu0
    %v617 = vadd.f32 0.0, %v616
    %v618 = vpop.f32.mrb[0].mxu0
    %v619 = vpop.f32.mrb[0].mxu0
    %v620 = vadd.f32 0.0, %v619
    %v621 = vpop.f32.mrb[0].mxu0
    %622 = vmatprep.mubr.bf16.mxu0 0
    %623 = vmatmul.mubr.bf16.gmra.mrb[0].mxu0 %v524
    %v624 = vpop.f32.mrb[0].mxu0
    %v625 = vadd.f32 0.0, %v624
    %v626 = vpop.f32.mrb[0].mxu0
    %v627 = vpop.f32.mrb[0].mxu0
    %v628 = vadd.f32 0.0, %v627
    %v629 = vpop.f32.mrb[0].mxu0
    %630 = vmatprep.mubr.bf16.mxu0 0
    %631 = vmatmul.mubr.bf16.gmra.mrb[0].mxu0 %v527
    %v632 = vpop.f32.mrb[0].mxu0
    %v633 = vadd.f32 0.0, %v632
    %v634 = vpop.f32.mrb[0].mxu0
    %v635 = vpop.f32.mrb[0].mxu0
    %v636 = vadd.f32 0.0, %v635
    %v637 = vpop.f32.mrb[0].mxu0
    %638 = vmatprep.mubr.bf16.mxu0 0
    %639 = vmatmul.mubr.bf16.gmra.mrb[0].mxu0 %v530
    %v640 = vpop.f32.mrb[0].mxu0
    %v641 = vadd.f32 0.0, %v640
    %v642 = vpop.f32.mrb[0].mxu0
    %v643 = vpop.f32.mrb[0].mxu0
    %v644 = vadd.f32 0.0, %v643
    %v645 = vpop.f32.mrb[0].mxu0
    %646 = vmatprep.mubr.bf16.mxu0 0
    %647 = vmatmul.mubr.bf16.gmra.mrb[0].mxu0 %v533
    %v648 = vpop.f32.mrb[0].mxu0
    %v649 = vadd.f32 0.0, %v648
    %v650 = vpop.f32.mrb[0].mxu0
    %v651 = vpop.f32.mrb[0].mxu0
    %v652 = vadd.f32 0.0, %v651
    %v653 = vpop.f32.mrb[0].mxu0
    %654 = vmatprep.mubr.bf16.mxu0 0
    %655 = vmatmul.mubr.bf16.gmra.mrb[0].mxu0 %v536
    %v656 = vpop.f32.mrb[0].mxu0
    %v657 = vadd.f32 0.0, %v656
    %v658 = vpop.f32.mrb[0].mxu0
    %v659 = vpop.f32.mrb[0].mxu0
    %v660 = vadd.f32 0.0, %v659
    %v661 = vpop.f32.mrb[0].mxu0
    %662 = vmatprep.mubr.bf16.mxu0 0
    %663 = vmatmul.mubr.bf16.gmra.mrb[0].mxu0 %v539
    %v664 = vpop.f32.mrb[0].mxu0
    %v665 = vadd.f32 0.0, %v664
    %v666 = vpop.f32.mrb[0].mxu0
    %v667 = vpop.f32.mrb[0].mxu0
    %v668 = vadd.f32 0.0, %v667
    %v669 = vpop.f32.mrb[0].mxu0
    %670 = vmatprep.mubr.bf16.mxu0 0
    %671 = vmatmul.mubr.bf16.gmra.mrb[0].mxu0 %v542
    %v672 = vpop.f32.mrb[0].mxu0
    %v673 = vadd.f32 0.0, %v672
    %v674 = vpop.f32.mrb[0].mxu0
    %v675 = vpop.f32.mrb[0].mxu0
    %v676 = vadd.f32 0.0, %v675
    %v677 = vpop.f32.mrb[0].mxu0
    %678 = vmatprep.mubr.bf16.mxu0 0
    %679 = vmatmul.mubr.bf16.gmra.mrb[0].mxu0 %v545
    %v680 = vpop.f32.mrb[0].mxu0
    %v681 = vadd.f32 0.0, %v680
    %v682 = vpop.f32.mrb[0].mxu0
    %v683 = vpop.f32.mrb[0].mxu0
    %v684 = vadd.f32 0.0, %v683
    %v685 = vpop.f32.mrb[0].mxu0
    %686 = vmatprep.mubr.bf16.mxu0 0
    %687 = vmatmul.mubr.bf16.gmra.mrb[0].mxu0 %v548
    %v688 = vpop.f32.mrb[0].mxu0
    %v689 = vadd.f32 0.0, %v688
    %v690 = vpop.f32.mrb[0].mxu0
    %v691 = vpop.f32.mrb[0].mxu0
    %v692 = vadd.f32 0.0, %v691
    %v693 = vpop.f32.mrb[0].mxu0
    %694 = vmatprep.mubr.bf16.mxu0 0
    %695 = vmatmul.mubr.bf16.gmra.mrb[0].mxu0 %v551
    %v696 = vpop.f32.mrb[0].mxu0
    %v697 = vadd.f32 0.0, %v696
    %v698 = vpop.f32.mrb[0].mxu0
    %v699 = vpop.f32.mrb[0].mxu0
    %v700 = vadd.f32 0.0, %v699
    %v701 = vpop.f32.mrb[0].mxu0
    %702 = vmatprep.mubr.bf16.mxu0 0
    %703 = vmatmul.mubr.bf16.gmra.mrb[0].mxu0 %v554
    %v704 = vpop.f32.mrb[0].mxu0
    %v705 = vadd.f32 0.0, %v704
    %v706 = vpop.f32.mrb[0].mxu0
    %v707 = vpop.f32.mrb[0].mxu0
    %v708 = vadd.f32 0.0, %v707
    %v709 = vpop.f32.mrb[0].mxu0
    %710 = vmatprep.mubr.bf16.mxu0 0
    %711 = vmatmul.mubr.bf16.gmra.mrb[0].mxu0 %v557
    %v712 = vpop.f32.mrb[0].mxu0
    %v713 = vadd.f32 0.0, %v712
    %v714 = vpop.f32.mrb[0].mxu0
    %v715 = vpop.f32.mrb[0].mxu0
    %v716 = vadd.f32 0.0, %v715
    %v717 = vpop.f32.mrb[0].mxu0
    %718 = vmatprep.mubr.bf16.mxu0 0
    %719 = vmatmul.mubr.bf16.gmra.mrb[0].mxu0 %v560
    %v720 = vpop.f32.mrb[0].mxu0
    %v721 = vadd.f32 0.0, %v720
    %v722 = vpop.f32.mrb[0].mxu0
    %v723 = vpop.f32.mrb[0].mxu0
    %v724 = vadd.f32 0.0, %v723
    %v725 = vpop.f32.mrb[0].mxu0
    %726 = vdwg.mxu0
    %v727 = vsel %vm513, %v347, 0
    %v729 = vsel %vm513, %v348, 0
    %v731 = vsel %vm513, %v349, 0
    %v733 = vsel %vm513, %v350, 0
    %v735 = vsel %vm513, %v351, 0
    %v737 = vsel %vm513, %v352, 0
    %v739 = vsel %vm513, %v353, 0
    %v741 = vsel %vm513, %v354, 0
    %v743 = vsel %vm513, %v355, 0
    %v745 = vsel %vm513, %v356, 0
    %v747 = vsel %vm513, %v357, 0
    %v749 = vsel %vm513, %v358, 0
    %v751 = vsel %vm513, %v359, 0
    %v753 = vsel %vm513, %v360, 0
    %v755 = vsel %vm513, %v361, 0
    %v757 = vsel %vm513, %v362, 0
    %v760 = vsel %vm562, %v373, 0
    %762 = vmatprep.subr.bf16.mxu0 0
    %763 = vmatpush1.bf16.msra.mxu0 %v760
    %764 = vmatprep.subr.bf16.mxu0 0
    %765 = vmatpush1.bf16.msra.mxu0 0
    %766 = vmatprep.subr.bf16.mxu0 0
    %767 = vmatpush1.bf16.msra.mxu0 0
    %768 = vmatprep.subr.bf16.mxu0 0
    %769 = vmatpush1.bf16.msra.mxu0 0
    %770 = vmatprep.subr.bf16.mxu0 0
    %771 = vmatpush1.bf16.msra.mxu0 0
    %772 = vmatprep.subr.bf16.mxu0 0
    %773 = vmatpush1.bf16.msra.mxu0 0
    %774 = vmatprep.subr.bf16.mxu0 0
    %775 = vmatpush1.bf16.msra.mxu0 0
    %776 = vmatprep.subr.bf16.mxu0 0
    %777 = vmatpush1.bf16.msra.mxu0 0
    %778 = vmatprep.subr.bf16.mxu0 0
    %779 = vmatpush1.bf16.msra.mxu0 0
    %780 = vmatprep.subr.bf16.mxu0 0
    %781 = vmatpush1.bf16.msra.mxu0 0
    %782 = vmatprep.subr.bf16.mxu0 0
    %783 = vmatpush1.bf16.msra.mxu0 0
    %784 = vmatprep.subr.bf16.mxu0 0
    %785 = vmatpush1.bf16.msra.mxu0 0
    %786 = vmatprep.subr.bf16.mxu0 0
    %787 = vmatpush1.bf16.msra.mxu0 0
    %788 = vmatprep.subr.bf16.mxu0 0
    %789 = vmatpush1.bf16.msra.mxu0 0
    %790 = vmatprep.subr.bf16.mxu0 0
    %791 = vmatpush1.bf16.msra.mxu0 0
    %792 = vmatprep.subr.bf16.mxu0 0
    %793 = vmatpush1.bf16.msra.mxu0 0
    %794 = vmatprep.mubr.bf16.mxu0 0
    %795 = vmatmul.mubr.bf16.gmra.mrb[0].mxu0 %v727
    %v796 = vpop.f32.mrb[0].mxu0
    %v797 = vadd.f32 %v601, %v796
    %v798 = vpop.f32.mrb[0].mxu0
    %v799 = vpop.f32.mrb[0].mxu0
    %v800 = vadd.f32 %v604, %v799
    %v801 = vpop.f32.mrb[0].mxu0
    %802 = vmatprep.mubr.bf16.mxu0 0
    %803 = vmatmul.mubr.bf16.gmra.mrb[0].mxu0 %v729
    %v804 = vpop.f32.mrb[0].mxu0
    %v805 = vadd.f32 %v609, %v804
    %v806 = vpop.f32.mrb[0].mxu0
    %v807 = vpop.f32.mrb[0].mxu0
    %v808 = vadd.f32 %v612, %v807
    %v809 = vpop.f32.mrb[0].mxu0
    %810 = vmatprep.mubr.bf16.mxu0 0
    %811 = vmatmul.mubr.bf16.gmra.mrb[0].mxu0 %v731
    %v812 = vpop.f32.mrb[0].mxu0
    %v813 = vadd.f32 %v617, %v812
    %v814 = vpop.f32.mrb[0].mxu0
    %v815 = vpop.f32.mrb[0].mxu0
    %v816 = vadd.f32 %v620, %v815
    %v817 = vpop.f32.mrb[0].mxu0
    %818 = vmatprep.mubr.bf16.mxu0 0
    %819 = vmatmul.mubr.bf16.gmra.mrb[0].mxu0 %v733
    %v820 = vpop.f32.mrb[0].mxu0
    %v821 = vadd.f32 %v625, %v820
    %v822 = vpop.f32.mrb[0].mxu0
    %v823 = vpop.f32.mrb[0].mxu0
    %v824 = vadd.f32 %v628, %v823
    %v825 = vpop.f32.mrb[0].mxu0
    %826 = vmatprep.mubr.bf16.mxu0 0
    %827 = vmatmul.mubr.bf16.gmra.mrb[0].mxu0 %v735
    %v828 = vpop.f32.mrb[0].mxu0
    %v829 = vadd.f32 %v633, %v828
    %v830 = vpop.f32.mrb[0].mxu0
    %v831 = vpop.f32.mrb[0].mxu0
    %v832 = vadd.f32 %v636, %v831
    %v833 = vpop.f32.mrb[0].mxu0
    %834 = vmatprep.mubr.bf16.mxu0 0
    %835 = vmatmul.mubr.bf16.gmra.mrb[0].mxu0 %v737
    %v836 = vpop.f32.mrb[0].mxu0
    %v837 = vadd.f32 %v641, %v836
    %v838 = vpop.f32.mrb[0].mxu0
    %v839 = vpop.f32.mrb[0].mxu0
    %v840 = vadd.f32 %v644, %v839
    %v841 = vpop.f32.mrb[0].mxu0
    %842 = vmatprep.mubr.bf16.mxu0 0
    %843 = vmatmul.mubr.bf16.gmra.mrb[0].mxu0 %v739
    %v844 = vpop.f32.mrb[0].mxu0
    %v845 = vadd.f32 %v649, %v844
    %v846 = vpop.f32.mrb[0].mxu0
    %v847 = vpop.f32.mrb[0].mxu0
    %v848 = vadd.f32 %v652, %v847
    %v849 = vpop.f32.mrb[0].mxu0
    %850 = vmatprep.mubr.bf16.mxu0 0
    %851 = vmatmul.mubr.bf16.gmra.mrb[0].mxu0 %v741
    %v852 = vpop.f32.mrb[0].mxu0
    %v853 = vadd.f32 %v657, %v852
    %v854 = vpop.f32.mrb[0].mxu0
    %v855 = vpop.f32.mrb[0].mxu0
    %v856 = vadd.f32 %v660, %v855
    %v857 = vpop.f32.mrb[0].mxu0
    %858 = vmatprep.mubr.bf16.mxu0 0
    %859 = vmatmul.mubr.bf16.gmra.mrb[0].mxu0 %v743
    %v860 = vpop.f32.mrb[0].mxu0
    %v861 = vadd.f32 %v665, %v860
    %v862 = vpop.f32.mrb[0].mxu0
    %v863 = vpop.f32.mrb[0].mxu0
    %v864 = vadd.f32 %v668, %v863
    %v865 = vpop.f32.mrb[0].mxu0
    %866 = vmatprep.mubr.bf16.mxu0 0
    %867 = vmatmul.mubr.bf16.gmra.mrb[0].mxu0 %v745
    %v868 = vpop.f32.mrb[0].mxu0
    %v869 = vadd.f32 %v673, %v868
    %v870 = vpop.f32.mrb[0].mxu0
    %v871 = vpop.f32.mrb[0].mxu0
    %v872 = vadd.f32 %v676, %v871
    %v873 = vpop.f32.mrb[0].mxu0
    %874 = vmatprep.mubr.bf16.mxu0 0
    %875 = vmatmul.mubr.bf16.gmra.mrb[0].mxu0 %v747
    %v876 = vpop.f32.mrb[0].mxu0
    %v877 = vadd.f32 %v681, %v876
    %v878 = vpop.f32.mrb[0].mxu0
    %v879 = vpop.f32.mrb[0].mxu0
    %v880 = vadd.f32 %v684, %v879
    %v881 = vpop.f32.mrb[0].mxu0
    %882 = vmatprep.mubr.bf16.mxu0 0
    %883 = vmatmul.mubr.bf16.gmra.mrb[0].mxu0 %v749
    %v884 = vpop.f32.mrb[0].mxu0
    %v885 = vadd.f32 %v689, %v884
    %v886 = vpop.f32.mrb[0].mxu0
    %v887 = vpop.f32.mrb[0].mxu0
    %v888 = vadd.f32 %v692, %v887
    %v889 = vpop.f32.mrb[0].mxu0
    %890 = vmatprep.mubr.bf16.mxu0 0
    %891 = vmatmul.mubr.bf16.gmra.mrb[0].mxu0 %v751
    %v892 = vpop.f32.mrb[0].mxu0
    %v893 = vadd.f32 %v697, %v892
    %v894 = vpop.f32.mrb[0].mxu0
    %v895 = vpop.f32.mrb[0].mxu0
    %v896 = vadd.f32 %v700, %v895
    %v897 = vpop.f32.mrb[0].mxu0
    %898 = vmatprep.mubr.bf16.mxu0 0
    %899 = vmatmul.mubr.bf16.gmra.mrb[0].mxu0 %v753
    %v900 = vpop.f32.mrb[0].mxu0
    %v901 = vadd.f32 %v705, %v900
    %v902 = vpop.f32.mrb[0].mxu0
    %v903 = vpop.f32.mrb[0].mxu0
    %v904 = vadd.f32 %v708, %v903
    %v905 = vpop.f32.mrb[0].mxu0
    %906 = vmatprep.mubr.bf16.mxu0 0
    %907 = vmatmul.mubr.bf16.gmra.mrb[0].mxu0 %v755
    %v908 = vpop.f32.mrb[0].mxu0
    %v909 = vadd.f32 %v713, %v908
    %v910 = vpop.f32.mrb[0].mxu0
    %v911 = vpop.f32.mrb[0].mxu0
    %v912 = vadd.f32 %v716, %v911
    %v913 = vpop.f32.mrb[0].mxu0
    %914 = vmatprep.mubr.bf16.mxu0 0
    %915 = vmatmul.mubr.bf16.gmra.mrb[0].mxu0 %v757
    %v916 = vpop.f32.mrb[0].mxu0
    %v917 = vadd.f32 %v721, %v916
    %v918 = vpop.f32.mrb[0].mxu0
    %v919 = vpop.f32.mrb[0].mxu0
    %v920 = vadd.f32 %v724, %v919
    %v921 = vpop.f32.mrb[0].mxu0
    %922 = vdwg.mxu0
    %s923 = scalar_lea.vmem %s2, 4
    %v924 = vld [vmem:[%s923] sm:$0x3]
    %vm925 = vcmask 1046528
    %v926 = vrot.slane %v347, 1
    %v927 = vrot.slane %v348, 1
    %v928 = vsel %vm925, %v926, %v927
    %v929 = vrot.slane %v349, 1
    %v930 = vsel %vm925, %v927, %v929
    %v931 = vrot.slane %v350, 1
    %v932 = vsel %vm925, %v929, %v931
    %v933 = vrot.slane %v351, 1
    %v934 = vsel %vm925, %v931, %v933
    %v935 = vrot.slane %v352, 1
    %v936 = vsel %vm925, %v933, %v935
    %v937 = vrot.slane %v353, 1
    %v938 = vsel %vm925, %v935, %v937
    %v939 = vrot.slane %v354, 1
    %v940 = vsel %vm925, %v937, %v939
    %v941 = vrot.slane %v371, 1
    %v942 = vsel %vm925, %v939, %v941
    %v943 = vrot.slane %v355, 1
    %v944 = vrot.slane %v356, 1
    %v945 = vsel %vm925, %v943, %v944
    %v946 = vrot.slane %v357, 1
    %v947 = vsel %vm925, %v944, %v946
    %v948 = vrot.slane %v358, 1
    %v949 = vsel %vm925, %v946, %v948
    %v950 = vrot.slane %v359, 1
    %v951 = vsel %vm925, %v948, %v950
    %v952 = vrot.slane %v360, 1
    %v953 = vsel %vm925, %v950, %v952
    %v954 = vrot.slane %v361, 1
    %v955 = vsel %vm925, %v952, %v954
    %v956 = vrot.slane %v362, 1
    %v957 = vsel %vm925, %v954, %v956
    %v958 = vrot.slane %v372, 1
    %v959 = vsel %vm925, %v956, %v958
    %v961 = vsel %vm513, %v928, 0
    %v964 = vsel %vm513, %v930, 0
    %v967 = vsel %vm513, %v932, 0
    %v970 = vsel %vm513, %v934, 0
    %v973 = vsel %vm513, %v936, 0
    %v976 = vsel %vm513, %v938, 0
    %v979 = vsel %vm513, %v940, 0
    %v982 = vsel %vm513, %v942, 0
    %v985 = vsel %vm513, %v945, 0
    %v988 = vsel %vm513, %v947, 0
    %v991 = vsel %vm513, %v949, 0
    %v994 = vsel %vm513, %v951, 0
    %v997 = vsel %vm513, %v953, 0
    %v1000 = vsel %vm513, %v955, 0
    %v1003 = vsel %vm513, %v957, 0
    %v1006 = vsel %vm513, %v959, 0
    %v1009 = vsel %vm562, %v924, 0
    %1011 = vmatprep.subr.bf16.mxu0 0
    %1012 = vmatpush1.bf16.msra.mxu0 %v1009
    %1013 = vmatprep.subr.bf16.mxu0 0
    %1014 = vmatpush1.bf16.msra.mxu0 0
    %1015 = vmatprep.subr.bf16.mxu0 0
    %1016 = vmatpush1.bf16.msra.mxu0 0
    %1017 = vmatprep.subr.bf16.mxu0 0
    %1018 = vmatpush1.bf16.msra.mxu0 0
    %1019 = vmatprep.subr.bf16.mxu0 0
    %1020 = vmatpush1.bf16.msra.mxu0 0
    %1021 = vmatprep.subr.bf16.mxu0 0
    %1022 = vmatpush1.bf16.msra.mxu0 0
    %1023 = vmatprep.subr.bf16.mxu0 0
    %1024 = vmatpush1.bf16.msra.mxu0 0
    %1025 = vmatprep.subr.bf16.mxu0 0
    %1026 = vmatpush1.bf16.msra.mxu0 0
    %1027 = vmatprep.subr.bf16.mxu0 0
    %1028 = vmatpush1.bf16.msra.mxu0 0
    %1029 = vmatprep.subr.bf16.mxu0 0
    %1030 = vmatpush1.bf16.msra.mxu0 0
    %1031 = vmatprep.subr.bf16.mxu0 0
    %1032 = vmatpush1.bf16.msra.mxu0 0
    %1033 = vmatprep.subr.bf16.mxu0 0
    %1034 = vmatpush1.bf16.msra.mxu0 0
    %1035 = vmatprep.subr.bf16.mxu0 0
    %1036 = vmatpush1.bf16.msra.mxu0 0
    %1037 = vmatprep.subr.bf16.mxu0 0
    %1038 = vmatpush1.bf16.msra.mxu0 0
    %1039 = vmatprep.subr.bf16.mxu0 0
    %1040 = vmatpush1.bf16.msra.mxu0 0
    %1041 = vmatprep.subr.bf16.mxu0 0
    %1042 = vmatpush1.bf16.msra.mxu0 0
    %1043 = vmatprep.mubr.bf16.mxu0 0
    %1044 = vmatmul.mubr.bf16.gmra.mrb[0].mxu0 %v961
    %v1045 = vpop.f32.mrb[0].mxu0
    %v1046 = vadd.f32 0.0, %v1045
    %v1047 = vpop.f32.mrb[0].mxu0
    %v1048 = vpop.f32.mrb[0].mxu0
    %v1049 = vadd.f32 0.0, %v1048
    %v1050 = vpop.f32.mrb[0].mxu0
    %1051 = vmatprep.mubr.bf16.mxu0 0
    %1052 = vmatmul.mubr.bf16.gmra.mrb[0].mxu0 %v964
    %v1053 = vpop.f32.mrb[0].mxu0
    %v1054 = vadd.f32 0.0, %v1053
    %v1055 = vpop.f32.mrb[0].mxu0
    %v1056 = vpop.f32.mrb[0].mxu0
    %v1057 = vadd.f32 0.0, %v1056
    %v1058 = vpop.f32.mrb[0].mxu0
    %1059 = vmatprep.mubr.bf16.mxu0 0
    %1060 = vmatmul.mubr.bf16.gmra.mrb[0].mxu0 %v967
    %v1061 = vpop.f32.mrb[0].mxu0
    %v1062 = vadd.f32 0.0, %v1061
    %v1063 = vpop.f32.mrb[0].mxu0
    %v1064 = vpop.f32.mrb[0].mxu0
    %v1065 = vadd.f32 0.0, %v1064
    %v1066 = vpop.f32.mrb[0].mxu0
    %1067 = vmatprep.mubr.bf16.mxu0 0
    %1068 = vmatmul.mubr.bf16.gmra.mrb[0].mxu0 %v970
    %v1069 = vpop.f32.mrb[0].mxu0
    %v1070 = vadd.f32 0.0, %v1069
    %v1071 = vpop.f32.mrb[0].mxu0
    %v1072 = vpop.f32.mrb[0].mxu0
    %v1073 = vadd.f32 0.0, %v1072
    %v1074 = vpop.f32.mrb[0].mxu0
    %1075 = vmatprep.mubr.bf16.mxu0 0
    %1076 = vmatmul.mubr.bf16.gmra.mrb[0].mxu0 %v973
    %v1077 = vpop.f32.mrb[0].mxu0
    %v1078 = vadd.f32 0.0, %v1077
    %v1079 = vpop.f32.mrb[0].mxu0
    %v1080 = vpop.f32.mrb[0].mxu0
    %v1081 = vadd.f32 0.0, %v1080
    %v1082 = vpop.f32.mrb[0].mxu0
    %1083 = vmatprep.mubr.bf16.mxu0 0
    %1084 = vmatmul.mubr.bf16.gmra.mrb[0].mxu0 %v976
    %v1085 = vpop.f32.mrb[0].mxu0
    %v1086 = vadd.f32 0.0, %v1085
    %v1087 = vpop.f32.mrb[0].mxu0
    %v1088 = vpop.f32.mrb[0].mxu0
    %v1089 = vadd.f32 0.0, %v1088
    %v1090 = vpop.f32.mrb[0].mxu0
    %1091 = vmatprep.mubr.bf16.mxu0 0
    %1092 = vmatmul.mubr.bf16.gmra.mrb[0].mxu0 %v979
    %v1093 = vpop.f32.mrb[0].mxu0
    %v1094 = vadd.f32 0.0, %v1093
    %v1095 = vpop.f32.mrb[0].mxu0
    %v1096 = vpop.f32.mrb[0].mxu0
    %v1097 = vadd.f32 0.0, %v1096
    %v1098 = vpop.f32.mrb[0].mxu0
    %1099 = vmatprep.mubr.bf16.mxu0 0
    %1100 = vmatmul.mubr.bf16.gmra.mrb[0].mxu0 %v982
    %v1101 = vpop.f32.mrb[0].mxu0
    %v1102 = vadd.f32 0.0, %v1101
    %v1103 = vpop.f32.mrb[0].mxu0
    %v1104 = vpop.f32.mrb[0].mxu0
    %v1105 = vadd.f32 0.0, %v1104
    %v1106 = vpop.f32.mrb[0].mxu0
    %1107 = vmatprep.mubr.bf16.mxu0 0
    %1108 = vmatmul.mubr.bf16.gmra.mrb[0].mxu0 %v985
    %v1109 = vpop.f32.mrb[0].mxu0
    %v1110 = vadd.f32 0.0, %v1109
    %v1111 = vpop.f32.mrb[0].mxu0
    %v1112 = vpop.f32.mrb[0].mxu0
    %v1113 = vadd.f32 0.0, %v1112
    %v1114 = vpop.f32.mrb[0].mxu0
    %1115 = vmatprep.mubr.bf16.mxu0 0
    %1116 = vmatmul.mubr.bf16.gmra.mrb[0].mxu0 %v988
    %v1117 = vpop.f32.mrb[0].mxu0
    %v1118 = vadd.f32 0.0, %v1117
    %v1119 = vpop.f32.mrb[0].mxu0
    %v1120 = vpop.f32.mrb[0].mxu0
    %v1121 = vadd.f32 0.0, %v1120
    %v1122 = vpop.f32.mrb[0].mxu0
    %1123 = vmatprep.mubr.bf16.mxu0 0
    %1124 = vmatmul.mubr.bf16.gmra.mrb[0].mxu0 %v991
    %v1125 = vpop.f32.mrb[0].mxu0
    %v1126 = vadd.f32 0.0, %v1125
    %v1127 = vpop.f32.mrb[0].mxu0
    %v1128 = vpop.f32.mrb[0].mxu0
    %v1129 = vadd.f32 0.0, %v1128
    %v1130 = vpop.f32.mrb[0].mxu0
    %1131 = vmatprep.mubr.bf16.mxu0 0
    %1132 = vmatmul.mubr.bf16.gmra.mrb[0].mxu0 %v994
    %v1133 = vpop.f32.mrb[0].mxu0
    %v1134 = vadd.f32 0.0, %v1133
    %v1135 = vpop.f32.mrb[0].mxu0
    %v1136 = vpop.f32.mrb[0].mxu0
    %v1137 = vadd.f32 0.0, %v1136
    %v1138 = vpop.f32.mrb[0].mxu0
    %1139 = vmatprep.mubr.bf16.mxu0 0
    %1140 = vmatmul.mubr.bf16.gmra.mrb[0].mxu0 %v997
    %v1141 = vpop.f32.mrb[0].mxu0
    %v1142 = vadd.f32 0.0, %v1141
    %v1143 = vpop.f32.mrb[0].mxu0
    %v1144 = vpop.f32.mrb[0].mxu0
    %v1145 = vadd.f32 0.0, %v1144
    %v1146 = vpop.f32.mrb[0].mxu0
    %1147 = vmatprep.mubr.bf16.mxu0 0
    %1148 = vmatmul.mubr.bf16.gmra.mrb[0].mxu0 %v1000
    %v1149 = vpop.f32.mrb[0].mxu0
    %v1150 = vadd.f32 0.0, %v1149
    %v1151 = vpop.f32.mrb[0].mxu0
    %v1152 = vpop.f32.mrb[0].mxu0
    %v1153 = vadd.f32 0.0, %v1152
    %v1154 = vpop.f32.mrb[0].mxu0
    %1155 = vmatprep.mubr.bf16.mxu0 0
    %1156 = vmatmul.mubr.bf16.gmra.mrb[0].mxu0 %v1003
    %v1157 = vpop.f32.mrb[0].mxu0
    %v1158 = vadd.f32 0.0, %v1157
    %v1159 = vpop.f32.mrb[0].mxu0
    %v1160 = vpop.f32.mrb[0].mxu0
    %v1161 = vadd.f32 0.0, %v1160
    %v1162 = vpop.f32.mrb[0].mxu0
    %1163 = vmatprep.mubr.bf16.mxu0 0
    %1164 = vmatmul.mubr.bf16.gmra.mrb[0].mxu0 %v1006
    %v1165 = vpop.f32.mrb[0].mxu0
    %v1166 = vadd.f32 0.0, %v1165
    %v1167 = vpop.f32.mrb[0].mxu0
    %v1168 = vpop.f32.mrb[0].mxu0
    %v1169 = vadd.f32 0.0, %v1168
    %v1170 = vpop.f32.mrb[0].mxu0
    %1171 = vdwg.mxu0
    %v1172 = vadd.f32 %v797, %v1046
    %v1173 = vadd.f32 %v800, %v1049
    %v1174 = vadd.f32 %v805, %v1054
    %v1175 = vadd.f32 %v808, %v1057
    %v1176 = vadd.f32 %v813, %v1062
    %v1177 = vadd.f32 %v816, %v1065
    %v1178 = vadd.f32 %v821, %v1070
    %v1179 = vadd.f32 %v824, %v1073
    %v1180 = vadd.f32 %v829, %v1078
    %v1181 = vadd.f32 %v832, %v1081
    %v1182 = vadd.f32 %v837, %v1086
    %v1183 = vadd.f32 %v840, %v1089
    %v1184 = vadd.f32 %v845, %v1094
    %v1185 = vadd.f32 %v848, %v1097
    %v1186 = vadd.f32 %v853, %v1102
    %v1187 = vadd.f32 %v856, %v1105
    %v1188 = vadd.f32 %v861, %v1110
    %v1189 = vadd.f32 %v864, %v1113
    %v1190 = vadd.f32 %v869, %v1118
    %v1191 = vadd.f32 %v872, %v1121
    %v1192 = vadd.f32 %v877, %v1126
    %v1193 = vadd.f32 %v880, %v1129
    %v1194 = vadd.f32 %v885, %v1134
    %v1195 = vadd.f32 %v888, %v1137
    %v1196 = vadd.f32 %v893, %v1142
    %v1197 = vadd.f32 %v896, %v1145
    %v1198 = vadd.f32 %v901, %v1150
    %v1199 = vadd.f32 %v904, %v1153
    %v1200 = vadd.f32 %v909, %v1158
    %v1201 = vadd.f32 %v912, %v1161
    %v1202 = vadd.f32 %v917, %v1166
    %v1203 = vadd.f32 %v920, %v1169
    %s1204 = scalar_lea.vmem %s2, 6
    %v1205 = vld [vmem:[%s1204] sm:$0x3]
    %vm1206 = vsmask.f32 6400
    %v1207 = vrot.slane %v378, 1
    %v1208 = vrot.slane %v380, 2
    %v1209 = vor.u32 %v1207, %v1208
    %v1210 = vrot.slane %v389, 1
    %v1211 = vrot.slane %v385, 2
    %v1212 = vor.u32 %v1210, %v1211
    %v1213 = vsel %vm1206, %v1209, %v1212
    %v1214 = vrot.slane %v397, 1
    %v1215 = vrot.slane %v393, 2
    %v1216 = vor.u32 %v1214, %v1215
    %v1217 = vsel %vm1206, %v1212, %v1216
    %v1218 = vrot.slane %v405, 1
    %v1219 = vrot.slane %v401, 2
    %v1220 = vor.u32 %v1218, %v1219
    %v1221 = vsel %vm1206, %v1216, %v1220
    %v1222 = vrot.slane %v413, 1
    %v1223 = vrot.slane %v409, 2
    %v1224 = vor.u32 %v1222, %v1223
    %v1225 = vsel %vm1206, %v1220, %v1224
    %v1226 = vrot.slane %v421, 1
    %v1227 = vrot.slane %v417, 2
    %v1228 = vor.u32 %v1226, %v1227
    %v1229 = vsel %vm1206, %v1224, %v1228
    %v1230 = vrot.slane %v429, 1
    %v1231 = vrot.slane %v425, 2
    %v1232 = vor.u32 %v1230, %v1231
    %v1233 = vsel %vm1206, %v1228, %v1232
    %v1234 = vrot.slane %v437, 1
    %v1235 = vrot.slane %v433, 2
    %v1236 = vor.u32 %v1234, %v1235
    %v1237 = vsel %vm1206, %v1232, %v1236
    %v1238 = vshrl.u32 %v371, 16
    %v1240 = vrot.slane %v1238, 1
    %v1241 = vrot.slane %v441, 2
    %v1242 = vor.u32 %v1240, %v1241
    %v1243 = vsel %vm1206, %v1236, %v1242
    %v1244 = vrot.slane %v446, 1
    %v1245 = vrot.slane %v448, 2
    %v1246 = vor.u32 %v1244, %v1245
    %v1247 = vrot.slane %v457, 1
    %v1248 = vrot.slane %v453, 2
    %v1249 = vor.u32 %v1247, %v1248
    %v1250 = vsel %vm1206, %v1246, %v1249
    %v1251 = vrot.slane %v465, 1
    %v1252 = vrot.slane %v461, 2
    %v1253 = vor.u32 %v1251, %v1252
    %v1254 = vsel %vm1206, %v1249, %v1253
    %v1255 = vrot.slane %v473, 1
    %v1256 = vrot.slane %v469, 2
    %v1257 = vor.u32 %v1255, %v1256
    %v1258 = vsel %vm1206, %v1253, %v1257
    %v1259 = vrot.slane %v481, 1
    %v1260 = vrot.slane %v477, 2
    %v1261 = vor.u32 %v1259, %v1260
    %v1262 = vsel %vm1206, %v1257, %v1261
    %v1263 = vrot.slane %v489, 1
    %v1264 = vrot.slane %v485, 2
    %v1265 = vor.u32 %v1263, %v1264
    %v1266 = vsel %vm1206, %v1261, %v1265
    %v1267 = vrot.slane %v497, 1
    %v1268 = vrot.slane %v493, 2
    %v1269 = vor.u32 %v1267, %v1268
    %v1270 = vsel %vm1206, %v1265, %v1269
    %v1271 = vrot.slane %v505, 1
    %v1272 = vrot.slane %v501, 2
    %v1273 = vor.u32 %v1271, %v1272
    %v1274 = vsel %vm1206, %v1269, %v1273
    %v1275 = vshrl.u32 %v372, 16
    %v1277 = vrot.slane %v1275, 1
    %v1278 = vrot.slane %v509, 2
    %v1279 = vor.u32 %v1277, %v1278
    %v1280 = vsel %vm1206, %v1273, %v1279
    %v1282 = vsel %vm513, %v1213, 0
    %v1285 = vsel %vm513, %v1217, 0
    %v1288 = vsel %vm513, %v1221, 0
    %v1291 = vsel %vm513, %v1225, 0
    %v1294 = vsel %vm513, %v1229, 0
    %v1297 = vsel %vm513, %v1233, 0
    %v1300 = vsel %vm513, %v1237, 0
    %v1303 = vsel %vm513, %v1243, 0
    %v1306 = vsel %vm513, %v1250, 0
    %v1309 = vsel %vm513, %v1254, 0
    %v1312 = vsel %vm513, %v1258, 0
    %v1315 = vsel %vm513, %v1262, 0
    %v1318 = vsel %vm513, %v1266, 0
    %v1321 = vsel %vm513, %v1270, 0
    %v1324 = vsel %vm513, %v1274, 0
    %v1327 = vsel %vm513, %v1280, 0
    %v1330 = vsel %vm562, %v1205, 0
    %1332 = vmatprep.subr.bf16.mxu0 0
    %1333 = vmatpush1.bf16.msra.mxu0 %v1330
    %1334 = vmatprep.subr.bf16.mxu0 0
    %1335 = vmatpush1.bf16.msra.mxu0 0
    %1336 = vmatprep.subr.bf16.mxu0 0
    %1337 = vmatpush1.bf16.msra.mxu0 0
    %1338 = vmatprep.subr.bf16.mxu0 0
    %1339 = vmatpush1.bf16.msra.mxu0 0
    %1340 = vmatprep.subr.bf16.mxu0 0
    %1341 = vmatpush1.bf16.msra.mxu0 0
    %1342 = vmatprep.subr.bf16.mxu0 0
    %1343 = vmatpush1.bf16.msra.mxu0 0
    %1344 = vmatprep.subr.bf16.mxu0 0
    %1345 = vmatpush1.bf16.msra.mxu0 0
    %1346 = vmatprep.subr.bf16.mxu0 0
    %1347 = vmatpush1.bf16.msra.mxu0 0
    %1348 = vmatprep.subr.bf16.mxu0 0
    %1349 = vmatpush1.bf16.msra.mxu0 0
    %1350 = vmatprep.subr.bf16.mxu0 0
    %1351 = vmatpush1.bf16.msra.mxu0 0
    %1352 = vmatprep.subr.bf16.mxu0 0
    %1353 = vmatpush1.bf16.msra.mxu0 0
    %1354 = vmatprep.subr.bf16.mxu0 0
    %1355 = vmatpush1.bf16.msra.mxu0 0
    %1356 = vmatprep.subr.bf16.mxu0 0
    %1357 = vmatpush1.bf16.msra.mxu0 0
    %1358 = vmatprep.subr.bf16.mxu0 0
    %1359 = vmatpush1.bf16.msra.mxu0 0
    %1360 = vmatprep.subr.bf16.mxu0 0
    %1361 = vmatpush1.bf16.msra.mxu0 0
    %1362 = vmatprep.subr.bf16.mxu0 0
    %1363 = vmatpush1.bf16.msra.mxu0 0
    %1364 = vmatprep.mubr.bf16.mxu0 0
    %1365 = vmatmul.mubr.bf16.gmra.mrb[0].mxu0 %v1282
    %v1366 = vpop.f32.mrb[0].mxu0
    %v1367 = vadd.f32 0.0, %v1366
    %v1368 = vpop.f32.mrb[0].mxu0
    %v1369 = vpop.f32.mrb[0].mxu0
    %v1370 = vadd.f32 0.0, %v1369
    %v1371 = vpop.f32.mrb[0].mxu0
    %1372 = vmatprep.mubr.bf16.mxu0 0
    %1373 = vmatmul.mubr.bf16.gmra.mrb[0].mxu0 %v1285
    %v1374 = vpop.f32.mrb[0].mxu0
    %v1375 = vadd.f32 0.0, %v1374
    %v1376 = vpop.f32.mrb[0].mxu0
    %v1377 = vpop.f32.mrb[0].mxu0
    %v1378 = vadd.f32 0.0, %v1377
    %v1379 = vpop.f32.mrb[0].mxu0
    %1380 = vmatprep.mubr.bf16.mxu0 0
    %1381 = vmatmul.mubr.bf16.gmra.mrb[0].mxu0 %v1288
    %v1382 = vpop.f32.mrb[0].mxu0
    %v1383 = vadd.f32 0.0, %v1382
    %v1384 = vpop.f32.mrb[0].mxu0
    %v1385 = vpop.f32.mrb[0].mxu0
    %v1386 = vadd.f32 0.0, %v1385
    %v1387 = vpop.f32.mrb[0].mxu0
    %1388 = vmatprep.mubr.bf16.mxu0 0
    %1389 = vmatmul.mubr.bf16.gmra.mrb[0].mxu0 %v1291
    %v1390 = vpop.f32.mrb[0].mxu0
    %v1391 = vadd.f32 0.0, %v1390
    %v1392 = vpop.f32.mrb[0].mxu0
    %v1393 = vpop.f32.mrb[0].mxu0
    %v1394 = vadd.f32 0.0, %v1393
    %v1395 = vpop.f32.mrb[0].mxu0
    %1396 = vmatprep.mubr.bf16.mxu0 0
    %1397 = vmatmul.mubr.bf16.gmra.mrb[0].mxu0 %v1294
    %v1398 = vpop.f32.mrb[0].mxu0
    %v1399 = vadd.f32 0.0, %v1398
    %v1400 = vpop.f32.mrb[0].mxu0
    %v1401 = vpop.f32.mrb[0].mxu0
    %v1402 = vadd.f32 0.0, %v1401
    %v1403 = vpop.f32.mrb[0].mxu0
    %1404 = vmatprep.mubr.bf16.mxu0 0
    %1405 = vmatmul.mubr.bf16.gmra.mrb[0].mxu0 %v1297
    %v1406 = vpop.f32.mrb[0].mxu0
    %v1407 = vadd.f32 0.0, %v1406
    %v1408 = vpop.f32.mrb[0].mxu0
    %v1409 = vpop.f32.mrb[0].mxu0
    %v1410 = vadd.f32 0.0, %v1409
    %v1411 = vpop.f32.mrb[0].mxu0
    %1412 = vmatprep.mubr.bf16.mxu0 0
    %1413 = vmatmul.mubr.bf16.gmra.mrb[0].mxu0 %v1300
    %v1414 = vpop.f32.mrb[0].mxu0
    %v1415 = vadd.f32 0.0, %v1414
    %v1416 = vpop.f32.mrb[0].mxu0
    %v1417 = vpop.f32.mrb[0].mxu0
    %v1418 = vadd.f32 0.0, %v1417
    %v1419 = vpop.f32.mrb[0].mxu0
    %1420 = vmatprep.mubr.bf16.mxu0 0
    %1421 = vmatmul.mubr.bf16.gmra.mrb[0].mxu0 %v1303
    %v1422 = vpop.f32.mrb[0].mxu0
    %v1423 = vadd.f32 0.0, %v1422
    %v1424 = vpop.f32.mrb[0].mxu0
    %v1425 = vpop.f32.mrb[0].mxu0
    %v1426 = vadd.f32 0.0, %v1425
    %v1427 = vpop.f32.mrb[0].mxu0
    %1428 = vmatprep.mubr.bf16.mxu0 0
    %1429 = vmatmul.mubr.bf16.gmra.mrb[0].mxu0 %v1306
    %v1430 = vpop.f32.mrb[0].mxu0
    %v1431 = vadd.f32 0.0, %v1430
    %v1432 = vpop.f32.mrb[0].mxu0
    %v1433 = vpop.f32.mrb[0].mxu0
    %v1434 = vadd.f32 0.0, %v1433
    %v1435 = vpop.f32.mrb[0].mxu0
    %1436 = vmatprep.mubr.bf16.mxu0 0
    %1437 = vmatmul.mubr.bf16.gmra.mrb[0].mxu0 %v1309
    %v1438 = vpop.f32.mrb[0].mxu0
    %v1439 = vadd.f32 0.0, %v1438
    %v1440 = vpop.f32.mrb[0].mxu0
    %v1441 = vpop.f32.mrb[0].mxu0
    %v1442 = vadd.f32 0.0, %v1441
    %v1443 = vpop.f32.mrb[0].mxu0
    %1444 = vmatprep.mubr.bf16.mxu0 0
    %1445 = vmatmul.mubr.bf16.gmra.mrb[0].mxu0 %v1312
    %v1446 = vpop.f32.mrb[0].mxu0
    %v1447 = vadd.f32 0.0, %v1446
    %v1448 = vpop.f32.mrb[0].mxu0
    %v1449 = vpop.f32.mrb[0].mxu0
    %v1450 = vadd.f32 0.0, %v1449
    %v1451 = vpop.f32.mrb[0].mxu0
    %1452 = vmatprep.mubr.bf16.mxu0 0
    %1453 = vmatmul.mubr.bf16.gmra.mrb[0].mxu0 %v1315
    %v1454 = vpop.f32.mrb[0].mxu0
    %v1455 = vadd.f32 0.0, %v1454
    %v1456 = vpop.f32.mrb[0].mxu0
    %v1457 = vpop.f32.mrb[0].mxu0
    %v1458 = vadd.f32 0.0, %v1457
    %v1459 = vpop.f32.mrb[0].mxu0
    %1460 = vmatprep.mubr.bf16.mxu0 0
    %1461 = vmatmul.mubr.bf16.gmra.mrb[0].mxu0 %v1318
    %v1462 = vpop.f32.mrb[0].mxu0
    %v1463 = vadd.f32 0.0, %v1462
    %v1464 = vpop.f32.mrb[0].mxu0
    %v1465 = vpop.f32.mrb[0].mxu0
    %v1466 = vadd.f32 0.0, %v1465
    %v1467 = vpop.f32.mrb[0].mxu0
    %1468 = vmatprep.mubr.bf16.mxu0 0
    %1469 = vmatmul.mubr.bf16.gmra.mrb[0].mxu0 %v1321
    %v1470 = vpop.f32.mrb[0].mxu0
    %v1471 = vadd.f32 0.0, %v1470
    %v1472 = vpop.f32.mrb[0].mxu0
    %v1473 = vpop.f32.mrb[0].mxu0
    %v1474 = vadd.f32 0.0, %v1473
    %v1475 = vpop.f32.mrb[0].mxu0
    %1476 = vmatprep.mubr.bf16.mxu0 0
    %1477 = vmatmul.mubr.bf16.gmra.mrb[0].mxu0 %v1324
    %v1478 = vpop.f32.mrb[0].mxu0
    %v1479 = vadd.f32 0.0, %v1478
    %v1480 = vpop.f32.mrb[0].mxu0
    %v1481 = vpop.f32.mrb[0].mxu0
    %v1482 = vadd.f32 0.0, %v1481
    %v1483 = vpop.f32.mrb[0].mxu0
    %1484 = vmatprep.mubr.bf16.mxu0 0
    %1485 = vmatmul.mubr.bf16.gmra.mrb[0].mxu0 %v1327
    %v1486 = vpop.f32.mrb[0].mxu0
    %v1487 = vadd.f32 0.0, %v1486
    %v1488 = vpop.f32.mrb[0].mxu0
    %v1489 = vpop.f32.mrb[0].mxu0
    %v1490 = vadd.f32 0.0, %v1489
    %v1491 = vpop.f32.mrb[0].mxu0
    %1492 = vdwg.mxu0
    %v1493 = vadd.f32 %v1172, %v1367
    %v1494 = vadd.f32 %v1173, %v1370
    %v1495 = vadd.f32 %v1174, %v1375
    %v1496 = vadd.f32 %v1175, %v1378
    %v1497 = vadd.f32 %v1176, %v1383
    %v1498 = vadd.f32 %v1177, %v1386
    %v1499 = vadd.f32 %v1178, %v1391
    %v1500 = vadd.f32 %v1179, %v1394
    %v1501 = vadd.f32 %v1180, %v1399
    %v1502 = vadd.f32 %v1181, %v1402
    %v1503 = vadd.f32 %v1182, %v1407
    %v1504 = vadd.f32 %v1183, %v1410
    %v1505 = vadd.f32 %v1184, %v1415
    %v1506 = vadd.f32 %v1185, %v1418
    %v1507 = vadd.f32 %v1186, %v1423
    %v1508 = vadd.f32 %v1187, %v1426
    %v1509 = vadd.f32 %v1188, %v1431
    %v1510 = vadd.f32 %v1189, %v1434
    %v1511 = vadd.f32 %v1190, %v1439
    %v1512 = vadd.f32 %v1191, %v1442
    %v1513 = vadd.f32 %v1192, %v1447
    %v1514 = vadd.f32 %v1193, %v1450
    %v1515 = vadd.f32 %v1194, %v1455
    %v1516 = vadd.f32 %v1195, %v1458
    %v1517 = vadd.f32 %v1196, %v1463
    %v1518 = vadd.f32 %v1197, %v1466
    %v1519 = vadd.f32 %v1198, %v1471
    %v1520 = vadd.f32 %v1199, %v1474
    %v1521 = vadd.f32 %v1200, %v1479
    %v1522 = vadd.f32 %v1201, %v1482
    %v1523 = vadd.f32 %v1202, %v1487
    %v1524 = vadd.f32 %v1203, %v1490
    %s1525 = scalar_lea.vmem %s2, 8
    %v1526 = vld [vmem:[%s1525] sm:$0x3]
    %vm1527 = vcmask 1045504
    %v1528 = vrot.slane %v347, 2
    %v1529 = vrot.slane %v348, 2
    %v1530 = vsel %vm1527, %v1528, %v1529
    %v1531 = vrot.slane %v349, 2
    %v1532 = vsel %vm1527, %v1529, %v1531
    %v1533 = vrot.slane %v350, 2
    %v1534 = vsel %vm1527, %v1531, %v1533
    %v1535 = vrot.slane %v351, 2
    %v1536 = vsel %vm1527, %v1533, %v1535
    %v1537 = vrot.slane %v352, 2
    %v1538 = vsel %vm1527, %v1535, %v1537
    %v1539 = vrot.slane %v353, 2
    %v1540 = vsel %vm1527, %v1537, %v1539
    %v1541 = vrot.slane %v354, 2
    %v1542 = vsel %vm1527, %v1539, %v1541
    %v1543 = vrot.slane %v371, 2
    %v1544 = vsel %vm1527, %v1541, %v1543
    %v1545 = vrot.slane %v355, 2
    %v1546 = vrot.slane %v356, 2
    %v1547 = vsel %vm1527, %v1545, %v1546
    %v1548 = vrot.slane %v357, 2
    %v1549 = vsel %vm1527, %v1546, %v1548
    %v1550 = vrot.slane %v358, 2
    %v1551 = vsel %vm1527, %v1548, %v1550
    %v1552 = vrot.slane %v359, 2
    %v1553 = vsel %vm1527, %v1550, %v1552
    %v1554 = vrot.slane %v360, 2
    %v1555 = vsel %vm1527, %v1552, %v1554
    %v1556 = vrot.slane %v361, 2
    %v1557 = vsel %vm1527, %v1554, %v1556
    %v1558 = vrot.slane %v362, 2
    %v1559 = vsel %vm1527, %v1556, %v1558
    %v1560 = vrot.slane %v372, 2
    %v1561 = vsel %vm1527, %v1558, %v1560
    %v1563 = vsel %vm513, %v1530, 0
    %v1566 = vsel %vm513, %v1532, 0
    %v1569 = vsel %vm513, %v1534, 0
    %v1572 = vsel %vm513, %v1536, 0
    %v1575 = vsel %vm513, %v1538, 0
    %v1578 = vsel %vm513, %v1540, 0
    %v1581 = vsel %vm513, %v1542, 0
    %v1584 = vsel %vm513, %v1544, 0
    %v1587 = vsel %vm513, %v1547, 0
    %v1590 = vsel %vm513, %v1549, 0
    %v1593 = vsel %vm513, %v1551, 0
    %v1596 = vsel %vm513, %v1553, 0
    %v1599 = vsel %vm513, %v1555, 0
    %v1602 = vsel %vm513, %v1557, 0
    %v1605 = vsel %vm513, %v1559, 0
    %v1608 = vsel %vm513, %v1561, 0
    %v1611 = vsel %vm562, %v1526, 0
    %1613 = vmatprep.subr.bf16.mxu0 0
    %1614 = vmatpush1.bf16.msra.mxu0 %v1611
    %1615 = vmatprep.subr.bf16.mxu0 0
    %1616 = vmatpush1.bf16.msra.mxu0 0
    %1617 = vmatprep.subr.bf16.mxu0 0
    %1618 = vmatpush1.bf16.msra.mxu0 0
    %1619 = vmatprep.subr.bf16.mxu0 0
    %1620 = vmatpush1.bf16.msra.mxu0 0
    %1621 = vmatprep.subr.bf16.mxu0 0
    %1622 = vmatpush1.bf16.msra.mxu0 0
    %1623 = vmatprep.subr.bf16.mxu0 0
    %1624 = vmatpush1.bf16.msra.mxu0 0
    %1625 = vmatprep.subr.bf16.mxu0 0
    %1626 = vmatpush1.bf16.msra.mxu0 0
    %1627 = vmatprep.subr.bf16.mxu0 0
    %1628 = vmatpush1.bf16.msra.mxu0 0
    %1629 = vmatprep.subr.bf16.mxu0 0
    %1630 = vmatpush1.bf16.msra.mxu0 0
    %1631 = vmatprep.subr.bf16.mxu0 0
    %1632 = vmatpush1.bf16.msra.mxu0 0
    %1633 = vmatprep.subr.bf16.mxu0 0
    %1634 = vmatpush1.bf16.msra.mxu0 0
    %1635 = vmatprep.subr.bf16.mxu0 0
    %1636 = vmatpush1.bf16.msra.mxu0 0
    %1637 = vmatprep.subr.bf16.mxu0 0
    %1638 = vmatpush1.bf16.msra.mxu0 0
    %1639 = vmatprep.subr.bf16.mxu0 0
    %1640 = vmatpush1.bf16.msra.mxu0 0
    %1641 = vmatprep.subr.bf16.mxu0 0
    %1642 = vmatpush1.bf16.msra.mxu0 0
    %1643 = vmatprep.subr.bf16.mxu0 0
    %1644 = vmatpush1.bf16.msra.mxu0 0
    %1645 = vmatprep.mubr.bf16.mxu0 0
    %1646 = vmatmul.mubr.bf16.gmra.mrb[0].mxu0 %v1563
    %v1647 = vpop.f32.mrb[0].mxu0
    %v1648 = vadd.f32 0.0, %v1647
    %v1649 = vpop.f32.mrb[0].mxu0
    %v1650 = vpop.f32.mrb[0].mxu0
    %v1651 = vadd.f32 0.0, %v1650
    %v1652 = vpop.f32.mrb[0].mxu0
    %1653 = vmatprep.mubr.bf16.mxu0 0
    %1654 = vmatmul.mubr.bf16.gmra.mrb[0].mxu0 %v1566
    %v1655 = vpop.f32.mrb[0].mxu0
    %v1656 = vadd.f32 0.0, %v1655
    %v1657 = vpop.f32.mrb[0].mxu0
    %v1658 = vpop.f32.mrb[0].mxu0
    %v1659 = vadd.f32 0.0, %v1658
    %v1660 = vpop.f32.mrb[0].mxu0
    %1661 = vmatprep.mubr.bf16.mxu0 0
    %1662 = vmatmul.mubr.bf16.gmra.mrb[0].mxu0 %v1569
    %v1663 = vpop.f32.mrb[0].mxu0
    %v1664 = vadd.f32 0.0, %v1663
    %v1665 = vpop.f32.mrb[0].mxu0
    %v1666 = vpop.f32.mrb[0].mxu0
    %v1667 = vadd.f32 0.0, %v1666
    %v1668 = vpop.f32.mrb[0].mxu0
    %1669 = vmatprep.mubr.bf16.mxu0 0
    %1670 = vmatmul.mubr.bf16.gmra.mrb[0].mxu0 %v1572
    %v1671 = vpop.f32.mrb[0].mxu0
    %v1672 = vadd.f32 0.0, %v1671
    %v1673 = vpop.f32.mrb[0].mxu0
    %v1674 = vpop.f32.mrb[0].mxu0
    %v1675 = vadd.f32 0.0, %v1674
    %v1676 = vpop.f32.mrb[0].mxu0
    %1677 = vmatprep.mubr.bf16.mxu0 0
    %1678 = vmatmul.mubr.bf16.gmra.mrb[0].mxu0 %v1575
    %v1679 = vpop.f32.mrb[0].mxu0
    %v1680 = vadd.f32 0.0, %v1679
    %v1681 = vpop.f32.mrb[0].mxu0
    %v1682 = vpop.f32.mrb[0].mxu0
    %v1683 = vadd.f32 0.0, %v1682
    %v1684 = vpop.f32.mrb[0].mxu0
    %1685 = vmatprep.mubr.bf16.mxu0 0
    %1686 = vmatmul.mubr.bf16.gmra.mrb[0].mxu0 %v1578
    %v1687 = vpop.f32.mrb[0].mxu0
    %v1688 = vadd.f32 0.0, %v1687
    %v1689 = vpop.f32.mrb[0].mxu0
    %v1690 = vpop.f32.mrb[0].mxu0
    %v1691 = vadd.f32 0.0, %v1690
    %v1692 = vpop.f32.mrb[0].mxu0
    %1693 = vmatprep.mubr.bf16.mxu0 0
    %1694 = vmatmul.mubr.bf16.gmra.mrb[0].mxu0 %v1581
    %v1695 = vpop.f32.mrb[0].mxu0
    %v1696 = vadd.f32 0.0, %v1695
    %v1697 = vpop.f32.mrb[0].mxu0
    %v1698 = vpop.f32.mrb[0].mxu0
    %v1699 = vadd.f32 0.0, %v1698
    %v1700 = vpop.f32.mrb[0].mxu0
    %1701 = vmatprep.mubr.bf16.mxu0 0
    %1702 = vmatmul.mubr.bf16.gmra.mrb[0].mxu0 %v1584
    %v1703 = vpop.f32.mrb[0].mxu0
    %v1704 = vadd.f32 0.0, %v1703
    %v1705 = vpop.f32.mrb[0].mxu0
    %v1706 = vpop.f32.mrb[0].mxu0
    %v1707 = vadd.f32 0.0, %v1706
    %v1708 = vpop.f32.mrb[0].mxu0
    %1709 = vmatprep.mubr.bf16.mxu0 0
    %1710 = vmatmul.mubr.bf16.gmra.mrb[0].mxu0 %v1587
    %v1711 = vpop.f32.mrb[0].mxu0
    %v1712 = vadd.f32 0.0, %v1711
    %v1713 = vpop.f32.mrb[0].mxu0
    %v1714 = vpop.f32.mrb[0].mxu0
    %v1715 = vadd.f32 0.0, %v1714
    %v1716 = vpop.f32.mrb[0].mxu0
    %1717 = vmatprep.mubr.bf16.mxu0 0
    %1718 = vmatmul.mubr.bf16.gmra.mrb[0].mxu0 %v1590
    %v1719 = vpop.f32.mrb[0].mxu0
    %v1720 = vadd.f32 0.0, %v1719
    %v1721 = vpop.f32.mrb[0].mxu0
    %v1722 = vpop.f32.mrb[0].mxu0
    %v1723 = vadd.f32 0.0, %v1722
    %v1724 = vpop.f32.mrb[0].mxu0
    %1725 = vmatprep.mubr.bf16.mxu0 0
    %1726 = vmatmul.mubr.bf16.gmra.mrb[0].mxu0 %v1593
    %v1727 = vpop.f32.mrb[0].mxu0
    %v1728 = vadd.f32 0.0, %v1727
    %v1729 = vpop.f32.mrb[0].mxu0
    %v1730 = vpop.f32.mrb[0].mxu0
    %v1731 = vadd.f32 0.0, %v1730
    %v1732 = vpop.f32.mrb[0].mxu0
    %1733 = vmatprep.mubr.bf16.mxu0 0
    %1734 = vmatmul.mubr.bf16.gmra.mrb[0].mxu0 %v1596
    %v1735 = vpop.f32.mrb[0].mxu0
    %v1736 = vadd.f32 0.0, %v1735
    %v1737 = vpop.f32.mrb[0].mxu0
    %v1738 = vpop.f32.mrb[0].mxu0
    %v1739 = vadd.f32 0.0, %v1738
    %v1740 = vpop.f32.mrb[0].mxu0
    %1741 = vmatprep.mubr.bf16.mxu0 0
    %1742 = vmatmul.mubr.bf16.gmra.mrb[0].mxu0 %v1599
    %v1743 = vpop.f32.mrb[0].mxu0
    %v1744 = vadd.f32 0.0, %v1743
    %v1745 = vpop.f32.mrb[0].mxu0
    %v1746 = vpop.f32.mrb[0].mxu0
    %v1747 = vadd.f32 0.0, %v1746
    %v1748 = vpop.f32.mrb[0].mxu0
    %1749 = vmatprep.mubr.bf16.mxu0 0
    %1750 = vmatmul.mubr.bf16.gmra.mrb[0].mxu0 %v1602
    %v1751 = vpop.f32.mrb[0].mxu0
    %v1752 = vadd.f32 0.0, %v1751
    %v1753 = vpop.f32.mrb[0].mxu0
    %v1754 = vpop.f32.mrb[0].mxu0
    %v1755 = vadd.f32 0.0, %v1754
    %v1756 = vpop.f32.mrb[0].mxu0
    %1757 = vmatprep.mubr.bf16.mxu0 0
    %1758 = vmatmul.mubr.bf16.gmra.mrb[0].mxu0 %v1605
    %v1759 = vpop.f32.mrb[0].mxu0
    %v1760 = vadd.f32 0.0, %v1759
    %v1761 = vpop.f32.mrb[0].mxu0
    %v1762 = vpop.f32.mrb[0].mxu0
    %v1763 = vadd.f32 0.0, %v1762
    %v1764 = vpop.f32.mrb[0].mxu0
    %1765 = vmatprep.mubr.bf16.mxu0 0
    %1766 = vmatmul.mubr.bf16.gmra.mrb[0].mxu0 %v1608
    %v1767 = vpop.f32.mrb[0].mxu0
    %v1768 = vadd.f32 0.0, %v1767
    %v1769 = vpop.f32.mrb[0].mxu0
    %v1770 = vpop.f32.mrb[0].mxu0
    %v1771 = vadd.f32 0.0, %v1770
    %v1772 = vpop.f32.mrb[0].mxu0
    %1773 = vdwg.mxu0
    %v1774 = vadd.f32 %v1493, %v1648
    %v1775 = vadd.f32 %v1494, %v1651
    %v1776 = vadd.f32 %v1495, %v1656
    %v1777 = vadd.f32 %v1496, %v1659
    %v1778 = vadd.f32 %v1497, %v1664
    %v1779 = vadd.f32 %v1498, %v1667
    %v1780 = vadd.f32 %v1499, %v1672
    %v1781 = vadd.f32 %v1500, %v1675
    %v1782 = vadd.f32 %v1501, %v1680
    %v1783 = vadd.f32 %v1502, %v1683
    %v1784 = vadd.f32 %v1503, %v1688
    %v1785 = vadd.f32 %v1504, %v1691
    %v1786 = vadd.f32 %v1505, %v1696
    %v1787 = vadd.f32 %v1506, %v1699
    %v1788 = vadd.f32 %v1507, %v1704
    %v1789 = vadd.f32 %v1508, %v1707
    %v1790 = vadd.f32 %v1509, %v1712
    %v1791 = vadd.f32 %v1510, %v1715
    %v1792 = vadd.f32 %v1511, %v1720
    %v1793 = vadd.f32 %v1512, %v1723
    %v1794 = vadd.f32 %v1513, %v1728
    %v1795 = vadd.f32 %v1514, %v1731
    %v1796 = vadd.f32 %v1515, %v1736
    %v1797 = vadd.f32 %v1516, %v1739
    %v1798 = vadd.f32 %v1517, %v1744
    %v1799 = vadd.f32 %v1518, %v1747
    %v1800 = vadd.f32 %v1519, %v1752
    %v1801 = vadd.f32 %v1520, %v1755
    %v1802 = vadd.f32 %v1521, %v1760
    %v1803 = vadd.f32 %v1522, %v1763
    %v1804 = vadd.f32 %v1523, %v1768
    %v1805 = vadd.f32 %v1524, %v1771
    %s1806 = scalar_lea.vmem %s2, 10
    %v1807 = vld [vmem:[%s1806] sm:$0x3]
    %vm1808 = vsmask.f32 5376
    %v1809 = vrot.slane %v378, 2
    %v1810 = vrot.slane %v380, 3
    %v1811 = vor.u32 %v1809, %v1810
    %v1812 = vrot.slane %v389, 2
    %v1813 = vrot.slane %v385, 3
    %v1814 = vor.u32 %v1812, %v1813
    %v1815 = vsel %vm1808, %v1811, %v1814
    %v1816 = vrot.slane %v397, 2
    %v1817 = vrot.slane %v393, 3
    %v1818 = vor.u32 %v1816, %v1817
    %v1819 = vsel %vm1808, %v1814, %v1818
    %v1820 = vrot.slane %v405, 2
    %v1821 = vrot.slane %v401, 3
    %v1822 = vor.u32 %v1820, %v1821
    %v1823 = vsel %vm1808, %v1818, %v1822
    %v1824 = vrot.slane %v413, 2
    %v1825 = vrot.slane %v409, 3
    %v1826 = vor.u32 %v1824, %v1825
    %v1827 = vsel %vm1808, %v1822, %v1826
    %v1828 = vrot.slane %v421, 2
    %v1829 = vrot.slane %v417, 3
    %v1830 = vor.u32 %v1828, %v1829
    %v1831 = vsel %vm1808, %v1826, %v1830
    %v1832 = vrot.slane %v429, 2
    %v1833 = vrot.slane %v425, 3
    %v1834 = vor.u32 %v1832, %v1833
    %v1835 = vsel %vm1808, %v1830, %v1834
    %v1836 = vrot.slane %v437, 2
    %v1837 = vrot.slane %v433, 3
    %v1838 = vor.u32 %v1836, %v1837
    %v1839 = vsel %vm1808, %v1834, %v1838
    %v1840 = vrot.slane %v1238, 2
    %v1841 = vrot.slane %v441, 3
    %v1842 = vor.u32 %v1840, %v1841
    %v1843 = vsel %vm1808, %v1838, %v1842
    %v1844 = vrot.slane %v446, 2
    %v1845 = vrot.slane %v448, 3
    %v1846 = vor.u32 %v1844, %v1845
    %v1847 = vrot.slane %v457, 2
    %v1848 = vrot.slane %v453, 3
    %v1849 = vor.u32 %v1847, %v1848
    %v1850 = vsel %vm1808, %v1846, %v1849
    %v1851 = vrot.slane %v465, 2
    %v1852 = vrot.slane %v461, 3
    %v1853 = vor.u32 %v1851, %v1852
    %v1854 = vsel %vm1808, %v1849, %v1853
    %v1855 = vrot.slane %v473, 2
    %v1856 = vrot.slane %v469, 3
    %v1857 = vor.u32 %v1855, %v1856
    %v1858 = vsel %vm1808, %v1853, %v1857
    %v1859 = vrot.slane %v481, 2
    %v1860 = vrot.slane %v477, 3
    %v1861 = vor.u32 %v1859, %v1860
    %v1862 = vsel %vm1808, %v1857, %v1861
    %v1863 = vrot.slane %v489, 2
    %v1864 = vrot.slane %v485, 3
    %v1865 = vor.u32 %v1863, %v1864
    %v1866 = vsel %vm1808, %v1861, %v1865
    %v1867 = vrot.slane %v497, 2
    %v1868 = vrot.slane %v493, 3
    %v1869 = vor.u32 %v1867, %v1868
    %v1870 = vsel %vm1808, %v1865, %v1869
    %v1871 = vrot.slane %v505, 2
    %v1872 = vrot.slane %v501, 3
    %v1873 = vor.u32 %v1871, %v1872
    %v1874 = vsel %vm1808, %v1869, %v1873
    %v1875 = vrot.slane %v1275, 2
    %v1876 = vrot.slane %v509, 3
    %v1877 = vor.u32 %v1875, %v1876
    %v1878 = vsel %vm1808, %v1873, %v1877
    %v1880 = vsel %vm513, %v1815, 0
    %v1883 = vsel %vm513, %v1819, 0
    %v1886 = vsel %vm513, %v1823, 0
    %v1889 = vsel %vm513, %v1827, 0
    %v1892 = vsel %vm513, %v1831, 0
    %v1895 = vsel %vm513, %v1835, 0
    %v1898 = vsel %vm513, %v1839, 0
    %v1901 = vsel %vm513, %v1843, 0
    %v1904 = vsel %vm513, %v1850, 0
    %v1907 = vsel %vm513, %v1854, 0
    %v1910 = vsel %vm513, %v1858, 0
    %v1913 = vsel %vm513, %v1862, 0
    %v1916 = vsel %vm513, %v1866, 0
    %v1919 = vsel %vm513, %v1870, 0
    %v1922 = vsel %vm513, %v1874, 0
    %v1925 = vsel %vm513, %v1878, 0
    %v1928 = vsel %vm562, %v1807, 0
    %1930 = vmatprep.subr.bf16.mxu0 0
    %1931 = vmatpush1.bf16.msra.mxu0 %v1928
    %1932 = vmatprep.subr.bf16.mxu0 0
    %1933 = vmatpush1.bf16.msra.mxu0 0
    %1934 = vmatprep.subr.bf16.mxu0 0
    %1935 = vmatpush1.bf16.msra.mxu0 0
    %1936 = vmatprep.subr.bf16.mxu0 0
    %1937 = vmatpush1.bf16.msra.mxu0 0
    %1938 = vmatprep.subr.bf16.mxu0 0
    %1939 = vmatpush1.bf16.msra.mxu0 0
    %1940 = vmatprep.subr.bf16.mxu0 0
    %1941 = vmatpush1.bf16.msra.mxu0 0
    %1942 = vmatprep.subr.bf16.mxu0 0
    %1943 = vmatpush1.bf16.msra.mxu0 0
    %1944 = vmatprep.subr.bf16.mxu0 0
    %1945 = vmatpush1.bf16.msra.mxu0 0
    %1946 = vmatprep.subr.bf16.mxu0 0
    %1947 = vmatpush1.bf16.msra.mxu0 0
    %1948 = vmatprep.subr.bf16.mxu0 0
    %1949 = vmatpush1.bf16.msra.mxu0 0
    %1950 = vmatprep.subr.bf16.mxu0 0
    %1951 = vmatpush1.bf16.msra.mxu0 0
    %1952 = vmatprep.subr.bf16.mxu0 0
    %1953 = vmatpush1.bf16.msra.mxu0 0
    %1954 = vmatprep.subr.bf16.mxu0 0
    %1955 = vmatpush1.bf16.msra.mxu0 0
    %1956 = vmatprep.subr.bf16.mxu0 0
    %1957 = vmatpush1.bf16.msra.mxu0 0
    %1958 = vmatprep.subr.bf16.mxu0 0
    %1959 = vmatpush1.bf16.msra.mxu0 0
    %1960 = vmatprep.subr.bf16.mxu0 0
    %1961 = vmatpush1.bf16.msra.mxu0 0
    %1962 = vmatprep.mubr.bf16.mxu0 0
    %1963 = vmatmul.mubr.bf16.gmra.mrb[0].mxu0 %v1880
    %v1964 = vpop.f32.mrb[0].mxu0
    %v1965 = vadd.f32 0.0, %v1964
    %v1966 = vpop.f32.mrb[0].mxu0
    %v1967 = vpop.f32.mrb[0].mxu0
    %v1968 = vadd.f32 0.0, %v1967
    %v1969 = vpop.f32.mrb[0].mxu0
    %1970 = vmatprep.mubr.bf16.mxu0 0
    %1971 = vmatmul.mubr.bf16.gmra.mrb[0].mxu0 %v1883
    %v1972 = vpop.f32.mrb[0].mxu0
    %v1973 = vadd.f32 0.0, %v1972
    %v1974 = vpop.f32.mrb[0].mxu0
    %v1975 = vpop.f32.mrb[0].mxu0
    %v1976 = vadd.f32 0.0, %v1975
    %v1977 = vpop.f32.mrb[0].mxu0
    %1978 = vmatprep.mubr.bf16.mxu0 0
    %1979 = vmatmul.mubr.bf16.gmra.mrb[0].mxu0 %v1886
    %v1980 = vpop.f32.mrb[0].mxu0
    %v1981 = vadd.f32 0.0, %v1980
    %v1982 = vpop.f32.mrb[0].mxu0
    %v1983 = vpop.f32.mrb[0].mxu0
    %v1984 = vadd.f32 0.0, %v1983
    %v1985 = vpop.f32.mrb[0].mxu0
    %1986 = vmatprep.mubr.bf16.mxu0 0
    %1987 = vmatmul.mubr.bf16.gmra.mrb[0].mxu0 %v1889
    %v1988 = vpop.f32.mrb[0].mxu0
    %v1989 = vadd.f32 0.0, %v1988
    %v1990 = vpop.f32.mrb[0].mxu0
    %v1991 = vpop.f32.mrb[0].mxu0
    %v1992 = vadd.f32 0.0, %v1991
    %v1993 = vpop.f32.mrb[0].mxu0
    %1994 = vmatprep.mubr.bf16.mxu0 0
    %1995 = vmatmul.mubr.bf16.gmra.mrb[0].mxu0 %v1892
    %v1996 = vpop.f32.mrb[0].mxu0
    %v1997 = vadd.f32 0.0, %v1996
    %v1998 = vpop.f32.mrb[0].mxu0
    %v1999 = vpop.f32.mrb[0].mxu0
    %v2000 = vadd.f32 0.0, %v1999
    %v2001 = vpop.f32.mrb[0].mxu0
    %2002 = vmatprep.mubr.bf16.mxu0 0
    %2003 = vmatmul.mubr.bf16.gmra.mrb[0].mxu0 %v1895
    %v2004 = vpop.f32.mrb[0].mxu0
    %v2005 = vadd.f32 0.0, %v2004
    %v2006 = vpop.f32.mrb[0].mxu0
    %v2007 = vpop.f32.mrb[0].mxu0
    %v2008 = vadd.f32 0.0, %v2007
    %v2009 = vpop.f32.mrb[0].mxu0
    %2010 = vmatprep.mubr.bf16.mxu0 0
    %2011 = vmatmul.mubr.bf16.gmra.mrb[0].mxu0 %v1898
    %v2012 = vpop.f32.mrb[0].mxu0
    %v2013 = vadd.f32 0.0, %v2012
    %v2014 = vpop.f32.mrb[0].mxu0
    %v2015 = vpop.f32.mrb[0].mxu0
    %v2016 = vadd.f32 0.0, %v2015
    %v2017 = vpop.f32.mrb[0].mxu0
    %2018 = vmatprep.mubr.bf16.mxu0 0
    %2019 = vmatmul.mubr.bf16.gmra.mrb[0].mxu0 %v1901
    %v2020 = vpop.f32.mrb[0].mxu0
    %v2021 = vadd.f32 0.0, %v2020
    %v2022 = vpop.f32.mrb[0].mxu0
    %v2023 = vpop.f32.mrb[0].mxu0
    %v2024 = vadd.f32 0.0, %v2023
    %v2025 = vpop.f32.mrb[0].mxu0
    %2026 = vmatprep.mubr.bf16.mxu0 0
    %2027 = vmatmul.mubr.bf16.gmra.mrb[0].mxu0 %v1904
    %v2028 = vpop.f32.mrb[0].mxu0
    %v2029 = vadd.f32 0.0, %v2028
    %v2030 = vpop.f32.mrb[0].mxu0
    %v2031 = vpop.f32.mrb[0].mxu0
    %v2032 = vadd.f32 0.0, %v2031
    %v2033 = vpop.f32.mrb[0].mxu0
    %2034 = vmatprep.mubr.bf16.mxu0 0
    %2035 = vmatmul.mubr.bf16.gmra.mrb[0].mxu0 %v1907
    %v2036 = vpop.f32.mrb[0].mxu0
    %v2037 = vadd.f32 0.0, %v2036
    %v2038 = vpop.f32.mrb[0].mxu0
    %v2039 = vpop.f32.mrb[0].mxu0
    %v2040 = vadd.f32 0.0, %v2039
    %v2041 = vpop.f32.mrb[0].mxu0
    %2042 = vmatprep.mubr.bf16.mxu0 0
    %2043 = vmatmul.mubr.bf16.gmra.mrb[0].mxu0 %v1910
    %v2044 = vpop.f32.mrb[0].mxu0
    %v2045 = vadd.f32 0.0, %v2044
    %v2046 = vpop.f32.mrb[0].mxu0
    %v2047 = vpop.f32.mrb[0].mxu0
    %v2048 = vadd.f32 0.0, %v2047
    %v2049 = vpop.f32.mrb[0].mxu0
    %2050 = vmatprep.mubr.bf16.mxu0 0
    %2051 = vmatmul.mubr.bf16.gmra.mrb[0].mxu0 %v1913
    %v2052 = vpop.f32.mrb[0].mxu0
    %v2053 = vadd.f32 0.0, %v2052
    %v2054 = vpop.f32.mrb[0].mxu0
    %v2055 = vpop.f32.mrb[0].mxu0
    %v2056 = vadd.f32 0.0, %v2055
    %v2057 = vpop.f32.mrb[0].mxu0
    %2058 = vmatprep.mubr.bf16.mxu0 0
    %2059 = vmatmul.mubr.bf16.gmra.mrb[0].mxu0 %v1916
    %v2060 = vpop.f32.mrb[0].mxu0
    %v2061 = vadd.f32 0.0, %v2060
    %v2062 = vpop.f32.mrb[0].mxu0
    %v2063 = vpop.f32.mrb[0].mxu0
    %v2064 = vadd.f32 0.0, %v2063
    %v2065 = vpop.f32.mrb[0].mxu0
    %2066 = vmatprep.mubr.bf16.mxu0 0
    %2067 = vmatmul.mubr.bf16.gmra.mrb[0].mxu0 %v1919
    %v2068 = vpop.f32.mrb[0].mxu0
    %v2069 = vadd.f32 0.0, %v2068
    %v2070 = vpop.f32.mrb[0].mxu0
    %v2071 = vpop.f32.mrb[0].mxu0
    %v2072 = vadd.f32 0.0, %v2071
    %v2073 = vpop.f32.mrb[0].mxu0
    %2074 = vmatprep.mubr.bf16.mxu0 0
    %2075 = vmatmul.mubr.bf16.gmra.mrb[0].mxu0 %v1922
    %v2076 = vpop.f32.mrb[0].mxu0
    %v2077 = vadd.f32 0.0, %v2076
    %v2078 = vpop.f32.mrb[0].mxu0
    %v2079 = vpop.f32.mrb[0].mxu0
    %v2080 = vadd.f32 0.0, %v2079
    %v2081 = vpop.f32.mrb[0].mxu0
    %2082 = vmatprep.mubr.bf16.mxu0 0
    %2083 = vmatmul.mubr.bf16.gmra.mrb[0].mxu0 %v1925
    %v2084 = vpop.f32.mrb[0].mxu0
    %v2085 = vadd.f32 0.0, %v2084
    %v2086 = vpop.f32.mrb[0].mxu0
    %v2087 = vpop.f32.mrb[0].mxu0
    %v2088 = vadd.f32 0.0, %v2087
    %v2089 = vpop.f32.mrb[0].mxu0
    %2090 = vdwg.mxu0
    %v2091 = vadd.f32 %v1774, %v1965
    %v2092 = vadd.f32 %v1775, %v1968
    %v2093 = vadd.f32 %v1776, %v1973
    %v2094 = vadd.f32 %v1777, %v1976
    %v2095 = vadd.f32 %v1778, %v1981
    %v2096 = vadd.f32 %v1779, %v1984
    %v2097 = vadd.f32 %v1780, %v1989
    %v2098 = vadd.f32 %v1781, %v1992
    %v2099 = vadd.f32 %v1782, %v1997
    %v2100 = vadd.f32 %v1783, %v2000
    %v2101 = vadd.f32 %v1784, %v2005
    %v2102 = vadd.f32 %v1785, %v2008
    %v2103 = vadd.f32 %v1786, %v2013
    %v2104 = vadd.f32 %v1787, %v2016
    %v2105 = vadd.f32 %v1788, %v2021
    %v2106 = vadd.f32 %v1789, %v2024
    %v2107 = vadd.f32 %v1790, %v2029
    %v2108 = vadd.f32 %v1791, %v2032
    %v2109 = vadd.f32 %v1792, %v2037
    %v2110 = vadd.f32 %v1793, %v2040
    %v2111 = vadd.f32 %v1794, %v2045
    %v2112 = vadd.f32 %v1795, %v2048
    %v2113 = vadd.f32 %v1796, %v2053
    %v2114 = vadd.f32 %v1797, %v2056
    %v2115 = vadd.f32 %v1798, %v2061
    %v2116 = vadd.f32 %v1799, %v2064
    %v2117 = vadd.f32 %v1800, %v2069
    %v2118 = vadd.f32 %v1801, %v2072
    %v2119 = vadd.f32 %v1802, %v2077
    %v2120 = vadd.f32 %v1803, %v2080
    %v2121 = vadd.f32 %v1804, %v2085
    %v2122 = vadd.f32 %v1805, %v2088
    %s2123 = scalar_lea.vmem %s2, 12
    %v2124 = vld [vmem:[%s2123] sm:$0x3]
    %vm2125 = vcmask 1044480
    %v2126 = vrot.slane %v347, 3
    %v2127 = vrot.slane %v348, 3
    %v2128 = vsel %vm2125, %v2126, %v2127
    %v2129 = vrot.slane %v349, 3
    %v2130 = vsel %vm2125, %v2127, %v2129
    %v2131 = vrot.slane %v350, 3
    %v2132 = vsel %vm2125, %v2129, %v2131
    %v2133 = vrot.slane %v351, 3
    %v2134 = vsel %vm2125, %v2131, %v2133
    %v2135 = vrot.slane %v352, 3
    %v2136 = vsel %vm2125, %v2133, %v2135
    %v2137 = vrot.slane %v353, 3
    %v2138 = vsel %vm2125, %v2135, %v2137
    %v2139 = vrot.slane %v354, 3
    %v2140 = vsel %vm2125, %v2137, %v2139
    %v2141 = vrot.slane %v371, 3
    %v2142 = vsel %vm2125, %v2139, %v2141
    %v2143 = vrot.slane %v355, 3
    %v2144 = vrot.slane %v356, 3
    %v2145 = vsel %vm2125, %v2143, %v2144
    %v2146 = vrot.slane %v357, 3
    %v2147 = vsel %vm2125, %v2144, %v2146
    %v2148 = vrot.slane %v358, 3
    %v2149 = vsel %vm2125, %v2146, %v2148
    %v2150 = vrot.slane %v359, 3
    %v2151 = vsel %vm2125, %v2148, %v2150
    %v2152 = vrot.slane %v360, 3
    %v2153 = vsel %vm2125, %v2150, %v2152
    %v2154 = vrot.slane %v361, 3
    %v2155 = vsel %vm2125, %v2152, %v2154
    %v2156 = vrot.slane %v362, 3
    %v2157 = vsel %vm2125, %v2154, %v2156
    %v2158 = vrot.slane %v372, 3
    %v2159 = vsel %vm2125, %v2156, %v2158
    %v2161 = vsel %vm513, %v2128, 0
    %v2164 = vsel %vm513, %v2130, 0
    %v2167 = vsel %vm513, %v2132, 0
    %v2170 = vsel %vm513, %v2134, 0
    %v2173 = vsel %vm513, %v2136, 0
    %v2176 = vsel %vm513, %v2138, 0
    %v2179 = vsel %vm513, %v2140, 0
    %v2182 = vsel %vm513, %v2142, 0
    %v2185 = vsel %vm513, %v2145, 0
    %v2188 = vsel %vm513, %v2147, 0
    %v2191 = vsel %vm513, %v2149, 0
    %v2194 = vsel %vm513, %v2151, 0
    %v2197 = vsel %vm513, %v2153, 0
    %v2200 = vsel %vm513, %v2155, 0
    %v2203 = vsel %vm513, %v2157, 0
    %v2206 = vsel %vm513, %v2159, 0
    %v2209 = vsel %vm562, %v2124, 0
    %2211 = vmatprep.subr.bf16.mxu0 0
    %2212 = vmatpush1.bf16.msra.mxu0 %v2209
    %2213 = vmatprep.subr.bf16.mxu0 0
    %2214 = vmatpush1.bf16.msra.mxu0 0
    %2215 = vmatprep.subr.bf16.mxu0 0
    %2216 = vmatpush1.bf16.msra.mxu0 0
    %2217 = vmatprep.subr.bf16.mxu0 0
    %2218 = vmatpush1.bf16.msra.mxu0 0
    %2219 = vmatprep.subr.bf16.mxu0 0
    %2220 = vmatpush1.bf16.msra.mxu0 0
    %2221 = vmatprep.subr.bf16.mxu0 0
    %2222 = vmatpush1.bf16.msra.mxu0 0
    %2223 = vmatprep.subr.bf16.mxu0 0
    %2224 = vmatpush1.bf16.msra.mxu0 0
    %2225 = vmatprep.subr.bf16.mxu0 0
    %2226 = vmatpush1.bf16.msra.mxu0 0
    %2227 = vmatprep.subr.bf16.mxu0 0
    %2228 = vmatpush1.bf16.msra.mxu0 0
    %2229 = vmatprep.subr.bf16.mxu0 0
    %2230 = vmatpush1.bf16.msra.mxu0 0
    %2231 = vmatprep.subr.bf16.mxu0 0
    %2232 = vmatpush1.bf16.msra.mxu0 0
    %2233 = vmatprep.subr.bf16.mxu0 0
    %2234 = vmatpush1.bf16.msra.mxu0 0
    %2235 = vmatprep.subr.bf16.mxu0 0
    %2236 = vmatpush1.bf16.msra.mxu0 0
    %2237 = vmatprep.subr.bf16.mxu0 0
    %2238 = vmatpush1.bf16.msra.mxu0 0
    %2239 = vmatprep.subr.bf16.mxu0 0
    %2240 = vmatpush1.bf16.msra.mxu0 0
    %2241 = vmatprep.subr.bf16.mxu0 0
    %2242 = vmatpush1.bf16.msra.mxu0 0
    %2243 = vmatprep.mubr.bf16.mxu0 0
    %2244 = vmatmul.mubr.bf16.gmra.mrb[0].mxu0 %v2161
    %v2245 = vpop.f32.mrb[0].mxu0
    %v2246 = vadd.f32 0.0, %v2245
    %v2247 = vpop.f32.mrb[0].mxu0
    %v2248 = vpop.f32.mrb[0].mxu0
    %v2249 = vadd.f32 0.0, %v2248
    %v2250 = vpop.f32.mrb[0].mxu0
    %2251 = vmatprep.mubr.bf16.mxu0 0
    %2252 = vmatmul.mubr.bf16.gmra.mrb[0].mxu0 %v2164
    %v2253 = vpop.f32.mrb[0].mxu0
    %v2254 = vadd.f32 0.0, %v2253
    %v2255 = vpop.f32.mrb[0].mxu0
    %v2256 = vpop.f32.mrb[0].mxu0
    %v2257 = vadd.f32 0.0, %v2256
    %v2258 = vpop.f32.mrb[0].mxu0
    %2259 = vmatprep.mubr.bf16.mxu0 0
    %2260 = vmatmul.mubr.bf16.gmra.mrb[0].mxu0 %v2167
    %v2261 = vpop.f32.mrb[0].mxu0
    %v2262 = vadd.f32 0.0, %v2261
    %v2263 = vpop.f32.mrb[0].mxu0
    %v2264 = vpop.f32.mrb[0].mxu0
    %v2265 = vadd.f32 0.0, %v2264
    %v2266 = vpop.f32.mrb[0].mxu0
    %2267 = vmatprep.mubr.bf16.mxu0 0
    %2268 = vmatmul.mubr.bf16.gmra.mrb[0].mxu0 %v2170
    %v2269 = vpop.f32.mrb[0].mxu0
    %v2270 = vadd.f32 0.0, %v2269
    %v2271 = vpop.f32.mrb[0].mxu0
    %v2272 = vpop.f32.mrb[0].mxu0
    %v2273 = vadd.f32 0.0, %v2272
    %v2274 = vpop.f32.mrb[0].mxu0
    %2275 = vmatprep.mubr.bf16.mxu0 0
    %2276 = vmatmul.mubr.bf16.gmra.mrb[0].mxu0 %v2173
    %v2277 = vpop.f32.mrb[0].mxu0
    %v2278 = vadd.f32 0.0, %v2277
    %v2279 = vpop.f32.mrb[0].mxu0
    %v2280 = vpop.f32.mrb[0].mxu0
    %v2281 = vadd.f32 0.0, %v2280
    %v2282 = vpop.f32.mrb[0].mxu0
    %2283 = vmatprep.mubr.bf16.mxu0 0
    %2284 = vmatmul.mubr.bf16.gmra.mrb[0].mxu0 %v2176
    %v2285 = vpop.f32.mrb[0].mxu0
    %v2286 = vadd.f32 0.0, %v2285
    %v2287 = vpop.f32.mrb[0].mxu0
    %v2288 = vpop.f32.mrb[0].mxu0
    %v2289 = vadd.f32 0.0, %v2288
    %v2290 = vpop.f32.mrb[0].mxu0
    %2291 = vmatprep.mubr.bf16.mxu0 0
    %2292 = vmatmul.mubr.bf16.gmra.mrb[0].mxu0 %v2179
    %v2293 = vpop.f32.mrb[0].mxu0
    %v2294 = vadd.f32 0.0, %v2293
    %v2295 = vpop.f32.mrb[0].mxu0
    %v2296 = vpop.f32.mrb[0].mxu0
    %v2297 = vadd.f32 0.0, %v2296
    %v2298 = vpop.f32.mrb[0].mxu0
    %2299 = vmatprep.mubr.bf16.mxu0 0
    %2300 = vmatmul.mubr.bf16.gmra.mrb[0].mxu0 %v2182
    %v2301 = vpop.f32.mrb[0].mxu0
    %v2302 = vadd.f32 0.0, %v2301
    %v2303 = vpop.f32.mrb[0].mxu0
    %v2304 = vpop.f32.mrb[0].mxu0
    %v2305 = vadd.f32 0.0, %v2304
    %v2306 = vpop.f32.mrb[0].mxu0
    %2307 = vmatprep.mubr.bf16.mxu0 0
    %2308 = vmatmul.mubr.bf16.gmra.mrb[0].mxu0 %v2185
    %v2309 = vpop.f32.mrb[0].mxu0
    %v2310 = vadd.f32 0.0, %v2309
    %v2311 = vpop.f32.mrb[0].mxu0
    %v2312 = vpop.f32.mrb[0].mxu0
    %v2313 = vadd.f32 0.0, %v2312
    %v2314 = vpop.f32.mrb[0].mxu0
    %2315 = vmatprep.mubr.bf16.mxu0 0
    %2316 = vmatmul.mubr.bf16.gmra.mrb[0].mxu0 %v2188
    %v2317 = vpop.f32.mrb[0].mxu0
    %v2318 = vadd.f32 0.0, %v2317
    %v2319 = vpop.f32.mrb[0].mxu0
    %v2320 = vpop.f32.mrb[0].mxu0
    %v2321 = vadd.f32 0.0, %v2320
    %v2322 = vpop.f32.mrb[0].mxu0
    %2323 = vmatprep.mubr.bf16.mxu0 0
    %2324 = vmatmul.mubr.bf16.gmra.mrb[0].mxu0 %v2191
    %v2325 = vpop.f32.mrb[0].mxu0
    %v2326 = vadd.f32 0.0, %v2325
    %v2327 = vpop.f32.mrb[0].mxu0
    %v2328 = vpop.f32.mrb[0].mxu0
    %v2329 = vadd.f32 0.0, %v2328
    %v2330 = vpop.f32.mrb[0].mxu0
    %2331 = vmatprep.mubr.bf16.mxu0 0
    %2332 = vmatmul.mubr.bf16.gmra.mrb[0].mxu0 %v2194
    %v2333 = vpop.f32.mrb[0].mxu0
    %v2334 = vadd.f32 0.0, %v2333
    %v2335 = vpop.f32.mrb[0].mxu0
    %v2336 = vpop.f32.mrb[0].mxu0
    %v2337 = vadd.f32 0.0, %v2336
    %v2338 = vpop.f32.mrb[0].mxu0
    %2339 = vmatprep.mubr.bf16.mxu0 0
    %2340 = vmatmul.mubr.bf16.gmra.mrb[0].mxu0 %v2197
    %v2341 = vpop.f32.mrb[0].mxu0
    %v2342 = vadd.f32 0.0, %v2341
    %v2343 = vpop.f32.mrb[0].mxu0
    %v2344 = vpop.f32.mrb[0].mxu0
    %v2345 = vadd.f32 0.0, %v2344
    %v2346 = vpop.f32.mrb[0].mxu0
    %2347 = vmatprep.mubr.bf16.mxu0 0
    %2348 = vmatmul.mubr.bf16.gmra.mrb[0].mxu0 %v2200
    %v2349 = vpop.f32.mrb[0].mxu0
    %v2350 = vadd.f32 0.0, %v2349
    %v2351 = vpop.f32.mrb[0].mxu0
    %v2352 = vpop.f32.mrb[0].mxu0
    %v2353 = vadd.f32 0.0, %v2352
    %v2354 = vpop.f32.mrb[0].mxu0
    %2355 = vmatprep.mubr.bf16.mxu0 0
    %2356 = vmatmul.mubr.bf16.gmra.mrb[0].mxu0 %v2203
    %v2357 = vpop.f32.mrb[0].mxu0
    %v2358 = vadd.f32 0.0, %v2357
    %v2359 = vpop.f32.mrb[0].mxu0
    %v2360 = vpop.f32.mrb[0].mxu0
    %v2361 = vadd.f32 0.0, %v2360
    %v2362 = vpop.f32.mrb[0].mxu0
    %2363 = vmatprep.mubr.bf16.mxu0 0
    %2364 = vmatmul.mubr.bf16.gmra.mrb[0].mxu0 %v2206
    %v2365 = vpop.f32.mrb[0].mxu0
    %v2366 = vadd.f32 0.0, %v2365
    %v2367 = vpop.f32.mrb[0].mxu0
    %v2368 = vpop.f32.mrb[0].mxu0
    %v2369 = vadd.f32 0.0, %v2368
    %v2370 = vpop.f32.mrb[0].mxu0
    %2371 = vdwg.mxu0
    %v2372 = vadd.f32 %v2091, %v2246
    %v2373 = vadd.f32 %v2092, %v2249
    %v2374 = vadd.f32 %v2093, %v2254
    %v2375 = vadd.f32 %v2094, %v2257
    %v2376 = vadd.f32 %v2095, %v2262
    %v2377 = vadd.f32 %v2096, %v2265
    %v2378 = vadd.f32 %v2097, %v2270
    %v2379 = vadd.f32 %v2098, %v2273
    %v2380 = vadd.f32 %v2099, %v2278
    %v2381 = vadd.f32 %v2100, %v2281
    %v2382 = vadd.f32 %v2101, %v2286
    %v2383 = vadd.f32 %v2102, %v2289
    %v2384 = vadd.f32 %v2103, %v2294
    %v2385 = vadd.f32 %v2104, %v2297
    %v2386 = vadd.f32 %v2105, %v2302
    %v2387 = vadd.f32 %v2106, %v2305
    %v2388 = vadd.f32 %v2107, %v2310
    %v2389 = vadd.f32 %v2108, %v2313
    %v2390 = vadd.f32 %v2109, %v2318
    %v2391 = vadd.f32 %v2110, %v2321
    %v2392 = vadd.f32 %v2111, %v2326
    %v2393 = vadd.f32 %v2112, %v2329
    %v2394 = vadd.f32 %v2113, %v2334
    %v2395 = vadd.f32 %v2114, %v2337
    %v2396 = vadd.f32 %v2115, %v2342
    %v2397 = vadd.f32 %v2116, %v2345
    %v2398 = vadd.f32 %v2117, %v2350
    %v2399 = vadd.f32 %v2118, %v2353
    %v2400 = vadd.f32 %v2119, %v2358
    %v2401 = vadd.f32 %v2120, %v2361
    %v2402 = vadd.f32 %v2121, %v2366
    %v2403 = vadd.f32 %v2122, %v2369
    %s2404 = scalar_lea.vmem %s2, 14
    %v2405 = vld [vmem:[%s2404] sm:$0x3]
    %vm2406 = vsmask.f32 4352
    %v2407 = vrot.slane %v378, 3
    %v2408 = vrot.slane %v380, 4
    %v2409 = vor.u32 %v2407, %v2408
    %v2410 = vrot.slane %v389, 3
    %v2411 = vrot.slane %v385, 4
    %v2412 = vor.u32 %v2410, %v2411
    %v2413 = vsel %vm2406, %v2409, %v2412
    %v2414 = vrot.slane %v397, 3
    %v2415 = vrot.slane %v393, 4
    %v2416 = vor.u32 %v2414, %v2415
    %v2417 = vsel %vm2406, %v2412, %v2416
    %v2418 = vrot.slane %v405, 3
    %v2419 = vrot.slane %v401, 4
    %v2420 = vor.u32 %v2418, %v2419
    %v2421 = vsel %vm2406, %v2416, %v2420
    %v2422 = vrot.slane %v413, 3
    %v2423 = vrot.slane %v409, 4
    %v2424 = vor.u32 %v2422, %v2423
    %v2425 = vsel %vm2406, %v2420, %v2424
    %v2426 = vrot.slane %v421, 3
    %v2427 = vrot.slane %v417, 4
    %v2428 = vor.u32 %v2426, %v2427
    %v2429 = vsel %vm2406, %v2424, %v2428
    %v2430 = vrot.slane %v429, 3
    %v2431 = vrot.slane %v425, 4
    %v2432 = vor.u32 %v2430, %v2431
    %v2433 = vsel %vm2406, %v2428, %v2432
    %v2434 = vrot.slane %v437, 3
    %v2435 = vrot.slane %v433, 4
    %v2436 = vor.u32 %v2434, %v2435
    %v2437 = vsel %vm2406, %v2432, %v2436
    %v2438 = vrot.slane %v1238, 3
    %v2439 = vrot.slane %v441, 4
    %v2440 = vor.u32 %v2438, %v2439
    %v2441 = vsel %vm2406, %v2436, %v2440
    %v2442 = vrot.slane %v446, 3
    %v2443 = vrot.slane %v448, 4
    %v2444 = vor.u32 %v2442, %v2443
    %v2445 = vrot.slane %v457, 3
    %v2446 = vrot.slane %v453, 4
    %v2447 = vor.u32 %v2445, %v2446
    %v2448 = vsel %vm2406, %v2444, %v2447
    %v2449 = vrot.slane %v465, 3
    %v2450 = vrot.slane %v461, 4
    %v2451 = vor.u32 %v2449, %v2450
    %v2452 = vsel %vm2406, %v2447, %v2451
    %v2453 = vrot.slane %v473, 3
    %v2454 = vrot.slane %v469, 4
    %v2455 = vor.u32 %v2453, %v2454
    %v2456 = vsel %vm2406, %v2451, %v2455
    %v2457 = vrot.slane %v481, 3
    %v2458 = vrot.slane %v477, 4
    %v2459 = vor.u32 %v2457, %v2458
    %v2460 = vsel %vm2406, %v2455, %v2459
    %v2461 = vrot.slane %v489, 3
    %v2462 = vrot.slane %v485, 4
    %v2463 = vor.u32 %v2461, %v2462
    %v2464 = vsel %vm2406, %v2459, %v2463
    %v2465 = vrot.slane %v497, 3
    %v2466 = vrot.slane %v493, 4
    %v2467 = vor.u32 %v2465, %v2466
    %v2468 = vsel %vm2406, %v2463, %v2467
    %v2469 = vrot.slane %v505, 3
    %v2470 = vrot.slane %v501, 4
    %v2471 = vor.u32 %v2469, %v2470
    %v2472 = vsel %vm2406, %v2467, %v2471
    %v2473 = vrot.slane %v1275, 3
    %v2474 = vrot.slane %v509, 4
    %v2475 = vor.u32 %v2473, %v2474
    %v2476 = vsel %vm2406, %v2471, %v2475
    %v2478 = vsel %vm513, %v2413, 0
    %v2481 = vsel %vm513, %v2417, 0
    %v2484 = vsel %vm513, %v2421, 0
    %v2487 = vsel %vm513, %v2425, 0
    %v2490 = vsel %vm513, %v2429, 0
    %v2493 = vsel %vm513, %v2433, 0
    %v2496 = vsel %vm513, %v2437, 0
    %v2499 = vsel %vm513, %v2441, 0
    %v2502 = vsel %vm513, %v2448, 0
    %v2505 = vsel %vm513, %v2452, 0
    %v2508 = vsel %vm513, %v2456, 0
    %v2511 = vsel %vm513, %v2460, 0
    %v2514 = vsel %vm513, %v2464, 0
    %v2517 = vsel %vm513, %v2468, 0
    %v2520 = vsel %vm513, %v2472, 0
    %v2523 = vsel %vm513, %v2476, 0
    %v2526 = vsel %vm562, %v2405, 0
    %2528 = vmatprep.subr.bf16.mxu0 0
    %2529 = vmatpush1.bf16.msra.mxu0 %v2526
    %2530 = vmatprep.subr.bf16.mxu0 0
    %2531 = vmatpush1.bf16.msra.mxu0 0
    %2532 = vmatprep.subr.bf16.mxu0 0
    %2533 = vmatpush1.bf16.msra.mxu0 0
    %2534 = vmatprep.subr.bf16.mxu0 0
    %2535 = vmatpush1.bf16.msra.mxu0 0
    %2536 = vmatprep.subr.bf16.mxu0 0
    %2537 = vmatpush1.bf16.msra.mxu0 0
    %2538 = vmatprep.subr.bf16.mxu0 0
    %2539 = vmatpush1.bf16.msra.mxu0 0
    %2540 = vmatprep.subr.bf16.mxu0 0
    %2541 = vmatpush1.bf16.msra.mxu0 0
    %2542 = vmatprep.subr.bf16.mxu0 0
    %2543 = vmatpush1.bf16.msra.mxu0 0
    %2544 = vmatprep.subr.bf16.mxu0 0
    %2545 = vmatpush1.bf16.msra.mxu0 0
    %2546 = vmatprep.subr.bf16.mxu0 0
    %2547 = vmatpush1.bf16.msra.mxu0 0
    %2548 = vmatprep.subr.bf16.mxu0 0
    %2549 = vmatpush1.bf16.msra.mxu0 0
    %2550 = vmatprep.subr.bf16.mxu0 0
    %2551 = vmatpush1.bf16.msra.mxu0 0
    %2552 = vmatprep.subr.bf16.mxu0 0
    %2553 = vmatpush1.bf16.msra.mxu0 0
    %2554 = vmatprep.subr.bf16.mxu0 0
    %2555 = vmatpush1.bf16.msra.mxu0 0
    %2556 = vmatprep.subr.bf16.mxu0 0
    %2557 = vmatpush1.bf16.msra.mxu0 0
    %2558 = vmatprep.subr.bf16.mxu0 0
    %2559 = vmatpush1.bf16.msra.mxu0 0
    %2560 = vmatprep.mubr.bf16.mxu0 0
    %2561 = vmatmul.mubr.bf16.gmra.mrb[0].mxu0 %v2478
    %v2562 = vpop.f32.mrb[0].mxu0
    %v2563 = vadd.f32 0.0, %v2562
    %v2564 = vpop.f32.mrb[0].mxu0
    %v2565 = vpop.f32.mrb[0].mxu0
    %v2566 = vadd.f32 0.0, %v2565
    %v2567 = vpop.f32.mrb[0].mxu0
    %2568 = vmatprep.mubr.bf16.mxu0 0
    %2569 = vmatmul.mubr.bf16.gmra.mrb[0].mxu0 %v2481
    %v2570 = vpop.f32.mrb[0].mxu0
    %v2571 = vadd.f32 0.0, %v2570
    %v2572 = vpop.f32.mrb[0].mxu0
    %v2573 = vpop.f32.mrb[0].mxu0
    %v2574 = vadd.f32 0.0, %v2573
    %v2575 = vpop.f32.mrb[0].mxu0
    %2576 = vmatprep.mubr.bf16.mxu0 0
    %2577 = vmatmul.mubr.bf16.gmra.mrb[0].mxu0 %v2484
    %v2578 = vpop.f32.mrb[0].mxu0
    %v2579 = vadd.f32 0.0, %v2578
    %v2580 = vpop.f32.mrb[0].mxu0
    %v2581 = vpop.f32.mrb[0].mxu0
    %v2582 = vadd.f32 0.0, %v2581
    %v2583 = vpop.f32.mrb[0].mxu0
    %2584 = vmatprep.mubr.bf16.mxu0 0
    %2585 = vmatmul.mubr.bf16.gmra.mrb[0].mxu0 %v2487
    %v2586 = vpop.f32.mrb[0].mxu0
    %v2587 = vadd.f32 0.0, %v2586
    %v2588 = vpop.f32.mrb[0].mxu0
    %v2589 = vpop.f32.mrb[0].mxu0
    %v2590 = vadd.f32 0.0, %v2589
    %v2591 = vpop.f32.mrb[0].mxu0
    %2592 = vmatprep.mubr.bf16.mxu0 0
    %2593 = vmatmul.mubr.bf16.gmra.mrb[0].mxu0 %v2490
    %v2594 = vpop.f32.mrb[0].mxu0
    %v2595 = vadd.f32 0.0, %v2594
    %v2596 = vpop.f32.mrb[0].mxu0
    %v2597 = vpop.f32.mrb[0].mxu0
    %v2598 = vadd.f32 0.0, %v2597
    %v2599 = vpop.f32.mrb[0].mxu0
    %2600 = vmatprep.mubr.bf16.mxu0 0
    %2601 = vmatmul.mubr.bf16.gmra.mrb[0].mxu0 %v2493
    %v2602 = vpop.f32.mrb[0].mxu0
    %v2603 = vadd.f32 0.0, %v2602
    %v2604 = vpop.f32.mrb[0].mxu0
    %v2605 = vpop.f32.mrb[0].mxu0
    %v2606 = vadd.f32 0.0, %v2605
    %v2607 = vpop.f32.mrb[0].mxu0
    %2608 = vmatprep.mubr.bf16.mxu0 0
    %2609 = vmatmul.mubr.bf16.gmra.mrb[0].mxu0 %v2496
    %v2610 = vpop.f32.mrb[0].mxu0
    %v2611 = vadd.f32 0.0, %v2610
    %v2612 = vpop.f32.mrb[0].mxu0
    %v2613 = vpop.f32.mrb[0].mxu0
    %v2614 = vadd.f32 0.0, %v2613
    %v2615 = vpop.f32.mrb[0].mxu0
    %2616 = vmatprep.mubr.bf16.mxu0 0
    %2617 = vmatmul.mubr.bf16.gmra.mrb[0].mxu0 %v2499
    %v2618 = vpop.f32.mrb[0].mxu0
    %v2619 = vadd.f32 0.0, %v2618
    %v2620 = vpop.f32.mrb[0].mxu0
    %v2621 = vpop.f32.mrb[0].mxu0
    %v2622 = vadd.f32 0.0, %v2621
    %v2623 = vpop.f32.mrb[0].mxu0
    %2624 = vmatprep.mubr.bf16.mxu0 0
    %2625 = vmatmul.mubr.bf16.gmra.mrb[0].mxu0 %v2502
    %v2626 = vpop.f32.mrb[0].mxu0
    %v2627 = vadd.f32 0.0, %v2626
    %v2628 = vpop.f32.mrb[0].mxu0
    %v2629 = vpop.f32.mrb[0].mxu0
    %v2630 = vadd.f32 0.0, %v2629
    %v2631 = vpop.f32.mrb[0].mxu0
    %2632 = vmatprep.mubr.bf16.mxu0 0
    %2633 = vmatmul.mubr.bf16.gmra.mrb[0].mxu0 %v2505
    %v2634 = vpop.f32.mrb[0].mxu0
    %v2635 = vadd.f32 0.0, %v2634
    %v2636 = vpop.f32.mrb[0].mxu0
    %v2637 = vpop.f32.mrb[0].mxu0
    %v2638 = vadd.f32 0.0, %v2637
    %v2639 = vpop.f32.mrb[0].mxu0
    %2640 = vmatprep.mubr.bf16.mxu0 0
    %2641 = vmatmul.mubr.bf16.gmra.mrb[0].mxu0 %v2508
    %v2642 = vpop.f32.mrb[0].mxu0
    %v2643 = vadd.f32 0.0, %v2642
    %v2644 = vpop.f32.mrb[0].mxu0
    %v2645 = vpop.f32.mrb[0].mxu0
    %v2646 = vadd.f32 0.0, %v2645
    %v2647 = vpop.f32.mrb[0].mxu0
    %2648 = vmatprep.mubr.bf16.mxu0 0
    %2649 = vmatmul.mubr.bf16.gmra.mrb[0].mxu0 %v2511
    %v2650 = vpop.f32.mrb[0].mxu0
    %v2651 = vadd.f32 0.0, %v2650
    %v2652 = vpop.f32.mrb[0].mxu0
    %v2653 = vpop.f32.mrb[0].mxu0
    %v2654 = vadd.f32 0.0, %v2653
    %v2655 = vpop.f32.mrb[0].mxu0
    %2656 = vmatprep.mubr.bf16.mxu0 0
    %2657 = vmatmul.mubr.bf16.gmra.mrb[0].mxu0 %v2514
    %v2658 = vpop.f32.mrb[0].mxu0
    %v2659 = vadd.f32 0.0, %v2658
    %v2660 = vpop.f32.mrb[0].mxu0
    %v2661 = vpop.f32.mrb[0].mxu0
    %v2662 = vadd.f32 0.0, %v2661
    %v2663 = vpop.f32.mrb[0].mxu0
    %2664 = vmatprep.mubr.bf16.mxu0 0
    %2665 = vmatmul.mubr.bf16.gmra.mrb[0].mxu0 %v2517
    %v2666 = vpop.f32.mrb[0].mxu0
    %v2667 = vadd.f32 0.0, %v2666
    %v2668 = vpop.f32.mrb[0].mxu0
    %v2669 = vpop.f32.mrb[0].mxu0
    %v2670 = vadd.f32 0.0, %v2669
    %v2671 = vpop.f32.mrb[0].mxu0
    %2672 = vmatprep.mubr.bf16.mxu0 0
    %2673 = vmatmul.mubr.bf16.gmra.mrb[0].mxu0 %v2520
    %v2674 = vpop.f32.mrb[0].mxu0
    %v2675 = vadd.f32 0.0, %v2674
    %v2676 = vpop.f32.mrb[0].mxu0
    %v2677 = vpop.f32.mrb[0].mxu0
    %v2678 = vadd.f32 0.0, %v2677
    %v2679 = vpop.f32.mrb[0].mxu0
    %2680 = vmatprep.mubr.bf16.mxu0 0
    %2681 = vmatmul.mubr.bf16.gmra.mrb[0].mxu0 %v2523
    %v2682 = vpop.f32.mrb[0].mxu0
    %v2683 = vadd.f32 0.0, %v2682
    %v2684 = vpop.f32.mrb[0].mxu0
    %v2685 = vpop.f32.mrb[0].mxu0
    %v2686 = vadd.f32 0.0, %v2685
    %v2687 = vpop.f32.mrb[0].mxu0
    %2688 = vdwg.mxu0
    %v2689 = vadd.f32 %v2372, %v2563
    %v2690 = vadd.f32 %v2373, %v2566
    %v2691 = vadd.f32 %v2374, %v2571
    %v2692 = vadd.f32 %v2375, %v2574
    %v2693 = vadd.f32 %v2376, %v2579
    %v2694 = vadd.f32 %v2377, %v2582
    %v2695 = vadd.f32 %v2378, %v2587
    %v2696 = vadd.f32 %v2379, %v2590
    %v2697 = vadd.f32 %v2380, %v2595
    %v2698 = vadd.f32 %v2381, %v2598
    %v2699 = vadd.f32 %v2382, %v2603
    %v2700 = vadd.f32 %v2383, %v2606
    %v2701 = vadd.f32 %v2384, %v2611
    %v2702 = vadd.f32 %v2385, %v2614
    %v2703 = vadd.f32 %v2386, %v2619
    %v2704 = vadd.f32 %v2387, %v2622
    %v2705 = vadd.f32 %v2388, %v2627
    %v2706 = vadd.f32 %v2389, %v2630
    %v2707 = vadd.f32 %v2390, %v2635
    %v2708 = vadd.f32 %v2391, %v2638
    %v2709 = vadd.f32 %v2392, %v2643
    %v2710 = vadd.f32 %v2393, %v2646
    %v2711 = vadd.f32 %v2394, %v2651
    %v2712 = vadd.f32 %v2395, %v2654
    %v2713 = vadd.f32 %v2396, %v2659
    %v2714 = vadd.f32 %v2397, %v2662
    %v2715 = vadd.f32 %v2398, %v2667
    %v2716 = vadd.f32 %v2399, %v2670
    %v2717 = vadd.f32 %v2400, %v2675
    %v2718 = vadd.f32 %v2401, %v2678
    %v2719 = vadd.f32 %v2402, %v2683
    %v2720 = vadd.f32 %v2403, %v2686
    %v2721 = vld [vmem:[%s3] sm:$0x1]
    %v2723 = vlaneseq
    %v2724 = vshrl.u32 %v2723, 7
    %v2725 = vsub.s32 0, %v2724
    %v2726 = vrot.slane %v2721, %v2725
    %v2728 = vmul.f32 %v2689, %v2726
    %v2729 = vmul.f32 %v2690, %v2726
    %v2730 = vmul.f32 %v2691, %v2726
    %v2731 = vmul.f32 %v2692, %v2726
    %v2732 = vmul.f32 %v2693, %v2726
    %v2733 = vmul.f32 %v2694, %v2726
    %v2734 = vmul.f32 %v2695, %v2726
    %v2735 = vmul.f32 %v2696, %v2726
    %v2736 = vmul.f32 %v2697, %v2726
    %v2737 = vmul.f32 %v2698, %v2726
    %v2738 = vmul.f32 %v2699, %v2726
    %v2739 = vmul.f32 %v2700, %v2726
    %v2740 = vmul.f32 %v2701, %v2726
    %v2741 = vmul.f32 %v2702, %v2726
    %v2742 = vmul.f32 %v2703, %v2726
    %v2743 = vmul.f32 %v2704, %v2726
    %v2744 = vmul.f32 %v2705, %v2726
    %v2745 = vmul.f32 %v2706, %v2726
    %v2746 = vmul.f32 %v2707, %v2726
    %v2747 = vmul.f32 %v2708, %v2726
    %v2748 = vmul.f32 %v2709, %v2726
    %v2749 = vmul.f32 %v2710, %v2726
    %v2750 = vmul.f32 %v2711, %v2726
    %v2751 = vmul.f32 %v2712, %v2726
    %v2752 = vmul.f32 %v2713, %v2726
    %v2753 = vmul.f32 %v2714, %v2726
    %v2754 = vmul.f32 %v2715, %v2726
    %v2755 = vmul.f32 %v2716, %v2726
    %v2756 = vmul.f32 %v2717, %v2726
    %v2757 = vmul.f32 %v2718, %v2726
    %v2758 = vmul.f32 %v2719, %v2726
    %v2759 = vmul.f32 %v2720, %v2726
    %v2760 = vld [vmem:[%s4] sm:$0x1]
    %v2762 = vlaneseq
    %v2763 = vshrl.u32 %v2762, 7
    %v2764 = vsub.s32 0, %v2763
    %v2765 = vrot.slane %v2760, %v2764
    %v2767 = vadd.f32 %v2728, %v2765
    %v2768 = vadd.f32 %v2729, %v2765
    %v2769 = vadd.f32 %v2730, %v2765
    %v2770 = vadd.f32 %v2731, %v2765
    %v2771 = vadd.f32 %v2732, %v2765
    %v2772 = vadd.f32 %v2733, %v2765
    %v2773 = vadd.f32 %v2734, %v2765
    %v2774 = vadd.f32 %v2735, %v2765
    %v2775 = vadd.f32 %v2736, %v2765
    %v2776 = vadd.f32 %v2737, %v2765
    %v2777 = vadd.f32 %v2738, %v2765
    %v2778 = vadd.f32 %v2739, %v2765
    %v2779 = vadd.f32 %v2740, %v2765
    %v2780 = vadd.f32 %v2741, %v2765
    %v2781 = vadd.f32 %v2742, %v2765
    %v2782 = vadd.f32 %v2743, %v2765
    %v2783 = vadd.f32 %v2744, %v2765
    %v2784 = vadd.f32 %v2745, %v2765
    %v2785 = vadd.f32 %v2746, %v2765
    %v2786 = vadd.f32 %v2747, %v2765
    %v2787 = vadd.f32 %v2748, %v2765
    %v2788 = vadd.f32 %v2749, %v2765
    %v2789 = vadd.f32 %v2750, %v2765
    %v2790 = vadd.f32 %v2751, %v2765
    %v2791 = vadd.f32 %v2752, %v2765
    %v2792 = vadd.f32 %v2753, %v2765
    %v2793 = vadd.f32 %v2754, %v2765
    %v2794 = vadd.f32 %v2755, %v2765
    %v2795 = vadd.f32 %v2756, %v2765
    %v2796 = vadd.f32 %v2757, %v2765
    %v2797 = vadd.f32 %v2758, %v2765
    %v2798 = vadd.f32 %v2759, %v2765
    %v2799 = vmax.f32 %v2767, 0.0
    %v2800 = vmax.f32 %v2768, 0.0
    %v2801 = vmax.f32 %v2769, 0.0
    %v2802 = vmax.f32 %v2770, 0.0
    %v2803 = vmax.f32 %v2771, 0.0
    %v2804 = vmax.f32 %v2772, 0.0
    %v2805 = vmax.f32 %v2773, 0.0
    %v2806 = vmax.f32 %v2774, 0.0
    %v2807 = vmax.f32 %v2775, 0.0
    %v2808 = vmax.f32 %v2776, 0.0
    %v2809 = vmax.f32 %v2777, 0.0
    %v2810 = vmax.f32 %v2778, 0.0
    %v2811 = vmax.f32 %v2779, 0.0
    %v2812 = vmax.f32 %v2780, 0.0
    %v2813 = vmax.f32 %v2781, 0.0
    %v2814 = vmax.f32 %v2782, 0.0
    %v2815 = vmax.f32 %v2783, 0.0
    %v2816 = vmax.f32 %v2784, 0.0
    %v2817 = vmax.f32 %v2785, 0.0
    %v2818 = vmax.f32 %v2786, 0.0
    %v2819 = vmax.f32 %v2787, 0.0
    %v2820 = vmax.f32 %v2788, 0.0
    %v2821 = vmax.f32 %v2789, 0.0
    %v2822 = vmax.f32 %v2790, 0.0
    %v2823 = vmax.f32 %v2791, 0.0
    %v2824 = vmax.f32 %v2792, 0.0
    %v2825 = vmax.f32 %v2793, 0.0
    %v2826 = vmax.f32 %v2794, 0.0
    %v2827 = vmax.f32 %v2795, 0.0
    %v2828 = vmax.f32 %v2796, 0.0
    %v2829 = vmax.f32 %v2797, 0.0
    %v2830 = vmax.f32 %v2798, 0.0
    %vm2831 = vcmask 130048
    %2832 = vst.msk [vmem:[#allocation2] sm:$0xff] %vm2831, %v2799
    %2833 = vst.msk [vmem:[#allocation2 + $0x8] sm:$0xff] %vm2831, %v2800
    %2834 = vst.msk [vmem:[#allocation2 + $0x10] sm:$0xff] %vm2831, %v2801
    %2835 = vst.msk [vmem:[#allocation2 + $0x18] sm:$0xff] %vm2831, %v2802
    %2836 = vst.msk [vmem:[#allocation2 + $0x20] sm:$0xff] %vm2831, %v2803
    %2837 = vst.msk [vmem:[#allocation2 + $0x28] sm:$0xff] %vm2831, %v2804
    %2838 = vst.msk [vmem:[#allocation2 + $0x30] sm:$0xff] %vm2831, %v2805
    %2839 = vst.msk [vmem:[#allocation2 + $0x38] sm:$0xff] %vm2831, %v2806
    %2840 = vst.msk [vmem:[#allocation2 + $0x40] sm:$0xff] %vm2831, %v2807
    %2841 = vst.msk [vmem:[#allocation2 + $0x48] sm:$0xff] %vm2831, %v2808
    %2842 = vst.msk [vmem:[#allocation2 + $0x50] sm:$0xff] %vm2831, %v2809
    %2843 = vst.msk [vmem:[#allocation2 + $0x58] sm:$0xff] %vm2831, %v2810
    %2844 = vst.msk [vmem:[#allocation2 + $0x60] sm:$0xff] %vm2831, %v2811
    %2845 = vst.msk [vmem:[#allocation2 + $0x68] sm:$0xff] %vm2831, %v2812
    %2846 = vst.msk [vmem:[#allocation2 + $0x70] sm:$0xff] %vm2831, %v2813
    %2847 = vst.msk [vmem:[#allocation2 + $0x78] sm:$0xff] %vm2831, %v2814
    %2848 = vst.msk [vmem:[#allocation2 + $0x80] sm:$0xff] %vm2831, %v2815
    %2849 = vst.msk [vmem:[#allocation2 + $0x88] sm:$0xff] %vm2831, %v2816
    %2850 = vst.msk [vmem:[#allocation2 + $0x90] sm:$0xff] %vm2831, %v2817
    %2851 = vst.msk [vmem:[#allocation2 + $0x98] sm:$0xff] %vm2831, %v2818
    %2852 = vst.msk [vmem:[#allocation2 + $0xa0] sm:$0xff] %vm2831, %v2819
    %2853 = vst.msk [vmem:[#allocation2 + $0xa8] sm:$0xff] %vm2831, %v2820
    %2854 = vst.msk [vmem:[#allocation2 + $0xb0] sm:$0xff] %vm2831, %v2821
    %2855 = vst.msk [vmem:[#allocation2 + $0xb8] sm:$0xff] %vm2831, %v2822
    %2856 = vst.msk [vmem:[#allocation2 + $0xc0] sm:$0xff] %vm2831, %v2823
    %2857 = vst.msk [vmem:[#allocation2 + $0xc8] sm:$0xff] %vm2831, %v2824
    %2858 = vst.msk [vmem:[#allocation2 + $0xd0] sm:$0xff] %vm2831, %v2825
    %2859 = vst.msk [vmem:[#allocation2 + $0xd8] sm:$0xff] %vm2831, %v2826
    %2860 = vst.msk [vmem:[#allocation2 + $0xe0] sm:$0xff] %vm2831, %v2827
    %2861 = vst.msk [vmem:[#allocation2 + $0xe8] sm:$0xff] %vm2831, %v2828
    %2862 = vst.msk [vmem:[#allocation2 + $0xf0] sm:$0xff] %vm2831, %v2829
    %2863 = vst.msk [vmem:[#allocation2 + $0xf8] sm:$0xff] %vm2831, %v2830
    %v2864 = vld [vmem:[#allocation2] ss:$16 sm:$0x3]
    %v2865 = vld [vmem:[#allocation2] ss:$16 sm:$0xc]
    %v2866 = vor.u32 %v2864, %v2865
    %v2867 = vld [vmem:[#allocation2] ss:$16 sm:$0x30]
    %v2868 = vor.u32 %v2866, %v2867
    %v2869 = vld [vmem:[#allocation2] ss:$16 sm:$0xc0]
    %v2870 = vor.u32 %v2868, %v2869
    %s2871 = scalar_lea.vmem [#allocation2], 128
    %v2872 = vld [vmem:[%s2871] ss:$16 sm:$0x3]
    %v2873 = vld [vmem:[%s2871] ss:$16 sm:$0xc]
    %v2874 = vor.u32 %v2872, %v2873
    %v2875 = vld [vmem:[%s2871] ss:$16 sm:$0x30]
    %v2876 = vor.u32 %v2874, %v2875
    %v2877 = vld [vmem:[%s2871] ss:$16 sm:$0xc0]
    %v2878 = vor.u32 %v2876, %v2877
    %s2879 = scalar_lea.vmem [#allocation2], 1
    %v2880 = vld [vmem:[%s2879] ss:$16 sm:$0x3]
    %v2881 = vld [vmem:[%s2879] ss:$16 sm:$0xc]
    %v2882 = vor.u32 %v2880, %v2881
    %v2883 = vld [vmem:[%s2879] ss:$16 sm:$0x30]
    %v2884 = vor.u32 %v2882, %v2883
    %v2885 = vld [vmem:[%s2879] ss:$16 sm:$0xc0]
    %v2886 = vor.u32 %v2884, %v2885
    %s2887 = scalar_lea.vmem [#allocation2], 129
    %v2888 = vld [vmem:[%s2887] ss:$16 sm:$0x3]
    %v2889 = vld [vmem:[%s2887] ss:$16 sm:$0xc]
    %v2890 = vor.u32 %v2888, %v2889
    %v2891 = vld [vmem:[%s2887] ss:$16 sm:$0x30]
    %v2892 = vor.u32 %v2890, %v2891
    %v2893 = vld [vmem:[%s2887] ss:$16 sm:$0xc0]
    %v2894 = vor.u32 %v2892, %v2893
    %v2895 = vmax.f32 %v2870, %v2886
    %v2896 = vmax.f32 %v2878, %v2894
    %s2897 = scalar_lea.vmem [#allocation2], 2
    %v2898 = vld [vmem:[%s2897] ss:$16 sm:$0x3]
    %v2899 = vld [vmem:[%s2897] ss:$16 sm:$0xc]
    %v2900 = vor.u32 %v2898, %v2899
    %v2901 = vld [vmem:[%s2897] ss:$16 sm:$0x30]
    %v2902 = vor.u32 %v2900, %v2901
    %v2903 = vld [vmem:[%s2897] ss:$16 sm:$0xc0]
    %v2904 = vor.u32 %v2902, %v2903
    %s2905 = scalar_lea.vmem [#allocation2], 130
    %v2906 = vld [vmem:[%s2905] ss:$16 sm:$0x3]
    %v2907 = vld [vmem:[%s2905] ss:$16 sm:$0xc]
    %v2908 = vor.u32 %v2906, %v2907
    %v2909 = vld [vmem:[%s2905] ss:$16 sm:$0x30]
    %v2910 = vor.u32 %v2908, %v2909
    %v2911 = vld [vmem:[%s2905] ss:$16 sm:$0xc0]
    %v2912 = vor.u32 %v2910, %v2911
    %s2913 = scalar_lea.vmem [#allocation2], 3
    %v2914 = vld [vmem:[%s2913] ss:$16 sm:$0x3]
    %v2915 = vld [vmem:[%s2913] ss:$16 sm:$0xc]
    %v2916 = vor.u32 %v2914, %v2915
    %v2917 = vld [vmem:[%s2913] ss:$16 sm:$0x30]
    %v2918 = vor.u32 %v2916, %v2917
    %v2919 = vld [vmem:[%s2913] ss:$16 sm:$0xc0]
    %v2920 = vor.u32 %v2918, %v2919
    %s2921 = scalar_lea.vmem [#allocation2], 131
    %v2922 = vld [vmem:[%s2921] ss:$16 sm:$0x3]
    %v2923 = vld [vmem:[%s2921] ss:$16 sm:$0xc]
    %v2924 = vor.u32 %v2922, %v2923
    %v2925 = vld [vmem:[%s2921] ss:$16 sm:$0x30]
    %v2926 = vor.u32 %v2924, %v2925
    %v2927 = vld [vmem:[%s2921] ss:$16 sm:$0xc0]
    %v2928 = vor.u32 %v2926, %v2927
    %v2929 = vmax.f32 %v2904, %v2920
    %v2930 = vmax.f32 %v2912, %v2928
    %s2931 = scalar_lea.vmem [#allocation2], 4
    %v2932 = vld [vmem:[%s2931] ss:$16 sm:$0x3]
    %v2933 = vld [vmem:[%s2931] ss:$16 sm:$0xc]
    %v2934 = vor.u32 %v2932, %v2933
    %v2935 = vld [vmem:[%s2931] ss:$16 sm:$0x30]
    %v2936 = vor.u32 %v2934, %v2935
    %v2937 = vld [vmem:[%s2931] ss:$16 sm:$0xc0]
    %v2938 = vor.u32 %v2936, %v2937
    %s2939 = scalar_lea.vmem [#allocation2], 132
    %v2940 = vld [vmem:[%s2939] ss:$16 sm:$0x3]
    %v2941 = vld [vmem:[%s2939] ss:$16 sm:$0xc]
    %v2942 = vor.u32 %v2940, %v2941
    %v2943 = vld [vmem:[%s2939] ss:$16 sm:$0x30]
    %v2944 = vor.u32 %v2942, %v2943
    %v2945 = vld [vmem:[%s2939] ss:$16 sm:$0xc0]
    %v2946 = vor.u32 %v2944, %v2945
    %s2947 = scalar_lea.vmem [#allocation2], 5
    %v2948 = vld [vmem:[%s2947] ss:$16 sm:$0x3]
    %v2949 = vld [vmem:[%s2947] ss:$16 sm:$0xc]
    %v2950 = vor.u32 %v2948, %v2949
    %v2951 = vld [vmem:[%s2947] ss:$16 sm:$0x30]
    %v2952 = vor.u32 %v2950, %v2951
    %v2953 = vld [vmem:[%s2947] ss:$16 sm:$0xc0]
    %v2954 = vor.u32 %v2952, %v2953
    %s2955 = scalar_lea.vmem [#allocation2], 133
    %v2956 = vld [vmem:[%s2955] ss:$16 sm:$0x3]
    %v2957 = vld [vmem:[%s2955] ss:$16 sm:$0xc]
    %v2958 = vor.u32 %v2956, %v2957
    %v2959 = vld [vmem:[%s2955] ss:$16 sm:$0x30]
    %v2960 = vor.u32 %v2958, %v2959
    %v2961 = vld [vmem:[%s2955] ss:$16 sm:$0xc0]
    %v2962 = vor.u32 %v2960, %v2961
    %v2963 = vmax.f32 %v2938, %v2954
    %v2964 = vmax.f32 %v2946, %v2962
    %s2965 = scalar_lea.vmem [#allocation2], 6
    %v2966 = vld [vmem:[%s2965] ss:$16 sm:$0x3]
    %v2967 = vld [vmem:[%s2965] ss:$16 sm:$0xc]
    %v2968 = vor.u32 %v2966, %v2967
    %v2969 = vld [vmem:[%s2965] ss:$16 sm:$0x30]
    %v2970 = vor.u32 %v2968, %v2969
    %v2971 = vld [vmem:[%s2965] ss:$16 sm:$0xc0]
    %v2972 = vor.u32 %v2970, %v2971
    %s2973 = scalar_lea.vmem [#allocation2], 134
    %v2974 = vld [vmem:[%s2973] ss:$16 sm:$0x3]
    %v2975 = vld [vmem:[%s2973] ss:$16 sm:$0xc]
    %v2976 = vor.u32 %v2974, %v2975
    %v2977 = vld [vmem:[%s2973] ss:$16 sm:$0x30]
    %v2978 = vor.u32 %v2976, %v2977
    %v2979 = vld [vmem:[%s2973] ss:$16 sm:$0xc0]
    %v2980 = vor.u32 %v2978, %v2979
    %s2981 = scalar_lea.vmem [#allocation2], 7
    %v2982 = vld [vmem:[%s2981] ss:$16 sm:$0x3]
    %v2983 = vld [vmem:[%s2981] ss:$16 sm:$0xc]
    %v2984 = vor.u32 %v2982, %v2983
    %v2985 = vld [vmem:[%s2981] ss:$16 sm:$0x30]
    %v2986 = vor.u32 %v2984, %v2985
    %v2987 = vld [vmem:[%s2981] ss:$16 sm:$0xc0]
    %v2988 = vor.u32 %v2986, %v2987
    %s2989 = scalar_lea.vmem [#allocation2], 135
    %v2990 = vld [vmem:[%s2989] ss:$16 sm:$0x3]
    %v2991 = vld [vmem:[%s2989] ss:$16 sm:$0xc]
    %v2992 = vor.u32 %v2990, %v2991
    %v2993 = vld [vmem:[%s2989] ss:$16 sm:$0x30]
    %v2994 = vor.u32 %v2992, %v2993
    %v2995 = vld [vmem:[%s2989] ss:$16 sm:$0xc0]
    %v2996 = vor.u32 %v2994, %v2995
    %v2997 = vmax.f32 %v2972, %v2988
    %v2998 = vmax.f32 %v2980, %v2996
    %s2999 = scalar_lea.vmem [#allocation2], 8
    %v3000 = vld [vmem:[%s2999] ss:$16 sm:$0x3]
    %v3001 = vld [vmem:[%s2999] ss:$16 sm:$0xc]
    %v3002 = vor.u32 %v3000, %v3001
    %v3003 = vld [vmem:[%s2999] ss:$16 sm:$0x30]
    %v3004 = vor.u32 %v3002, %v3003
    %v3005 = vld [vmem:[%s2999] ss:$16 sm:$0xc0]
    %v3006 = vor.u32 %v3004, %v3005
    %s3007 = scalar_lea.vmem [#allocation2], 136
    %v3008 = vld [vmem:[%s3007] ss:$16 sm:$0x3]
    %v3009 = vld [vmem:[%s3007] ss:$16 sm:$0xc]
    %v3010 = vor.u32 %v3008, %v3009
    %v3011 = vld [vmem:[%s3007] ss:$16 sm:$0x30]
    %v3012 = vor.u32 %v3010, %v3011
    %v3013 = vld [vmem:[%s3007] ss:$16 sm:$0xc0]
    %v3014 = vor.u32 %v3012, %v3013
    %s3015 = scalar_lea.vmem [#allocation2], 9
    %v3016 = vld [vmem:[%s3015] ss:$16 sm:$0x3]
    %v3017 = vld [vmem:[%s3015] ss:$16 sm:$0xc]
    %v3018 = vor.u32 %v3016, %v3017
    %v3019 = vld [vmem:[%s3015] ss:$16 sm:$0x30]
    %v3020 = vor.u32 %v3018, %v3019
    %v3021 = vld [vmem:[%s3015] ss:$16 sm:$0xc0]
    %v3022 = vor.u32 %v3020, %v3021
    %s3023 = scalar_lea.vmem [#allocation2], 137
    %v3024 = vld [vmem:[%s3023] ss:$16 sm:$0x3]
    %v3025 = vld [vmem:[%s3023] ss:$16 sm:$0xc]
    %v3026 = vor.u32 %v3024, %v3025
    %v3027 = vld [vmem:[%s3023] ss:$16 sm:$0x30]
    %v3028 = vor.u32 %v3026, %v3027
    %v3029 = vld [vmem:[%s3023] ss:$16 sm:$0xc0]
    %v3030 = vor.u32 %v3028, %v3029
    %v3031 = vmax.f32 %v3006, %v3022
    %v3032 = vmax.f32 %v3014, %v3030
    %s3033 = scalar_lea.vmem [#allocation2], 10
    %v3034 = vld [vmem:[%s3033] ss:$16 sm:$0x3]
    %v3035 = vld [vmem:[%s3033] ss:$16 sm:$0xc]
    %v3036 = vor.u32 %v3034, %v3035
    %v3037 = vld [vmem:[%s3033] ss:$16 sm:$0x30]
    %v3038 = vor.u32 %v3036, %v3037
    %v3039 = vld [vmem:[%s3033] ss:$16 sm:$0xc0]
    %v3040 = vor.u32 %v3038, %v3039
    %s3041 = scalar_lea.vmem [#allocation2], 138
    %v3042 = vld [vmem:[%s3041] ss:$16 sm:$0x3]
    %v3043 = vld [vmem:[%s3041] ss:$16 sm:$0xc]
    %v3044 = vor.u32 %v3042, %v3043
    %v3045 = vld [vmem:[%s3041] ss:$16 sm:$0x30]
    %v3046 = vor.u32 %v3044, %v3045
    %v3047 = vld [vmem:[%s3041] ss:$16 sm:$0xc0]
    %v3048 = vor.u32 %v3046, %v3047
    %s3049 = scalar_lea.vmem [#allocation2], 11
    %v3050 = vld [vmem:[%s3049] ss:$16 sm:$0x3]
    %v3051 = vld [vmem:[%s3049] ss:$16 sm:$0xc]
    %v3052 = vor.u32 %v3050, %v3051
    %v3053 = vld [vmem:[%s3049] ss:$16 sm:$0x30]
    %v3054 = vor.u32 %v3052, %v3053
    %v3055 = vld [vmem:[%s3049] ss:$16 sm:$0xc0]
    %v3056 = vor.u32 %v3054, %v3055
    %s3057 = scalar_lea.vmem [#allocation2], 139
    %v3058 = vld [vmem:[%s3057] ss:$16 sm:$0x3]
    %v3059 = vld [vmem:[%s3057] ss:$16 sm:$0xc]
    %v3060 = vor.u32 %v3058, %v3059
    %v3061 = vld [vmem:[%s3057] ss:$16 sm:$0x30]
    %v3062 = vor.u32 %v3060, %v3061
    %v3063 = vld [vmem:[%s3057] ss:$16 sm:$0xc0]
    %v3064 = vor.u32 %v3062, %v3063
    %v3065 = vmax.f32 %v3040, %v3056
    %v3066 = vmax.f32 %v3048, %v3064
    %s3067 = scalar_lea.vmem [#allocation2], 12
    %v3068 = vld [vmem:[%s3067] ss:$16 sm:$0x3]
    %v3069 = vld [vmem:[%s3067] ss:$16 sm:$0xc]
    %v3070 = vor.u32 %v3068, %v3069
    %v3071 = vld [vmem:[%s3067] ss:$16 sm:$0x30]
    %v3072 = vor.u32 %v3070, %v3071
    %v3073 = vld [vmem:[%s3067] ss:$16 sm:$0xc0]
    %v3074 = vor.u32 %v3072, %v3073
    %s3075 = scalar_lea.vmem [#allocation2], 140
    %v3076 = vld [vmem:[%s3075] ss:$16 sm:$0x3]
    %v3077 = vld [vmem:[%s3075] ss:$16 sm:$0xc]
    %v3078 = vor.u32 %v3076, %v3077
    %v3079 = vld [vmem:[%s3075] ss:$16 sm:$0x30]
    %v3080 = vor.u32 %v3078, %v3079
    %v3081 = vld [vmem:[%s3075] ss:$16 sm:$0xc0]
    %v3082 = vor.u32 %v3080, %v3081
    %s3083 = scalar_lea.vmem [#allocation2], 13
    %v3084 = vld [vmem:[%s3083] ss:$16 sm:$0x3]
    %v3085 = vld [vmem:[%s3083] ss:$16 sm:$0xc]
    %v3086 = vor.u32 %v3084, %v3085
    %v3087 = vld [vmem:[%s3083] ss:$16 sm:$0x30]
    %v3088 = vor.u32 %v3086, %v3087
    %v3089 = vld [vmem:[%s3083] ss:$16 sm:$0xc0]
    %v3090 = vor.u32 %v3088, %v3089
    %s3091 = scalar_lea.vmem [#allocation2], 141
    %v3092 = vld [vmem:[%s3091] ss:$16 sm:$0x3]
    %v3093 = vld [vmem:[%s3091] ss:$16 sm:$0xc]
    %v3094 = vor.u32 %v3092, %v3093
    %v3095 = vld [vmem:[%s3091] ss:$16 sm:$0x30]
    %v3096 = vor.u32 %v3094, %v3095
    %v3097 = vld [vmem:[%s3091] ss:$16 sm:$0xc0]
    %v3098 = vor.u32 %v3096, %v3097
    %v3099 = vmax.f32 %v3074, %v3090
    %v3100 = vmax.f32 %v3082, %v3098
    %s3101 = scalar_lea.vmem [#allocation2], 14
    %v3102 = vld [vmem:[%s3101] ss:$16 sm:$0x3]
    %v3103 = vld [vmem:[%s3101] ss:$16 sm:$0xc]
    %v3104 = vor.u32 %v3102, %v3103
    %v3105 = vld [vmem:[%s3101] ss:$16 sm:$0x30]
    %v3106 = vor.u32 %v3104, %v3105
    %v3107 = vld [vmem:[%s3101] ss:$16 sm:$0xc0]
    %v3108 = vor.u32 %v3106, %v3107
    %s3109 = scalar_lea.vmem [#allocation2], 142
    %v3110 = vld [vmem:[%s3109] ss:$16 sm:$0x3]
    %v3111 = vld [vmem:[%s3109] ss:$16 sm:$0xc]
    %v3112 = vor.u32 %v3110, %v3111
    %v3113 = vld [vmem:[%s3109] ss:$16 sm:$0x30]
    %v3114 = vor.u32 %v3112, %v3113
    %v3115 = vld [vmem:[%s3109] ss:$16 sm:$0xc0]
    %v3116 = vor.u32 %v3114, %v3115
    %s3117 = scalar_lea.vmem [#allocation2], 15
    %v3118 = vld [vmem:[%s3117] ss:$16 sm:$0x3]
    %v3119 = vld [vmem:[%s3117] ss:$16 sm:$0xc]
    %v3120 = vor.u32 %v3118, %v3119
    %v3121 = vld [vmem:[%s3117] ss:$16 sm:$0x30]
    %v3122 = vor.u32 %v3120, %v3121
    %v3123 = vld [vmem:[%s3117] ss:$16 sm:$0xc0]
    %v3124 = vor.u32 %v3122, %v3123
    %s3125 = scalar_lea.vmem [#allocation2], 143
    %v3126 = vld [vmem:[%s3125] ss:$16 sm:$0x3]
    %v3127 = vld [vmem:[%s3125] ss:$16 sm:$0xc]
    %v3128 = vor.u32 %v3126, %v3127
    %v3129 = vld [vmem:[%s3125] ss:$16 sm:$0x30]
    %v3130 = vor.u32 %v3128, %v3129
    %v3131 = vld [vmem:[%s3125] ss:$16 sm:$0xc0]
    %v3132 = vor.u32 %v3130, %v3131
    %v3133 = vmax.f32 %v3108, %v3124
    %v3134 = vmax.f32 %v3116, %v3132
    %3137 = vrot.lane.b32.xlu0 %v2929, 16
    %v3138 = vpop.permute.xlu0 %3137
    %3139 = vrot.lane.b32.xlu0 %v2930, 16
    %v3140 = vpop.permute.xlu0 %3139
    %3145 = vrot.lane.b32.xlu0 %v2963, 32
    %v3146 = vpop.permute.xlu0 %3145
    %3147 = vrot.lane.b32.xlu0 %v2964, 32
    %v3148 = vpop.permute.xlu0 %3147
    %3153 = vrot.lane.b32.xlu0 %v2997, 48
    %v3154 = vpop.permute.xlu0 %3153
    %3155 = vrot.lane.b32.xlu0 %v2998, 48
    %v3156 = vpop.permute.xlu0 %3155
    %3161 = vrot.lane.b32.xlu0 %v3031, 64
    %v3162 = vpop.permute.xlu0 %3161
    %3163 = vrot.lane.b32.xlu0 %v3032, 64
    %v3164 = vpop.permute.xlu0 %3163
    %3169 = vrot.lane.b32.xlu0 %v3065, 80
    %v3170 = vpop.permute.xlu0 %3169
    %3171 = vrot.lane.b32.xlu0 %v3066, 80
    %v3172 = vpop.permute.xlu0 %3171
    %3177 = vrot.lane.b32.xlu0 %v3099, 96
    %v3178 = vpop.permute.xlu0 %3177
    %3179 = vrot.lane.b32.xlu0 %v3100, 96
    %v3180 = vpop.permute.xlu0 %3179
    %3185 = vrot.lane.b32.xlu0 %v3133, 112
    %v3186 = vpop.permute.xlu0 %3185
    %3187 = vrot.lane.b32.xlu0 %v3134, 112
    %v3188 = vpop.permute.xlu0 %3187
    %v3191 = vsel %vm2831, %v2895, %v3138
    %v3192 = vsel %vm2831, %v2896, %v3140
    %vm3193 = vcmask 261120
    %v3194 = vsel %vm3193, %v3191, %v3146
    %v3195 = vsel %vm3193, %v3192, %v3148
    %vm3196 = vcmask 392192
    %v3197 = vsel %vm3196, %v3194, %v3154
    %v3198 = vsel %vm3196, %v3195, %v3156
    %vm3199 = vcmask 523264
    %v3200 = vsel %vm3199, %v3197, %v3162
    %v3201 = vsel %vm3199, %v3198, %v3164
    %vm3202 = vcmask 654336
    %v3203 = vsel %vm3202, %v3200, %v3170
    %v3204 = vsel %vm3202, %v3201, %v3172
    %vm3205 = vcmask 785408
    %v3206 = vsel %vm3205, %v3203, %v3178
    %v3207 = vsel %vm3205, %v3204, %v3180
    %vm3208 = vcmask 916480
    %v3209 = vsel %vm3208, %v3206, %v3186
    %v3210 = vsel %vm3208, %v3207, %v3188
    %v3211 = vpack.c.bf16 %v3209, %v3209
    %v3212 = vpack.c.bf16 %v3210, %v3210
    %3213 = vst [vmem:[%s5] sm:$0xf] %v3211
    %3214 = vst [vmem:[%s5 + $0x4] sm:$0xf] %v3212
    // Predicated region
    $region104: #{_lambda_.5} parent=1 // pred_check
      _
    $region105: #{_lambda_.5} parent=1 // pred_check_branch
      %3216 = sbr.rel (0) target = $region107
    $region106: #{_lambda_.5} parent=1 // pred_region
      _
    $region107: #{_lambda_.5} parent=1 // pred_fallthru
      _
    // Predicated region
    $region108: #{_lambda_.5} parent=1 // pred_check
      _
    $region109: #{_lambda_.5} parent=1 // pred_check_branch
      %3218 = sbr.rel (0) target = $region111
    $region110: #{_lambda_.5} parent=1 // pred_region
      _
    $region111: #{_lambda_.5} parent=1 // pred_fallthru
      _

// kernel: _lambda_.4
$region0: #{_lambda_.4}
  #allocation0 [shape = 'u32[]', space=smem, size = 0x4, offset = 0x4, fixed_abs, tag = 'smem constant byte address 0x4 - core index']
  #allocation1 [shape = 'u32[144,128]{1,0:T(1,128)}', space=vmem, size = 0x12000, scoped, tag = 'internal scratch']
  %s0 = inlined_call_operand.vmem [shape: bf16[2,144,4], index: 0, kind: input, shape index: {}, may-alias: {0,1}]
  %s1 = inlined_call_operand.vmem [shape: bf16[2,144,4], index: 1, kind: input, shape index: {}, may-alias: {0,1}]
  %s2 = inlined_call_operand.vmem [shape: bf16[8,4,16], index: 2, kind: input, shape index: {}]
  %s3 = inlined_call_operand.vmem [shape: f32[1,8,16], index: 3, kind: output, shape index: {0}]
  %s4 = inlined_call_operand.vmem [shape: f32[1,8,16], index: 4, kind: output, shape index: {1}]
  %5 = xla_tuple %s3, %s4
  %s6 = sld [smem:[#allocation0]]
  $region145: #{_lambda_.4} parent=0
    _
  %s8 = ssub.s32 1, %s6
  %s9 = scalar_select 0, %s8, %s6
  $region1: #{_lambda_.4} parent=0
    #allocation2 [shape = 'u8[65536]{0}', space=vmem, size = 0x10000, scoped, tag = 'input window, operand 0, single buffered']
    #allocation3 [shape = 'u8[8192]{0}', space=vmem, size = 0x2000, scoped, tag = 'input window, operand 1, single buffered']
    // Predicated region
    $region2: #{_lambda_.4} parent=1 // pred_check
      _
    $region3: #{_lambda_.4} parent=1 // pred_check_branch
      %11 = sbr.rel (0) target = $region5
    $region4: #{_lambda_.4} parent=1 // pred_region
      %s12 = sadd.s32 0, 0
      %s13 = smul.u32 16, %s12
      %s14 = ssub.s32 18, %s13
      %p15 = scmp.lt.s32.totalorder %s14, 16
      %s16 = scalar_select %p15, %s14, 16
      %s17 = smul.u32 128, %s16
      %p18 = scmp.ne.s32.totalorder 0, %s17
      %s19 = smul.addr %s13, 4
      %s20 = scalar_lea.vmem %s0, %s19
      // Predicated region
      $region6: #{_lambda_.4} parent=4 // pred_check
        %p21 = pneg %p18
      $region7: #{_lambda_.4} parent=4 // pred_check_branch
        %23 = sbr.rel (%p21) target = $region9
      $region8: #{_lambda_.4} parent=4 // pred_region
        // Predicated region
        $region10: #{_lambda_.4} parent=8 // pred_check
          _
        $region11: #{_lambda_.4} parent=8 // pred_check_branch
          %25 = sbr.rel target = $region13
        $region12: #{_lambda_.4} parent=8 // pred_region
          // Predicated region
          $region32: #{_lambda_.4} parent=12 // pred_check
            _
          $region33: #{_lambda_.4} parent=12 // pred_check_branch
            %138 = sbr.rel (0) target = $region35
          $region34: #{_lambda_.4} parent=12 // pred_region
            %s139 = sshrl.u32 %s16, 4
            // While loop
            $region36: #{_lambda_.4} parent=34 // loop_pre_header
              _
            $region37: #{_lambda_.4} parent=34 // loop_header
              %s141 = sphi 0, %s143
              %p142 = scmp.ge.s32.totalorder %s141, %s139
              %s146 = sphi 0, %s151
              %s147 = sphi %s20, %s154
              %s148 = sphi [#allocation2], %s155
            $region38: #{_lambda_.4} parent=34 // loop_header_branch
              %145 = sbr.rel (%p142) target = $region42
            $region39: #{_lambda_.4} parent=34 // loop_body
              %s149 = sadd.s32 1, %s146
              %p150 = scmp.ge.s32.totalorder %s149, %s139
              %s151 = scalar_select %p150, 0, %s149
              %s152 = smul.u32 %s151, 64
              %s153 = smul.u32 %s151, 64
              %s154 = scalar_lea.vmem %s20, %s152
              %s155 = scalar_lea.vmem [#allocation2], %s153
            $region40: #{_lambda_.4} parent=34 // loop_footer
              %s143 = sadd.s32 %s141, 1
            $region41: #{_lambda_.4} parent=34 // loop_footer_branch
              %140 = sbr.rel target = $region37
            $region42: #{_lambda_.4} parent=34 // loop_exit
              _
            %s156 = sshrl.u32 %s16, 4
            %s157 = sand.u32 %s16, 15
            %s158 = smul.u32 %s156, 16
            %s159 = smul.u32 4, %s158
            %s160 = scalar_lea.vmem %s20, %s159
            %s161 = smul.u32 4, %s158
            %s162 = scalar_lea.vmem [#allocation2], %s161
            // While loop
            $region43: #{_lambda_.4} parent=34 // loop_pre_header
              _
            $region44: #{_lambda_.4} parent=34 // loop_header
              %s164 = sphi 0, %s166
              %p165 = scmp.ge.s32.totalorder %s164, %s157
              %s169 = sphi 0, %s174
              %s170 = sphi %s160, %s177
              %s171 = sphi %s162, %s178
            $region45: #{_lambda_.4} parent=34 // loop_header_branch
              %168 = sbr.rel (%p165) target = $region49
            $region46: #{_lambda_.4} parent=34 // loop_body
              %s172 = sadd.s32 1, %s169
              %p173 = scmp.ge.s32.totalorder %s172, %s157
              %s174 = scalar_select %p173, 0, %s172
              %s175 = smul.u32 %s174, 4
              %s176 = smul.u32 %s174, 4
              %s177 = scalar_lea.vmem %s160, %s175
              %s178 = scalar_lea.vmem %s162, %s176 [#allocation2]
            $region47: #{_lambda_.4} parent=34 // loop_footer
              %s166 = sadd.s32 %s164, 1
            $region48: #{_lambda_.4} parent=34 // loop_footer_branch
              %163 = sbr.rel target = $region44
            $region49: #{_lambda_.4} parent=34 // loop_exit
              _
            %s180 = sshrl.u32 %s16, 4
            // While loop
            $region50: #{_lambda_.4} parent=34 // loop_pre_header
              _
            $region51: #{_lambda_.4} parent=34 // loop_header
              %s182 = sphi 0, %s184
              %p183 = scmp.ge.s32.totalorder %s182, %s180
              %s187 = sphi 0, %s256
              %s188 = sphi %s20, %s259
              %s189 = sphi [#allocation2], %s260
            $region52: #{_lambda_.4} parent=34 // loop_header_branch
              %186 = sbr.rel (%p183) target = $region56
            $region53: #{_lambda_.4} parent=34 // loop_body
              %v190 = vld [vmem:[%s188] sm:$0xf]
              %191 = vst [vmem:[%s189] sm:$0xf] %v190
              %v192 = vld [vmem:[%s188 + $0x4] sm:$0xf]
              %193 = vst [vmem:[%s189 + $0x4] sm:$0xf] %v192
              %v194 = vld [vmem:[%s188 + $0x8] sm:$0xf]
              %195 = vst [vmem:[%s189 + $0x8] sm:$0xf] %v194
              %v196 = vld [vmem:[%s188 + $0xc] sm:$0xf]
              %197 = vst [vmem:[%s189 + $0xc] sm:$0xf] %v196
              %v198 = vld [vmem:[%s188 + $0x10] sm:$0xf]
              %199 = vst [vmem:[%s189 + $0x10] sm:$0xf] %v198
              %v200 = vld [vmem:[%s188 + $0x14] sm:$0xf]
              %201 = vst [vmem:[%s189 + $0x14] sm:$0xf] %v200
              %v202 = vld [vmem:[%s188 + $0x18] sm:$0xf]
              %203 = vst [vmem:[%s189 + $0x18] sm:$0xf] %v202
              %v204 = vld [vmem:[%s188 + $0x1c] sm:$0xf]
              %205 = vst [vmem:[%s189 + $0x1c] sm:$0xf] %v204
              %v206 = vld [vmem:[%s188 + $0x20] sm:$0xf]
              %207 = vst [vmem:[%s189 + $0x20] sm:$0xf] %v206
              %v208 = vld [vmem:[%s188 + $0x24] sm:$0xf]
              %209 = vst [vmem:[%s189 + $0x24] sm:$0xf] %v208
              %v210 = vld [vmem:[%s188 + $0x28] sm:$0xf]
              %211 = vst [vmem:[%s189 + $0x28] sm:$0xf] %v210
              %v212 = vld [vmem:[%s188 + $0x2c] sm:$0xf]
              %213 = vst [vmem:[%s189 + $0x2c] sm:$0xf] %v212
              %v214 = vld [vmem:[%s188 + $0x30] sm:$0xf]
              %215 = vst [vmem:[%s189 + $0x30] sm:$0xf] %v214
              %v216 = vld [vmem:[%s188 + $0x34] sm:$0xf]
              %217 = vst [vmem:[%s189 + $0x34] sm:$0xf] %v216
              %v218 = vld [vmem:[%s188 + $0x38] sm:$0xf]
              %219 = vst [vmem:[%s189 + $0x38] sm:$0xf] %v218
              %v220 = vld [vmem:[%s188 + $0x3c] sm:$0xf]
              %221 = vst [vmem:[%s189 + $0x3c] sm:$0xf] %v220
              %v222 = vld [vmem:[%s188 + $0x48] sm:$0xf]
              %223 = vst [vmem:[%s189 + $0x40] sm:$0xf] %v222
              %v224 = vld [vmem:[%s188 + $0x4c] sm:$0xf]
              %225 = vst [vmem:[%s189 + $0x44] sm:$0xf] %v224
              %v226 = vld [vmem:[%s188 + $0x50] sm:$0xf]
              %227 = vst [vmem:[%s189 + $0x48] sm:$0xf] %v226
              %v228 = vld [vmem:[%s188 + $0x54] sm:$0xf]
              %229 = vst [vmem:[%s189 + $0x4c] sm:$0xf] %v228
              %v230 = vld [vmem:[%s188 + $0x58] sm:$0xf]
              %231 = vst [vmem:[%s189 + $0x50] sm:$0xf] %v230
              %v232 = vld [vmem:[%s188 + $0x5c] sm:$0xf]
              %233 = vst [vmem:[%s189 + $0x54] sm:$0xf] %v232
              %v234 = vld [vmem:[%s188 + $0x60] sm:$0xf]
              %235 = vst [vmem:[%s189 + $0x58] sm:$0xf] %v234
              %v236 = vld [vmem:[%s188 + $0x64] sm:$0xf]
              %237 = vst [vmem:[%s189 + $0x5c] sm:$0xf] %v236
              %v238 = vld [vmem:[%s188 + $0x68] sm:$0xf]
              %239 = vst [vmem:[%s189 + $0x60] sm:$0xf] %v238
              %v240 = vld [vmem:[%s188 + $0x6c] sm:$0xf]
              %241 = vst [vmem:[%s189 + $0x64] sm:$0xf] %v240
              %v242 = vld [vmem:[%s188 + $0x70] sm:$0xf]
              %243 = vst [vmem:[%s189 + $0x68] sm:$0xf] %v242
              %v244 = vld [vmem:[%s188 + $0x74] sm:$0xf]
              %245 = vst [vmem:[%s189 + $0x6c] sm:$0xf] %v244
              %v246 = vld [vmem:[%s188 + $0x78] sm:$0xf]
              %247 = vst [vmem:[%s189 + $0x70] sm:$0xf] %v246
              %v248 = vld [vmem:[%s188 + $0x7c] sm:$0xf]
              %249 = vst [vmem:[%s189 + $0x74] sm:$0xf] %v248
              %v250 = vld [vmem:[%s188 + $0x80] sm:$0xf]
              %251 = vst [vmem:[%s189 + $0x78] sm:$0xf] %v250
              %v252 = vld [vmem:[%s188 + $0x84] sm:$0xf]
              %253 = vst [vmem:[%s189 + $0x7c] sm:$0xf] %v252
              %s254 = sadd.s32 1, %s187
              %p255 = scmp.ge.s32.totalorder %s254, %s180
              %s256 = scalar_select %p255, 0, %s254
              %s257 = smul.u32 %s256, 64
              %s258 = smul.u32 %s256, 64
              %s259 = scalar_lea.vmem %s20, %s257
              %s260 = scalar_lea.vmem [#allocation2], %s258
            $region54: #{_lambda_.4} parent=34 // loop_footer
              %s184 = sadd.s32 %s182, 1
            $region55: #{_lambda_.4} parent=34 // loop_footer_branch
              %181 = sbr.rel target = $region51
            $region56: #{_lambda_.4} parent=34 // loop_exit
              _
            %s261 = sshrl.u32 %s16, 4
            %s262 = sand.u32 %s16, 15
            %s263 = smul.u32 %s261, 16
            %s264 = smul.u32 4, %s263
            %s265 = scalar_lea.vmem %s20, %s264
            %s266 = smul.u32 4, %s263
            %s267 = scalar_lea.vmem [#allocation2], %s266
            // While loop
            $region57: #{_lambda_.4} parent=34 // loop_pre_header
              _
            $region58: #{_lambda_.4} parent=34 // loop_header
              %s269 = sphi 0, %s271
              %p270 = scmp.ge.s32.totalorder %s269, %s262
              %s274 = sphi 0, %s283
              %s275 = sphi %s265, %s286
              %s276 = sphi %s267, %s287
            $region59: #{_lambda_.4} parent=34 // loop_header_branch
              %273 = sbr.rel (%p270) target = $region63
            $region60: #{_lambda_.4} parent=34 // loop_body
              %v277 = vld [vmem:[%s275] sm:$0xf]
              %278 = vst [vmem:[%s276] sm:$0xf] %v277
              %v279 = vld [vmem:[%s275 + $0x48] sm:$0xf]
              %280 = vst [vmem:[%s276 + $0x40] sm:$0xf] %v279
              %s281 = sadd.s32 1, %s274
              %p282 = scmp.ge.s32.totalorder %s281, %s262
              %s283 = scalar_select %p282, 0, %s281
              %s284 = smul.u32 %s283, 4
              %s285 = smul.u32 %s283, 4
              %s286 = scalar_lea.vmem %s265, %s284
              %s287 = scalar_lea.vmem %s267, %s285 [#allocation2]
            $region61: #{_lambda_.4} parent=34 // loop_footer
              %s271 = sadd.s32 %s269, 1
            $region62: #{_lambda_.4} parent=34 // loop_footer_branch
              %268 = sbr.rel target = $region58
            $region63: #{_lambda_.4} parent=34 // loop_exit
              _
          $region35: #{_lambda_.4} parent=12 // pred_fallthru
            _
        $region13: #{_lambda_.4} parent=8 // pred_fallthru
          _
        // Predicated region
        $region14: #{_lambda_.4} parent=8 // pred_check
          _
        $region15: #{_lambda_.4} parent=8 // pred_check_branch
          %27 = sbr.rel (0) target = $region17
        $region16: #{_lambda_.4} parent=8 // pred_region
          %s29 = sshrl.u32 %s16, 4
          // While loop
          $region18: #{_lambda_.4} parent=16 // loop_pre_header
            _
          $region19: #{_lambda_.4} parent=16 // loop_header
            %s31 = sphi 0, %s33
            %p32 = scmp.ge.s32.totalorder %s31, %s29
            %s36 = sphi 0, %s105
            %s37 = sphi %s20, %s108
            %s38 = sphi [#allocation2], %s109
          $region20: #{_lambda_.4} parent=16 // loop_header_branch
            %35 = sbr.rel (%p32) target = $region24
          $region21: #{_lambda_.4} parent=16 // loop_body
            %v39 = vld [vmem:[%s37] sm:$0xf]
            %40 = vst [vmem:[%s38] sm:$0xf] %v39
            %v41 = vld [vmem:[%s37 + $0x4] sm:$0xf]
            %42 = vst [vmem:[%s38 + $0x4] sm:$0xf] %v41
            %v43 = vld [vmem:[%s37 + $0x8] sm:$0xf]
            %44 = vst [vmem:[%s38 + $0x8] sm:$0xf] %v43
            %v45 = vld [vmem:[%s37 + $0xc] sm:$0xf]
            %46 = vst [vmem:[%s38 + $0xc] sm:$0xf] %v45
            %v47 = vld [vmem:[%s37 + $0x10] sm:$0xf]
            %48 = vst [vmem:[%s38 + $0x10] sm:$0xf] %v47
            %v49 = vld [vmem:[%s37 + $0x14] sm:$0xf]
            %50 = vst [vmem:[%s38 + $0x14] sm:$0xf] %v49
            %v51 = vld [vmem:[%s37 + $0x18] sm:$0xf]
            %52 = vst [vmem:[%s38 + $0x18] sm:$0xf] %v51
            %v53 = vld [vmem:[%s37 + $0x1c] sm:$0xf]
            %54 = vst [vmem:[%s38 + $0x1c] sm:$0xf] %v53
            %v55 = vld [vmem:[%s37 + $0x20] sm:$0xf]
            %56 = vst [vmem:[%s38 + $0x20] sm:$0xf] %v55
            %v57 = vld [vmem:[%s37 + $0x24] sm:$0xf]
            %58 = vst [vmem:[%s38 + $0x24] sm:$0xf] %v57
            %v59 = vld [vmem:[%s37 + $0x28] sm:$0xf]
            %60 = vst [vmem:[%s38 + $0x28] sm:$0xf] %v59
            %v61 = vld [vmem:[%s37 + $0x2c] sm:$0xf]
            %62 = vst [vmem:[%s38 + $0x2c] sm:$0xf] %v61
            %v63 = vld [vmem:[%s37 + $0x30] sm:$0xf]
            %64 = vst [vmem:[%s38 + $0x30] sm:$0xf] %v63
            %v65 = vld [vmem:[%s37 + $0x34] sm:$0xf]
            %66 = vst [vmem:[%s38 + $0x34] sm:$0xf] %v65
            %v67 = vld [vmem:[%s37 + $0x38] sm:$0xf]
            %68 = vst [vmem:[%s38 + $0x38] sm:$0xf] %v67
            %v69 = vld [vmem:[%s37 + $0x3c] sm:$0xf]
            %70 = vst [vmem:[%s38 + $0x3c] sm:$0xf] %v69
            %v71 = vld [vmem:[%s37 + $0x48] sm:$0xf]
            %72 = vst [vmem:[%s38 + $0x40] sm:$0xf] %v71
            %v73 = vld [vmem:[%s37 + $0x4c] sm:$0xf]
            %74 = vst [vmem:[%s38 + $0x44] sm:$0xf] %v73
            %v75 = vld [vmem:[%s37 + $0x50] sm:$0xf]
            %76 = vst [vmem:[%s38 + $0x48] sm:$0xf] %v75
            %v77 = vld [vmem:[%s37 + $0x54] sm:$0xf]
            %78 = vst [vmem:[%s38 + $0x4c] sm:$0xf] %v77
            %v79 = vld [vmem:[%s37 + $0x58] sm:$0xf]
            %80 = vst [vmem:[%s38 + $0x50] sm:$0xf] %v79
            %v81 = vld [vmem:[%s37 + $0x5c] sm:$0xf]
            %82 = vst [vmem:[%s38 + $0x54] sm:$0xf] %v81
            %v83 = vld [vmem:[%s37 + $0x60] sm:$0xf]
            %84 = vst [vmem:[%s38 + $0x58] sm:$0xf] %v83
            %v85 = vld [vmem:[%s37 + $0x64] sm:$0xf]
            %86 = vst [vmem:[%s38 + $0x5c] sm:$0xf] %v85
            %v87 = vld [vmem:[%s37 + $0x68] sm:$0xf]
            %88 = vst [vmem:[%s38 + $0x60] sm:$0xf] %v87
            %v89 = vld [vmem:[%s37 + $0x6c] sm:$0xf]
            %90 = vst [vmem:[%s38 + $0x64] sm:$0xf] %v89
            %v91 = vld [vmem:[%s37 + $0x70] sm:$0xf]
            %92 = vst [vmem:[%s38 + $0x68] sm:$0xf] %v91
            %v93 = vld [vmem:[%s37 + $0x74] sm:$0xf]
            %94 = vst [vmem:[%s38 + $0x6c] sm:$0xf] %v93
            %v95 = vld [vmem:[%s37 + $0x78] sm:$0xf]
            %96 = vst [vmem:[%s38 + $0x70] sm:$0xf] %v95
            %v97 = vld [vmem:[%s37 + $0x7c] sm:$0xf]
            %98 = vst [vmem:[%s38 + $0x74] sm:$0xf] %v97
            %v99 = vld [vmem:[%s37 + $0x80] sm:$0xf]
            %100 = vst [vmem:[%s38 + $0x78] sm:$0xf] %v99
            %v101 = vld [vmem:[%s37 + $0x84] sm:$0xf]
            %102 = vst [vmem:[%s38 + $0x7c] sm:$0xf] %v101
            %s103 = sadd.s32 1, %s36
            %p104 = scmp.ge.s32.totalorder %s103, %s29
            %s105 = scalar_select %p104, 0, %s103
            %s106 = smul.u32 %s105, 64
            %s107 = smul.u32 %s105, 64
            %s108 = scalar_lea.vmem %s20, %s106
            %s109 = scalar_lea.vmem [#allocation2], %s107
          $region22: #{_lambda_.4} parent=16 // loop_footer
            %s33 = sadd.s32 %s31, 1
          $region23: #{_lambda_.4} parent=16 // loop_footer_branch
            %30 = sbr.rel target = $region19
          $region24: #{_lambda_.4} parent=16 // loop_exit
            _
          %s110 = sshrl.u32 %s16, 4
          %s111 = sand.u32 %s16, 15
          %s112 = smul.u32 %s110, 16
          %s113 = smul.u32 4, %s112
          %s114 = scalar_lea.vmem %s20, %s113
          %s115 = smul.u32 4, %s112
          %s116 = scalar_lea.vmem [#allocation2], %s115
          // While loop
          $region25: #{_lambda_.4} parent=16 // loop_pre_header
            _
          $region26: #{_lambda_.4} parent=16 // loop_header
            %s118 = sphi 0, %s120
            %p119 = scmp.ge.s32.totalorder %s118, %s111
            %s123 = sphi 0, %s132
            %s124 = sphi %s114, %s135
            %s125 = sphi %s116, %s136
          $region27: #{_lambda_.4} parent=16 // loop_header_branch
            %122 = sbr.rel (%p119) target = $region31
          $region28: #{_lambda_.4} parent=16 // loop_body
            %v126 = vld [vmem:[%s124] sm:$0xf]
            %127 = vst [vmem:[%s125] sm:$0xf] %v126
            %v128 = vld [vmem:[%s124 + $0x48] sm:$0xf]
            %129 = vst [vmem:[%s125 + $0x40] sm:$0xf] %v128
            %s130 = sadd.s32 1, %s123
            %p131 = scmp.ge.s32.totalorder %s130, %s111
            %s132 = scalar_select %p131, 0, %s130
            %s133 = smul.u32 %s132, 4
            %s134 = smul.u32 %s132, 4
            %s135 = scalar_lea.vmem %s114, %s133
            %s136 = scalar_lea.vmem %s116, %s134 [#allocation2]
          $region29: #{_lambda_.4} parent=16 // loop_footer
            %s120 = sadd.s32 %s118, 1
          $region30: #{_lambda_.4} parent=16 // loop_footer_branch
            %117 = sbr.rel target = $region26
          $region31: #{_lambda_.4} parent=16 // loop_exit
            _
        $region17: #{_lambda_.4} parent=8 // pred_fallthru
          _
      $region9: #{_lambda_.4} parent=4 // pred_fallthru
        _
      %288 = vnop
    $region5: #{_lambda_.4} parent=1 // pred_fallthru
      _
    // Predicated region
    $region64: #{_lambda_.4} parent=1 // pred_check
      _
    $region65: #{_lambda_.4} parent=1 // pred_check_branch
      %290 = sbr.rel (0) target = $region67
    $region66: #{_lambda_.4} parent=1 // pred_region
      %s291 = sadd.s32 0, 0
      %s292 = sadd.s32 %s291, 1
      %s293 = smul.u32 %s292, 8
      %s294 = smul.u32 2, %s293
      %s295 = smul.addr %s294, 4
      %s296 = scalar_lea.vmem %s1, %s295
      // Predicated region
      $region68: #{_lambda_.4} parent=66 // pred_check
        _
      $region69: #{_lambda_.4} parent=66 // pred_check_branch
        %298 = sbr.rel (0) target = $region71
      $region70: #{_lambda_.4} parent=66 // pred_region
        // Predicated region
        $region72: #{_lambda_.4} parent=70 // pred_check
          _
        $region73: #{_lambda_.4} parent=70 // pred_check_branch
          %300 = sbr.rel target = $region75
        $region74: #{_lambda_.4} parent=70 // pred_region
          // Predicated region
          $region87: #{_lambda_.4} parent=74 // pred_check
            _
          $region88: #{_lambda_.4} parent=74 // pred_check_branch
            %321 = sbr.rel (0) target = $region90
          $region89: #{_lambda_.4} parent=74 // pred_region
            loop: start=0, step=1, limit=1
            $region91: #{_lambda_.4} parent=89 // loop_pre_header
              _
            $region92: #{_lambda_.4} parent=89 // loop_header
              %s323 = sphi 0, %s327
              %p324 = scmp.ge.s32.totalorder %s323, 1
              %s328 = sphi %s296, %s296
              %s329 = sphi [#allocation3], [#allocation3]
            $region93: #{_lambda_.4} parent=89 // loop_header_branch
              %326 = sbr.rel (%p324) target = $region97
            $region94: #{_lambda_.4} parent=89 // loop_body
              _
            $region95: #{_lambda_.4} parent=89 // loop_footer
              %s327 = sadd.s32 1, %s323
            $region96: #{_lambda_.4} parent=89 // loop_footer_branch
              %322 = sbr.rel target = $region92
            $region97: #{_lambda_.4} parent=89 // loop_exit
              _
            loop: start=0, step=1, limit=1
            $region98: #{_lambda_.4} parent=89 // loop_pre_header
              _
            $region99: #{_lambda_.4} parent=89 // loop_header
              %s332 = sphi 0, %s336
              %p333 = scmp.ge.s32.totalorder %s332, 1
              %s337 = sphi %s296, %s296
              %s338 = sphi [#allocation3], [#allocation3]
            $region100: #{_lambda_.4} parent=89 // loop_header_branch
              %335 = sbr.rel (%p333) target = $region104
            $region101: #{_lambda_.4} parent=89 // loop_body
              %v339 = vld [vmem:[%s337] sm:$0xf]
              %340 = vst [vmem:[%s338] sm:$0xf] %v339
              %v341 = vld [vmem:[%s337 + $0x4] sm:$0xf]
              %342 = vst [vmem:[%s338 + $0x4] sm:$0xf] %v341
              %v343 = vld [vmem:[%s337 + $0x48] sm:$0xf]
              %344 = vst [vmem:[%s338 + $0x8] sm:$0xf] %v343
              %v345 = vld [vmem:[%s337 + $0x4c] sm:$0xf]
              %346 = vst [vmem:[%s338 + $0xc] sm:$0xf] %v345
            $region102: #{_lambda_.4} parent=89 // loop_footer
              %s336 = sadd.s32 1, %s332
            $region103: #{_lambda_.4} parent=89 // loop_footer_branch
              %331 = sbr.rel target = $region99
            $region104: #{_lambda_.4} parent=89 // loop_exit
              _
          $region90: #{_lambda_.4} parent=74 // pred_fallthru
            _
        $region75: #{_lambda_.4} parent=70 // pred_fallthru
          _
        // Predicated region
        $region76: #{_lambda_.4} parent=70 // pred_check
          _
        $region77: #{_lambda_.4} parent=70 // pred_check_branch
          %302 = sbr.rel (0) target = $region79
        $region78: #{_lambda_.4} parent=70 // pred_region
          loop: start=0, step=1, limit=1
          $region80: #{_lambda_.4} parent=78 // loop_pre_header
            _
          $region81: #{_lambda_.4} parent=78 // loop_header
            %s305 = sphi 0, %s309
            %p306 = scmp.ge.s32.totalorder %s305, 1
            %s310 = sphi %s296, %s296
            %s311 = sphi [#allocation3], [#allocation3]
          $region82: #{_lambda_.4} parent=78 // loop_header_branch
            %308 = sbr.rel (%p306) target = $region86
          $region83: #{_lambda_.4} parent=78 // loop_body
            %v312 = vld [vmem:[%s310] sm:$0xf]
            %313 = vst [vmem:[%s311] sm:$0xf] %v312
            %v314 = vld [vmem:[%s310 + $0x4] sm:$0xf]
            %315 = vst [vmem:[%s311 + $0x4] sm:$0xf] %v314
            %v316 = vld [vmem:[%s310 + $0x48] sm:$0xf]
            %317 = vst [vmem:[%s311 + $0x8] sm:$0xf] %v316
            %v318 = vld [vmem:[%s310 + $0x4c] sm:$0xf]
            %319 = vst [vmem:[%s311 + $0xc] sm:$0xf] %v318
          $region84: #{_lambda_.4} parent=78 // loop_footer
            %s309 = sadd.s32 1, %s305
          $region85: #{_lambda_.4} parent=78 // loop_footer_branch
            %304 = sbr.rel target = $region81
          $region86: #{_lambda_.4} parent=78 // loop_exit
            _
        $region79: #{_lambda_.4} parent=70 // pred_fallthru
          _
      $region71: #{_lambda_.4} parent=66 // pred_fallthru
        _
      %347 = vnop
    $region67: #{_lambda_.4} parent=1 // pred_fallthru
      _
    // Predicated region
    $region105: #{_lambda_.4} parent=1 // pred_check
      _
    $region106: #{_lambda_.4} parent=1 // pred_check_branch
      %349 = sbr.rel (0) target = $region108
    $region107: #{_lambda_.4} parent=1 // pred_region
      _
    $region108: #{_lambda_.4} parent=1 // pred_fallthru
      _
    // Predicated region
    $region109: #{_lambda_.4} parent=1 // pred_check
      _
    $region110: #{_lambda_.4} parent=1 // pred_check_branch
      %351 = sbr.rel (0) target = $region112
    $region111: #{_lambda_.4} parent=1 // pred_region
      _
    $region112: #{_lambda_.4} parent=1 // pred_fallthru
      _
    // Predicated region
    $region113: #{_lambda_.4} parent=1 // pred_check
      _
    $region114: #{_lambda_.4} parent=1 // pred_check_branch
      %353 = sbr.rel (0) target = $region116
    $region115: #{_lambda_.4} parent=1 // pred_region
      _
    $region116: #{_lambda_.4} parent=1 // pred_fallthru
      _
    %s354 = sadd.s32 0, 0
    %s355 = smul.u32 16, %s354
    %s356 = ssub.s32 18, %s355
    %p357 = scmp.lt.s32.totalorder %s356, 16
    %s358 = scalar_select %p357, %s356, 16
    %s359 = smul.u32 128, %s358
    %s360 = sadd.s32 0, 0
    %s361 = sadd.s32 %s360, 1
    %s362 = smul.u32 %s361, 8
    %s363 = smul.u32 2, %s362
    %p365 = scmp.eq.s32.totalorder 0, 0
    // Predicated region
    $region117: #{_lambda_.4} parent=1 // pred_check
      %p366 = pneg %p365
    $region118: #{_lambda_.4} parent=1 // pred_check_branch
      %368 = sbr.rel (%p366) target = $region120
    $region119: #{_lambda_.4} parent=1 // pred_region
      %vm369 = vcmask 130048
      %370 = vst.msk [vmem:[%s3] sm:$0xff] %vm369, 0.0
      %371 = vst.msk [vmem:[%s4] sm:$0xff] %vm369, 0.0
    $region120: #{_lambda_.4} parent=1 // pred_fallthru
      _
    %v372 = vld [vmem:[#allocation2] sm:$0xf]
    %v373 = vld [vmem:[#allocation2 + $0x4] sm:$0xf]
    %v374 = vld [vmem:[#allocation2 + $0x8] sm:$0xf]
    %v375 = vld [vmem:[#allocation2 + $0xc] sm:$0xf]
    %v376 = vld [vmem:[#allocation2 + $0x10] sm:$0xf]
    %v377 = vld [vmem:[#allocation2 + $0x14] sm:$0xf]
    %v378 = vld [vmem:[#allocation2 + $0x18] sm:$0xf]
    %v379 = vld [vmem:[#allocation2 + $0x1c] sm:$0xf]
    %v380 = vld [vmem:[#allocation2 + $0x20] sm:$0xf]
    %v381 = vld [vmem:[#allocation2 + $0x24] sm:$0xf]
    %v382 = vld [vmem:[#allocation2 + $0x28] sm:$0xf]
    %v383 = vld [vmem:[#allocation2 + $0x2c] sm:$0xf]
    %v384 = vld [vmem:[#allocation2 + $0x30] sm:$0xf]
    %v385 = vld [vmem:[#allocation2 + $0x34] sm:$0xf]
    %v386 = vld [vmem:[#allocation2 + $0x38] sm:$0xf]
    %v387 = vld [vmem:[#allocation2 + $0x3c] sm:$0xf]
    %v388 = vld [vmem:[#allocation2 + $0x40] sm:$0xf]
    %v389 = vld [vmem:[#allocation2 + $0x44] sm:$0xf]
    %v390 = vld [vmem:[#allocation2 + $0x48] sm:$0xf]
    %v391 = vld [vmem:[#allocation2 + $0x4c] sm:$0xf]
    %v392 = vld [vmem:[#allocation2 + $0x50] sm:$0xf]
    %v393 = vld [vmem:[#allocation2 + $0x54] sm:$0xf]
    %v394 = vld [vmem:[#allocation2 + $0x58] sm:$0xf]
    %v395 = vld [vmem:[#allocation2 + $0x5c] sm:$0xf]
    %v396 = vld [vmem:[#allocation2 + $0x60] sm:$0xf]
    %v397 = vld [vmem:[#allocation2 + $0x64] sm:$0xf]
    %v398 = vld [vmem:[#allocation2 + $0x68] sm:$0xf]
    %v399 = vld [vmem:[#allocation2 + $0x6c] sm:$0xf]
    %v400 = vld [vmem:[#allocation2 + $0x70] sm:$0xf]
    %v401 = vld [vmem:[#allocation2 + $0x74] sm:$0xf]
    %v402 = vld [vmem:[#allocation2 + $0x78] sm:$0xf]
    %v403 = vld [vmem:[#allocation2 + $0x7c] sm:$0xf]
    %v404 = vld [vmem:[#allocation3] sm:$0xf]
    %v405 = vld [vmem:[#allocation3 + $0x4] sm:$0xf]
    %v406 = vld [vmem:[#allocation3 + $0x8] sm:$0xf]
    %v407 = vld [vmem:[#allocation3 + $0xc] sm:$0xf]
    %v440 = vunpack.c.l.b16 %v372
    %v441 = vunpack.c.l.b16 %v373
    %v442 = vunpack.c.l.b16 %v374
    %v443 = vunpack.c.l.b16 %v375
    %v444 = vunpack.c.l.b16 %v376
    %v445 = vunpack.c.l.b16 %v377
    %v446 = vunpack.c.l.b16 %v378
    %v447 = vunpack.c.l.b16 %v379
    %v448 = vunpack.c.l.b16 %v380
    %v449 = vunpack.c.l.b16 %v381
    %v450 = vunpack.c.l.b16 %v382
    %v451 = vunpack.c.l.b16 %v383
    %v452 = vunpack.c.l.b16 %v384
    %v453 = vunpack.c.l.b16 %v385
    %v454 = vunpack.c.l.b16 %v386
    %v455 = vunpack.c.l.b16 %v387
    %v456 = vunpack.c.l.b16 %v388
    %v457 = vunpack.c.l.b16 %v389
    %v458 = vunpack.c.l.b16 %v390
    %v459 = vunpack.c.l.b16 %v391
    %v460 = vunpack.c.l.b16 %v392
    %v461 = vunpack.c.l.b16 %v393
    %v462 = vunpack.c.l.b16 %v394
    %v463 = vunpack.c.l.b16 %v395
    %v464 = vunpack.c.l.b16 %v396
    %v465 = vunpack.c.l.b16 %v397
    %v466 = vunpack.c.l.b16 %v398
    %v467 = vunpack.c.l.b16 %v399
    %v468 = vunpack.c.l.b16 %v400
    %v469 = vunpack.c.l.b16 %v401
    %v470 = vunpack.c.l.b16 %v402
    %v471 = vunpack.c.l.b16 %v403
    %v472 = vpack.c.b16 %v441, %v440
    %v473 = vpack.c.b16 %v443, %v442
    %v474 = vpack.c.b16 %v445, %v444
    %v475 = vpack.c.b16 %v447, %v446
    %v476 = vpack.c.b16 %v449, %v448
    %v477 = vpack.c.b16 %v451, %v450
    %v478 = vpack.c.b16 %v453, %v452
    %v479 = vpack.c.b16 %v455, %v454
    %v480 = vpack.c.b16 %v457, %v456
    %v481 = vpack.c.b16 %v459, %v458
    %v482 = vpack.c.b16 %v461, %v460
    %v483 = vpack.c.b16 %v463, %v462
    %v484 = vpack.c.b16 %v465, %v464
    %v485 = vpack.c.b16 %v467, %v466
    %v486 = vpack.c.b16 %v469, %v468
    %v487 = vpack.c.b16 %v471, %v470
    %v492 = vunpack.c.l.b16 %v404
    %v493 = vunpack.c.l.b16 %v405
    %v494 = vunpack.c.l.b16 %v406
    %v495 = vunpack.c.l.b16 %v407
    %v496 = vpack.c.b16 %v493, %v492
    %v497 = vpack.c.b16 %v495, %v494
    %v498 = vld [vmem:[%s2] sm:$0x3]
    %s499 = scalar_lea.vmem %s2, 2
    %v500 = vld [vmem:[%s499] sm:$0x3]
    %vm501 = vsmask.f32 7424
    %v503 = vshrl.u32 %v472, 16
    %v505 = vshll.u32 %v472, 16
    %v507 = vrot.slane %v505, 1
    %v508 = vor.u32 %v503, %v507
    %v510 = vshll.u32 %v473, 16
    %v512 = vrot.slane %v510, 1
    %v513 = vsel %vm501, %v508, %v512
    %v514 = vshrl.u32 %v473, 16
    %v516 = vor.u32 %v514, %v512
    %v518 = vshll.u32 %v474, 16
    %v520 = vrot.slane %v518, 1
    %v521 = vsel %vm501, %v516, %v520
    %v522 = vshrl.u32 %v474, 16
    %v524 = vor.u32 %v522, %v520
    %v526 = vshll.u32 %v475, 16
    %v528 = vrot.slane %v526, 1
    %v529 = vsel %vm501, %v524, %v528
    %v530 = vshrl.u32 %v475, 16
    %v532 = vor.u32 %v530, %v528
    %v534 = vshll.u32 %v476, 16
    %v536 = vrot.slane %v534, 1
    %v537 = vsel %vm501, %v532, %v536
    %v538 = vshrl.u32 %v476, 16
    %v540 = vor.u32 %v538, %v536
    %v542 = vshll.u32 %v477, 16
    %v544 = vrot.slane %v542, 1
    %v545 = vsel %vm501, %v540, %v544
    %v546 = vshrl.u32 %v477, 16
    %v548 = vor.u32 %v546, %v544
    %v550 = vshll.u32 %v478, 16
    %v552 = vrot.slane %v550, 1
    %v553 = vsel %vm501, %v548, %v552
    %v554 = vshrl.u32 %v478, 16
    %v556 = vor.u32 %v554, %v552
    %v558 = vshll.u32 %v479, 16
    %v560 = vrot.slane %v558, 1
    %v561 = vsel %vm501, %v556, %v560
    %v562 = vshrl.u32 %v479, 16
    %v564 = vor.u32 %v562, %v560
    %v566 = vshll.u32 %v496, 16
    %v568 = vrot.slane %v566, 1
    %v569 = vsel %vm501, %v564, %v568
    %v571 = vshrl.u32 %v480, 16
    %v573 = vshll.u32 %v480, 16
    %v575 = vrot.slane %v573, 1
    %v576 = vor.u32 %v571, %v575
    %v578 = vshll.u32 %v481, 16
    %v580 = vrot.slane %v578, 1
    %v581 = vsel %vm501, %v576, %v580
    %v582 = vshrl.u32 %v481, 16
    %v584 = vor.u32 %v582, %v580
    %v586 = vshll.u32 %v482, 16
    %v588 = vrot.slane %v586, 1
    %v589 = vsel %vm501, %v584, %v588
    %v590 = vshrl.u32 %v482, 16
    %v592 = vor.u32 %v590, %v588
    %v594 = vshll.u32 %v483, 16
    %v596 = vrot.slane %v594, 1
    %v597 = vsel %vm501, %v592, %v596
    %v598 = vshrl.u32 %v483, 16
    %v600 = vor.u32 %v598, %v596
    %v602 = vshll.u32 %v484, 16
    %v604 = vrot.slane %v602, 1
    %v605 = vsel %vm501, %v600, %v604
    %v606 = vshrl.u32 %v484, 16
    %v608 = vor.u32 %v606, %v604
    %v610 = vshll.u32 %v485, 16
    %v612 = vrot.slane %v610, 1
    %v613 = vsel %vm501, %v608, %v612
    %v614 = vshrl.u32 %v485, 16
    %v616 = vor.u32 %v614, %v612
    %v618 = vshll.u32 %v486, 16
    %v620 = vrot.slane %v618, 1
    %v621 = vsel %vm501, %v616, %v620
    %v622 = vshrl.u32 %v486, 16
    %v624 = vor.u32 %v622, %v620
    %v626 = vshll.u32 %v487, 16
    %v628 = vrot.slane %v626, 1
    %v629 = vsel %vm501, %v624, %v628
    %v630 = vshrl.u32 %v487, 16
    %v632 = vor.u32 %v630, %v628
    %v634 = vshll.u32 %v497, 16
    %v636 = vrot.slane %v634, 1
    %v637 = vsel %vm501, %v632, %v636
    %vm638 = vcmask 31744
    %v640 = vsel %vm638, %v513, 0
    %v643 = vsel %vm638, %v521, 0
    %v646 = vsel %vm638, %v529, 0
    %v649 = vsel %vm638, %v537, 0
    %v652 = vsel %vm638, %v545, 0
    %v655 = vsel %vm638, %v553, 0
    %v658 = vsel %vm638, %v561, 0
    %v661 = vsel %vm638, %v569, 0
    %v664 = vsel %vm638, %v581, 0
    %v667 = vsel %vm638, %v589, 0
    %v670 = vsel %vm638, %v597, 0
    %v673 = vsel %vm638, %v605, 0
    %v676 = vsel %vm638, %v613, 0
    %v679 = vsel %vm638, %v621, 0
    %v682 = vsel %vm638, %v629, 0
    %v685 = vsel %vm638, %v637, 0
    %vm687 = vcmask 1041408
    %v689 = vsel %vm687, %v500, 0
    %691 = vmatprep.subr.bf16.mxu0 0
    %692 = vmatpush1.bf16.msra.mxu0 %v689
    %693 = vmatprep.subr.bf16.mxu0 0
    %694 = vmatpush1.bf16.msra.mxu0 0
    %695 = vmatprep.subr.bf16.mxu0 0
    %696 = vmatpush1.bf16.msra.mxu0 0
    %697 = vmatprep.subr.bf16.mxu0 0
    %698 = vmatpush1.bf16.msra.mxu0 0
    %699 = vmatprep.subr.bf16.mxu0 0
    %700 = vmatpush1.bf16.msra.mxu0 0
    %701 = vmatprep.subr.bf16.mxu0 0
    %702 = vmatpush1.bf16.msra.mxu0 0
    %703 = vmatprep.subr.bf16.mxu0 0
    %704 = vmatpush1.bf16.msra.mxu0 0
    %705 = vmatprep.subr.bf16.mxu0 0
    %706 = vmatpush1.bf16.msra.mxu0 0
    %707 = vmatprep.subr.bf16.mxu0 0
    %708 = vmatpush1.bf16.msra.mxu0 0
    %709 = vmatprep.subr.bf16.mxu0 0
    %710 = vmatpush1.bf16.msra.mxu0 0
    %711 = vmatprep.subr.bf16.mxu0 0
    %712 = vmatpush1.bf16.msra.mxu0 0
    %713 = vmatprep.subr.bf16.mxu0 0
    %714 = vmatpush1.bf16.msra.mxu0 0
    %715 = vmatprep.subr.bf16.mxu0 0
    %716 = vmatpush1.bf16.msra.mxu0 0
    %717 = vmatprep.subr.bf16.mxu0 0
    %718 = vmatpush1.bf16.msra.mxu0 0
    %719 = vmatprep.subr.bf16.mxu0 0
    %720 = vmatpush1.bf16.msra.mxu0 0
    %721 = vmatprep.subr.bf16.mxu0 0
    %722 = vmatpush1.bf16.msra.mxu0 0
    %723 = vmatprep.mubr.bf16.mxu0 0
    %724 = vmatmul.mubr.bf16.gmra.mrb[0].mxu0 %v640
    %v725 = vpop.f32.mrb[0].mxu0
    %v726 = vadd.f32 0.0, %v725
    %v727 = vpop.f32.mrb[0].mxu0
    %v728 = vpop.f32.mrb[0].mxu0
    %v729 = vadd.f32 0.0, %v728
    %v730 = vpop.f32.mrb[0].mxu0
    %731 = vmatprep.mubr.bf16.mxu0 0
    %732 = vmatmul.mubr.bf16.gmra.mrb[0].mxu0 %v643
    %v733 = vpop.f32.mrb[0].mxu0
    %v734 = vadd.f32 0.0, %v733
    %v735 = vpop.f32.mrb[0].mxu0
    %v736 = vpop.f32.mrb[0].mxu0
    %v737 = vadd.f32 0.0, %v736
    %v738 = vpop.f32.mrb[0].mxu0
    %739 = vmatprep.mubr.bf16.mxu0 0
    %740 = vmatmul.mubr.bf16.gmra.mrb[0].mxu0 %v646
    %v741 = vpop.f32.mrb[0].mxu0
    %v742 = vadd.f32 0.0, %v741
    %v743 = vpop.f32.mrb[0].mxu0
    %v744 = vpop.f32.mrb[0].mxu0
    %v745 = vadd.f32 0.0, %v744
    %v746 = vpop.f32.mrb[0].mxu0
    %747 = vmatprep.mubr.bf16.mxu0 0
    %748 = vmatmul.mubr.bf16.gmra.mrb[0].mxu0 %v649
    %v749 = vpop.f32.mrb[0].mxu0
    %v750 = vadd.f32 0.0, %v749
    %v751 = vpop.f32.mrb[0].mxu0
    %v752 = vpop.f32.mrb[0].mxu0
    %v753 = vadd.f32 0.0, %v752
    %v754 = vpop.f32.mrb[0].mxu0
    %755 = vmatprep.mubr.bf16.mxu0 0
    %756 = vmatmul.mubr.bf16.gmra.mrb[0].mxu0 %v652
    %v757 = vpop.f32.mrb[0].mxu0
    %v758 = vadd.f32 0.0, %v757
    %v759 = vpop.f32.mrb[0].mxu0
    %v760 = vpop.f32.mrb[0].mxu0
    %v761 = vadd.f32 0.0, %v760
    %v762 = vpop.f32.mrb[0].mxu0
    %763 = vmatprep.mubr.bf16.mxu0 0
    %764 = vmatmul.mubr.bf16.gmra.mrb[0].mxu0 %v655
    %v765 = vpop.f32.mrb[0].mxu0
    %v766 = vadd.f32 0.0, %v765
    %v767 = vpop.f32.mrb[0].mxu0
    %v768 = vpop.f32.mrb[0].mxu0
    %v769 = vadd.f32 0.0, %v768
    %v770 = vpop.f32.mrb[0].mxu0
    %771 = vmatprep.mubr.bf16.mxu0 0
    %772 = vmatmul.mubr.bf16.gmra.mrb[0].mxu0 %v658
    %v773 = vpop.f32.mrb[0].mxu0
    %v774 = vadd.f32 0.0, %v773
    %v775 = vpop.f32.mrb[0].mxu0
    %v776 = vpop.f32.mrb[0].mxu0
    %v777 = vadd.f32 0.0, %v776
    %v778 = vpop.f32.mrb[0].mxu0
    %779 = vmatprep.mubr.bf16.mxu0 0
    %780 = vmatmul.mubr.bf16.gmra.mrb[0].mxu0 %v661
    %v781 = vpop.f32.mrb[0].mxu0
    %v782 = vadd.f32 0.0, %v781
    %v783 = vpop.f32.mrb[0].mxu0
    %v784 = vpop.f32.mrb[0].mxu0
    %v785 = vadd.f32 0.0, %v784
    %v786 = vpop.f32.mrb[0].mxu0
    %787 = vmatprep.mubr.bf16.mxu0 0
    %788 = vmatmul.mubr.bf16.gmra.mrb[0].mxu0 %v664
    %v789 = vpop.f32.mrb[0].mxu0
    %v790 = vadd.f32 0.0, %v789
    %v791 = vpop.f32.mrb[0].mxu0
    %v792 = vpop.f32.mrb[0].mxu0
    %v793 = vadd.f32 0.0, %v792
    %v794 = vpop.f32.mrb[0].mxu0
    %795 = vmatprep.mubr.bf16.mxu0 0
    %796 = vmatmul.mubr.bf16.gmra.mrb[0].mxu0 %v667
    %v797 = vpop.f32.mrb[0].mxu0
    %v798 = vadd.f32 0.0, %v797
    %v799 = vpop.f32.mrb[0].mxu0
    %v800 = vpop.f32.mrb[0].mxu0
    %v801 = vadd.f32 0.0, %v800
    %v802 = vpop.f32.mrb[0].mxu0
    %803 = vmatprep.mubr.bf16.mxu0 0
    %804 = vmatmul.mubr.bf16.gmra.mrb[0].mxu0 %v670
    %v805 = vpop.f32.mrb[0].mxu0
    %v806 = vadd.f32 0.0, %v805
    %v807 = vpop.f32.mrb[0].mxu0
    %v808 = vpop.f32.mrb[0].mxu0
    %v809 = vadd.f32 0.0, %v808
    %v810 = vpop.f32.mrb[0].mxu0
    %811 = vmatprep.mubr.bf16.mxu0 0
    %812 = vmatmul.mubr.bf16.gmra.mrb[0].mxu0 %v673
    %v813 = vpop.f32.mrb[0].mxu0
    %v814 = vadd.f32 0.0, %v813
    %v815 = vpop.f32.mrb[0].mxu0
    %v816 = vpop.f32.mrb[0].mxu0
    %v817 = vadd.f32 0.0, %v816
    %v818 = vpop.f32.mrb[0].mxu0
    %819 = vmatprep.mubr.bf16.mxu0 0
    %820 = vmatmul.mubr.bf16.gmra.mrb[0].mxu0 %v676
    %v821 = vpop.f32.mrb[0].mxu0
    %v822 = vadd.f32 0.0, %v821
    %v823 = vpop.f32.mrb[0].mxu0
    %v824 = vpop.f32.mrb[0].mxu0
    %v825 = vadd.f32 0.0, %v824
    %v826 = vpop.f32.mrb[0].mxu0
    %827 = vmatprep.mubr.bf16.mxu0 0
    %828 = vmatmul.mubr.bf16.gmra.mrb[0].mxu0 %v679
    %v829 = vpop.f32.mrb[0].mxu0
    %v830 = vadd.f32 0.0, %v829
    %v831 = vpop.f32.mrb[0].mxu0
    %v832 = vpop.f32.mrb[0].mxu0
    %v833 = vadd.f32 0.0, %v832
    %v834 = vpop.f32.mrb[0].mxu0
    %835 = vmatprep.mubr.bf16.mxu0 0
    %836 = vmatmul.mubr.bf16.gmra.mrb[0].mxu0 %v682
    %v837 = vpop.f32.mrb[0].mxu0
    %v838 = vadd.f32 0.0, %v837
    %v839 = vpop.f32.mrb[0].mxu0
    %v840 = vpop.f32.mrb[0].mxu0
    %v841 = vadd.f32 0.0, %v840
    %v842 = vpop.f32.mrb[0].mxu0
    %843 = vmatprep.mubr.bf16.mxu0 0
    %844 = vmatmul.mubr.bf16.gmra.mrb[0].mxu0 %v685
    %v845 = vpop.f32.mrb[0].mxu0
    %v846 = vadd.f32 0.0, %v845
    %v847 = vpop.f32.mrb[0].mxu0
    %v848 = vpop.f32.mrb[0].mxu0
    %v849 = vadd.f32 0.0, %v848
    %v850 = vpop.f32.mrb[0].mxu0
    %851 = vdwg.mxu0
    %v852 = vsel %vm638, %v472, 0
    %v854 = vsel %vm638, %v473, 0
    %v856 = vsel %vm638, %v474, 0
    %v858 = vsel %vm638, %v475, 0
    %v860 = vsel %vm638, %v476, 0
    %v862 = vsel %vm638, %v477, 0
    %v864 = vsel %vm638, %v478, 0
    %v866 = vsel %vm638, %v479, 0
    %v868 = vsel %vm638, %v480, 0
    %v870 = vsel %vm638, %v481, 0
    %v872 = vsel %vm638, %v482, 0
    %v874 = vsel %vm638, %v483, 0
    %v876 = vsel %vm638, %v484, 0
    %v878 = vsel %vm638, %v485, 0
    %v880 = vsel %vm638, %v486, 0
    %v882 = vsel %vm638, %v487, 0
    %v885 = vsel %vm687, %v498, 0
    %887 = vmatprep.subr.bf16.mxu0 0
    %888 = vmatpush1.bf16.msra.mxu0 %v885
    %889 = vmatprep.subr.bf16.mxu0 0
    %890 = vmatpush1.bf16.msra.mxu0 0
    %891 = vmatprep.subr.bf16.mxu0 0
    %892 = vmatpush1.bf16.msra.mxu0 0
    %893 = vmatprep.subr.bf16.mxu0 0
    %894 = vmatpush1.bf16.msra.mxu0 0
    %895 = vmatprep.subr.bf16.mxu0 0
    %896 = vmatpush1.bf16.msra.mxu0 0
    %897 = vmatprep.subr.bf16.mxu0 0
    %898 = vmatpush1.bf16.msra.mxu0 0
    %899 = vmatprep.subr.bf16.mxu0 0
    %900 = vmatpush1.bf16.msra.mxu0 0
    %901 = vmatprep.subr.bf16.mxu0 0
    %902 = vmatpush1.bf16.msra.mxu0 0
    %903 = vmatprep.subr.bf16.mxu0 0
    %904 = vmatpush1.bf16.msra.mxu0 0
    %905 = vmatprep.subr.bf16.mxu0 0
    %906 = vmatpush1.bf16.msra.mxu0 0
    %907 = vmatprep.subr.bf16.mxu0 0
    %908 = vmatpush1.bf16.msra.mxu0 0
    %909 = vmatprep.subr.bf16.mxu0 0
    %910 = vmatpush1.bf16.msra.mxu0 0
    %911 = vmatprep.subr.bf16.mxu0 0
    %912 = vmatpush1.bf16.msra.mxu0 0
    %913 = vmatprep.subr.bf16.mxu0 0
    %914 = vmatpush1.bf16.msra.mxu0 0
    %915 = vmatprep.subr.bf16.mxu0 0
    %916 = vmatpush1.bf16.msra.mxu0 0
    %917 = vmatprep.subr.bf16.mxu0 0
    %918 = vmatpush1.bf16.msra.mxu0 0
    %919 = vmatprep.mubr.bf16.mxu0 0
    %920 = vmatmul.mubr.bf16.gmra.mrb[0].mxu0 %v852
    %v921 = vpop.f32.mrb[0].mxu0
    %v922 = vadd.f32 %v726, %v921
    %v923 = vpop.f32.mrb[0].mxu0
    %v924 = vpop.f32.mrb[0].mxu0
    %v925 = vadd.f32 %v729, %v924
    %v926 = vpop.f32.mrb[0].mxu0
    %927 = vmatprep.mubr.bf16.mxu0 0
    %928 = vmatmul.mubr.bf16.gmra.mrb[0].mxu0 %v854
    %v929 = vpop.f32.mrb[0].mxu0
    %v930 = vadd.f32 %v734, %v929
    %v931 = vpop.f32.mrb[0].mxu0
    %v932 = vpop.f32.mrb[0].mxu0
    %v933 = vadd.f32 %v737, %v932
    %v934 = vpop.f32.mrb[0].mxu0
    %935 = vmatprep.mubr.bf16.mxu0 0
    %936 = vmatmul.mubr.bf16.gmra.mrb[0].mxu0 %v856
    %v937 = vpop.f32.mrb[0].mxu0
    %v938 = vadd.f32 %v742, %v937
    %v939 = vpop.f32.mrb[0].mxu0
    %v940 = vpop.f32.mrb[0].mxu0
    %v941 = vadd.f32 %v745, %v940
    %v942 = vpop.f32.mrb[0].mxu0
    %943 = vmatprep.mubr.bf16.mxu0 0
    %944 = vmatmul.mubr.bf16.gmra.mrb[0].mxu0 %v858
    %v945 = vpop.f32.mrb[0].mxu0
    %v946 = vadd.f32 %v750, %v945
    %v947 = vpop.f32.mrb[0].mxu0
    %v948 = vpop.f32.mrb[0].mxu0
    %v949 = vadd.f32 %v753, %v948
    %v950 = vpop.f32.mrb[0].mxu0
    %951 = vmatprep.mubr.bf16.mxu0 0
    %952 = vmatmul.mubr.bf16.gmra.mrb[0].mxu0 %v860
    %v953 = vpop.f32.mrb[0].mxu0
    %v954 = vadd.f32 %v758, %v953
    %v955 = vpop.f32.mrb[0].mxu0
    %v956 = vpop.f32.mrb[0].mxu0
    %v957 = vadd.f32 %v761, %v956
    %v958 = vpop.f32.mrb[0].mxu0
    %959 = vmatprep.mubr.bf16.mxu0 0
    %960 = vmatmul.mubr.bf16.gmra.mrb[0].mxu0 %v862
    %v961 = vpop.f32.mrb[0].mxu0
    %v962 = vadd.f32 %v766, %v961
    %v963 = vpop.f32.mrb[0].mxu0
    %v964 = vpop.f32.mrb[0].mxu0
    %v965 = vadd.f32 %v769, %v964
    %v966 = vpop.f32.mrb[0].mxu0
    %967 = vmatprep.mubr.bf16.mxu0 0
    %968 = vmatmul.mubr.bf16.gmra.mrb[0].mxu0 %v864
    %v969 = vpop.f32.mrb[0].mxu0
    %v970 = vadd.f32 %v774, %v969
    %v971 = vpop.f32.mrb[0].mxu0
    %v972 = vpop.f32.mrb[0].mxu0
    %v973 = vadd.f32 %v777, %v972
    %v974 = vpop.f32.mrb[0].mxu0
    %975 = vmatprep.mubr.bf16.mxu0 0
    %976 = vmatmul.mubr.bf16.gmra.mrb[0].mxu0 %v866
    %v977 = vpop.f32.mrb[0].mxu0
    %v978 = vadd.f32 %v782, %v977
    %v979 = vpop.f32.mrb[0].mxu0
    %v980 = vpop.f32.mrb[0].mxu0
    %v981 = vadd.f32 %v785, %v980
    %v982 = vpop.f32.mrb[0].mxu0
    %983 = vmatprep.mubr.bf16.mxu0 0
    %984 = vmatmul.mubr.bf16.gmra.mrb[0].mxu0 %v868
    %v985 = vpop.f32.mrb[0].mxu0
    %v986 = vadd.f32 %v790, %v985
    %v987 = vpop.f32.mrb[0].mxu0
    %v988 = vpop.f32.mrb[0].mxu0
    %v989 = vadd.f32 %v793, %v988
    %v990 = vpop.f32.mrb[0].mxu0
    %991 = vmatprep.mubr.bf16.mxu0 0
    %992 = vmatmul.mubr.bf16.gmra.mrb[0].mxu0 %v870
    %v993 = vpop.f32.mrb[0].mxu0
    %v994 = vadd.f32 %v798, %v993
    %v995 = vpop.f32.mrb[0].mxu0
    %v996 = vpop.f32.mrb[0].mxu0
    %v997 = vadd.f32 %v801, %v996
    %v998 = vpop.f32.mrb[0].mxu0
    %999 = vmatprep.mubr.bf16.mxu0 0
    %1000 = vmatmul.mubr.bf16.gmra.mrb[0].mxu0 %v872
    %v1001 = vpop.f32.mrb[0].mxu0
    %v1002 = vadd.f32 %v806, %v1001
    %v1003 = vpop.f32.mrb[0].mxu0
    %v1004 = vpop.f32.mrb[0].mxu0
    %v1005 = vadd.f32 %v809, %v1004
    %v1006 = vpop.f32.mrb[0].mxu0
    %1007 = vmatprep.mubr.bf16.mxu0 0
    %1008 = vmatmul.mubr.bf16.gmra.mrb[0].mxu0 %v874
    %v1009 = vpop.f32.mrb[0].mxu0
    %v1010 = vadd.f32 %v814, %v1009
    %v1011 = vpop.f32.mrb[0].mxu0
    %v1012 = vpop.f32.mrb[0].mxu0
    %v1013 = vadd.f32 %v817, %v1012
    %v1014 = vpop.f32.mrb[0].mxu0
    %1015 = vmatprep.mubr.bf16.mxu0 0
    %1016 = vmatmul.mubr.bf16.gmra.mrb[0].mxu0 %v876
    %v1017 = vpop.f32.mrb[0].mxu0
    %v1018 = vadd.f32 %v822, %v1017
    %v1019 = vpop.f32.mrb[0].mxu0
    %v1020 = vpop.f32.mrb[0].mxu0
    %v1021 = vadd.f32 %v825, %v1020
    %v1022 = vpop.f32.mrb[0].mxu0
    %1023 = vmatprep.mubr.bf16.mxu0 0
    %1024 = vmatmul.mubr.bf16.gmra.mrb[0].mxu0 %v878
    %v1025 = vpop.f32.mrb[0].mxu0
    %v1026 = vadd.f32 %v830, %v1025
    %v1027 = vpop.f32.mrb[0].mxu0
    %v1028 = vpop.f32.mrb[0].mxu0
    %v1029 = vadd.f32 %v833, %v1028
    %v1030 = vpop.f32.mrb[0].mxu0
    %1031 = vmatprep.mubr.bf16.mxu0 0
    %1032 = vmatmul.mubr.bf16.gmra.mrb[0].mxu0 %v880
    %v1033 = vpop.f32.mrb[0].mxu0
    %v1034 = vadd.f32 %v838, %v1033
    %v1035 = vpop.f32.mrb[0].mxu0
    %v1036 = vpop.f32.mrb[0].mxu0
    %v1037 = vadd.f32 %v841, %v1036
    %v1038 = vpop.f32.mrb[0].mxu0
    %1039 = vmatprep.mubr.bf16.mxu0 0
    %1040 = vmatmul.mubr.bf16.gmra.mrb[0].mxu0 %v882
    %v1041 = vpop.f32.mrb[0].mxu0
    %v1042 = vadd.f32 %v846, %v1041
    %v1043 = vpop.f32.mrb[0].mxu0
    %v1044 = vpop.f32.mrb[0].mxu0
    %v1045 = vadd.f32 %v849, %v1044
    %v1046 = vpop.f32.mrb[0].mxu0
    %1047 = vdwg.mxu0
    %s1048 = scalar_lea.vmem %s2, 4
    %v1049 = vld [vmem:[%s1048] sm:$0x3]
    %vm1050 = vcmask 1046528
    %v1051 = vrot.slane %v472, 1
    %v1052 = vrot.slane %v473, 1
    %v1053 = vsel %vm1050, %v1051, %v1052
    %v1054 = vrot.slane %v474, 1
    %v1055 = vsel %vm1050, %v1052, %v1054
    %v1056 = vrot.slane %v475, 1
    %v1057 = vsel %vm1050, %v1054, %v1056
    %v1058 = vrot.slane %v476, 1
    %v1059 = vsel %vm1050, %v1056, %v1058
    %v1060 = vrot.slane %v477, 1
    %v1061 = vsel %vm1050, %v1058, %v1060
    %v1062 = vrot.slane %v478, 1
    %v1063 = vsel %vm1050, %v1060, %v1062
    %v1064 = vrot.slane %v479, 1
    %v1065 = vsel %vm1050, %v1062, %v1064
    %v1066 = vrot.slane %v496, 1
    %v1067 = vsel %vm1050, %v1064, %v1066
    %v1068 = vrot.slane %v480, 1
    %v1069 = vrot.slane %v481, 1
    %v1070 = vsel %vm1050, %v1068, %v1069
    %v1071 = vrot.slane %v482, 1
    %v1072 = vsel %vm1050, %v1069, %v1071
    %v1073 = vrot.slane %v483, 1
    %v1074 = vsel %vm1050, %v1071, %v1073
    %v1075 = vrot.slane %v484, 1
    %v1076 = vsel %vm1050, %v1073, %v1075
    %v1077 = vrot.slane %v485, 1
    %v1078 = vsel %vm1050, %v1075, %v1077
    %v1079 = vrot.slane %v486, 1
    %v1080 = vsel %vm1050, %v1077, %v1079
    %v1081 = vrot.slane %v487, 1
    %v1082 = vsel %vm1050, %v1079, %v1081
    %v1083 = vrot.slane %v497, 1
    %v1084 = vsel %vm1050, %v1081, %v1083
    %v1086 = vsel %vm638, %v1053, 0
    %v1089 = vsel %vm638, %v1055, 0
    %v1092 = vsel %vm638, %v1057, 0
    %v1095 = vsel %vm638, %v1059, 0
    %v1098 = vsel %vm638, %v1061, 0
    %v1101 = vsel %vm638, %v1063, 0
    %v1104 = vsel %vm638, %v1065, 0
    %v1107 = vsel %vm638, %v1067, 0
    %v1110 = vsel %vm638, %v1070, 0
    %v1113 = vsel %vm638, %v1072, 0
    %v1116 = vsel %vm638, %v1074, 0
    %v1119 = vsel %vm638, %v1076, 0
    %v1122 = vsel %vm638, %v1078, 0
    %v1125 = vsel %vm638, %v1080, 0
    %v1128 = vsel %vm638, %v1082, 0
    %v1131 = vsel %vm638, %v1084, 0
    %v1134 = vsel %vm687, %v1049, 0
    %1136 = vmatprep.subr.bf16.mxu0 0
    %1137 = vmatpush1.bf16.msra.mxu0 %v1134
    %1138 = vmatprep.subr.bf16.mxu0 0
    %1139 = vmatpush1.bf16.msra.mxu0 0
    %1140 = vmatprep.subr.bf16.mxu0 0
    %1141 = vmatpush1.bf16.msra.mxu0 0
    %1142 = vmatprep.subr.bf16.mxu0 0
    %1143 = vmatpush1.bf16.msra.mxu0 0
    %1144 = vmatprep.subr.bf16.mxu0 0
    %1145 = vmatpush1.bf16.msra.mxu0 0
    %1146 = vmatprep.subr.bf16.mxu0 0
    %1147 = vmatpush1.bf16.msra.mxu0 0
    %1148 = vmatprep.subr.bf16.mxu0 0
    %1149 = vmatpush1.bf16.msra.mxu0 0
    %1150 = vmatprep.subr.bf16.mxu0 0
    %1151 = vmatpush1.bf16.msra.mxu0 0
    %1152 = vmatprep.subr.bf16.mxu0 0
    %1153 = vmatpush1.bf16.msra.mxu0 0
    %1154 = vmatprep.subr.bf16.mxu0 0
    %1155 = vmatpush1.bf16.msra.mxu0 0
    %1156 = vmatprep.subr.bf16.mxu0 0
    %1157 = vmatpush1.bf16.msra.mxu0 0
    %1158 = vmatprep.subr.bf16.mxu0 0
    %1159 = vmatpush1.bf16.msra.mxu0 0
    %1160 = vmatprep.subr.bf16.mxu0 0
    %1161 = vmatpush1.bf16.msra.mxu0 0
    %1162 = vmatprep.subr.bf16.mxu0 0
    %1163 = vmatpush1.bf16.msra.mxu0 0
    %1164 = vmatprep.subr.bf16.mxu0 0
    %1165 = vmatpush1.bf16.msra.mxu0 0
    %1166 = vmatprep.subr.bf16.mxu0 0
    %1167 = vmatpush1.bf16.msra.mxu0 0
    %1168 = vmatprep.mubr.bf16.mxu0 0
    %1169 = vmatmul.mubr.bf16.gmra.mrb[0].mxu0 %v1086
    %v1170 = vpop.f32.mrb[0].mxu0
    %v1171 = vadd.f32 0.0, %v1170
    %v1172 = vpop.f32.mrb[0].mxu0
    %v1173 = vpop.f32.mrb[0].mxu0
    %v1174 = vadd.f32 0.0, %v1173
    %v1175 = vpop.f32.mrb[0].mxu0
    %1176 = vmatprep.mubr.bf16.mxu0 0
    %1177 = vmatmul.mubr.bf16.gmra.mrb[0].mxu0 %v1089
    %v1178 = vpop.f32.mrb[0].mxu0
    %v1179 = vadd.f32 0.0, %v1178
    %v1180 = vpop.f32.mrb[0].mxu0
    %v1181 = vpop.f32.mrb[0].mxu0
    %v1182 = vadd.f32 0.0, %v1181
    %v1183 = vpop.f32.mrb[0].mxu0
    %1184 = vmatprep.mubr.bf16.mxu0 0
    %1185 = vmatmul.mubr.bf16.gmra.mrb[0].mxu0 %v1092
    %v1186 = vpop.f32.mrb[0].mxu0
    %v1187 = vadd.f32 0.0, %v1186
    %v1188 = vpop.f32.mrb[0].mxu0
    %v1189 = vpop.f32.mrb[0].mxu0
    %v1190 = vadd.f32 0.0, %v1189
    %v1191 = vpop.f32.mrb[0].mxu0
    %1192 = vmatprep.mubr.bf16.mxu0 0
    %1193 = vmatmul.mubr.bf16.gmra.mrb[0].mxu0 %v1095
    %v1194 = vpop.f32.mrb[0].mxu0
    %v1195 = vadd.f32 0.0, %v1194
    %v1196 = vpop.f32.mrb[0].mxu0
    %v1197 = vpop.f32.mrb[0].mxu0
    %v1198 = vadd.f32 0.0, %v1197
    %v1199 = vpop.f32.mrb[0].mxu0
    %1200 = vmatprep.mubr.bf16.mxu0 0
    %1201 = vmatmul.mubr.bf16.gmra.mrb[0].mxu0 %v1098
    %v1202 = vpop.f32.mrb[0].mxu0
    %v1203 = vadd.f32 0.0, %v1202
    %v1204 = vpop.f32.mrb[0].mxu0
    %v1205 = vpop.f32.mrb[0].mxu0
    %v1206 = vadd.f32 0.0, %v1205
    %v1207 = vpop.f32.mrb[0].mxu0
    %1208 = vmatprep.mubr.bf16.mxu0 0
    %1209 = vmatmul.mubr.bf16.gmra.mrb[0].mxu0 %v1101
    %v1210 = vpop.f32.mrb[0].mxu0
    %v1211 = vadd.f32 0.0, %v1210
    %v1212 = vpop.f32.mrb[0].mxu0
    %v1213 = vpop.f32.mrb[0].mxu0
    %v1214 = vadd.f32 0.0, %v1213
    %v1215 = vpop.f32.mrb[0].mxu0
    %1216 = vmatprep.mubr.bf16.mxu0 0
    %1217 = vmatmul.mubr.bf16.gmra.mrb[0].mxu0 %v1104
    %v1218 = vpop.f32.mrb[0].mxu0
    %v1219 = vadd.f32 0.0, %v1218
    %v1220 = vpop.f32.mrb[0].mxu0
    %v1221 = vpop.f32.mrb[0].mxu0
    %v1222 = vadd.f32 0.0, %v1221
    %v1223 = vpop.f32.mrb[0].mxu0
    %1224 = vmatprep.mubr.bf16.mxu0 0
    %1225 = vmatmul.mubr.bf16.gmra.mrb[0].mxu0 %v1107
    %v1226 = vpop.f32.mrb[0].mxu0
    %v1227 = vadd.f32 0.0, %v1226
    %v1228 = vpop.f32.mrb[0].mxu0
    %v1229 = vpop.f32.mrb[0].mxu0
    %v1230 = vadd.f32 0.0, %v1229
    %v1231 = vpop.f32.mrb[0].mxu0
    %1232 = vmatprep.mubr.bf16.mxu0 0
    %1233 = vmatmul.mubr.bf16.gmra.mrb[0].mxu0 %v1110
    %v1234 = vpop.f32.mrb[0].mxu0
    %v1235 = vadd.f32 0.0, %v1234
    %v1236 = vpop.f32.mrb[0].mxu0
    %v1237 = vpop.f32.mrb[0].mxu0
    %v1238 = vadd.f32 0.0, %v1237
    %v1239 = vpop.f32.mrb[0].mxu0
    %1240 = vmatprep.mubr.bf16.mxu0 0
    %1241 = vmatmul.mubr.bf16.gmra.mrb[0].mxu0 %v1113
    %v1242 = vpop.f32.mrb[0].mxu0
    %v1243 = vadd.f32 0.0, %v1242
    %v1244 = vpop.f32.mrb[0].mxu0
    %v1245 = vpop.f32.mrb[0].mxu0
    %v1246 = vadd.f32 0.0, %v1245
    %v1247 = vpop.f32.mrb[0].mxu0
    %1248 = vmatprep.mubr.bf16.mxu0 0
    %1249 = vmatmul.mubr.bf16.gmra.mrb[0].mxu0 %v1116
    %v1250 = vpop.f32.mrb[0].mxu0
    %v1251 = vadd.f32 0.0, %v1250
    %v1252 = vpop.f32.mrb[0].mxu0
    %v1253 = vpop.f32.mrb[0].mxu0
    %v1254 = vadd.f32 0.0, %v1253
    %v1255 = vpop.f32.mrb[0].mxu0
    %1256 = vmatprep.mubr.bf16.mxu0 0
    %1257 = vmatmul.mubr.bf16.gmra.mrb[0].mxu0 %v1119
    %v1258 = vpop.f32.mrb[0].mxu0
    %v1259 = vadd.f32 0.0, %v1258
    %v1260 = vpop.f32.mrb[0].mxu0
    %v1261 = vpop.f32.mrb[0].mxu0
    %v1262 = vadd.f32 0.0, %v1261
    %v1263 = vpop.f32.mrb[0].mxu0
    %1264 = vmatprep.mubr.bf16.mxu0 0
    %1265 = vmatmul.mubr.bf16.gmra.mrb[0].mxu0 %v1122
    %v1266 = vpop.f32.mrb[0].mxu0
    %v1267 = vadd.f32 0.0, %v1266
    %v1268 = vpop.f32.mrb[0].mxu0
    %v1269 = vpop.f32.mrb[0].mxu0
    %v1270 = vadd.f32 0.0, %v1269
    %v1271 = vpop.f32.mrb[0].mxu0
    %1272 = vmatprep.mubr.bf16.mxu0 0
    %1273 = vmatmul.mubr.bf16.gmra.mrb[0].mxu0 %v1125
    %v1274 = vpop.f32.mrb[0].mxu0
    %v1275 = vadd.f32 0.0, %v1274
    %v1276 = vpop.f32.mrb[0].mxu0
    %v1277 = vpop.f32.mrb[0].mxu0
    %v1278 = vadd.f32 0.0, %v1277
    %v1279 = vpop.f32.mrb[0].mxu0
    %1280 = vmatprep.mubr.bf16.mxu0 0
    %1281 = vmatmul.mubr.bf16.gmra.mrb[0].mxu0 %v1128
    %v1282 = vpop.f32.mrb[0].mxu0
    %v1283 = vadd.f32 0.0, %v1282
    %v1284 = vpop.f32.mrb[0].mxu0
    %v1285 = vpop.f32.mrb[0].mxu0
    %v1286 = vadd.f32 0.0, %v1285
    %v1287 = vpop.f32.mrb[0].mxu0
    %1288 = vmatprep.mubr.bf16.mxu0 0
    %1289 = vmatmul.mubr.bf16.gmra.mrb[0].mxu0 %v1131
    %v1290 = vpop.f32.mrb[0].mxu0
    %v1291 = vadd.f32 0.0, %v1290
    %v1292 = vpop.f32.mrb[0].mxu0
    %v1293 = vpop.f32.mrb[0].mxu0
    %v1294 = vadd.f32 0.0, %v1293
    %v1295 = vpop.f32.mrb[0].mxu0
    %1296 = vdwg.mxu0
    %v1297 = vadd.f32 %v922, %v1171
    %v1298 = vadd.f32 %v925, %v1174
    %v1299 = vadd.f32 %v930, %v1179
    %v1300 = vadd.f32 %v933, %v1182
    %v1301 = vadd.f32 %v938, %v1187
    %v1302 = vadd.f32 %v941, %v1190
    %v1303 = vadd.f32 %v946, %v1195
    %v1304 = vadd.f32 %v949, %v1198
    %v1305 = vadd.f32 %v954, %v1203
    %v1306 = vadd.f32 %v957, %v1206
    %v1307 = vadd.f32 %v962, %v1211
    %v1308 = vadd.f32 %v965, %v1214
    %v1309 = vadd.f32 %v970, %v1219
    %v1310 = vadd.f32 %v973, %v1222
    %v1311 = vadd.f32 %v978, %v1227
    %v1312 = vadd.f32 %v981, %v1230
    %v1313 = vadd.f32 %v986, %v1235
    %v1314 = vadd.f32 %v989, %v1238
    %v1315 = vadd.f32 %v994, %v1243
    %v1316 = vadd.f32 %v997, %v1246
    %v1317 = vadd.f32 %v1002, %v1251
    %v1318 = vadd.f32 %v1005, %v1254
    %v1319 = vadd.f32 %v1010, %v1259
    %v1320 = vadd.f32 %v1013, %v1262
    %v1321 = vadd.f32 %v1018, %v1267
    %v1322 = vadd.f32 %v1021, %v1270
    %v1323 = vadd.f32 %v1026, %v1275
    %v1324 = vadd.f32 %v1029, %v1278
    %v1325 = vadd.f32 %v1034, %v1283
    %v1326 = vadd.f32 %v1037, %v1286
    %v1327 = vadd.f32 %v1042, %v1291
    %v1328 = vadd.f32 %v1045, %v1294
    %s1329 = scalar_lea.vmem %s2, 6
    %v1330 = vld [vmem:[%s1329] sm:$0x3]
    %vm1331 = vsmask.f32 6400
    %v1332 = vrot.slane %v503, 1
    %v1333 = vrot.slane %v505, 2
    %v1334 = vor.u32 %v1332, %v1333
    %v1335 = vrot.slane %v514, 1
    %v1336 = vrot.slane %v510, 2
    %v1337 = vor.u32 %v1335, %v1336
    %v1338 = vsel %vm1331, %v1334, %v1337
    %v1339 = vrot.slane %v522, 1
    %v1340 = vrot.slane %v518, 2
    %v1341 = vor.u32 %v1339, %v1340
    %v1342 = vsel %vm1331, %v1337, %v1341
    %v1343 = vrot.slane %v530, 1
    %v1344 = vrot.slane %v526, 2
    %v1345 = vor.u32 %v1343, %v1344
    %v1346 = vsel %vm1331, %v1341, %v1345
    %v1347 = vrot.slane %v538, 1
    %v1348 = vrot.slane %v534, 2
    %v1349 = vor.u32 %v1347, %v1348
    %v1350 = vsel %vm1331, %v1345, %v1349
    %v1351 = vrot.slane %v546, 1
    %v1352 = vrot.slane %v542, 2
    %v1353 = vor.u32 %v1351, %v1352
    %v1354 = vsel %vm1331, %v1349, %v1353
    %v1355 = vrot.slane %v554, 1
    %v1356 = vrot.slane %v550, 2
    %v1357 = vor.u32 %v1355, %v1356
    %v1358 = vsel %vm1331, %v1353, %v1357
    %v1359 = vrot.slane %v562, 1
    %v1360 = vrot.slane %v558, 2
    %v1361 = vor.u32 %v1359, %v1360
    %v1362 = vsel %vm1331, %v1357, %v1361
    %v1363 = vshrl.u32 %v496, 16
    %v1365 = vrot.slane %v1363, 1
    %v1366 = vrot.slane %v566, 2
    %v1367 = vor.u32 %v1365, %v1366
    %v1368 = vsel %vm1331, %v1361, %v1367
    %v1369 = vrot.slane %v571, 1
    %v1370 = vrot.slane %v573, 2
    %v1371 = vor.u32 %v1369, %v1370
    %v1372 = vrot.slane %v582, 1
    %v1373 = vrot.slane %v578, 2
    %v1374 = vor.u32 %v1372, %v1373
    %v1375 = vsel %vm1331, %v1371, %v1374
    %v1376 = vrot.slane %v590, 1
    %v1377 = vrot.slane %v586, 2
    %v1378 = vor.u32 %v1376, %v1377
    %v1379 = vsel %vm1331, %v1374, %v1378
    %v1380 = vrot.slane %v598, 1
    %v1381 = vrot.slane %v594, 2
    %v1382 = vor.u32 %v1380, %v1381
    %v1383 = vsel %vm1331, %v1378, %v1382
    %v1384 = vrot.slane %v606, 1
    %v1385 = vrot.slane %v602, 2
    %v1386 = vor.u32 %v1384, %v1385
    %v1387 = vsel %vm1331, %v1382, %v1386
    %v1388 = vrot.slane %v614, 1
    %v1389 = vrot.slane %v610, 2
    %v1390 = vor.u32 %v1388, %v1389
    %v1391 = vsel %vm1331, %v1386, %v1390
    %v1392 = vrot.slane %v622, 1
    %v1393 = vrot.slane %v618, 2
    %v1394 = vor.u32 %v1392, %v1393
    %v1395 = vsel %vm1331, %v1390, %v1394
    %v1396 = vrot.slane %v630, 1
    %v1397 = vrot.slane %v626, 2
    %v1398 = vor.u32 %v1396, %v1397
    %v1399 = vsel %vm1331, %v1394, %v1398
    %v1400 = vshrl.u32 %v497, 16
    %v1402 = vrot.slane %v1400, 1
    %v1403 = vrot.slane %v634, 2
    %v1404 = vor.u32 %v1402, %v1403
    %v1405 = vsel %vm1331, %v1398, %v1404
    %v1407 = vsel %vm638, %v1338, 0
    %v1410 = vsel %vm638, %v1342, 0
    %v1413 = vsel %vm638, %v1346, 0
    %v1416 = vsel %vm638, %v1350, 0
    %v1419 = vsel %vm638, %v1354, 0
    %v1422 = vsel %vm638, %v1358, 0
    %v1425 = vsel %vm638, %v1362, 0
    %v1428 = vsel %vm638, %v1368, 0
    %v1431 = vsel %vm638, %v1375, 0
    %v1434 = vsel %vm638, %v1379, 0
    %v1437 = vsel %vm638, %v1383, 0
    %v1440 = vsel %vm638, %v1387, 0
    %v1443 = vsel %vm638, %v1391, 0
    %v1446 = vsel %vm638, %v1395, 0
    %v1449 = vsel %vm638, %v1399, 0
    %v1452 = vsel %vm638, %v1405, 0
    %v1455 = vsel %vm687, %v1330, 0
    %1457 = vmatprep.subr.bf16.mxu0 0
    %1458 = vmatpush1.bf16.msra.mxu0 %v1455
    %1459 = vmatprep.subr.bf16.mxu0 0
    %1460 = vmatpush1.bf16.msra.mxu0 0
    %1461 = vmatprep.subr.bf16.mxu0 0
    %1462 = vmatpush1.bf16.msra.mxu0 0
    %1463 = vmatprep.subr.bf16.mxu0 0
    %1464 = vmatpush1.bf16.msra.mxu0 0
    %1465 = vmatprep.subr.bf16.mxu0 0
    %1466 = vmatpush1.bf16.msra.mxu0 0
    %1467 = vmatprep.subr.bf16.mxu0 0
    %1468 = vmatpush1.bf16.msra.mxu0 0
    %1469 = vmatprep.subr.bf16.mxu0 0
    %1470 = vmatpush1.bf16.msra.mxu0 0
    %1471 = vmatprep.subr.bf16.mxu0 0
    %1472 = vmatpush1.bf16.msra.mxu0 0
    %1473 = vmatprep.subr.bf16.mxu0 0
    %1474 = vmatpush1.bf16.msra.mxu0 0
    %1475 = vmatprep.subr.bf16.mxu0 0
    %1476 = vmatpush1.bf16.msra.mxu0 0
    %1477 = vmatprep.subr.bf16.mxu0 0
    %1478 = vmatpush1.bf16.msra.mxu0 0
    %1479 = vmatprep.subr.bf16.mxu0 0
    %1480 = vmatpush1.bf16.msra.mxu0 0
    %1481 = vmatprep.subr.bf16.mxu0 0
    %1482 = vmatpush1.bf16.msra.mxu0 0
    %1483 = vmatprep.subr.bf16.mxu0 0
    %1484 = vmatpush1.bf16.msra.mxu0 0
    %1485 = vmatprep.subr.bf16.mxu0 0
    %1486 = vmatpush1.bf16.msra.mxu0 0
    %1487 = vmatprep.subr.bf16.mxu0 0
    %1488 = vmatpush1.bf16.msra.mxu0 0
    %1489 = vmatprep.mubr.bf16.mxu0 0
    %1490 = vmatmul.mubr.bf16.gmra.mrb[0].mxu0 %v1407
    %v1491 = vpop.f32.mrb[0].mxu0
    %v1492 = vadd.f32 0.0, %v1491
    %v1493 = vpop.f32.mrb[0].mxu0
    %v1494 = vpop.f32.mrb[0].mxu0
    %v1495 = vadd.f32 0.0, %v1494
    %v1496 = vpop.f32.mrb[0].mxu0
    %1497 = vmatprep.mubr.bf16.mxu0 0
    %1498 = vmatmul.mubr.bf16.gmra.mrb[0].mxu0 %v1410
    %v1499 = vpop.f32.mrb[0].mxu0
    %v1500 = vadd.f32 0.0, %v1499
    %v1501 = vpop.f32.mrb[0].mxu0
    %v1502 = vpop.f32.mrb[0].mxu0
    %v1503 = vadd.f32 0.0, %v1502
    %v1504 = vpop.f32.mrb[0].mxu0
    %1505 = vmatprep.mubr.bf16.mxu0 0
    %1506 = vmatmul.mubr.bf16.gmra.mrb[0].mxu0 %v1413
    %v1507 = vpop.f32.mrb[0].mxu0
    %v1508 = vadd.f32 0.0, %v1507
    %v1509 = vpop.f32.mrb[0].mxu0
    %v1510 = vpop.f32.mrb[0].mxu0
    %v1511 = vadd.f32 0.0, %v1510
    %v1512 = vpop.f32.mrb[0].mxu0
    %1513 = vmatprep.mubr.bf16.mxu0 0
    %1514 = vmatmul.mubr.bf16.gmra.mrb[0].mxu0 %v1416
    %v1515 = vpop.f32.mrb[0].mxu0
    %v1516 = vadd.f32 0.0, %v1515
    %v1517 = vpop.f32.mrb[0].mxu0
    %v1518 = vpop.f32.mrb[0].mxu0
    %v1519 = vadd.f32 0.0, %v1518
    %v1520 = vpop.f32.mrb[0].mxu0
    %1521 = vmatprep.mubr.bf16.mxu0 0
    %1522 = vmatmul.mubr.bf16.gmra.mrb[0].mxu0 %v1419
    %v1523 = vpop.f32.mrb[0].mxu0
    %v1524 = vadd.f32 0.0, %v1523
    %v1525 = vpop.f32.mrb[0].mxu0
    %v1526 = vpop.f32.mrb[0].mxu0
    %v1527 = vadd.f32 0.0, %v1526
    %v1528 = vpop.f32.mrb[0].mxu0
    %1529 = vmatprep.mubr.bf16.mxu0 0
    %1530 = vmatmul.mubr.bf16.gmra.mrb[0].mxu0 %v1422
    %v1531 = vpop.f32.mrb[0].mxu0
    %v1532 = vadd.f32 0.0, %v1531
    %v1533 = vpop.f32.mrb[0].mxu0
    %v1534 = vpop.f32.mrb[0].mxu0
    %v1535 = vadd.f32 0.0, %v1534
    %v1536 = vpop.f32.mrb[0].mxu0
    %1537 = vmatprep.mubr.bf16.mxu0 0
    %1538 = vmatmul.mubr.bf16.gmra.mrb[0].mxu0 %v1425
    %v1539 = vpop.f32.mrb[0].mxu0
    %v1540 = vadd.f32 0.0, %v1539
    %v1541 = vpop.f32.mrb[0].mxu0
    %v1542 = vpop.f32.mrb[0].mxu0
    %v1543 = vadd.f32 0.0, %v1542
    %v1544 = vpop.f32.mrb[0].mxu0
    %1545 = vmatprep.mubr.bf16.mxu0 0
    %1546 = vmatmul.mubr.bf16.gmra.mrb[0].mxu0 %v1428
    %v1547 = vpop.f32.mrb[0].mxu0
    %v1548 = vadd.f32 0.0, %v1547
    %v1549 = vpop.f32.mrb[0].mxu0
    %v1550 = vpop.f32.mrb[0].mxu0
    %v1551 = vadd.f32 0.0, %v1550
    %v1552 = vpop.f32.mrb[0].mxu0
    %1553 = vmatprep.mubr.bf16.mxu0 0
    %1554 = vmatmul.mubr.bf16.gmra.mrb[0].mxu0 %v1431
    %v1555 = vpop.f32.mrb[0].mxu0
    %v1556 = vadd.f32 0.0, %v1555
    %v1557 = vpop.f32.mrb[0].mxu0
    %v1558 = vpop.f32.mrb[0].mxu0
    %v1559 = vadd.f32 0.0, %v1558
    %v1560 = vpop.f32.mrb[0].mxu0
    %1561 = vmatprep.mubr.bf16.mxu0 0
    %1562 = vmatmul.mubr.bf16.gmra.mrb[0].mxu0 %v1434
    %v1563 = vpop.f32.mrb[0].mxu0
    %v1564 = vadd.f32 0.0, %v1563
    %v1565 = vpop.f32.mrb[0].mxu0
    %v1566 = vpop.f32.mrb[0].mxu0
    %v1567 = vadd.f32 0.0, %v1566
    %v1568 = vpop.f32.mrb[0].mxu0
    %1569 = vmatprep.mubr.bf16.mxu0 0
    %1570 = vmatmul.mubr.bf16.gmra.mrb[0].mxu0 %v1437
    %v1571 = vpop.f32.mrb[0].mxu0
    %v1572 = vadd.f32 0.0, %v1571
    %v1573 = vpop.f32.mrb[0].mxu0
    %v1574 = vpop.f32.mrb[0].mxu0
    %v1575 = vadd.f32 0.0, %v1574
    %v1576 = vpop.f32.mrb[0].mxu0
    %1577 = vmatprep.mubr.bf16.mxu0 0
    %1578 = vmatmul.mubr.bf16.gmra.mrb[0].mxu0 %v1440
    %v1579 = vpop.f32.mrb[0].mxu0
    %v1580 = vadd.f32 0.0, %v1579
    %v1581 = vpop.f32.mrb[0].mxu0
    %v1582 = vpop.f32.mrb[0].mxu0
    %v1583 = vadd.f32 0.0, %v1582
    %v1584 = vpop.f32.mrb[0].mxu0
    %1585 = vmatprep.mubr.bf16.mxu0 0
    %1586 = vmatmul.mubr.bf16.gmra.mrb[0].mxu0 %v1443
    %v1587 = vpop.f32.mrb[0].mxu0
    %v1588 = vadd.f32 0.0, %v1587
    %v1589 = vpop.f32.mrb[0].mxu0
    %v1590 = vpop.f32.mrb[0].mxu0
    %v1591 = vadd.f32 0.0, %v1590
    %v1592 = vpop.f32.mrb[0].mxu0
    %1593 = vmatprep.mubr.bf16.mxu0 0
    %1594 = vmatmul.mubr.bf16.gmra.mrb[0].mxu0 %v1446
    %v1595 = vpop.f32.mrb[0].mxu0
    %v1596 = vadd.f32 0.0, %v1595
    %v1597 = vpop.f32.mrb[0].mxu0
    %v1598 = vpop.f32.mrb[0].mxu0
    %v1599 = vadd.f32 0.0, %v1598
    %v1600 = vpop.f32.mrb[0].mxu0
    %1601 = vmatprep.mubr.bf16.mxu0 0
    %1602 = vmatmul.mubr.bf16.gmra.mrb[0].mxu0 %v1449
    %v1603 = vpop.f32.mrb[0].mxu0
    %v1604 = vadd.f32 0.0, %v1603
    %v1605 = vpop.f32.mrb[0].mxu0
    %v1606 = vpop.f32.mrb[0].mxu0
    %v1607 = vadd.f32 0.0, %v1606
    %v1608 = vpop.f32.mrb[0].mxu0
    %1609 = vmatprep.mubr.bf16.mxu0 0
    %1610 = vmatmul.mubr.bf16.gmra.mrb[0].mxu0 %v1452
    %v1611 = vpop.f32.mrb[0].mxu0
    %v1612 = vadd.f32 0.0, %v1611
    %v1613 = vpop.f32.mrb[0].mxu0
    %v1614 = vpop.f32.mrb[0].mxu0
    %v1615 = vadd.f32 0.0, %v1614
    %v1616 = vpop.f32.mrb[0].mxu0
    %1617 = vdwg.mxu0
    %v1618 = vadd.f32 %v1297, %v1492
    %v1619 = vadd.f32 %v1298, %v1495
    %v1620 = vadd.f32 %v1299, %v1500
    %v1621 = vadd.f32 %v1300, %v1503
    %v1622 = vadd.f32 %v1301, %v1508
    %v1623 = vadd.f32 %v1302, %v1511
    %v1624 = vadd.f32 %v1303, %v1516
    %v1625 = vadd.f32 %v1304, %v1519
    %v1626 = vadd.f32 %v1305, %v1524
    %v1627 = vadd.f32 %v1306, %v1527
    %v1628 = vadd.f32 %v1307, %v1532
    %v1629 = vadd.f32 %v1308, %v1535
    %v1630 = vadd.f32 %v1309, %v1540
    %v1631 = vadd.f32 %v1310, %v1543
    %v1632 = vadd.f32 %v1311, %v1548
    %v1633 = vadd.f32 %v1312, %v1551
    %v1634 = vadd.f32 %v1313, %v1556
    %v1635 = vadd.f32 %v1314, %v1559
    %v1636 = vadd.f32 %v1315, %v1564
    %v1637 = vadd.f32 %v1316, %v1567
    %v1638 = vadd.f32 %v1317, %v1572
    %v1639 = vadd.f32 %v1318, %v1575
    %v1640 = vadd.f32 %v1319, %v1580
    %v1641 = vadd.f32 %v1320, %v1583
    %v1642 = vadd.f32 %v1321, %v1588
    %v1643 = vadd.f32 %v1322, %v1591
    %v1644 = vadd.f32 %v1323, %v1596
    %v1645 = vadd.f32 %v1324, %v1599
    %v1646 = vadd.f32 %v1325, %v1604
    %v1647 = vadd.f32 %v1326, %v1607
    %v1648 = vadd.f32 %v1327, %v1612
    %v1649 = vadd.f32 %v1328, %v1615
    %s1650 = scalar_lea.vmem %s2, 8
    %v1651 = vld [vmem:[%s1650] sm:$0x3]
    %vm1652 = vcmask 1045504
    %v1653 = vrot.slane %v472, 2
    %v1654 = vrot.slane %v473, 2
    %v1655 = vsel %vm1652, %v1653, %v1654
    %v1656 = vrot.slane %v474, 2
    %v1657 = vsel %vm1652, %v1654, %v1656
    %v1658 = vrot.slane %v475, 2
    %v1659 = vsel %vm1652, %v1656, %v1658
    %v1660 = vrot.slane %v476, 2
    %v1661 = vsel %vm1652, %v1658, %v1660
    %v1662 = vrot.slane %v477, 2
    %v1663 = vsel %vm1652, %v1660, %v1662
    %v1664 = vrot.slane %v478, 2
    %v1665 = vsel %vm1652, %v1662, %v1664
    %v1666 = vrot.slane %v479, 2
    %v1667 = vsel %vm1652, %v1664, %v1666
    %v1668 = vrot.slane %v496, 2
    %v1669 = vsel %vm1652, %v1666, %v1668
    %v1670 = vrot.slane %v480, 2
    %v1671 = vrot.slane %v481, 2
    %v1672 = vsel %vm1652, %v1670, %v1671
    %v1673 = vrot.slane %v482, 2
    %v1674 = vsel %vm1652, %v1671, %v1673
    %v1675 = vrot.slane %v483, 2
    %v1676 = vsel %vm1652, %v1673, %v1675
    %v1677 = vrot.slane %v484, 2
    %v1678 = vsel %vm1652, %v1675, %v1677
    %v1679 = vrot.slane %v485, 2
    %v1680 = vsel %vm1652, %v1677, %v1679
    %v1681 = vrot.slane %v486, 2
    %v1682 = vsel %vm1652, %v1679, %v1681
    %v1683 = vrot.slane %v487, 2
    %v1684 = vsel %vm1652, %v1681, %v1683
    %v1685 = vrot.slane %v497, 2
    %v1686 = vsel %vm1652, %v1683, %v1685
    %v1688 = vsel %vm638, %v1655, 0
    %v1691 = vsel %vm638, %v1657, 0
    %v1694 = vsel %vm638, %v1659, 0
    %v1697 = vsel %vm638, %v1661, 0
    %v1700 = vsel %vm638, %v1663, 0
    %v1703 = vsel %vm638, %v1665, 0
    %v1706 = vsel %vm638, %v1667, 0
    %v1709 = vsel %vm638, %v1669, 0
    %v1712 = vsel %vm638, %v1672, 0
    %v1715 = vsel %vm638, %v1674, 0
    %v1718 = vsel %vm638, %v1676, 0
    %v1721 = vsel %vm638, %v1678, 0
    %v1724 = vsel %vm638, %v1680, 0
    %v1727 = vsel %vm638, %v1682, 0
    %v1730 = vsel %vm638, %v1684, 0
    %v1733 = vsel %vm638, %v1686, 0
    %v1736 = vsel %vm687, %v1651, 0
    %1738 = vmatprep.subr.bf16.mxu0 0
    %1739 = vmatpush1.bf16.msra.mxu0 %v1736
    %1740 = vmatprep.subr.bf16.mxu0 0
    %1741 = vmatpush1.bf16.msra.mxu0 0
    %1742 = vmatprep.subr.bf16.mxu0 0
    %1743 = vmatpush1.bf16.msra.mxu0 0
    %1744 = vmatprep.subr.bf16.mxu0 0
    %1745 = vmatpush1.bf16.msra.mxu0 0
    %1746 = vmatprep.subr.bf16.mxu0 0
    %1747 = vmatpush1.bf16.msra.mxu0 0
    %1748 = vmatprep.subr.bf16.mxu0 0
    %1749 = vmatpush1.bf16.msra.mxu0 0
    %1750 = vmatprep.subr.bf16.mxu0 0
    %1751 = vmatpush1.bf16.msra.mxu0 0
    %1752 = vmatprep.subr.bf16.mxu0 0
    %1753 = vmatpush1.bf16.msra.mxu0 0
    %1754 = vmatprep.subr.bf16.mxu0 0
    %1755 = vmatpush1.bf16.msra.mxu0 0
    %1756 = vmatprep.subr.bf16.mxu0 0
    %1757 = vmatpush1.bf16.msra.mxu0 0
    %1758 = vmatprep.subr.bf16.mxu0 0
    %1759 = vmatpush1.bf16.msra.mxu0 0
    %1760 = vmatprep.subr.bf16.mxu0 0
    %1761 = vmatpush1.bf16.msra.mxu0 0
    %1762 = vmatprep.subr.bf16.mxu0 0
    %1763 = vmatpush1.bf16.msra.mxu0 0
    %1764 = vmatprep.subr.bf16.mxu0 0
    %1765 = vmatpush1.bf16.msra.mxu0 0
    %1766 = vmatprep.subr.bf16.mxu0 0
    %1767 = vmatpush1.bf16.msra.mxu0 0
    %1768 = vmatprep.subr.bf16.mxu0 0
    %1769 = vmatpush1.bf16.msra.mxu0 0
    %1770 = vmatprep.mubr.bf16.mxu0 0
    %1771 = vmatmul.mubr.bf16.gmra.mrb[0].mxu0 %v1688
    %v1772 = vpop.f32.mrb[0].mxu0
    %v1773 = vadd.f32 0.0, %v1772
    %v1774 = vpop.f32.mrb[0].mxu0
    %v1775 = vpop.f32.mrb[0].mxu0
    %v1776 = vadd.f32 0.0, %v1775
    %v1777 = vpop.f32.mrb[0].mxu0
    %1778 = vmatprep.mubr.bf16.mxu0 0
    %1779 = vmatmul.mubr.bf16.gmra.mrb[0].mxu0 %v1691
    %v1780 = vpop.f32.mrb[0].mxu0
    %v1781 = vadd.f32 0.0, %v1780
    %v1782 = vpop.f32.mrb[0].mxu0
    %v1783 = vpop.f32.mrb[0].mxu0
    %v1784 = vadd.f32 0.0, %v1783
    %v1785 = vpop.f32.mrb[0].mxu0
    %1786 = vmatprep.mubr.bf16.mxu0 0
    %1787 = vmatmul.mubr.bf16.gmra.mrb[0].mxu0 %v1694
    %v1788 = vpop.f32.mrb[0].mxu0
    %v1789 = vadd.f32 0.0, %v1788
    %v1790 = vpop.f32.mrb[0].mxu0
    %v1791 = vpop.f32.mrb[0].mxu0
    %v1792 = vadd.f32 0.0, %v1791
    %v1793 = vpop.f32.mrb[0].mxu0
    %1794 = vmatprep.mubr.bf16.mxu0 0
    %1795 = vmatmul.mubr.bf16.gmra.mrb[0].mxu0 %v1697
    %v1796 = vpop.f32.mrb[0].mxu0
    %v1797 = vadd.f32 0.0, %v1796
    %v1798 = vpop.f32.mrb[0].mxu0
    %v1799 = vpop.f32.mrb[0].mxu0
    %v1800 = vadd.f32 0.0, %v1799
    %v1801 = vpop.f32.mrb[0].mxu0
    %1802 = vmatprep.mubr.bf16.mxu0 0
    %1803 = vmatmul.mubr.bf16.gmra.mrb[0].mxu0 %v1700
    %v1804 = vpop.f32.mrb[0].mxu0
    %v1805 = vadd.f32 0.0, %v1804
    %v1806 = vpop.f32.mrb[0].mxu0
    %v1807 = vpop.f32.mrb[0].mxu0
    %v1808 = vadd.f32 0.0, %v1807
    %v1809 = vpop.f32.mrb[0].mxu0
    %1810 = vmatprep.mubr.bf16.mxu0 0
    %1811 = vmatmul.mubr.bf16.gmra.mrb[0].mxu0 %v1703
    %v1812 = vpop.f32.mrb[0].mxu0
    %v1813 = vadd.f32 0.0, %v1812
    %v1814 = vpop.f32.mrb[0].mxu0
    %v1815 = vpop.f32.mrb[0].mxu0
    %v1816 = vadd.f32 0.0, %v1815
    %v1817 = vpop.f32.mrb[0].mxu0
    %1818 = vmatprep.mubr.bf16.mxu0 0
    %1819 = vmatmul.mubr.bf16.gmra.mrb[0].mxu0 %v1706
    %v1820 = vpop.f32.mrb[0].mxu0
    %v1821 = vadd.f32 0.0, %v1820
    %v1822 = vpop.f32.mrb[0].mxu0
    %v1823 = vpop.f32.mrb[0].mxu0
    %v1824 = vadd.f32 0.0, %v1823
    %v1825 = vpop.f32.mrb[0].mxu0
    %1826 = vmatprep.mubr.bf16.mxu0 0
    %1827 = vmatmul.mubr.bf16.gmra.mrb[0].mxu0 %v1709
    %v1828 = vpop.f32.mrb[0].mxu0
    %v1829 = vadd.f32 0.0, %v1828
    %v1830 = vpop.f32.mrb[0].mxu0
    %v1831 = vpop.f32.mrb[0].mxu0
    %v1832 = vadd.f32 0.0, %v1831
    %v1833 = vpop.f32.mrb[0].mxu0
    %1834 = vmatprep.mubr.bf16.mxu0 0
    %1835 = vmatmul.mubr.bf16.gmra.mrb[0].mxu0 %v1712
    %v1836 = vpop.f32.mrb[0].mxu0
    %v1837 = vadd.f32 0.0, %v1836
    %v1838 = vpop.f32.mrb[0].mxu0
    %v1839 = vpop.f32.mrb[0].mxu0
    %v1840 = vadd.f32 0.0, %v1839
    %v1841 = vpop.f32.mrb[0].mxu0
    %1842 = vmatprep.mubr.bf16.mxu0 0
    %1843 = vmatmul.mubr.bf16.gmra.mrb[0].mxu0 %v1715
    %v1844 = vpop.f32.mrb[0].mxu0
    %v1845 = vadd.f32 0.0, %v1844
    %v1846 = vpop.f32.mrb[0].mxu0
    %v1847 = vpop.f32.mrb[0].mxu0
    %v1848 = vadd.f32 0.0, %v1847
    %v1849 = vpop.f32.mrb[0].mxu0
    %1850 = vmatprep.mubr.bf16.mxu0 0
    %1851 = vmatmul.mubr.bf16.gmra.mrb[0].mxu0 %v1718
    %v1852 = vpop.f32.mrb[0].mxu0
    %v1853 = vadd.f32 0.0, %v1852
    %v1854 = vpop.f32.mrb[0].mxu0
    %v1855 = vpop.f32.mrb[0].mxu0
    %v1856 = vadd.f32 0.0, %v1855
    %v1857 = vpop.f32.mrb[0].mxu0
    %1858 = vmatprep.mubr.bf16.mxu0 0
    %1859 = vmatmul.mubr.bf16.gmra.mrb[0].mxu0 %v1721
    %v1860 = vpop.f32.mrb[0].mxu0
    %v1861 = vadd.f32 0.0, %v1860
    %v1862 = vpop.f32.mrb[0].mxu0
    %v1863 = vpop.f32.mrb[0].mxu0
    %v1864 = vadd.f32 0.0, %v1863
    %v1865 = vpop.f32.mrb[0].mxu0
    %1866 = vmatprep.mubr.bf16.mxu0 0
    %1867 = vmatmul.mubr.bf16.gmra.mrb[0].mxu0 %v1724
    %v1868 = vpop.f32.mrb[0].mxu0
    %v1869 = vadd.f32 0.0, %v1868
    %v1870 = vpop.f32.mrb[0].mxu0
    %v1871 = vpop.f32.mrb[0].mxu0
    %v1872 = vadd.f32 0.0, %v1871
    %v1873 = vpop.f32.mrb[0].mxu0
    %1874 = vmatprep.mubr.bf16.mxu0 0
    %1875 = vmatmul.mubr.bf16.gmra.mrb[0].mxu0 %v1727
    %v1876 = vpop.f32.mrb[0].mxu0
    %v1877 = vadd.f32 0.0, %v1876
    %v1878 = vpop.f32.mrb[0].mxu0
    %v1879 = vpop.f32.mrb[0].mxu0
    %v1880 = vadd.f32 0.0, %v1879
    %v1881 = vpop.f32.mrb[0].mxu0
    %1882 = vmatprep.mubr.bf16.mxu0 0
    %1883 = vmatmul.mubr.bf16.gmra.mrb[0].mxu0 %v1730
    %v1884 = vpop.f32.mrb[0].mxu0
    %v1885 = vadd.f32 0.0, %v1884
    %v1886 = vpop.f32.mrb[0].mxu0
    %v1887 = vpop.f32.mrb[0].mxu0
    %v1888 = vadd.f32 0.0, %v1887
    %v1889 = vpop.f32.mrb[0].mxu0
    %1890 = vmatprep.mubr.bf16.mxu0 0
    %1891 = vmatmul.mubr.bf16.gmra.mrb[0].mxu0 %v1733
    %v1892 = vpop.f32.mrb[0].mxu0
    %v1893 = vadd.f32 0.0, %v1892
    %v1894 = vpop.f32.mrb[0].mxu0
    %v1895 = vpop.f32.mrb[0].mxu0
    %v1896 = vadd.f32 0.0, %v1895
    %v1897 = vpop.f32.mrb[0].mxu0
    %1898 = vdwg.mxu0
    %v1899 = vadd.f32 %v1618, %v1773
    %v1900 = vadd.f32 %v1619, %v1776
    %v1901 = vadd.f32 %v1620, %v1781
    %v1902 = vadd.f32 %v1621, %v1784
    %v1903 = vadd.f32 %v1622, %v1789
    %v1904 = vadd.f32 %v1623, %v1792
    %v1905 = vadd.f32 %v1624, %v1797
    %v1906 = vadd.f32 %v1625, %v1800
    %v1907 = vadd.f32 %v1626, %v1805
    %v1908 = vadd.f32 %v1627, %v1808
    %v1909 = vadd.f32 %v1628, %v1813
    %v1910 = vadd.f32 %v1629, %v1816
    %v1911 = vadd.f32 %v1630, %v1821
    %v1912 = vadd.f32 %v1631, %v1824
    %v1913 = vadd.f32 %v1632, %v1829
    %v1914 = vadd.f32 %v1633, %v1832
    %v1915 = vadd.f32 %v1634, %v1837
    %v1916 = vadd.f32 %v1635, %v1840
    %v1917 = vadd.f32 %v1636, %v1845
    %v1918 = vadd.f32 %v1637, %v1848
    %v1919 = vadd.f32 %v1638, %v1853
    %v1920 = vadd.f32 %v1639, %v1856
    %v1921 = vadd.f32 %v1640, %v1861
    %v1922 = vadd.f32 %v1641, %v1864
    %v1923 = vadd.f32 %v1642, %v1869
    %v1924 = vadd.f32 %v1643, %v1872
    %v1925 = vadd.f32 %v1644, %v1877
    %v1926 = vadd.f32 %v1645, %v1880
    %v1927 = vadd.f32 %v1646, %v1885
    %v1928 = vadd.f32 %v1647, %v1888
    %v1929 = vadd.f32 %v1648, %v1893
    %v1930 = vadd.f32 %v1649, %v1896
    %s1931 = scalar_lea.vmem %s2, 10
    %v1932 = vld [vmem:[%s1931] sm:$0x3]
    %vm1933 = vsmask.f32 5376
    %v1934 = vrot.slane %v503, 2
    %v1935 = vrot.slane %v505, 3
    %v1936 = vor.u32 %v1934, %v1935
    %v1937 = vrot.slane %v514, 2
    %v1938 = vrot.slane %v510, 3
    %v1939 = vor.u32 %v1937, %v1938
    %v1940 = vsel %vm1933, %v1936, %v1939
    %v1941 = vrot.slane %v522, 2
    %v1942 = vrot.slane %v518, 3
    %v1943 = vor.u32 %v1941, %v1942
    %v1944 = vsel %vm1933, %v1939, %v1943
    %v1945 = vrot.slane %v530, 2
    %v1946 = vrot.slane %v526, 3
    %v1947 = vor.u32 %v1945, %v1946
    %v1948 = vsel %vm1933, %v1943, %v1947
    %v1949 = vrot.slane %v538, 2
    %v1950 = vrot.slane %v534, 3
    %v1951 = vor.u32 %v1949, %v1950
    %v1952 = vsel %vm1933, %v1947, %v1951
    %v1953 = vrot.slane %v546, 2
    %v1954 = vrot.slane %v542, 3
    %v1955 = vor.u32 %v1953, %v1954
    %v1956 = vsel %vm1933, %v1951, %v1955
    %v1957 = vrot.slane %v554, 2
    %v1958 = vrot.slane %v550, 3
    %v1959 = vor.u32 %v1957, %v1958
    %v1960 = vsel %vm1933, %v1955, %v1959
    %v1961 = vrot.slane %v562, 2
    %v1962 = vrot.slane %v558, 3
    %v1963 = vor.u32 %v1961, %v1962
    %v1964 = vsel %vm1933, %v1959, %v1963
    %v1965 = vrot.slane %v1363, 2
    %v1966 = vrot.slane %v566, 3
    %v1967 = vor.u32 %v1965, %v1966
    %v1968 = vsel %vm1933, %v1963, %v1967
    %v1969 = vrot.slane %v571, 2
    %v1970 = vrot.slane %v573, 3
    %v1971 = vor.u32 %v1969, %v1970
    %v1972 = vrot.slane %v582, 2
    %v1973 = vrot.slane %v578, 3
    %v1974 = vor.u32 %v1972, %v1973
    %v1975 = vsel %vm1933, %v1971, %v1974
    %v1976 = vrot.slane %v590, 2
    %v1977 = vrot.slane %v586, 3
    %v1978 = vor.u32 %v1976, %v1977
    %v1979 = vsel %vm1933, %v1974, %v1978
    %v1980 = vrot.slane %v598, 2
    %v1981 = vrot.slane %v594, 3
    %v1982 = vor.u32 %v1980, %v1981
    %v1983 = vsel %vm1933, %v1978, %v1982
    %v1984 = vrot.slane %v606, 2
    %v1985 = vrot.slane %v602, 3
    %v1986 = vor.u32 %v1984, %v1985
    %v1987 = vsel %vm1933, %v1982, %v1986
    %v1988 = vrot.slane %v614, 2
    %v1989 = vrot.slane %v610, 3
    %v1990 = vor.u32 %v1988, %v1989
    %v1991 = vsel %vm1933, %v1986, %v1990
    %v1992 = vrot.slane %v622, 2
    %v1993 = vrot.slane %v618, 3
    %v1994 = vor.u32 %v1992, %v1993
    %v1995 = vsel %vm1933, %v1990, %v1994
    %v1996 = vrot.slane %v630, 2
    %v1997 = vrot.slane %v626, 3
    %v1998 = vor.u32 %v1996, %v1997
    %v1999 = vsel %vm1933, %v1994, %v1998
    %v2000 = vrot.slane %v1400, 2
    %v2001 = vrot.slane %v634, 3
    %v2002 = vor.u32 %v2000, %v2001
    %v2003 = vsel %vm1933, %v1998, %v2002
    %v2005 = vsel %vm638, %v1940, 0
    %v2008 = vsel %vm638, %v1944, 0
    %v2011 = vsel %vm638, %v1948, 0
    %v2014 = vsel %vm638, %v1952, 0
    %v2017 = vsel %vm638, %v1956, 0
    %v2020 = vsel %vm638, %v1960, 0
    %v2023 = vsel %vm638, %v1964, 0
    %v2026 = vsel %vm638, %v1968, 0
    %v2029 = vsel %vm638, %v1975, 0
    %v2032 = vsel %vm638, %v1979, 0
    %v2035 = vsel %vm638, %v1983, 0
    %v2038 = vsel %vm638, %v1987, 0
    %v2041 = vsel %vm638, %v1991, 0
    %v2044 = vsel %vm638, %v1995, 0
    %v2047 = vsel %vm638, %v1999, 0
    %v2050 = vsel %vm638, %v2003, 0
    %v2053 = vsel %vm687, %v1932, 0
    %2055 = vmatprep.subr.bf16.mxu0 0
    %2056 = vmatpush1.bf16.msra.mxu0 %v2053
    %2057 = vmatprep.subr.bf16.mxu0 0
    %2058 = vmatpush1.bf16.msra.mxu0 0
    %2059 = vmatprep.subr.bf16.mxu0 0
    %2060 = vmatpush1.bf16.msra.mxu0 0
    %2061 = vmatprep.subr.bf16.mxu0 0
    %2062 = vmatpush1.bf16.msra.mxu0 0
    %2063 = vmatprep.subr.bf16.mxu0 0
    %2064 = vmatpush1.bf16.msra.mxu0 0
    %2065 = vmatprep.subr.bf16.mxu0 0
    %2066 = vmatpush1.bf16.msra.mxu0 0
    %2067 = vmatprep.subr.bf16.mxu0 0
    %2068 = vmatpush1.bf16.msra.mxu0 0
    %2069 = vmatprep.subr.bf16.mxu0 0
    %2070 = vmatpush1.bf16.msra.mxu0 0
    %2071 = vmatprep.subr.bf16.mxu0 0
    %2072 = vmatpush1.bf16.msra.mxu0 0
    %2073 = vmatprep.subr.bf16.mxu0 0
    %2074 = vmatpush1.bf16.msra.mxu0 0
    %2075 = vmatprep.subr.bf16.mxu0 0
    %2076 = vmatpush1.bf16.msra.mxu0 0
    %2077 = vmatprep.subr.bf16.mxu0 0
    %2078 = vmatpush1.bf16.msra.mxu0 0
    %2079 = vmatprep.subr.bf16.mxu0 0
    %2080 = vmatpush1.bf16.msra.mxu0 0
    %2081 = vmatprep.subr.bf16.mxu0 0
    %2082 = vmatpush1.bf16.msra.mxu0 0
    %2083 = vmatprep.subr.bf16.mxu0 0
    %2084 = vmatpush1.bf16.msra.mxu0 0
    %2085 = vmatprep.subr.bf16.mxu0 0
    %2086 = vmatpush1.bf16.msra.mxu0 0
    %2087 = vmatprep.mubr.bf16.mxu0 0
    %2088 = vmatmul.mubr.bf16.gmra.mrb[0].mxu0 %v2005
    %v2089 = vpop.f32.mrb[0].mxu0
    %v2090 = vadd.f32 0.0, %v2089
    %v2091 = vpop.f32.mrb[0].mxu0
    %v2092 = vpop.f32.mrb[0].mxu0
    %v2093 = vadd.f32 0.0, %v2092
    %v2094 = vpop.f32.mrb[0].mxu0
    %2095 = vmatprep.mubr.bf16.mxu0 0
    %2096 = vmatmul.mubr.bf16.gmra.mrb[0].mxu0 %v2008
    %v2097 = vpop.f32.mrb[0].mxu0
    %v2098 = vadd.f32 0.0, %v2097
    %v2099 = vpop.f32.mrb[0].mxu0
    %v2100 = vpop.f32.mrb[0].mxu0
    %v2101 = vadd.f32 0.0, %v2100
    %v2102 = vpop.f32.mrb[0].mxu0
    %2103 = vmatprep.mubr.bf16.mxu0 0
    %2104 = vmatmul.mubr.bf16.gmra.mrb[0].mxu0 %v2011
    %v2105 = vpop.f32.mrb[0].mxu0
    %v2106 = vadd.f32 0.0, %v2105
    %v2107 = vpop.f32.mrb[0].mxu0
    %v2108 = vpop.f32.mrb[0].mxu0
    %v2109 = vadd.f32 0.0, %v2108
    %v2110 = vpop.f32.mrb[0].mxu0
    %2111 = vmatprep.mubr.bf16.mxu0 0
    %2112 = vmatmul.mubr.bf16.gmra.mrb[0].mxu0 %v2014
    %v2113 = vpop.f32.mrb[0].mxu0
    %v2114 = vadd.f32 0.0, %v2113
    %v2115 = vpop.f32.mrb[0].mxu0
    %v2116 = vpop.f32.mrb[0].mxu0
    %v2117 = vadd.f32 0.0, %v2116
    %v2118 = vpop.f32.mrb[0].mxu0
    %2119 = vmatprep.mubr.bf16.mxu0 0
    %2120 = vmatmul.mubr.bf16.gmra.mrb[0].mxu0 %v2017
    %v2121 = vpop.f32.mrb[0].mxu0
    %v2122 = vadd.f32 0.0, %v2121
    %v2123 = vpop.f32.mrb[0].mxu0
    %v2124 = vpop.f32.mrb[0].mxu0
    %v2125 = vadd.f32 0.0, %v2124
    %v2126 = vpop.f32.mrb[0].mxu0
    %2127 = vmatprep.mubr.bf16.mxu0 0
    %2128 = vmatmul.mubr.bf16.gmra.mrb[0].mxu0 %v2020
    %v2129 = vpop.f32.mrb[0].mxu0
    %v2130 = vadd.f32 0.0, %v2129
    %v2131 = vpop.f32.mrb[0].mxu0
    %v2132 = vpop.f32.mrb[0].mxu0
    %v2133 = vadd.f32 0.0, %v2132
    %v2134 = vpop.f32.mrb[0].mxu0
    %2135 = vmatprep.mubr.bf16.mxu0 0
    %2136 = vmatmul.mubr.bf16.gmra.mrb[0].mxu0 %v2023
    %v2137 = vpop.f32.mrb[0].mxu0
    %v2138 = vadd.f32 0.0, %v2137
    %v2139 = vpop.f32.mrb[0].mxu0
    %v2140 = vpop.f32.mrb[0].mxu0
    %v2141 = vadd.f32 0.0, %v2140
    %v2142 = vpop.f32.mrb[0].mxu0
    %2143 = vmatprep.mubr.bf16.mxu0 0
    %2144 = vmatmul.mubr.bf16.gmra.mrb[0].mxu0 %v2026
    %v2145 = vpop.f32.mrb[0].mxu0
    %v2146 = vadd.f32 0.0, %v2145
    %v2147 = vpop.f32.mrb[0].mxu0
    %v2148 = vpop.f32.mrb[0].mxu0
    %v2149 = vadd.f32 0.0, %v2148
    %v2150 = vpop.f32.mrb[0].mxu0
    %2151 = vmatprep.mubr.bf16.mxu0 0
    %2152 = vmatmul.mubr.bf16.gmra.mrb[0].mxu0 %v2029
    %v2153 = vpop.f32.mrb[0].mxu0
    %v2154 = vadd.f32 0.0, %v2153
    %v2155 = vpop.f32.mrb[0].mxu0
    %v2156 = vpop.f32.mrb[0].mxu0
    %v2157 = vadd.f32 0.0, %v2156
    %v2158 = vpop.f32.mrb[0].mxu0
    %2159 = vmatprep.mubr.bf16.mxu0 0
    %2160 = vmatmul.mubr.bf16.gmra.mrb[0].mxu0 %v2032
    %v2161 = vpop.f32.mrb[0].mxu0
    %v2162 = vadd.f32 0.0, %v2161
    %v2163 = vpop.f32.mrb[0].mxu0
    %v2164 = vpop.f32.mrb[0].mxu0
    %v2165 = vadd.f32 0.0, %v2164
    %v2166 = vpop.f32.mrb[0].mxu0
    %2167 = vmatprep.mubr.bf16.mxu0 0
    %2168 = vmatmul.mubr.bf16.gmra.mrb[0].mxu0 %v2035
    %v2169 = vpop.f32.mrb[0].mxu0
    %v2170 = vadd.f32 0.0, %v2169
    %v2171 = vpop.f32.mrb[0].mxu0
    %v2172 = vpop.f32.mrb[0].mxu0
    %v2173 = vadd.f32 0.0, %v2172
    %v2174 = vpop.f32.mrb[0].mxu0
    %2175 = vmatprep.mubr.bf16.mxu0 0
    %2176 = vmatmul.mubr.bf16.gmra.mrb[0].mxu0 %v2038
    %v2177 = vpop.f32.mrb[0].mxu0
    %v2178 = vadd.f32 0.0, %v2177
    %v2179 = vpop.f32.mrb[0].mxu0
    %v2180 = vpop.f32.mrb[0].mxu0
    %v2181 = vadd.f32 0.0, %v2180
    %v2182 = vpop.f32.mrb[0].mxu0
    %2183 = vmatprep.mubr.bf16.mxu0 0
    %2184 = vmatmul.mubr.bf16.gmra.mrb[0].mxu0 %v2041
    %v2185 = vpop.f32.mrb[0].mxu0
    %v2186 = vadd.f32 0.0, %v2185
    %v2187 = vpop.f32.mrb[0].mxu0
    %v2188 = vpop.f32.mrb[0].mxu0
    %v2189 = vadd.f32 0.0, %v2188
    %v2190 = vpop.f32.mrb[0].mxu0
    %2191 = vmatprep.mubr.bf16.mxu0 0
    %2192 = vmatmul.mubr.bf16.gmra.mrb[0].mxu0 %v2044
    %v2193 = vpop.f32.mrb[0].mxu0
    %v2194 = vadd.f32 0.0, %v2193
    %v2195 = vpop.f32.mrb[0].mxu0
    %v2196 = vpop.f32.mrb[0].mxu0
    %v2197 = vadd.f32 0.0, %v2196
    %v2198 = vpop.f32.mrb[0].mxu0
    %2199 = vmatprep.mubr.bf16.mxu0 0
    %2200 = vmatmul.mubr.bf16.gmra.mrb[0].mxu0 %v2047
    %v2201 = vpop.f32.mrb[0].mxu0
    %v2202 = vadd.f32 0.0, %v2201
    %v2203 = vpop.f32.mrb[0].mxu0
    %v2204 = vpop.f32.mrb[0].mxu0
    %v2205 = vadd.f32 0.0, %v2204
    %v2206 = vpop.f32.mrb[0].mxu0
    %2207 = vmatprep.mubr.bf16.mxu0 0
    %2208 = vmatmul.mubr.bf16.gmra.mrb[0].mxu0 %v2050
    %v2209 = vpop.f32.mrb[0].mxu0
    %v2210 = vadd.f32 0.0, %v2209
    %v2211 = vpop.f32.mrb[0].mxu0
    %v2212 = vpop.f32.mrb[0].mxu0
    %v2213 = vadd.f32 0.0, %v2212
    %v2214 = vpop.f32.mrb[0].mxu0
    %2215 = vdwg.mxu0
    %v2216 = vadd.f32 %v1899, %v2090
    %v2217 = vadd.f32 %v1900, %v2093
    %v2218 = vadd.f32 %v1901, %v2098
    %v2219 = vadd.f32 %v1902, %v2101
    %v2220 = vadd.f32 %v1903, %v2106
    %v2221 = vadd.f32 %v1904, %v2109
    %v2222 = vadd.f32 %v1905, %v2114
    %v2223 = vadd.f32 %v1906, %v2117
    %v2224 = vadd.f32 %v1907, %v2122
    %v2225 = vadd.f32 %v1908, %v2125
    %v2226 = vadd.f32 %v1909, %v2130
    %v2227 = vadd.f32 %v1910, %v2133
    %v2228 = vadd.f32 %v1911, %v2138
    %v2229 = vadd.f32 %v1912, %v2141
    %v2230 = vadd.f32 %v1913, %v2146
    %v2231 = vadd.f32 %v1914, %v2149
    %v2232 = vadd.f32 %v1915, %v2154
    %v2233 = vadd.f32 %v1916, %v2157
    %v2234 = vadd.f32 %v1917, %v2162
    %v2235 = vadd.f32 %v1918, %v2165
    %v2236 = vadd.f32 %v1919, %v2170
    %v2237 = vadd.f32 %v1920, %v2173
    %v2238 = vadd.f32 %v1921, %v2178
    %v2239 = vadd.f32 %v1922, %v2181
    %v2240 = vadd.f32 %v1923, %v2186
    %v2241 = vadd.f32 %v1924, %v2189
    %v2242 = vadd.f32 %v1925, %v2194
    %v2243 = vadd.f32 %v1926, %v2197
    %v2244 = vadd.f32 %v1927, %v2202
    %v2245 = vadd.f32 %v1928, %v2205
    %v2246 = vadd.f32 %v1929, %v2210
    %v2247 = vadd.f32 %v1930, %v2213
    %s2248 = scalar_lea.vmem %s2, 12
    %v2249 = vld [vmem:[%s2248] sm:$0x3]
    %vm2250 = vcmask 1044480
    %v2251 = vrot.slane %v472, 3
    %v2252 = vrot.slane %v473, 3
    %v2253 = vsel %vm2250, %v2251, %v2252
    %v2254 = vrot.slane %v474, 3
    %v2255 = vsel %vm2250, %v2252, %v2254
    %v2256 = vrot.slane %v475, 3
    %v2257 = vsel %vm2250, %v2254, %v2256
    %v2258 = vrot.slane %v476, 3
    %v2259 = vsel %vm2250, %v2256, %v2258
    %v2260 = vrot.slane %v477, 3
    %v2261 = vsel %vm2250, %v2258, %v2260
    %v2262 = vrot.slane %v478, 3
    %v2263 = vsel %vm2250, %v2260, %v2262
    %v2264 = vrot.slane %v479, 3
    %v2265 = vsel %vm2250, %v2262, %v2264
    %v2266 = vrot.slane %v496, 3
    %v2267 = vsel %vm2250, %v2264, %v2266
    %v2268 = vrot.slane %v480, 3
    %v2269 = vrot.slane %v481, 3
    %v2270 = vsel %vm2250, %v2268, %v2269
    %v2271 = vrot.slane %v482, 3
    %v2272 = vsel %vm2250, %v2269, %v2271
    %v2273 = vrot.slane %v483, 3
    %v2274 = vsel %vm2250, %v2271, %v2273
    %v2275 = vrot.slane %v484, 3
    %v2276 = vsel %vm2250, %v2273, %v2275
    %v2277 = vrot.slane %v485, 3
    %v2278 = vsel %vm2250, %v2275, %v2277
    %v2279 = vrot.slane %v486, 3
    %v2280 = vsel %vm2250, %v2277, %v2279
    %v2281 = vrot.slane %v487, 3
    %v2282 = vsel %vm2250, %v2279, %v2281
    %v2283 = vrot.slane %v497, 3
    %v2284 = vsel %vm2250, %v2281, %v2283
    %v2286 = vsel %vm638, %v2253, 0
    %v2289 = vsel %vm638, %v2255, 0
    %v2292 = vsel %vm638, %v2257, 0
    %v2295 = vsel %vm638, %v2259, 0
    %v2298 = vsel %vm638, %v2261, 0
    %v2301 = vsel %vm638, %v2263, 0
    %v2304 = vsel %vm638, %v2265, 0
    %v2307 = vsel %vm638, %v2267, 0
    %v2310 = vsel %vm638, %v2270, 0
    %v2313 = vsel %vm638, %v2272, 0
    %v2316 = vsel %vm638, %v2274, 0
    %v2319 = vsel %vm638, %v2276, 0
    %v2322 = vsel %vm638, %v2278, 0
    %v2325 = vsel %vm638, %v2280, 0
    %v2328 = vsel %vm638, %v2282, 0
    %v2331 = vsel %vm638, %v2284, 0
    %v2334 = vsel %vm687, %v2249, 0
    %2336 = vmatprep.subr.bf16.mxu0 0
    %2337 = vmatpush1.bf16.msra.mxu0 %v2334
    %2338 = vmatprep.subr.bf16.mxu0 0
    %2339 = vmatpush1.bf16.msra.mxu0 0
    %2340 = vmatprep.subr.bf16.mxu0 0
    %2341 = vmatpush1.bf16.msra.mxu0 0
    %2342 = vmatprep.subr.bf16.mxu0 0
    %2343 = vmatpush1.bf16.msra.mxu0 0
    %2344 = vmatprep.subr.bf16.mxu0 0
    %2345 = vmatpush1.bf16.msra.mxu0 0
    %2346 = vmatprep.subr.bf16.mxu0 0
    %2347 = vmatpush1.bf16.msra.mxu0 0
    %2348 = vmatprep.subr.bf16.mxu0 0
    %2349 = vmatpush1.bf16.msra.mxu0 0
    %2350 = vmatprep.subr.bf16.mxu0 0
    %2351 = vmatpush1.bf16.msra.mxu0 0
    %2352 = vmatprep.subr.bf16.mxu0 0
    %2353 = vmatpush1.bf16.msra.mxu0 0
    %2354 = vmatprep.subr.bf16.mxu0 0
    %2355 = vmatpush1.bf16.msra.mxu0 0
    %2356 = vmatprep.subr.bf16.mxu0 0
    %2357 = vmatpush1.bf16.msra.mxu0 0
    %2358 = vmatprep.subr.bf16.mxu0 0
    %2359 = vmatpush1.bf16.msra.mxu0 0
    %2360 = vmatprep.subr.bf16.mxu0 0
    %2361 = vmatpush1.bf16.msra.mxu0 0
    %2362 = vmatprep.subr.bf16.mxu0 0
    %2363 = vmatpush1.bf16.msra.mxu0 0
    %2364 = vmatprep.subr.bf16.mxu0 0
    %2365 = vmatpush1.bf16.msra.mxu0 0
    %2366 = vmatprep.subr.bf16.mxu0 0
    %2367 = vmatpush1.bf16.msra.mxu0 0
    %2368 = vmatprep.mubr.bf16.mxu0 0
    %2369 = vmatmul.mubr.bf16.gmra.mrb[0].mxu0 %v2286
    %v2370 = vpop.f32.mrb[0].mxu0
    %v2371 = vadd.f32 0.0, %v2370
    %v2372 = vpop.f32.mrb[0].mxu0
    %v2373 = vpop.f32.mrb[0].mxu0
    %v2374 = vadd.f32 0.0, %v2373
    %v2375 = vpop.f32.mrb[0].mxu0
    %2376 = vmatprep.mubr.bf16.mxu0 0
    %2377 = vmatmul.mubr.bf16.gmra.mrb[0].mxu0 %v2289
    %v2378 = vpop.f32.mrb[0].mxu0
    %v2379 = vadd.f32 0.0, %v2378
    %v2380 = vpop.f32.mrb[0].mxu0
    %v2381 = vpop.f32.mrb[0].mxu0
    %v2382 = vadd.f32 0.0, %v2381
    %v2383 = vpop.f32.mrb[0].mxu0
    %2384 = vmatprep.mubr.bf16.mxu0 0
    %2385 = vmatmul.mubr.bf16.gmra.mrb[0].mxu0 %v2292
    %v2386 = vpop.f32.mrb[0].mxu0
    %v2387 = vadd.f32 0.0, %v2386
    %v2388 = vpop.f32.mrb[0].mxu0
    %v2389 = vpop.f32.mrb[0].mxu0
    %v2390 = vadd.f32 0.0, %v2389
    %v2391 = vpop.f32.mrb[0].mxu0
    %2392 = vmatprep.mubr.bf16.mxu0 0
    %2393 = vmatmul.mubr.bf16.gmra.mrb[0].mxu0 %v2295
    %v2394 = vpop.f32.mrb[0].mxu0
    %v2395 = vadd.f32 0.0, %v2394
    %v2396 = vpop.f32.mrb[0].mxu0
    %v2397 = vpop.f32.mrb[0].mxu0
    %v2398 = vadd.f32 0.0, %v2397
    %v2399 = vpop.f32.mrb[0].mxu0
    %2400 = vmatprep.mubr.bf16.mxu0 0
    %2401 = vmatmul.mubr.bf16.gmra.mrb[0].mxu0 %v2298
    %v2402 = vpop.f32.mrb[0].mxu0
    %v2403 = vadd.f32 0.0, %v2402
    %v2404 = vpop.f32.mrb[0].mxu0
    %v2405 = vpop.f32.mrb[0].mxu0
    %v2406 = vadd.f32 0.0, %v2405
    %v2407 = vpop.f32.mrb[0].mxu0
    %2408 = vmatprep.mubr.bf16.mxu0 0
    %2409 = vmatmul.mubr.bf16.gmra.mrb[0].mxu0 %v2301
    %v2410 = vpop.f32.mrb[0].mxu0
    %v2411 = vadd.f32 0.0, %v2410
    %v2412 = vpop.f32.mrb[0].mxu0
    %v2413 = vpop.f32.mrb[0].mxu0
    %v2414 = vadd.f32 0.0, %v2413
    %v2415 = vpop.f32.mrb[0].mxu0
    %2416 = vmatprep.mubr.bf16.mxu0 0
    %2417 = vmatmul.mubr.bf16.gmra.mrb[0].mxu0 %v2304
    %v2418 = vpop.f32.mrb[0].mxu0
    %v2419 = vadd.f32 0.0, %v2418
    %v2420 = vpop.f32.mrb[0].mxu0
    %v2421 = vpop.f32.mrb[0].mxu0
    %v2422 = vadd.f32 0.0, %v2421
    %v2423 = vpop.f32.mrb[0].mxu0
    %2424 = vmatprep.mubr.bf16.mxu0 0
    %2425 = vmatmul.mubr.bf16.gmra.mrb[0].mxu0 %v2307
    %v2426 = vpop.f32.mrb[0].mxu0
    %v2427 = vadd.f32 0.0, %v2426
    %v2428 = vpop.f32.mrb[0].mxu0
    %v2429 = vpop.f32.mrb[0].mxu0
    %v2430 = vadd.f32 0.0, %v2429
    %v2431 = vpop.f32.mrb[0].mxu0
    %2432 = vmatprep.mubr.bf16.mxu0 0
    %2433 = vmatmul.mubr.bf16.gmra.mrb[0].mxu0 %v2310
    %v2434 = vpop.f32.mrb[0].mxu0
    %v2435 = vadd.f32 0.0, %v2434
    %v2436 = vpop.f32.mrb[0].mxu0
    %v2437 = vpop.f32.mrb[0].mxu0
    %v2438 = vadd.f32 0.0, %v2437
    %v2439 = vpop.f32.mrb[0].mxu0
    %2440 = vmatprep.mubr.bf16.mxu0 0
    %2441 = vmatmul.mubr.bf16.gmra.mrb[0].mxu0 %v2313
    %v2442 = vpop.f32.mrb[0].mxu0
    %v2443 = vadd.f32 0.0, %v2442
    %v2444 = vpop.f32.mrb[0].mxu0
    %v2445 = vpop.f32.mrb[0].mxu0
    %v2446 = vadd.f32 0.0, %v2445
    %v2447 = vpop.f32.mrb[0].mxu0
    %2448 = vmatprep.mubr.bf16.mxu0 0
    %2449 = vmatmul.mubr.bf16.gmra.mrb[0].mxu0 %v2316
    %v2450 = vpop.f32.mrb[0].mxu0
    %v2451 = vadd.f32 0.0, %v2450
    %v2452 = vpop.f32.mrb[0].mxu0
    %v2453 = vpop.f32.mrb[0].mxu0
    %v2454 = vadd.f32 0.0, %v2453
    %v2455 = vpop.f32.mrb[0].mxu0
    %2456 = vmatprep.mubr.bf16.mxu0 0
    %2457 = vmatmul.mubr.bf16.gmra.mrb[0].mxu0 %v2319
    %v2458 = vpop.f32.mrb[0].mxu0
    %v2459 = vadd.f32 0.0, %v2458
    %v2460 = vpop.f32.mrb[0].mxu0
    %v2461 = vpop.f32.mrb[0].mxu0
    %v2462 = vadd.f32 0.0, %v2461
    %v2463 = vpop.f32.mrb[0].mxu0
    %2464 = vmatprep.mubr.bf16.mxu0 0
    %2465 = vmatmul.mubr.bf16.gmra.mrb[0].mxu0 %v2322
    %v2466 = vpop.f32.mrb[0].mxu0
    %v2467 = vadd.f32 0.0, %v2466
    %v2468 = vpop.f32.mrb[0].mxu0
    %v2469 = vpop.f32.mrb[0].mxu0
    %v2470 = vadd.f32 0.0, %v2469
    %v2471 = vpop.f32.mrb[0].mxu0
    %2472 = vmatprep.mubr.bf16.mxu0 0
    %2473 = vmatmul.mubr.bf16.gmra.mrb[0].mxu0 %v2325
    %v2474 = vpop.f32.mrb[0].mxu0
    %v2475 = vadd.f32 0.0, %v2474
    %v2476 = vpop.f32.mrb[0].mxu0
    %v2477 = vpop.f32.mrb[0].mxu0
    %v2478 = vadd.f32 0.0, %v2477
    %v2479 = vpop.f32.mrb[0].mxu0
    %2480 = vmatprep.mubr.bf16.mxu0 0
    %2481 = vmatmul.mubr.bf16.gmra.mrb[0].mxu0 %v2328
    %v2482 = vpop.f32.mrb[0].mxu0
    %v2483 = vadd.f32 0.0, %v2482
    %v2484 = vpop.f32.mrb[0].mxu0
    %v2485 = vpop.f32.mrb[0].mxu0
    %v2486 = vadd.f32 0.0, %v2485
    %v2487 = vpop.f32.mrb[0].mxu0
    %2488 = vmatprep.mubr.bf16.mxu0 0
    %2489 = vmatmul.mubr.bf16.gmra.mrb[0].mxu0 %v2331
    %v2490 = vpop.f32.mrb[0].mxu0
    %v2491 = vadd.f32 0.0, %v2490
    %v2492 = vpop.f32.mrb[0].mxu0
    %v2493 = vpop.f32.mrb[0].mxu0
    %v2494 = vadd.f32 0.0, %v2493
    %v2495 = vpop.f32.mrb[0].mxu0
    %2496 = vdwg.mxu0
    %v2497 = vadd.f32 %v2216, %v2371
    %v2498 = vadd.f32 %v2217, %v2374
    %v2499 = vadd.f32 %v2218, %v2379
    %v2500 = vadd.f32 %v2219, %v2382
    %v2501 = vadd.f32 %v2220, %v2387
    %v2502 = vadd.f32 %v2221, %v2390
    %v2503 = vadd.f32 %v2222, %v2395
    %v2504 = vadd.f32 %v2223, %v2398
    %v2505 = vadd.f32 %v2224, %v2403
    %v2506 = vadd.f32 %v2225, %v2406
    %v2507 = vadd.f32 %v2226, %v2411
    %v2508 = vadd.f32 %v2227, %v2414
    %v2509 = vadd.f32 %v2228, %v2419
    %v2510 = vadd.f32 %v2229, %v2422
    %v2511 = vadd.f32 %v2230, %v2427
    %v2512 = vadd.f32 %v2231, %v2430
    %v2513 = vadd.f32 %v2232, %v2435
    %v2514 = vadd.f32 %v2233, %v2438
    %v2515 = vadd.f32 %v2234, %v2443
    %v2516 = vadd.f32 %v2235, %v2446
    %v2517 = vadd.f32 %v2236, %v2451
    %v2518 = vadd.f32 %v2237, %v2454
    %v2519 = vadd.f32 %v2238, %v2459
    %v2520 = vadd.f32 %v2239, %v2462
    %v2521 = vadd.f32 %v2240, %v2467
    %v2522 = vadd.f32 %v2241, %v2470
    %v2523 = vadd.f32 %v2242, %v2475
    %v2524 = vadd.f32 %v2243, %v2478
    %v2525 = vadd.f32 %v2244, %v2483
    %v2526 = vadd.f32 %v2245, %v2486
    %v2527 = vadd.f32 %v2246, %v2491
    %v2528 = vadd.f32 %v2247, %v2494
    %s2529 = scalar_lea.vmem %s2, 14
    %v2530 = vld [vmem:[%s2529] sm:$0x3]
    %vm2531 = vsmask.f32 4352
    %v2532 = vrot.slane %v503, 3
    %v2533 = vrot.slane %v505, 4
    %v2534 = vor.u32 %v2532, %v2533
    %v2535 = vrot.slane %v514, 3
    %v2536 = vrot.slane %v510, 4
    %v2537 = vor.u32 %v2535, %v2536
    %v2538 = vsel %vm2531, %v2534, %v2537
    %v2539 = vrot.slane %v522, 3
    %v2540 = vrot.slane %v518, 4
    %v2541 = vor.u32 %v2539, %v2540
    %v2542 = vsel %vm2531, %v2537, %v2541
    %v2543 = vrot.slane %v530, 3
    %v2544 = vrot.slane %v526, 4
    %v2545 = vor.u32 %v2543, %v2544
    %v2546 = vsel %vm2531, %v2541, %v2545
    %v2547 = vrot.slane %v538, 3
    %v2548 = vrot.slane %v534, 4
    %v2549 = vor.u32 %v2547, %v2548
    %v2550 = vsel %vm2531, %v2545, %v2549
    %v2551 = vrot.slane %v546, 3
    %v2552 = vrot.slane %v542, 4
    %v2553 = vor.u32 %v2551, %v2552
    %v2554 = vsel %vm2531, %v2549, %v2553
    %v2555 = vrot.slane %v554, 3
    %v2556 = vrot.slane %v550, 4
    %v2557 = vor.u32 %v2555, %v2556
    %v2558 = vsel %vm2531, %v2553, %v2557
    %v2559 = vrot.slane %v562, 3
    %v2560 = vrot.slane %v558, 4
    %v2561 = vor.u32 %v2559, %v2560
    %v2562 = vsel %vm2531, %v2557, %v2561
    %v2563 = vrot.slane %v1363, 3
    %v2564 = vrot.slane %v566, 4
    %v2565 = vor.u32 %v2563, %v2564
    %v2566 = vsel %vm2531, %v2561, %v2565
    %v2567 = vrot.slane %v571, 3
    %v2568 = vrot.slane %v573, 4
    %v2569 = vor.u32 %v2567, %v2568
    %v2570 = vrot.slane %v582, 3
    %v2571 = vrot.slane %v578, 4
    %v2572 = vor.u32 %v2570, %v2571
    %v2573 = vsel %vm2531, %v2569, %v2572
    %v2574 = vrot.slane %v590, 3
    %v2575 = vrot.slane %v586, 4
    %v2576 = vor.u32 %v2574, %v2575
    %v2577 = vsel %vm2531, %v2572, %v2576
    %v2578 = vrot.slane %v598, 3
    %v2579 = vrot.slane %v594, 4
    %v2580 = vor.u32 %v2578, %v2579
    %v2581 = vsel %vm2531, %v2576, %v2580
    %v2582 = vrot.slane %v606, 3
    %v2583 = vrot.slane %v602, 4
    %v2584 = vor.u32 %v2582, %v2583
    %v2585 = vsel %vm2531, %v2580, %v2584
    %v2586 = vrot.slane %v614, 3
    %v2587 = vrot.slane %v610, 4
    %v2588 = vor.u32 %v2586, %v2587
    %v2589 = vsel %vm2531, %v2584, %v2588
    %v2590 = vrot.slane %v622, 3
    %v2591 = vrot.slane %v618, 4
    %v2592 = vor.u32 %v2590, %v2591
    %v2593 = vsel %vm2531, %v2588, %v2592
    %v2594 = vrot.slane %v630, 3
    %v2595 = vrot.slane %v626, 4
    %v2596 = vor.u32 %v2594, %v2595
    %v2597 = vsel %vm2531, %v2592, %v2596
    %v2598 = vrot.slane %v1400, 3
    %v2599 = vrot.slane %v634, 4
    %v2600 = vor.u32 %v2598, %v2599
    %v2601 = vsel %vm2531, %v2596, %v2600
    %v2603 = vsel %vm638, %v2538, 0
    %v2606 = vsel %vm638, %v2542, 0
    %v2609 = vsel %vm638, %v2546, 0
    %v2612 = vsel %vm638, %v2550, 0
    %v2615 = vsel %vm638, %v2554, 0
    %v2618 = vsel %vm638, %v2558, 0
    %v2621 = vsel %vm638, %v2562, 0
    %v2624 = vsel %vm638, %v2566, 0
    %v2627 = vsel %vm638, %v2573, 0
    %v2630 = vsel %vm638, %v2577, 0
    %v2633 = vsel %vm638, %v2581, 0
    %v2636 = vsel %vm638, %v2585, 0
    %v2639 = vsel %vm638, %v2589, 0
    %v2642 = vsel %vm638, %v2593, 0
    %v2645 = vsel %vm638, %v2597, 0
    %v2648 = vsel %vm638, %v2601, 0
    %v2651 = vsel %vm687, %v2530, 0
    %2653 = vmatprep.subr.bf16.mxu0 0
    %2654 = vmatpush1.bf16.msra.mxu0 %v2651
    %2655 = vmatprep.subr.bf16.mxu0 0
    %2656 = vmatpush1.bf16.msra.mxu0 0
    %2657 = vmatprep.subr.bf16.mxu0 0
    %2658 = vmatpush1.bf16.msra.mxu0 0
    %2659 = vmatprep.subr.bf16.mxu0 0
    %2660 = vmatpush1.bf16.msra.mxu0 0
    %2661 = vmatprep.subr.bf16.mxu0 0
    %2662 = vmatpush1.bf16.msra.mxu0 0
    %2663 = vmatprep.subr.bf16.mxu0 0
    %2664 = vmatpush1.bf16.msra.mxu0 0
    %2665 = vmatprep.subr.bf16.mxu0 0
    %2666 = vmatpush1.bf16.msra.mxu0 0
    %2667 = vmatprep.subr.bf16.mxu0 0
    %2668 = vmatpush1.bf16.msra.mxu0 0
    %2669 = vmatprep.subr.bf16.mxu0 0
    %2670 = vmatpush1.bf16.msra.mxu0 0
    %2671 = vmatprep.subr.bf16.mxu0 0
    %2672 = vmatpush1.bf16.msra.mxu0 0
    %2673 = vmatprep.subr.bf16.mxu0 0
    %2674 = vmatpush1.bf16.msra.mxu0 0
    %2675 = vmatprep.subr.bf16.mxu0 0
    %2676 = vmatpush1.bf16.msra.mxu0 0
    %2677 = vmatprep.subr.bf16.mxu0 0
    %2678 = vmatpush1.bf16.msra.mxu0 0
    %2679 = vmatprep.subr.bf16.mxu0 0
    %2680 = vmatpush1.bf16.msra.mxu0 0
    %2681 = vmatprep.subr.bf16.mxu0 0
    %2682 = vmatpush1.bf16.msra.mxu0 0
    %2683 = vmatprep.subr.bf16.mxu0 0
    %2684 = vmatpush1.bf16.msra.mxu0 0
    %2685 = vmatprep.mubr.bf16.mxu0 0
    %2686 = vmatmul.mubr.bf16.gmra.mrb[0].mxu0 %v2603
    %v2687 = vpop.f32.mrb[0].mxu0
    %v2688 = vadd.f32 0.0, %v2687
    %v2689 = vpop.f32.mrb[0].mxu0
    %v2690 = vpop.f32.mrb[0].mxu0
    %v2691 = vadd.f32 0.0, %v2690
    %v2692 = vpop.f32.mrb[0].mxu0
    %2693 = vmatprep.mubr.bf16.mxu0 0
    %2694 = vmatmul.mubr.bf16.gmra.mrb[0].mxu0 %v2606
    %v2695 = vpop.f32.mrb[0].mxu0
    %v2696 = vadd.f32 0.0, %v2695
    %v2697 = vpop.f32.mrb[0].mxu0
    %v2698 = vpop.f32.mrb[0].mxu0
    %v2699 = vadd.f32 0.0, %v2698
    %v2700 = vpop.f32.mrb[0].mxu0
    %2701 = vmatprep.mubr.bf16.mxu0 0
    %2702 = vmatmul.mubr.bf16.gmra.mrb[0].mxu0 %v2609
    %v2703 = vpop.f32.mrb[0].mxu0
    %v2704 = vadd.f32 0.0, %v2703
    %v2705 = vpop.f32.mrb[0].mxu0
    %v2706 = vpop.f32.mrb[0].mxu0
    %v2707 = vadd.f32 0.0, %v2706
    %v2708 = vpop.f32.mrb[0].mxu0
    %2709 = vmatprep.mubr.bf16.mxu0 0
    %2710 = vmatmul.mubr.bf16.gmra.mrb[0].mxu0 %v2612
    %v2711 = vpop.f32.mrb[0].mxu0
    %v2712 = vadd.f32 0.0, %v2711
    %v2713 = vpop.f32.mrb[0].mxu0
    %v2714 = vpop.f32.mrb[0].mxu0
    %v2715 = vadd.f32 0.0, %v2714
    %v2716 = vpop.f32.mrb[0].mxu0
    %2717 = vmatprep.mubr.bf16.mxu0 0
    %2718 = vmatmul.mubr.bf16.gmra.mrb[0].mxu0 %v2615
    %v2719 = vpop.f32.mrb[0].mxu0
    %v2720 = vadd.f32 0.0, %v2719
    %v2721 = vpop.f32.mrb[0].mxu0
    %v2722 = vpop.f32.mrb[0].mxu0
    %v2723 = vadd.f32 0.0, %v2722
    %v2724 = vpop.f32.mrb[0].mxu0
    %2725 = vmatprep.mubr.bf16.mxu0 0
    %2726 = vmatmul.mubr.bf16.gmra.mrb[0].mxu0 %v2618
    %v2727 = vpop.f32.mrb[0].mxu0
    %v2728 = vadd.f32 0.0, %v2727
    %v2729 = vpop.f32.mrb[0].mxu0
    %v2730 = vpop.f32.mrb[0].mxu0
    %v2731 = vadd.f32 0.0, %v2730
    %v2732 = vpop.f32.mrb[0].mxu0
    %2733 = vmatprep.mubr.bf16.mxu0 0
    %2734 = vmatmul.mubr.bf16.gmra.mrb[0].mxu0 %v2621
    %v2735 = vpop.f32.mrb[0].mxu0
    %v2736 = vadd.f32 0.0, %v2735
    %v2737 = vpop.f32.mrb[0].mxu0
    %v2738 = vpop.f32.mrb[0].mxu0
    %v2739 = vadd.f32 0.0, %v2738
    %v2740 = vpop.f32.mrb[0].mxu0
    %2741 = vmatprep.mubr.bf16.mxu0 0
    %2742 = vmatmul.mubr.bf16.gmra.mrb[0].mxu0 %v2624
    %v2743 = vpop.f32.mrb[0].mxu0
    %v2744 = vadd.f32 0.0, %v2743
    %v2745 = vpop.f32.mrb[0].mxu0
    %v2746 = vpop.f32.mrb[0].mxu0
    %v2747 = vadd.f32 0.0, %v2746
    %v2748 = vpop.f32.mrb[0].mxu0
    %2749 = vmatprep.mubr.bf16.mxu0 0
    %2750 = vmatmul.mubr.bf16.gmra.mrb[0].mxu0 %v2627
    %v2751 = vpop.f32.mrb[0].mxu0
    %v2752 = vadd.f32 0.0, %v2751
    %v2753 = vpop.f32.mrb[0].mxu0
    %v2754 = vpop.f32.mrb[0].mxu0
    %v2755 = vadd.f32 0.0, %v2754
    %v2756 = vpop.f32.mrb[0].mxu0
    %2757 = vmatprep.mubr.bf16.mxu0 0
    %2758 = vmatmul.mubr.bf16.gmra.mrb[0].mxu0 %v2630
    %v2759 = vpop.f32.mrb[0].mxu0
    %v2760 = vadd.f32 0.0, %v2759
    %v2761 = vpop.f32.mrb[0].mxu0
    %v2762 = vpop.f32.mrb[0].mxu0
    %v2763 = vadd.f32 0.0, %v2762
    %v2764 = vpop.f32.mrb[0].mxu0
    %2765 = vmatprep.mubr.bf16.mxu0 0
    %2766 = vmatmul.mubr.bf16.gmra.mrb[0].mxu0 %v2633
    %v2767 = vpop.f32.mrb[0].mxu0
    %v2768 = vadd.f32 0.0, %v2767
    %v2769 = vpop.f32.mrb[0].mxu0
    %v2770 = vpop.f32.mrb[0].mxu0
    %v2771 = vadd.f32 0.0, %v2770
    %v2772 = vpop.f32.mrb[0].mxu0
    %2773 = vmatprep.mubr.bf16.mxu0 0
    %2774 = vmatmul.mubr.bf16.gmra.mrb[0].mxu0 %v2636
    %v2775 = vpop.f32.mrb[0].mxu0
    %v2776 = vadd.f32 0.0, %v2775
    %v2777 = vpop.f32.mrb[0].mxu0
    %v2778 = vpop.f32.mrb[0].mxu0
    %v2779 = vadd.f32 0.0, %v2778
    %v2780 = vpop.f32.mrb[0].mxu0
    %2781 = vmatprep.mubr.bf16.mxu0 0
    %2782 = vmatmul.mubr.bf16.gmra.mrb[0].mxu0 %v2639
    %v2783 = vpop.f32.mrb[0].mxu0
    %v2784 = vadd.f32 0.0, %v2783
    %v2785 = vpop.f32.mrb[0].mxu0
    %v2786 = vpop.f32.mrb[0].mxu0
    %v2787 = vadd.f32 0.0, %v2786
    %v2788 = vpop.f32.mrb[0].mxu0
    %2789 = vmatprep.mubr.bf16.mxu0 0
    %2790 = vmatmul.mubr.bf16.gmra.mrb[0].mxu0 %v2642
    %v2791 = vpop.f32.mrb[0].mxu0
    %v2792 = vadd.f32 0.0, %v2791
    %v2793 = vpop.f32.mrb[0].mxu0
    %v2794 = vpop.f32.mrb[0].mxu0
    %v2795 = vadd.f32 0.0, %v2794
    %v2796 = vpop.f32.mrb[0].mxu0
    %2797 = vmatprep.mubr.bf16.mxu0 0
    %2798 = vmatmul.mubr.bf16.gmra.mrb[0].mxu0 %v2645
    %v2799 = vpop.f32.mrb[0].mxu0
    %v2800 = vadd.f32 0.0, %v2799
    %v2801 = vpop.f32.mrb[0].mxu0
    %v2802 = vpop.f32.mrb[0].mxu0
    %v2803 = vadd.f32 0.0, %v2802
    %v2804 = vpop.f32.mrb[0].mxu0
    %2805 = vmatprep.mubr.bf16.mxu0 0
    %2806 = vmatmul.mubr.bf16.gmra.mrb[0].mxu0 %v2648
    %v2807 = vpop.f32.mrb[0].mxu0
    %v2808 = vadd.f32 0.0, %v2807
    %v2809 = vpop.f32.mrb[0].mxu0
    %v2810 = vpop.f32.mrb[0].mxu0
    %v2811 = vadd.f32 0.0, %v2810
    %v2812 = vpop.f32.mrb[0].mxu0
    %2813 = vdwg.mxu0
    %v2814 = vadd.f32 %v2497, %v2688
    %v2815 = vadd.f32 %v2498, %v2691
    %v2816 = vadd.f32 %v2499, %v2696
    %v2817 = vadd.f32 %v2500, %v2699
    %v2818 = vadd.f32 %v2501, %v2704
    %v2819 = vadd.f32 %v2502, %v2707
    %v2820 = vadd.f32 %v2503, %v2712
    %v2821 = vadd.f32 %v2504, %v2715
    %v2822 = vadd.f32 %v2505, %v2720
    %v2823 = vadd.f32 %v2506, %v2723
    %v2824 = vadd.f32 %v2507, %v2728
    %v2825 = vadd.f32 %v2508, %v2731
    %v2826 = vadd.f32 %v2509, %v2736
    %v2827 = vadd.f32 %v2510, %v2739
    %v2828 = vadd.f32 %v2511, %v2744
    %v2829 = vadd.f32 %v2512, %v2747
    %v2830 = vadd.f32 %v2513, %v2752
    %v2831 = vadd.f32 %v2514, %v2755
    %v2832 = vadd.f32 %v2515, %v2760
    %v2833 = vadd.f32 %v2516, %v2763
    %v2834 = vadd.f32 %v2517, %v2768
    %v2835 = vadd.f32 %v2518, %v2771
    %v2836 = vadd.f32 %v2519, %v2776
    %v2837 = vadd.f32 %v2520, %v2779
    %v2838 = vadd.f32 %v2521, %v2784
    %v2839 = vadd.f32 %v2522, %v2787
    %v2840 = vadd.f32 %v2523, %v2792
    %v2841 = vadd.f32 %v2524, %v2795
    %v2842 = vadd.f32 %v2525, %v2800
    %v2843 = vadd.f32 %v2526, %v2803
    %v2844 = vadd.f32 %v2527, %v2808
    %v2845 = vadd.f32 %v2528, %v2811
    %s2846 = sadd.s32 0, 0
    %p2847 = scmp.ne.s32.totalorder %s2846, 0
    // Predicated region
    $region121: #{_lambda_.4} parent=1 // pred_check
      %p2848 = pneg %p2847
    $region122: #{_lambda_.4} parent=1 // pred_check_branch
      %2850 = sbr.rel (%p2848) target = $region124
    $region123: #{_lambda_.4} parent=1 // pred_region
      %v2851 = vld [vmem:[%s3] sm:$0xff]
      %vm2852 = vcmask 130048
      %v2853 = vsel %vm2852, %v2814, 0.0
      %v2854 = vsel %vm2852, %v2815, 0.0
      %v2855 = vadd.f32 %v2853, %v2854
      %v2856 = vsel %vm2852, %v2816, 0.0
      %v2857 = vadd.f32 %v2855, %v2856
      %v2858 = vsel %vm2852, %v2817, 0.0
      %v2859 = vadd.f32 %v2857, %v2858
      %v2860 = vsel %vm2852, %v2818, 0.0
      %v2861 = vadd.f32 %v2859, %v2860
      %v2862 = vsel %vm2852, %v2819, 0.0
      %v2863 = vadd.f32 %v2861, %v2862
      %v2864 = vsel %vm2852, %v2820, 0.0
      %v2865 = vadd.f32 %v2863, %v2864
      %v2866 = vsel %vm2852, %v2821, 0.0
      %v2867 = vadd.f32 %v2865, %v2866
      %v2868 = vsel %vm2852, %v2822, 0.0
      %v2869 = vadd.f32 %v2867, %v2868
      %v2870 = vsel %vm2852, %v2823, 0.0
      %v2871 = vadd.f32 %v2869, %v2870
      %v2872 = vsel %vm2852, %v2824, 0.0
      %v2873 = vadd.f32 %v2871, %v2872
      %v2874 = vsel %vm2852, %v2825, 0.0
      %v2875 = vadd.f32 %v2873, %v2874
      %v2876 = vsel %vm2852, %v2826, 0.0
      %v2877 = vadd.f32 %v2875, %v2876
      %v2878 = vsel %vm2852, %v2827, 0.0
      %v2879 = vadd.f32 %v2877, %v2878
      %v2880 = vsel %vm2852, %v2828, 0.0
      %v2881 = vadd.f32 %v2879, %v2880
      %v2882 = vsel %vm2852, %v2829, 0.0
      %v2883 = vadd.f32 %v2881, %v2882
      %v2884 = vsel %vm2852, %v2830, 0.0
      %v2885 = vadd.f32 %v2883, %v2884
      %v2886 = vsel %vm2852, %v2831, 0.0
      %v2887 = vadd.f32 %v2885, %v2886
      %v2888 = vsel %vm2852, %v2832, 0.0
      %v2889 = vadd.f32 %v2887, %v2888
      %v2890 = vsel %vm2852, %v2833, 0.0
      %v2891 = vadd.f32 %v2889, %v2890
      %v2892 = vsel %vm2852, %v2834, 0.0
      %v2893 = vadd.f32 %v2891, %v2892
      %v2894 = vsel %vm2852, %v2835, 0.0
      %v2895 = vadd.f32 %v2893, %v2894
      %v2896 = vsel %vm2852, %v2836, 0.0
      %v2897 = vadd.f32 %v2895, %v2896
      %v2898 = vsel %vm2852, %v2837, 0.0
      %v2899 = vadd.f32 %v2897, %v2898
      %v2900 = vsel %vm2852, %v2838, 0.0
      %v2901 = vadd.f32 %v2899, %v2900
      %v2902 = vsel %vm2852, %v2839, 0.0
      %v2903 = vadd.f32 %v2901, %v2902
      %v2904 = vsel %vm2852, %v2840, 0.0
      %v2905 = vadd.f32 %v2903, %v2904
      %v2906 = vsel %vm2852, %v2841, 0.0
      %v2907 = vadd.f32 %v2905, %v2906
      %v2908 = vsel %vm2852, %v2842, 0.0
      %v2909 = vadd.f32 %v2907, %v2908
      %v2910 = vsel %vm2852, %v2843, 0.0
      %v2911 = vadd.f32 %v2909, %v2910
      %v2912 = vsel %vm2852, %v2844, 0.0
      %v2913 = vadd.f32 %v2911, %v2912
      %v2914 = vsel %vm2852, %v2845, 0.0
      %v2915 = vadd.f32 %v2913, %v2914
      %v2916 = vrot.slane %v2915, 4
      %v2917 = vadd.f32 %v2915, %v2916
      %v2918 = vrot.slane %v2917, 2
      %v2919 = vadd.f32 %v2917, %v2918
      %v2920 = vrot.slane %v2919, 1
      %v2921 = vadd.f32 %v2919, %v2920
      %v2922 = vadd.f32 %v2851, %v2921
      %2923 = vst.msk [vmem:[%s3] sm:$0xff] %vm2852, %v2922
      %v2924 = vld [vmem:[%s4] sm:$0xff]
      %v2925 = vmul.f32 %v2814, %v2814
      %v2926 = vmul.f32 %v2815, %v2815
      %v2927 = vmul.f32 %v2816, %v2816
      %v2928 = vmul.f32 %v2817, %v2817
      %v2929 = vmul.f32 %v2818, %v2818
      %v2930 = vmul.f32 %v2819, %v2819
      %v2931 = vmul.f32 %v2820, %v2820
      %v2932 = vmul.f32 %v2821, %v2821
      %v2933 = vmul.f32 %v2822, %v2822
      %v2934 = vmul.f32 %v2823, %v2823
      %v2935 = vmul.f32 %v2824, %v2824
      %v2936 = vmul.f32 %v2825, %v2825
      %v2937 = vmul.f32 %v2826, %v2826
      %v2938 = vmul.f32 %v2827, %v2827
      %v2939 = vmul.f32 %v2828, %v2828
      %v2940 = vmul.f32 %v2829, %v2829
      %v2941 = vmul.f32 %v2830, %v2830
      %v2942 = vmul.f32 %v2831, %v2831
      %v2943 = vmul.f32 %v2832, %v2832
      %v2944 = vmul.f32 %v2833, %v2833
      %v2945 = vmul.f32 %v2834, %v2834
      %v2946 = vmul.f32 %v2835, %v2835
      %v2947 = vmul.f32 %v2836, %v2836
      %v2948 = vmul.f32 %v2837, %v2837
      %v2949 = vmul.f32 %v2838, %v2838
      %v2950 = vmul.f32 %v2839, %v2839
      %v2951 = vmul.f32 %v2840, %v2840
      %v2952 = vmul.f32 %v2841, %v2841
      %v2953 = vmul.f32 %v2842, %v2842
      %v2954 = vmul.f32 %v2843, %v2843
      %v2955 = vmul.f32 %v2844, %v2844
      %v2956 = vmul.f32 %v2845, %v2845
      %v2957 = vsel %vm2852, %v2925, 0.0
      %v2958 = vsel %vm2852, %v2926, 0.0
      %v2959 = vadd.f32 %v2957, %v2958
      %v2960 = vsel %vm2852, %v2927, 0.0
      %v2961 = vadd.f32 %v2959, %v2960
      %v2962 = vsel %vm2852, %v2928, 0.0
      %v2963 = vadd.f32 %v2961, %v2962
      %v2964 = vsel %vm2852, %v2929, 0.0
      %v2965 = vadd.f32 %v2963, %v2964
      %v2966 = vsel %vm2852, %v2930, 0.0
      %v2967 = vadd.f32 %v2965, %v2966
      %v2968 = vsel %vm2852, %v2931, 0.0
      %v2969 = vadd.f32 %v2967, %v2968
      %v2970 = vsel %vm2852, %v2932, 0.0
      %v2971 = vadd.f32 %v2969, %v2970
      %v2972 = vsel %vm2852, %v2933, 0.0
      %v2973 = vadd.f32 %v2971, %v2972
      %v2974 = vsel %vm2852, %v2934, 0.0
      %v2975 = vadd.f32 %v2973, %v2974
      %v2976 = vsel %vm2852, %v2935, 0.0
      %v2977 = vadd.f32 %v2975, %v2976
      %v2978 = vsel %vm2852, %v2936, 0.0
      %v2979 = vadd.f32 %v2977, %v2978
      %v2980 = vsel %vm2852, %v2937, 0.0
      %v2981 = vadd.f32 %v2979, %v2980
      %v2982 = vsel %vm2852, %v2938, 0.0
      %v2983 = vadd.f32 %v2981, %v2982
      %v2984 = vsel %vm2852, %v2939, 0.0
      %v2985 = vadd.f32 %v2983, %v2984
      %v2986 = vsel %vm2852, %v2940, 0.0
      %v2987 = vadd.f32 %v2985, %v2986
      %v2988 = vsel %vm2852, %v2941, 0.0
      %v2989 = vadd.f32 %v2987, %v2988
      %v2990 = vsel %vm2852, %v2942, 0.0
      %v2991 = vadd.f32 %v2989, %v2990
      %v2992 = vsel %vm2852, %v2943, 0.0
      %v2993 = vadd.f32 %v2991, %v2992
      %v2994 = vsel %vm2852, %v2944, 0.0
      %v2995 = vadd.f32 %v2993, %v2994
      %v2996 = vsel %vm2852, %v2945, 0.0
      %v2997 = vadd.f32 %v2995, %v2996
      %v2998 = vsel %vm2852, %v2946, 0.0
      %v2999 = vadd.f32 %v2997, %v2998
      %v3000 = vsel %vm2852, %v2947, 0.0
      %v3001 = vadd.f32 %v2999, %v3000
      %v3002 = vsel %vm2852, %v2948, 0.0
      %v3003 = vadd.f32 %v3001, %v3002
      %v3004 = vsel %vm2852, %v2949, 0.0
      %v3005 = vadd.f32 %v3003, %v3004
      %v3006 = vsel %vm2852, %v2950, 0.0
      %v3007 = vadd.f32 %v3005, %v3006
      %v3008 = vsel %vm2852, %v2951, 0.0
      %v3009 = vadd.f32 %v3007, %v3008
      %v3010 = vsel %vm2852, %v2952, 0.0
      %v3011 = vadd.f32 %v3009, %v3010
      %v3012 = vsel %vm2852, %v2953, 0.0
      %v3013 = vadd.f32 %v3011, %v3012
      %v3014 = vsel %vm2852, %v2954, 0.0
      %v3015 = vadd.f32 %v3013, %v3014
      %v3016 = vsel %vm2852, %v2955, 0.0
      %v3017 = vadd.f32 %v3015, %v3016
      %v3018 = vsel %vm2852, %v2956, 0.0
      %v3019 = vadd.f32 %v3017, %v3018
      %v3020 = vrot.slane %v3019, 4
      %v3021 = vadd.f32 %v3019, %v3020
      %v3022 = vrot.slane %v3021, 2
      %v3023 = vadd.f32 %v3021, %v3022
      %v3024 = vrot.slane %v3023, 1
      %v3025 = vadd.f32 %v3023, %v3024
      %v3026 = vadd.f32 %v2924, %v3025
      %3027 = vst.msk [vmem:[%s4] sm:$0xff] %vm2852, %v3026
    $region124: #{_lambda_.4} parent=1 // pred_fallthru
      _
    %p3028 = scmp.eq.s32.totalorder %s2846, 0
    // Predicated region
    $region125: #{_lambda_.4} parent=1 // pred_check
      %p3029 = pneg %p3028
    $region126: #{_lambda_.4} parent=1 // pred_check_branch
      %3031 = sbr.rel (%p3029) target = $region128
    $region127: #{_lambda_.4} parent=1 // pred_region
      %v3032 = vlaneseq
      %v3033 = vshrl.u32 %v3032, 7
      %v3034 = vadd.s32 %v3033, 8
      %v3035 = vadd.s32 %v3033, 16
      %v3036 = vadd.s32 %v3033, 24
      %v3037 = vadd.s32 %v3033, 32
      %v3038 = vadd.s32 %v3033, 40
      %v3039 = vadd.s32 %v3033, 48
      %v3040 = vadd.s32 %v3033, 56
      %v3041 = vadd.s32 %v3033, 64
      %v3042 = vadd.s32 %v3033, 72
      %v3043 = vadd.s32 %v3033, 80
      %v3044 = vadd.s32 %v3033, 88
      %v3045 = vadd.s32 %v3033, 96
      %v3046 = vadd.s32 %v3033, 104
      %v3047 = vadd.s32 %v3033, 112
      %v3048 = vadd.s32 %v3033, 120
      %s3049 = smul.u32 %s2846, 128
      %v3050 = vstv %s3049
      %v3051 = vadd.s32 %v3033, %v3050
      %v3052 = vadd.s32 %v3034, %v3050
      %v3053 = vadd.s32 %v3035, %v3050
      %v3054 = vadd.s32 %v3036, %v3050
      %v3055 = vadd.s32 %v3037, %v3050
      %v3056 = vadd.s32 %v3038, %v3050
      %v3057 = vadd.s32 %v3039, %v3050
      %v3058 = vadd.s32 %v3040, %v3050
      %v3059 = vadd.s32 %v3041, %v3050
      %v3060 = vadd.s32 %v3042, %v3050
      %v3061 = vadd.s32 %v3043, %v3050
      %v3062 = vadd.s32 %v3044, %v3050
      %v3063 = vadd.s32 %v3045, %v3050
      %v3064 = vadd.s32 %v3046, %v3050
      %v3065 = vadd.s32 %v3047, %v3050
      %v3066 = vadd.s32 %v3048, %v3050
      %vm3067 = vcmp.lt.s32.totalorder %v3051, 16
      %vm3068 = vcmp.lt.s32.totalorder %v3052, 16
      %vm3069 = vcmp.lt.s32.totalorder %v3053, 16
      %vm3070 = vcmp.lt.s32.totalorder %v3054, 16
      %vm3071 = vcmp.lt.s32.totalorder %v3055, 16
      %vm3072 = vcmp.lt.s32.totalorder %v3056, 16
      %vm3073 = vcmp.lt.s32.totalorder %v3057, 16
      %vm3074 = vcmp.lt.s32.totalorder %v3058, 16
      %vm3075 = vcmp.lt.s32.totalorder %v3059, 16
      %vm3076 = vcmp.lt.s32.totalorder %v3060, 16
      %vm3077 = vcmp.lt.s32.totalorder %v3061, 16
      %vm3078 = vcmp.lt.s32.totalorder %v3062, 16
      %vm3079 = vcmp.lt.s32.totalorder %v3063, 16
      %vm3080 = vcmp.lt.s32.totalorder %v3064, 16
      %vm3081 = vcmp.lt.s32.totalorder %v3065, 16
      %vm3082 = vcmp.lt.s32.totalorder %v3066, 16
      %v3083 = vsel %vm3067, %v2814, 0.0
      %v3084 = vsel %vm3068, %v2815, 0.0
      %v3085 = vsel %vm3069, %v2816, 0.0
      %v3086 = vsel %vm3070, %v2817, 0.0
      %v3087 = vsel %vm3071, %v2818, 0.0
      %v3088 = vsel %vm3072, %v2819, 0.0
      %v3089 = vsel %vm3073, %v2820, 0.0
      %v3090 = vsel %vm3074, %v2821, 0.0
      %v3091 = vsel %vm3075, %v2822, 0.0
      %v3092 = vsel %vm3076, %v2823, 0.0
      %v3093 = vsel %vm3077, %v2824, 0.0
      %v3094 = vsel %vm3078, %v2825, 0.0
      %v3095 = vsel %vm3079, %v2826, 0.0
      %v3096 = vsel %vm3080, %v2827, 0.0
      %v3097 = vsel %vm3081, %v2828, 0.0
      %v3098 = vsel %vm3082, %v2829, 0.0
      %v3099 = vsel %vm3067, %v2830, 0.0
      %v3100 = vsel %vm3068, %v2831, 0.0
      %v3101 = vsel %vm3069, %v2832, 0.0
      %v3102 = vsel %vm3070, %v2833, 0.0
      %v3103 = vsel %vm3071, %v2834, 0.0
      %v3104 = vsel %vm3072, %v2835, 0.0
      %v3105 = vsel %vm3073, %v2836, 0.0
      %v3106 = vsel %vm3074, %v2837, 0.0
      %v3107 = vsel %vm3075, %v2838, 0.0
      %v3108 = vsel %vm3076, %v2839, 0.0
      %v3109 = vsel %vm3077, %v2840, 0.0
      %v3110 = vsel %vm3078, %v2841, 0.0
      %v3111 = vsel %vm3079, %v2842, 0.0
      %v3112 = vsel %vm3080, %v2843, 0.0
      %v3113 = vsel %vm3081, %v2844, 0.0
      %v3114 = vsel %vm3082, %v2845, 0.0
      %v3115 = vld [vmem:[%s3] sm:$0xff]
      %vm3116 = vcmask 130048
      %v3117 = vsel %vm3116, %v3083, 0.0
      %v3118 = vsel %vm3116, %v3084, 0.0
      %v3119 = vadd.f32 %v3117, %v3118
      %v3120 = vsel %vm3116, %v3085, 0.0
      %v3121 = vadd.f32 %v3119, %v3120
      %v3122 = vsel %vm3116, %v3086, 0.0
      %v3123 = vadd.f32 %v3121, %v3122
      %v3124 = vsel %vm3116, %v3087, 0.0
      %v3125 = vadd.f32 %v3123, %v3124
      %v3126 = vsel %vm3116, %v3088, 0.0
      %v3127 = vadd.f32 %v3125, %v3126
      %v3128 = vsel %vm3116, %v3089, 0.0
      %v3129 = vadd.f32 %v3127, %v3128
      %v3130 = vsel %vm3116, %v3090, 0.0
      %v3131 = vadd.f32 %v3129, %v3130
      %v3132 = vsel %vm3116, %v3091, 0.0
      %v3133 = vadd.f32 %v3131, %v3132
      %v3134 = vsel %vm3116, %v3092, 0.0
      %v3135 = vadd.f32 %v3133, %v3134
      %v3136 = vsel %vm3116, %v3093, 0.0
      %v3137 = vadd.f32 %v3135, %v3136
      %v3138 = vsel %vm3116, %v3094, 0.0
      %v3139 = vadd.f32 %v3137, %v3138
      %v3140 = vsel %vm3116, %v3095, 0.0
      %v3141 = vadd.f32 %v3139, %v3140
      %v3142 = vsel %vm3116, %v3096, 0.0
      %v3143 = vadd.f32 %v3141, %v3142
      %v3144 = vsel %vm3116, %v3097, 0.0
      %v3145 = vadd.f32 %v3143, %v3144
      %v3146 = vsel %vm3116, %v3098, 0.0
      %v3147 = vadd.f32 %v3145, %v3146
      %v3148 = vsel %vm3116, %v3099, 0.0
      %v3149 = vadd.f32 %v3147, %v3148
      %v3150 = vsel %vm3116, %v3100, 0.0
      %v3151 = vadd.f32 %v3149, %v3150
      %v3152 = vsel %vm3116, %v3101, 0.0
      %v3153 = vadd.f32 %v3151, %v3152
      %v3154 = vsel %vm3116, %v3102, 0.0
      %v3155 = vadd.f32 %v3153, %v3154
      %v3156 = vsel %vm3116, %v3103, 0.0
      %v3157 = vadd.f32 %v3155, %v3156
      %v3158 = vsel %vm3116, %v3104, 0.0
      %v3159 = vadd.f32 %v3157, %v3158
      %v3160 = vsel %vm3116, %v3105, 0.0
      %v3161 = vadd.f32 %v3159, %v3160
      %v3162 = vsel %vm3116, %v3106, 0.0
      %v3163 = vadd.f32 %v3161, %v3162
      %v3164 = vsel %vm3116, %v3107, 0.0
      %v3165 = vadd.f32 %v3163, %v3164
      %v3166 = vsel %vm3116, %v3108, 0.0
      %v3167 = vadd.f32 %v3165, %v3166
      %v3168 = vsel %vm3116, %v3109, 0.0
      %v3169 = vadd.f32 %v3167, %v3168
      %v3170 = vsel %vm3116, %v3110, 0.0
      %v3171 = vadd.f32 %v3169, %v3170
      %v3172 = vsel %vm3116, %v3111, 0.0
      %v3173 = vadd.f32 %v3171, %v3172
      %v3174 = vsel %vm3116, %v3112, 0.0
      %v3175 = vadd.f32 %v3173, %v3174
      %v3176 = vsel %vm3116, %v3113, 0.0
      %v3177 = vadd.f32 %v3175, %v3176
      %v3178 = vsel %vm3116, %v3114, 0.0
      %v3179 = vadd.f32 %v3177, %v3178
      %v3180 = vrot.slane %v3179, 4
      %v3181 = vadd.f32 %v3179, %v3180
      %v3182 = vrot.slane %v3181, 2
      %v3183 = vadd.f32 %v3181, %v3182
      %v3184 = vrot.slane %v3183, 1
      %v3185 = vadd.f32 %v3183, %v3184
      %v3186 = vadd.f32 %v3115, %v3185
      %3187 = vst.msk [vmem:[%s3] sm:$0xff] %vm3116, %v3186
      %v3188 = vld [vmem:[%s4] sm:$0xff]
      %v3189 = vmul.f32 %v3083, %v3083
      %v3190 = vmul.f32 %v3084, %v3084
      %v3191 = vmul.f32 %v3085, %v3085
      %v3192 = vmul.f32 %v3086, %v3086
      %v3193 = vmul.f32 %v3087, %v3087
      %v3194 = vmul.f32 %v3088, %v3088
      %v3195 = vmul.f32 %v3089, %v3089
      %v3196 = vmul.f32 %v3090, %v3090
      %v3197 = vmul.f32 %v3091, %v3091
      %v3198 = vmul.f32 %v3092, %v3092
      %v3199 = vmul.f32 %v3093, %v3093
      %v3200 = vmul.f32 %v3094, %v3094
      %v3201 = vmul.f32 %v3095, %v3095
      %v3202 = vmul.f32 %v3096, %v3096
      %v3203 = vmul.f32 %v3097, %v3097
      %v3204 = vmul.f32 %v3098, %v3098
      %v3205 = vmul.f32 %v3099, %v3099
      %v3206 = vmul.f32 %v3100, %v3100
      %v3207 = vmul.f32 %v3101, %v3101
      %v3208 = vmul.f32 %v3102, %v3102
      %v3209 = vmul.f32 %v3103, %v3103
      %v3210 = vmul.f32 %v3104, %v3104
      %v3211 = vmul.f32 %v3105, %v3105
      %v3212 = vmul.f32 %v3106, %v3106
      %v3213 = vmul.f32 %v3107, %v3107
      %v3214 = vmul.f32 %v3108, %v3108
      %v3215 = vmul.f32 %v3109, %v3109
      %v3216 = vmul.f32 %v3110, %v3110
      %v3217 = vmul.f32 %v3111, %v3111
      %v3218 = vmul.f32 %v3112, %v3112
      %v3219 = vmul.f32 %v3113, %v3113
      %v3220 = vmul.f32 %v3114, %v3114
      %v3221 = vsel %vm3116, %v3189, 0.0
      %v3222 = vsel %vm3116, %v3190, 0.0
      %v3223 = vadd.f32 %v3221, %v3222
      %v3224 = vsel %vm3116, %v3191, 0.0
      %v3225 = vadd.f32 %v3223, %v3224
      %v3226 = vsel %vm3116, %v3192, 0.0
      %v3227 = vadd.f32 %v3225, %v3226
      %v3228 = vsel %vm3116, %v3193, 0.0
      %v3229 = vadd.f32 %v3227, %v3228
      %v3230 = vsel %vm3116, %v3194, 0.0
      %v3231 = vadd.f32 %v3229, %v3230
      %v3232 = vsel %vm3116, %v3195, 0.0
      %v3233 = vadd.f32 %v3231, %v3232
      %v3234 = vsel %vm3116, %v3196, 0.0
      %v3235 = vadd.f32 %v3233, %v3234
      %v3236 = vsel %vm3116, %v3197, 0.0
      %v3237 = vadd.f32 %v3235, %v3236
      %v3238 = vsel %vm3116, %v3198, 0.0
      %v3239 = vadd.f32 %v3237, %v3238
      %v3240 = vsel %vm3116, %v3199, 0.0
      %v3241 = vadd.f32 %v3239, %v3240
      %v3242 = vsel %vm3116, %v3200, 0.0
      %v3243 = vadd.f32 %v3241, %v3242
      %v3244 = vsel %vm3116, %v3201, 0.0
      %v3245 = vadd.f32 %v3243, %v3244
      %v3246 = vsel %vm3116, %v3202, 0.0
      %v3247 = vadd.f32 %v3245, %v3246
      %v3248 = vsel %vm3116, %v3203, 0.0
      %v3249 = vadd.f32 %v3247, %v3248
      %v3250 = vsel %vm3116, %v3204, 0.0
      %v3251 = vadd.f32 %v3249, %v3250
      %v3252 = vsel %vm3116, %v3205, 0.0
      %v3253 = vadd.f32 %v3251, %v3252
      %v3254 = vsel %vm3116, %v3206, 0.0
      %v3255 = vadd.f32 %v3253, %v3254
      %v3256 = vsel %vm3116, %v3207, 0.0
      %v3257 = vadd.f32 %v3255, %v3256
      %v3258 = vsel %vm3116, %v3208, 0.0
      %v3259 = vadd.f32 %v3257, %v3258
      %v3260 = vsel %vm3116, %v3209, 0.0
      %v3261 = vadd.f32 %v3259, %v3260
      %v3262 = vsel %vm3116, %v3210, 0.0
      %v3263 = vadd.f32 %v3261, %v3262
      %v3264 = vsel %vm3116, %v3211, 0.0
      %v3265 = vadd.f32 %v3263, %v3264
      %v3266 = vsel %vm3116, %v3212, 0.0
      %v3267 = vadd.f32 %v3265, %v3266
      %v3268 = vsel %vm3116, %v3213, 0.0
      %v3269 = vadd.f32 %v3267, %v3268
      %v3270 = vsel %vm3116, %v3214, 0.0
      %v3271 = vadd.f32 %v3269, %v3270
      %v3272 = vsel %vm3116, %v3215, 0.0
      %v3273 = vadd.f32 %v3271, %v3272
      %v3274 = vsel %vm3116, %v3216, 0.0
      %v3275 = vadd.f32 %v3273, %v3274
      %v3276 = vsel %vm3116, %v3217, 0.0
      %v3277 = vadd.f32 %v3275, %v3276
      %v3278 = vsel %vm3116, %v3218, 0.0
      %v3279 = vadd.f32 %v3277, %v3278
      %v3280 = vsel %vm3116, %v3219, 0.0
      %v3281 = vadd.f32 %v3279, %v3280
      %v3282 = vsel %vm3116, %v3220, 0.0
      %v3283 = vadd.f32 %v3281, %v3282
      %v3284 = vrot.slane %v3283, 4
      %v3285 = vadd.f32 %v3283, %v3284
      %v3286 = vrot.slane %v3285, 2
      %v3287 = vadd.f32 %v3285, %v3286
      %v3288 = vrot.slane %v3287, 1
      %v3289 = vadd.f32 %v3287, %v3288
      %v3290 = vadd.f32 %v3188, %v3289
      %3291 = vst.msk [vmem:[%s4] sm:$0xff] %vm3116, %v3290
    $region128: #{_lambda_.4} parent=1 // pred_fallthru
      _
    // Predicated region
    $region129: #{_lambda_.4} parent=1 // pred_check
      _
    $region130: #{_lambda_.4} parent=1 // pred_check_branch
      %3293 = sbr.rel (0) target = $region132
    $region131: #{_lambda_.4} parent=1 // pred_region
      _
    $region132: #{_lambda_.4} parent=1 // pred_fallthru
      _
    // Predicated region
    $region133: #{_lambda_.4} parent=1 // pred_check
      _
    $region134: #{_lambda_.4} parent=1 // pred_check_branch
      %3295 = sbr.rel (0) target = $region136
    $region135: #{_lambda_.4} parent=1 // pred_region
      _
    $region136: #{_lambda_.4} parent=1 // pred_fallthru
      _
    // Predicated region
    $region137: #{_lambda_.4} parent=1 // pred_check
      _
    $region138: #{_lambda_.4} parent=1 // pred_check_branch
      %3297 = sbr.rel (0) target = $region140
    $region139: #{_lambda_.4} parent=1 // pred_region
      _
    $region140: #{_lambda_.4} parent=1 // pred_fallthru
      _
    // Predicated region
    $region141: #{_lambda_.4} parent=1 // pred_check
      _
    $region142: #{_lambda_.4} parent=1 // pred_check_branch
      %3299 = sbr.rel (0) target = $region144
    $region143: #{_lambda_.4} parent=1 // pred_region
      _
    $region144: #{_lambda_.4} parent=1 // pred_fallthru
      _

</llo_original>
